<compile_context>
chip_gen: v5e
topology: v5e:2x2
jax: 0.10.0
libtpu: 0.0.40
codegen_flags: <defaults>
</compile_context>

<pallas_src>
import numpy as np
import jax
import jax.numpy as jnp
from jax.experimental import pallas as pl
from jax.experimental.pallas import tpu as pltpu

HIDDEN = 128              # hidden_size
EMB = 128                 # emb_size
HALF = EMB // 2           # 64
NBLOCKS = 3               # hidden_layers
CONCAT = 3 * EMB          # 384 (x_emb, y_emb, t_emb)
DATA = 2                  # twoD_data -> output size 2
DATA_PAD = 128            # lane-dense padded output width
LN_EPS = 1e-5
_INV_SQRT2 = 0.7071067811865476


# ----------------------------- in-kernel math -----------------------------
def _gelu_exact(x):
    # nn.GELU() default = exact (erf-based) GELU
    return 0.5 * x * (1.0 + jax.lax.erf(x * _INV_SQRT2))


def _layernorm(x, g, b):
    # single-pass stats: the two reductions are independent -> can overlap on
    # the XLUs instead of serializing mean -> centered-variance.
    inv_n = 1.0 / x.shape[-1]
    s1 = jnp.sum(x, axis=-1, keepdims=True)
    s2 = jnp.sum(x * x, axis=-1, keepdims=True)
    mu = s1 * inv_n
    var = s2 * inv_n - mu * mu
    return (x - mu) * jax.lax.rsqrt(var + LN_EPS) * g + b


# ------------------------------- Pallas kernel ----------------------------
def mlp_kernel(x0_ref, x1_ref, t_ref, freq_ref, w0s_ref, b0_ref,
               blk_lng_ref, blk_lnb_ref, blk_w_ref, blk_b_ref,
               lnf_g_ref, lnf_b_ref, wout_ref, bout_ref, out_ref):
    freq = freq_ref[...]                       # [1, HALF]
    e_x = (x0_ref[...] * 25.0) * freq          # [TB, HALF]
    e_y = (x1_ref[...] * 25.0) * freq          # [TB, HALF]
    e_t = t_ref[...] * freq                    # [TB, HALF]

    # input projection with row-split w0: six accumulated [TB,64]@[64,128] dots,
    # no lane-axis concatenation of sin/cos or of the three embeddings.
    h = b0_ref[...]
    h = h + jnp.dot(jnp.sin(e_x), w0s_ref[0], preferred_element_type=jnp.float32)
    h = h + jnp.dot(jnp.cos(e_x), w0s_ref[1], preferred_element_type=jnp.float32)
    h = h + jnp.dot(jnp.sin(e_y), w0s_ref[2], preferred_element_type=jnp.float32)
    h = h + jnp.dot(jnp.cos(e_y), w0s_ref[3], preferred_element_type=jnp.float32)
    h = h + jnp.dot(jnp.sin(e_t), w0s_ref[4], preferred_element_type=jnp.float32)
    h = h + jnp.dot(jnp.cos(e_t), w0s_ref[5], preferred_element_type=jnp.float32)
    h = _gelu_exact(h)

    # residual Blocks: x + GELU(Linear(LayerNorm(x)))
    for i in range(NBLOCKS):
        hn = _layernorm(h, blk_lng_ref[i], blk_lnb_ref[i])
        hf = jnp.dot(hn, blk_w_ref[i], preferred_element_type=jnp.float32) + blk_b_ref[i]
        h = h + _gelu_exact(hf)

    # final LayerNorm + lane-dense (128-wide, zero-padded) output Linear
    h = _layernorm(h, lnf_g_ref[...], lnf_b_ref[...])
    out_ref[...] = (jnp.dot(h, wout_ref[...], preferred_element_type=jnp.float32)
                    + bout_ref[...])


# --------------------------------- wrapper --------------------------------
def _round_up(a, m):
    return (a + m - 1) // m * m


def model_forward(x, t, params, block_b=1024):
    B = x.shape[0]
    TB = min(block_b, _round_up(B, 8))         # 8-row aligned batch tile
    B_pad = _round_up(B, TB)
    if B_pad != B:
        pad = B_pad - B
        x = jnp.pad(x, ((0, pad), (0, 0)))
        t = jnp.pad(t, ((0, pad), (0, 0)))
    x0, x1 = x[:, 0:1], x[:, 1:2]              # free layout plumbing in XLA

    weights = (params["freq"], params["w0_split"], params["b0"],
               params["blk_ln_g"], params["blk_ln_b"],
               params["blk_w"], params["blk_b"],
               params["lnf_g"], params["lnf_b"],
               params["w_out_pad"], params["b_out_pad"])

    def row_spec(width):
        return pl.BlockSpec((TB, width), lambda i: (i, 0))

    def full_spec(a):
        nd = a.ndim
        return pl.BlockSpec(a.shape, lambda i, _n=nd: (0,) * _n)

    grid = (B_pad // TB,)
    flops = 2 * B_pad * (CONCAT * HIDDEN + NBLOCKS * HIDDEN * HIDDEN
                         + HIDDEN * DATA_PAD)
    transcendentals = B_pad * (6 * HALF + (NBLOCKS + 1) * HIDDEN)
    bytes_accessed = 4 * (B_pad * (3 + DATA_PAD)
                          + sum(int(np.prod(w.shape)) for w in weights))

    out = pl.pallas_call(
        mlp_kernel,
        out_shape=jax.ShapeDtypeStruct((B_pad, DATA_PAD), jnp.float32),
        grid=grid,
        in_specs=[row_spec(1), row_spec(1), row_spec(1)]
                 + [full_spec(w) for w in weights],
        out_specs=pl.BlockSpec((TB, DATA_PAD), lambda i: (i, 0)),
        compiler_params=pltpu.CompilerParams(
            dimension_semantics=("parallel",)),
        cost_estimate=pl.CostEstimate(flops=flops,
                                      transcendentals=transcendentals,
                                      bytes_accessed=bytes_accessed),
    )(x0, x1, t, *weights)
    return out[:B, :DATA]


# --------------------------- deterministic params --------------------------
def init_params(key):
    ks = jax.random.split(key, 8)

    def linear(k, fan_in, fan_out):
        k1, k2 = jax.random.split(k)
        bound = 1.0 / np.sqrt(fan_in)
        w = jax.random.uniform(k1, (fan_in, fan_out), jnp.float32, -bound, bound)
        b = jax.random.uniform(k2, (1, fan_out), jnp.float32, -bound, bound)
        return w, b

    freq = jnp.exp(-(jnp.log(10000.0) / (HALF - 1))
                   * jnp.arange(HALF, dtype=jnp.float32))[None, :]   # [1, HALF]

    w0, b0 = linear(ks[0], CONCAT, HIDDEN)          # [384,128], [1,128]
    # concat row order is [sin_x, cos_x, sin_y, cos_y, sin_t, cos_t] (64 each)
    w0_split = w0.reshape(6, HALF, HIDDEN)          # [6, 64, 128]

    blk_w, blk_b = [], []
    for i in range(NBLOCKS):
        w, b = linear(ks[1 + i], HIDDEN, HIDDEN)
        blk_w.append(w)
        blk_b.append(b)
    blk_w = jnp.stack(blk_w, axis=0)                # [NB, H, H]
    blk_b = jnp.stack(blk_b, axis=0)                # [NB, 1, H]
    blk_ln_g = jnp.ones((NBLOCKS, 1, HIDDEN), jnp.float32)
    blk_ln_b = jnp.zeros((NBLOCKS, 1, HIDDEN), jnp.float32)

    w_out, b_out = linear(ks[4], HIDDEN, DATA)      # [128,2], [1,2]
    w_out_pad = jnp.zeros((HIDDEN, DATA_PAD), jnp.float32).at[:, :DATA].set(w_out)
    b_out_pad = jnp.zeros((1, DATA_PAD), jnp.float32).at[:, :DATA].set(b_out)

    return dict(freq=freq,
                w0=w0, b0=b0, w0_split=w0_split,
                blk_w=blk_w, blk_b=blk_b,
                blk_ln_g=blk_ln_g, blk_ln_b=blk_ln_b,
                lnf_g=jnp.ones((1, HIDDEN), jnp.float32),
                lnf_b=jnp.zeros((1, HIDDEN), jnp.float32),
                w_out=w_out, b_out=b_out,
                w_out_pad=w_out_pad, b_out_pad=b_out_pad)


# ------------------------------ pure-JAX reference -------------------------
def _sin_emb(v, freq, scale):
    e = (v * scale) * freq
    return jnp.concatenate([jnp.sin(e), jnp.cos(e)], axis=-1)


def _layernorm_ref(x, g, b):
    mu = jnp.mean(x, axis=-1, keepdims=True)
    var = jnp.mean(jnp.square(x - mu), axis=-1, keepdims=True)
    return (x - mu) * jax.lax.rsqrt(var + LN_EPS) * g + b


def reference_forward(x, t, p):
    t_emb = _sin_emb(t, p["freq"], 1.0)
    x_emb = _sin_emb(x[:, 0:1], p["freq"], 25.0)
    y_emb = _sin_emb(x[:, 1:2], p["freq"], 25.0)
    h = jnp.concatenate([x_emb, y_emb, t_emb], axis=-1)
    h = _gelu_exact(h @ p["w0"] + p["b0"])
    for i in range(NBLOCKS):
        hn = _layernorm_ref(h, p["blk_ln_g"][i], p["blk_ln_b"][i])
        h = h + _gelu_exact(hn @ p["blk_w"][i] + p["blk_b"][i])
    h = _layernorm_ref(h, p["lnf_g"], p["lnf_b"])
    return h @ p["w_out"] + p["b_out"]


if __name__ == "__main__":
    key = jax.random.PRNGKey(0)
    kx, kt, kp = jax.random.split(key, 3)
    params = init_params(kp)

    # small-shape check (single grid step, TB clamps to the batch)
    B = 64
    x = jax.random.normal(kx, (B, 2), dtype=jnp.float32)
    t = jax.random.uniform(kt, (B, 1), jnp.float32, 0.0, 1000.0)
    out = jax.block_until_ready(jax.jit(model_forward)(x, t, params))
    ref = reference_forward(x, t, params)
    assert out.shape == (B, DATA)
    np.testing.assert_allclose(np.asarray(out), np.asarray(ref),
                               rtol=2e-4, atol=2e-4)

    # ragged batch -> exercises padding + a 4-step parallel batch grid
    B2 = 2000
    x2 = jax.random.normal(kx, (B2, 2), dtype=jnp.float32)
    t2 = jax.random.uniform(kt, (B2, 1), jnp.float32, 0.0, 1000.0)
    fwd2 = jax.jit(lambda a, b, p: model_forward(a, b, p, block_b=512))
    out2 = jax.block_until_ready(fwd2(x2, t2, params))
    ref2 = reference_forward(x2, t2, params)
    assert out2.shape == (B2, DATA)
    np.testing.assert_allclose(np.asarray(out2), np.asarray(ref2),
                               rtol=2e-4, atol=2e-4)

    print("KERNEL_OK")
</pallas_src>

<mosaic_0001>
module attributes {stable_mosaic.version = 11 : i64} {
  func.func @mlp_kernel(%arg0: i32, %arg1: memref<64x1xf32, #tpu.memory_space<vmem>>, %arg2: memref<64x1xf32, #tpu.memory_space<vmem>>, %arg3: memref<64x1xf32, #tpu.memory_space<vmem>>, %arg4: memref<1x64xf32, #tpu.memory_space<vmem>>, %arg5: memref<6x64x128xf32, #tpu.memory_space<vmem>>, %arg6: memref<1x128xf32, #tpu.memory_space<vmem>>, %arg7: memref<3x1x128xf32, #tpu.memory_space<vmem>>, %arg8: memref<3x1x128xf32, #tpu.memory_space<vmem>>, %arg9: memref<3x128x128xf32, #tpu.memory_space<vmem>>, %arg10: memref<3x1x128xf32, #tpu.memory_space<vmem>>, %arg11: memref<1x128xf32, #tpu.memory_space<vmem>>, %arg12: memref<1x128xf32, #tpu.memory_space<vmem>>, %arg13: memref<128x128xf32, #tpu.memory_space<vmem>>, %arg14: memref<1x128xf32, #tpu.memory_space<vmem>>, %arg15: memref<64x128xf32, #tpu.memory_space<vmem>>) attributes {dimension_semantics = [#tpu.dimension_semantics<parallel>], iteration_bounds = array<i64: 1>, scalar_prefetch = 0 : i64, scratch_operands = 0 : i64, tpu.core_type = #tpu.core_type<tc>, window_params = [{transform_indices = @transform_0, window_bounds = array<i64: 64, 1>}, {transform_indices = @transform_1, window_bounds = array<i64: 64, 1>}, {transform_indices = @transform_2, window_bounds = array<i64: 64, 1>}, {pipeline_mode = #tpu.pipeline_mode<synchronous>, transform_indices = @transform_3, window_bounds = array<i64: 1, 64>}, {pipeline_mode = #tpu.pipeline_mode<synchronous>, transform_indices = @transform_4, window_bounds = array<i64: 6, 64, 128>}, {pipeline_mode = #tpu.pipeline_mode<synchronous>, transform_indices = @transform_5, window_bounds = array<i64: 1, 128>}, {pipeline_mode = #tpu.pipeline_mode<synchronous>, transform_indices = @transform_6, window_bounds = array<i64: 3, 1, 128>}, {pipeline_mode = #tpu.pipeline_mode<synchronous>, transform_indices = @transform_7, window_bounds = array<i64: 3, 1, 128>}, {pipeline_mode = #tpu.pipeline_mode<synchronous>, transform_indices = @transform_8, window_bounds = array<i64: 3, 128, 128>}, {pipeline_mode = #tpu.pipeline_mode<synchronous>, transform_indices = @transform_9, window_bounds = array<i64: 3, 1, 128>}, {pipeline_mode = #tpu.pipeline_mode<synchronous>, transform_indices = @transform_10, window_bounds = array<i64: 1, 128>}, {pipeline_mode = #tpu.pipeline_mode<synchronous>, transform_indices = @transform_11, window_bounds = array<i64: 1, 128>}, {pipeline_mode = #tpu.pipeline_mode<synchronous>, transform_indices = @transform_12, window_bounds = array<i64: 128, 128>}, {pipeline_mode = #tpu.pipeline_mode<synchronous>, transform_indices = @transform_13, window_bounds = array<i64: 1, 128>}, {transform_indices = @transform_14, window_bounds = array<i64: 64, 128>}]} {
    %c0 = arith.constant 0 : index
    %c0_0 = arith.constant 0 : index
    %0 = vector.load %arg4[%c0, %c0_0] : memref<1x64xf32, #tpu.memory_space<vmem>>, vector<1x64xf32>
    %c0_1 = arith.constant 0 : index
    %c0_2 = arith.constant 0 : index
    %1 = vector.load %arg1[%c0_1, %c0_2] : memref<64x1xf32, #tpu.memory_space<vmem>>, vector<64x1xf32>
    %cst = arith.constant 2.500000e+01 : f32
    %2 = vector.broadcast %cst : f32 to vector<64x1xf32>
    %3 = arith.mulf %1, %2 : vector<64x1xf32>
    %4 = vector.broadcast %3 : vector<64x1xf32> to vector<64x64xf32>
    %5 = vector.broadcast %0 : vector<1x64xf32> to vector<64x64xf32>
    %6 = arith.mulf %4, %5 : vector<64x64xf32>
    %c0_3 = arith.constant 0 : index
    %c0_4 = arith.constant 0 : index
    %7 = vector.load %arg2[%c0_3, %c0_4] : memref<64x1xf32, #tpu.memory_space<vmem>>, vector<64x1xf32>
    %cst_5 = arith.constant 2.500000e+01 : f32
    %8 = vector.broadcast %cst_5 : f32 to vector<64x1xf32>
    %9 = arith.mulf %7, %8 : vector<64x1xf32>
    %10 = vector.broadcast %9 : vector<64x1xf32> to vector<64x64xf32>
    %11 = vector.broadcast %0 : vector<1x64xf32> to vector<64x64xf32>
    %12 = arith.mulf %10, %11 : vector<64x64xf32>
    %c0_6 = arith.constant 0 : index
    %c0_7 = arith.constant 0 : index
    %13 = vector.load %arg3[%c0_6, %c0_7] : memref<64x1xf32, #tpu.memory_space<vmem>>, vector<64x1xf32>
    %14 = vector.broadcast %13 : vector<64x1xf32> to vector<64x64xf32>
    %15 = vector.broadcast %0 : vector<1x64xf32> to vector<64x64xf32>
    %16 = arith.mulf %14, %15 : vector<64x64xf32>
    %c0_8 = arith.constant 0 : index
    %c0_9 = arith.constant 0 : index
    %17 = vector.load %arg6[%c0_8, %c0_9] : memref<1x128xf32, #tpu.memory_space<vmem>>, vector<1x128xf32>
    %18 = math.sin %6 : vector<64x64xf32>
    %c0_10 = arith.constant 0 : index
    %c0_11 = arith.constant 0 : index
    %c0_12 = arith.constant 0 : index
    %19 = vector.load %arg5[%c0_10, %c0_11, %c0_12] : memref<6x64x128xf32, #tpu.memory_space<vmem>>, vector<1x64x128xf32>
    %20 = vector.shape_cast %19 : vector<1x64x128xf32> to vector<64x128xf32>
    %cst_13 = arith.constant dense<0.000000e+00> : vector<64x128xf32>
    %21 = tpu.matmul %18, %20, %cst_13 {dimension_numbers = #tpu.dot_dimension_numbers<[1], [0], [0], [1], [0, 0, 1, 1], [], []>} : vector<64x64xf32>, vector<64x128xf32>, vector<64x128xf32> -> vector<64x128xf32>
    %22 = vector.broadcast %17 : vector<1x128xf32> to vector<64x128xf32>
    %23 = arith.addf %22, %21 : vector<64x128xf32>
    %24 = math.cos %6 : vector<64x64xf32>
    %c1 = arith.constant 1 : index
    %c0_14 = arith.constant 0 : index
    %c0_15 = arith.constant 0 : index
    %25 = vector.load %arg5[%c1, %c0_14, %c0_15] : memref<6x64x128xf32, #tpu.memory_space<vmem>>, vector<1x64x128xf32>
    %26 = vector.shape_cast %25 : vector<1x64x128xf32> to vector<64x128xf32>
    %cst_16 = arith.constant dense<0.000000e+00> : vector<64x128xf32>
    %27 = tpu.matmul %24, %26, %cst_16 {dimension_numbers = #tpu.dot_dimension_numbers<[1], [0], [0], [1], [0, 0, 1, 1], [], []>} : vector<64x64xf32>, vector<64x128xf32>, vector<64x128xf32> -> vector<64x128xf32>
    %28 = arith.addf %23, %27 : vector<64x128xf32>
    %29 = math.sin %12 : vector<64x64xf32>
    %c2 = arith.constant 2 : index
    %c0_17 = arith.constant 0 : index
    %c0_18 = arith.constant 0 : index
    %30 = vector.load %arg5[%c2, %c0_17, %c0_18] : memref<6x64x128xf32, #tpu.memory_space<vmem>>, vector<1x64x128xf32>
    %31 = vector.shape_cast %30 : vector<1x64x128xf32> to vector<64x128xf32>
    %cst_19 = arith.constant dense<0.000000e+00> : vector<64x128xf32>
    %32 = tpu.matmul %29, %31, %cst_19 {dimension_numbers = #tpu.dot_dimension_numbers<[1], [0], [0], [1], [0, 0, 1, 1], [], []>} : vector<64x64xf32>, vector<64x128xf32>, vector<64x128xf32> -> vector<64x128xf32>
    %33 = arith.addf %28, %32 : vector<64x128xf32>
    %34 = math.cos %12 : vector<64x64xf32>
    %c3 = arith.constant 3 : index
    %c0_20 = arith.constant 0 : index
    %c0_21 = arith.constant 0 : index
    %35 = vector.load %arg5[%c3, %c0_20, %c0_21] : memref<6x64x128xf32, #tpu.memory_space<vmem>>, vector<1x64x128xf32>
    %36 = vector.shape_cast %35 : vector<1x64x128xf32> to vector<64x128xf32>
    %cst_22 = arith.constant dense<0.000000e+00> : vector<64x128xf32>
    %37 = tpu.matmul %34, %36, %cst_22 {dimension_numbers = #tpu.dot_dimension_numbers<[1], [0], [0], [1], [0, 0, 1, 1], [], []>} : vector<64x64xf32>, vector<64x128xf32>, vector<64x128xf32> -> vector<64x128xf32>
    %38 = arith.addf %33, %37 : vector<64x128xf32>
    %39 = math.sin %16 : vector<64x64xf32>
    %c4 = arith.constant 4 : index
    %c0_23 = arith.constant 0 : index
    %c0_24 = arith.constant 0 : index
    %40 = vector.load %arg5[%c4, %c0_23, %c0_24] : memref<6x64x128xf32, #tpu.memory_space<vmem>>, vector<1x64x128xf32>
    %41 = vector.shape_cast %40 : vector<1x64x128xf32> to vector<64x128xf32>
    %cst_25 = arith.constant dense<0.000000e+00> : vector<64x128xf32>
    %42 = tpu.matmul %39, %41, %cst_25 {dimension_numbers = #tpu.dot_dimension_numbers<[1], [0], [0], [1], [0, 0, 1, 1], [], []>} : vector<64x64xf32>, vector<64x128xf32>, vector<64x128xf32> -> vector<64x128xf32>
    %43 = arith.addf %38, %42 : vector<64x128xf32>
    %44 = math.cos %16 : vector<64x64xf32>
    %c5 = arith.constant 5 : index
    %c0_26 = arith.constant 0 : index
    %c0_27 = arith.constant 0 : index
    %45 = vector.load %arg5[%c5, %c0_26, %c0_27] : memref<6x64x128xf32, #tpu.memory_space<vmem>>, vector<1x64x128xf32>
    %46 = vector.shape_cast %45 : vector<1x64x128xf32> to vector<64x128xf32>
    %cst_28 = arith.constant dense<0.000000e+00> : vector<64x128xf32>
    %47 = tpu.matmul %44, %46, %cst_28 {dimension_numbers = #tpu.dot_dimension_numbers<[1], [0], [0], [1], [0, 0, 1, 1], [], []>} : vector<64x64xf32>, vector<64x128xf32>, vector<64x128xf32> -> vector<64x128xf32>
    %48 = arith.addf %43, %47 : vector<64x128xf32>
    %cst_29 = arith.constant 5.000000e-01 : f32
    %49 = vector.broadcast %cst_29 : f32 to vector<64x128xf32>
    %50 = arith.mulf %49, %48 : vector<64x128xf32>
    %cst_30 = arith.constant 0.707106769 : f32
    %51 = vector.broadcast %cst_30 : f32 to vector<64x128xf32>
    %52 = arith.mulf %48, %51 : vector<64x128xf32>
    %53 = math.erf %52 : vector<64x128xf32>
    %cst_31 = arith.constant 1.000000e+00 : f32
    %54 = vector.broadcast %cst_31 : f32 to vector<64x128xf32>
    %55 = arith.addf %54, %53 : vector<64x128xf32>
    %56 = arith.mulf %50, %55 : vector<64x128xf32>
    %c0_32 = arith.constant 0 : index
    %c0_33 = arith.constant 0 : index
    %c0_34 = arith.constant 0 : index
    %57 = vector.load %arg7[%c0_32, %c0_33, %c0_34] : memref<3x1x128xf32, #tpu.memory_space<vmem>>, vector<1x1x128xf32>
    %58 = vector.shape_cast %57 : vector<1x1x128xf32> to vector<1x128xf32>
    %c0_35 = arith.constant 0 : index
    %c0_36 = arith.constant 0 : index
    %c0_37 = arith.constant 0 : index
    %59 = vector.load %arg8[%c0_35, %c0_36, %c0_37] : memref<3x1x128xf32, #tpu.memory_space<vmem>>, vector<1x1x128xf32>
    %60 = vector.shape_cast %59 : vector<1x1x128xf32> to vector<1x128xf32>
    %cst_38 = arith.constant dense<0.000000e+00> : vector<64xf32>
    %61 = vector.multi_reduction <add>, %56, %cst_38 [1] : vector<64x128xf32> to vector<64xf32>
    %62 = vector.shape_cast %61 : vector<64xf32> to vector<64x1xf32>
    %63 = arith.mulf %56, %56 : vector<64x128xf32>
    %cst_39 = arith.constant dense<0.000000e+00> : vector<64xf32>
    %64 = vector.multi_reduction <add>, %63, %cst_39 [1] : vector<64x128xf32> to vector<64xf32>
    %65 = vector.shape_cast %64 : vector<64xf32> to vector<64x1xf32>
    %cst_40 = arith.constant 7.812500e-03 : f32
    %66 = vector.broadcast %cst_40 : f32 to vector<64x1xf32>
    %67 = arith.mulf %62, %66 : vector<64x1xf32>
    %cst_41 = arith.constant 7.812500e-03 : f32
    %68 = vector.broadcast %cst_41 : f32 to vector<64x1xf32>
    %69 = arith.mulf %65, %68 : vector<64x1xf32>
    %70 = arith.mulf %67, %67 : vector<64x1xf32>
    %71 = arith.subf %69, %70 : vector<64x1xf32>
    %72 = vector.broadcast %67 : vector<64x1xf32> to vector<64x128xf32>
    %73 = arith.subf %56, %72 : vector<64x128xf32>
    %cst_42 = arith.constant 9.99999974E-6 : f32
    %74 = vector.broadcast %cst_42 : f32 to vector<64x1xf32>
    %75 = arith.addf %71, %74 : vector<64x1xf32>
    %76 = math.rsqrt %75 : vector<64x1xf32>
    %77 = vector.broadcast %76 : vector<64x1xf32> to vector<64x128xf32>
    %78 = arith.mulf %73, %77 : vector<64x128xf32>
    %79 = vector.broadcast %58 : vector<1x128xf32> to vector<64x128xf32>
    %80 = arith.mulf %78, %79 : vector<64x128xf32>
    %81 = vector.broadcast %60 : vector<1x128xf32> to vector<64x128xf32>
    %82 = arith.addf %80, %81 : vector<64x128xf32>
    %c0_43 = arith.constant 0 : index
    %c0_44 = arith.constant 0 : index
    %c0_45 = arith.constant 0 : index
    %83 = vector.load %arg9[%c0_43, %c0_44, %c0_45] : memref<3x128x128xf32, #tpu.memory_space<vmem>>, vector<1x128x128xf32>
    %84 = vector.shape_cast %83 : vector<1x128x128xf32> to vector<128x128xf32>
    %cst_46 = arith.constant dense<0.000000e+00> : vector<64x128xf32>
    %85 = tpu.matmul %82, %84, %cst_46 {dimension_numbers = #tpu.dot_dimension_numbers<[1], [0], [0], [1], [0, 0, 1, 1], [], []>} : vector<64x128xf32>, vector<128x128xf32>, vector<64x128xf32> -> vector<64x128xf32>
    %c0_47 = arith.constant 0 : index
    %c0_48 = arith.constant 0 : index
    %c0_49 = arith.constant 0 : index
    %86 = vector.load %arg10[%c0_47, %c0_48, %c0_49] : memref<3x1x128xf32, #tpu.memory_space<vmem>>, vector<1x1x128xf32>
    %87 = vector.shape_cast %86 : vector<1x1x128xf32> to vector<1x128xf32>
    %88 = vector.broadcast %87 : vector<1x128xf32> to vector<64x128xf32>
    %89 = arith.addf %85, %88 : vector<64x128xf32>
    %cst_50 = arith.constant 5.000000e-01 : f32
    %90 = vector.broadcast %cst_50 : f32 to vector<64x128xf32>
    %91 = arith.mulf %90, %89 : vector<64x128xf32>
    %cst_51 = arith.constant 0.707106769 : f32
    %92 = vector.broadcast %cst_51 : f32 to vector<64x128xf32>
    %93 = arith.mulf %89, %92 : vector<64x128xf32>
    %94 = math.erf %93 : vector<64x128xf32>
    %cst_52 = arith.constant 1.000000e+00 : f32
    %95 = vector.broadcast %cst_52 : f32 to vector<64x128xf32>
    %96 = arith.addf %95, %94 : vector<64x128xf32>
    %97 = arith.mulf %91, %96 : vector<64x128xf32>
    %98 = arith.addf %56, %97 : vector<64x128xf32>
    %c1_53 = arith.constant 1 : index
    %c0_54 = arith.constant 0 : index
    %c0_55 = arith.constant 0 : index
    %99 = vector.load %arg7[%c1_53, %c0_54, %c0_55] : memref<3x1x128xf32, #tpu.memory_space<vmem>>, vector<1x1x128xf32>
    %100 = vector.shape_cast %99 : vector<1x1x128xf32> to vector<1x128xf32>
    %c1_56 = arith.constant 1 : index
    %c0_57 = arith.constant 0 : index
    %c0_58 = arith.constant 0 : index
    %101 = vector.load %arg8[%c1_56, %c0_57, %c0_58] : memref<3x1x128xf32, #tpu.memory_space<vmem>>, vector<1x1x128xf32>
    %102 = vector.shape_cast %101 : vector<1x1x128xf32> to vector<1x128xf32>
    %cst_59 = arith.constant dense<0.000000e+00> : vector<64xf32>
    %103 = vector.multi_reduction <add>, %98, %cst_59 [1] : vector<64x128xf32> to vector<64xf32>
    %104 = vector.shape_cast %103 : vector<64xf32> to vector<64x1xf32>
    %105 = arith.mulf %98, %98 : vector<64x128xf32>
    %cst_60 = arith.constant dense<0.000000e+00> : vector<64xf32>
    %106 = vector.multi_reduction <add>, %105, %cst_60 [1] : vector<64x128xf32> to vector<64xf32>
    %107 = vector.shape_cast %106 : vector<64xf32> to vector<64x1xf32>
    %cst_61 = arith.constant 7.812500e-03 : f32
    %108 = vector.broadcast %cst_61 : f32 to vector<64x1xf32>
    %109 = arith.mulf %104, %108 : vector<64x1xf32>
    %cst_62 = arith.constant 7.812500e-03 : f32
    %110 = vector.broadcast %cst_62 : f32 to vector<64x1xf32>
    %111 = arith.mulf %107, %110 : vector<64x1xf32>
    %112 = arith.mulf %109, %109 : vector<64x1xf32>
    %113 = arith.subf %111, %112 : vector<64x1xf32>
    %114 = vector.broadcast %109 : vector<64x1xf32> to vector<64x128xf32>
    %115 = arith.subf %98, %114 : vector<64x128xf32>
    %cst_63 = arith.constant 9.99999974E-6 : f32
    %116 = vector.broadcast %cst_63 : f32 to vector<64x1xf32>
    %117 = arith.addf %113, %116 : vector<64x1xf32>
    %118 = math.rsqrt %117 : vector<64x1xf32>
    %119 = vector.broadcast %118 : vector<64x1xf32> to vector<64x128xf32>
    %120 = arith.mulf %115, %119 : vector<64x128xf32>
    %121 = vector.broadcast %100 : vector<1x128xf32> to vector<64x128xf32>
    %122 = arith.mulf %120, %121 : vector<64x128xf32>
    %123 = vector.broadcast %102 : vector<1x128xf32> to vector<64x128xf32>
    %124 = arith.addf %122, %123 : vector<64x128xf32>
    %c1_64 = arith.constant 1 : index
    %c0_65 = arith.constant 0 : index
    %c0_66 = arith.constant 0 : index
    %125 = vector.load %arg9[%c1_64, %c0_65, %c0_66] : memref<3x128x128xf32, #tpu.memory_space<vmem>>, vector<1x128x128xf32>
    %126 = vector.shape_cast %125 : vector<1x128x128xf32> to vector<128x128xf32>
    %cst_67 = arith.constant dense<0.000000e+00> : vector<64x128xf32>
    %127 = tpu.matmul %124, %126, %cst_67 {dimension_numbers = #tpu.dot_dimension_numbers<[1], [0], [0], [1], [0, 0, 1, 1], [], []>} : vector<64x128xf32>, vector<128x128xf32>, vector<64x128xf32> -> vector<64x128xf32>
    %c1_68 = arith.constant 1 : index
    %c0_69 = arith.constant 0 : index
    %c0_70 = arith.constant 0 : index
    %128 = vector.load %arg10[%c1_68, %c0_69, %c0_70] : memref<3x1x128xf32, #tpu.memory_space<vmem>>, vector<1x1x128xf32>
    %129 = vector.shape_cast %128 : vector<1x1x128xf32> to vector<1x128xf32>
    %130 = vector.broadcast %129 : vector<1x128xf32> to vector<64x128xf32>
    %131 = arith.addf %127, %130 : vector<64x128xf32>
    %cst_71 = arith.constant 5.000000e-01 : f32
    %132 = vector.broadcast %cst_71 : f32 to vector<64x128xf32>
    %133 = arith.mulf %132, %131 : vector<64x128xf32>
    %cst_72 = arith.constant 0.707106769 : f32
    %134 = vector.broadcast %cst_72 : f32 to vector<64x128xf32>
    %135 = arith.mulf %131, %134 : vector<64x128xf32>
    %136 = math.erf %135 : vector<64x128xf32>
    %cst_73 = arith.constant 1.000000e+00 : f32
    %137 = vector.broadcast %cst_73 : f32 to vector<64x128xf32>
    %138 = arith.addf %137, %136 : vector<64x128xf32>
    %139 = arith.mulf %133, %138 : vector<64x128xf32>
    %140 = arith.addf %98, %139 : vector<64x128xf32>
    %c2_74 = arith.constant 2 : index
    %c0_75 = arith.constant 0 : index
    %c0_76 = arith.constant 0 : index
    %141 = vector.load %arg7[%c2_74, %c0_75, %c0_76] : memref<3x1x128xf32, #tpu.memory_space<vmem>>, vector<1x1x128xf32>
    %142 = vector.shape_cast %141 : vector<1x1x128xf32> to vector<1x128xf32>
    %c2_77 = arith.constant 2 : index
    %c0_78 = arith.constant 0 : index
    %c0_79 = arith.constant 0 : index
    %143 = vector.load %arg8[%c2_77, %c0_78, %c0_79] : memref<3x1x128xf32, #tpu.memory_space<vmem>>, vector<1x1x128xf32>
    %144 = vector.shape_cast %143 : vector<1x1x128xf32> to vector<1x128xf32>
    %cst_80 = arith.constant dense<0.000000e+00> : vector<64xf32>
    %145 = vector.multi_reduction <add>, %140, %cst_80 [1] : vector<64x128xf32> to vector<64xf32>
    %146 = vector.shape_cast %145 : vector<64xf32> to vector<64x1xf32>
    %147 = arith.mulf %140, %140 : vector<64x128xf32>
    %cst_81 = arith.constant dense<0.000000e+00> : vector<64xf32>
    %148 = vector.multi_reduction <add>, %147, %cst_81 [1] : vector<64x128xf32> to vector<64xf32>
    %149 = vector.shape_cast %148 : vector<64xf32> to vector<64x1xf32>
    %cst_82 = arith.constant 7.812500e-03 : f32
    %150 = vector.broadcast %cst_82 : f32 to vector<64x1xf32>
    %151 = arith.mulf %146, %150 : vector<64x1xf32>
    %cst_83 = arith.constant 7.812500e-03 : f32
    %152 = vector.broadcast %cst_83 : f32 to vector<64x1xf32>
    %153 = arith.mulf %149, %152 : vector<64x1xf32>
    %154 = arith.mulf %151, %151 : vector<64x1xf32>
    %155 = arith.subf %153, %154 : vector<64x1xf32>
    %156 = vector.broadcast %151 : vector<64x1xf32> to vector<64x128xf32>
    %157 = arith.subf %140, %156 : vector<64x128xf32>
    %cst_84 = arith.constant 9.99999974E-6 : f32
    %158 = vector.broadcast %cst_84 : f32 to vector<64x1xf32>
    %159 = arith.addf %155, %158 : vector<64x1xf32>
    %160 = math.rsqrt %159 : vector<64x1xf32>
    %161 = vector.broadcast %160 : vector<64x1xf32> to vector<64x128xf32>
    %162 = arith.mulf %157, %161 : vector<64x128xf32>
    %163 = vector.broadcast %142 : vector<1x128xf32> to vector<64x128xf32>
    %164 = arith.mulf %162, %163 : vector<64x128xf32>
    %165 = vector.broadcast %144 : vector<1x128xf32> to vector<64x128xf32>
    %166 = arith.addf %164, %165 : vector<64x128xf32>
    %c2_85 = arith.constant 2 : index
    %c0_86 = arith.constant 0 : index
    %c0_87 = arith.constant 0 : index
    %167 = vector.load %arg9[%c2_85, %c0_86, %c0_87] : memref<3x128x128xf32, #tpu.memory_space<vmem>>, vector<1x128x128xf32>
    %168 = vector.shape_cast %167 : vector<1x128x128xf32> to vector<128x128xf32>
    %cst_88 = arith.constant dense<0.000000e+00> : vector<64x128xf32>
    %169 = tpu.matmul %166, %168, %cst_88 {dimension_numbers = #tpu.dot_dimension_numbers<[1], [0], [0], [1], [0, 0, 1, 1], [], []>} : vector<64x128xf32>, vector<128x128xf32>, vector<64x128xf32> -> vector<64x128xf32>
    %c2_89 = arith.constant 2 : index
    %c0_90 = arith.constant 0 : index
    %c0_91 = arith.constant 0 : index
    %170 = vector.load %arg10[%c2_89, %c0_90, %c0_91] : memref<3x1x128xf32, #tpu.memory_space<vmem>>, vector<1x1x128xf32>
    %171 = vector.shape_cast %170 : vector<1x1x128xf32> to vector<1x128xf32>
    %172 = vector.broadcast %171 : vector<1x128xf32> to vector<64x128xf32>
    %173 = arith.addf %169, %172 : vector<64x128xf32>
    %cst_92 = arith.constant 5.000000e-01 : f32
    %174 = vector.broadcast %cst_92 : f32 to vector<64x128xf32>
    %175 = arith.mulf %174, %173 : vector<64x128xf32>
    %cst_93 = arith.constant 0.707106769 : f32
    %176 = vector.broadcast %cst_93 : f32 to vector<64x128xf32>
    %177 = arith.mulf %173, %176 : vector<64x128xf32>
    %178 = math.erf %177 : vector<64x128xf32>
    %cst_94 = arith.constant 1.000000e+00 : f32
    %179 = vector.broadcast %cst_94 : f32 to vector<64x128xf32>
    %180 = arith.addf %179, %178 : vector<64x128xf32>
    %181 = arith.mulf %175, %180 : vector<64x128xf32>
    %182 = arith.addf %140, %181 : vector<64x128xf32>
    %c0_95 = arith.constant 0 : index
    %c0_96 = arith.constant 0 : index
    %183 = vector.load %arg11[%c0_95, %c0_96] : memref<1x128xf32, #tpu.memory_space<vmem>>, vector<1x128xf32>
    %c0_97 = arith.constant 0 : index
    %c0_98 = arith.constant 0 : index
    %184 = vector.load %arg12[%c0_97, %c0_98] : memref<1x128xf32, #tpu.memory_space<vmem>>, vector<1x128xf32>
    %cst_99 = arith.constant dense<0.000000e+00> : vector<64xf32>
    %185 = vector.multi_reduction <add>, %182, %cst_99 [1] : vector<64x128xf32> to vector<64xf32>
    %186 = vector.shape_cast %185 : vector<64xf32> to vector<64x1xf32>
    %187 = arith.mulf %182, %182 : vector<64x128xf32>
    %cst_100 = arith.constant dense<0.000000e+00> : vector<64xf32>
    %188 = vector.multi_reduction <add>, %187, %cst_100 [1] : vector<64x128xf32> to vector<64xf32>
    %189 = vector.shape_cast %188 : vector<64xf32> to vector<64x1xf32>
    %cst_101 = arith.constant 7.812500e-03 : f32
    %190 = vector.broadcast %cst_101 : f32 to vector<64x1xf32>
    %191 = arith.mulf %186, %190 : vector<64x1xf32>
    %cst_102 = arith.constant 7.812500e-03 : f32
    %192 = vector.broadcast %cst_102 : f32 to vector<64x1xf32>
    %193 = arith.mulf %189, %192 : vector<64x1xf32>
    %194 = arith.mulf %191, %191 : vector<64x1xf32>
    %195 = arith.subf %193, %194 : vector<64x1xf32>
    %196 = vector.broadcast %191 : vector<64x1xf32> to vector<64x128xf32>
    %197 = arith.subf %182, %196 : vector<64x128xf32>
    %cst_103 = arith.constant 9.99999974E-6 : f32
    %198 = vector.broadcast %cst_103 : f32 to vector<64x1xf32>
    %199 = arith.addf %195, %198 : vector<64x1xf32>
    %200 = math.rsqrt %199 : vector<64x1xf32>
    %201 = vector.broadcast %200 : vector<64x1xf32> to vector<64x128xf32>
    %202 = arith.mulf %197, %201 : vector<64x128xf32>
    %203 = vector.broadcast %183 : vector<1x128xf32> to vector<64x128xf32>
    %204 = arith.mulf %202, %203 : vector<64x128xf32>
    %205 = vector.broadcast %184 : vector<1x128xf32> to vector<64x128xf32>
    %206 = arith.addf %204, %205 : vector<64x128xf32>
    %c0_104 = arith.constant 0 : index
    %c0_105 = arith.constant 0 : index
    %207 = vector.load %arg13[%c0_104, %c0_105] : memref<128x128xf32, #tpu.memory_space<vmem>>, vector<128x128xf32>
    %cst_106 = arith.constant dense<0.000000e+00> : vector<64x128xf32>
    %208 = tpu.matmul %206, %207, %cst_106 {dimension_numbers = #tpu.dot_dimension_numbers<[1], [0], [0], [1], [0, 0, 1, 1], [], []>} : vector<64x128xf32>, vector<128x128xf32>, vector<64x128xf32> -> vector<64x128xf32>
    %c0_107 = arith.constant 0 : index
    %c0_108 = arith.constant 0 : index
    %209 = vector.load %arg14[%c0_107, %c0_108] : memref<1x128xf32, #tpu.memory_space<vmem>>, vector<1x128xf32>
    %210 = vector.broadcast %209 : vector<1x128xf32> to vector<64x128xf32>
    %211 = arith.addf %208, %210 : vector<64x128xf32>
    %c0_109 = arith.constant 0 : index
    %c0_110 = arith.constant 0 : index
    %212 = vector.load %arg15[%c0_109, %c0_110] : memref<64x128xf32, #tpu.memory_space<vmem>>, vector<64x128xf32>
    tpu.vector_store %arg15[%c0_109, %c0_110], %211 {strides = array<i32>} : memref<64x128xf32, #tpu.memory_space<vmem>>, vector<64x128xf32>,
    return
  }
  func.func @transform_0(%arg0: i32) -> (i32, i32) {
    %c0_i32 = arith.constant 0 : i32
    %c0_i32_0 = arith.constant 0 : i32
    return %arg0, %c0_i32 : i32, i32
  }
  func.func @transform_1(%arg0: i32) -> (i32, i32) {
    %c0_i32 = arith.constant 0 : i32
    %c0_i32_0 = arith.constant 0 : i32
    return %arg0, %c0_i32 : i32, i32
  }
  func.func @transform_2(%arg0: i32) -> (i32, i32) {
    %c0_i32 = arith.constant 0 : i32
    %c0_i32_0 = arith.constant 0 : i32
    return %arg0, %c0_i32 : i32, i32
  }
  func.func @transform_3(%arg0: i32) -> (i32, i32) {
    %c0_i32 = arith.constant 0 : i32
    %c0_i32_0 = arith.constant 0 : i32
    %c0_i32_1 = arith.constant 0 : i32
    return %c0_i32, %c0_i32_0 : i32, i32
  }
  func.func @transform_4(%arg0: i32) -> (i32, i32, i32) {
    %c0_i32 = arith.constant 0 : i32
    %c0_i32_0 = arith.constant 0 : i32
    %c0_i32_1 = arith.constant 0 : i32
    %c0_i32_2 = arith.constant 0 : i32
    return %c0_i32, %c0_i32_0, %c0_i32_1 : i32, i32, i32
  }
  func.func @transform_5(%arg0: i32) -> (i32, i32) {
    %c0_i32 = arith.constant 0 : i32
    %c0_i32_0 = arith.constant 0 : i32
    %c0_i32_1 = arith.constant 0 : i32
    return %c0_i32, %c0_i32_0 : i32, i32
  }
  func.func @transform_6(%arg0: i32) -> (i32, i32, i32) {
    %c0_i32 = arith.constant 0 : i32
    %c0_i32_0 = arith.constant 0 : i32
    %c0_i32_1 = arith.constant 0 : i32
    %c0_i32_2 = arith.constant 0 : i32
    return %c0_i32, %c0_i32_0, %c0_i32_1 : i32, i32, i32
  }
  func.func @transform_7(%arg0: i32) -> (i32, i32, i32) {
    %c0_i32 = arith.constant 0 : i32
    %c0_i32_0 = arith.constant 0 : i32
    %c0_i32_1 = arith.constant 0 : i32
    %c0_i32_2 = arith.constant 0 : i32
    return %c0_i32, %c0_i32_0, %c0_i32_1 : i32, i32, i32
  }
  func.func @transform_8(%arg0: i32) -> (i32, i32, i32) {
    %c0_i32 = arith.constant 0 : i32
    %c0_i32_0 = arith.constant 0 : i32
    %c0_i32_1 = arith.constant 0 : i32
    %c0_i32_2 = arith.constant 0 : i32
    return %c0_i32, %c0_i32_0, %c0_i32_1 : i32, i32, i32
  }
  func.func @transform_9(%arg0: i32) -> (i32, i32, i32) {
    %c0_i32 = arith.constant 0 : i32
    %c0_i32_0 = arith.constant 0 : i32
    %c0_i32_1 = arith.constant 0 : i32
    %c0_i32_2 = arith.constant 0 : i32
    return %c0_i32, %c0_i32_0, %c0_i32_1 : i32, i32, i32
  }
  func.func @transform_10(%arg0: i32) -> (i32, i32) {
    %c0_i32 = arith.constant 0 : i32
    %c0_i32_0 = arith.constant 0 : i32
    %c0_i32_1 = arith.constant 0 : i32
    return %c0_i32, %c0_i32_0 : i32, i32
  }
  func.func @transform_11(%arg0: i32) -> (i32, i32) {
    %c0_i32 = arith.constant 0 : i32
    %c0_i32_0 = arith.constant 0 : i32
    %c0_i32_1 = arith.constant 0 : i32
    return %c0_i32, %c0_i32_0 : i32, i32
  }
  func.func @transform_12(%arg0: i32) -> (i32, i32) {
    %c0_i32 = arith.constant 0 : i32
    %c0_i32_0 = arith.constant 0 : i32
    %c0_i32_1 = arith.constant 0 : i32
    return %c0_i32, %c0_i32_0 : i32, i32
  }
  func.func @transform_13(%arg0: i32) -> (i32, i32) {
    %c0_i32 = arith.constant 0 : i32
    %c0_i32_0 = arith.constant 0 : i32
    %c0_i32_1 = arith.constant 0 : i32
    return %c0_i32, %c0_i32_0 : i32, i32
  }
  func.func @transform_14(%arg0: i32) -> (i32, i32) {
    %c0_i32 = arith.constant 0 : i32
    %c0_i32_0 = arith.constant 0 : i32
    return %arg0, %c0_i32 : i32, i32
  }
}

</mosaic_0001>

<llo_original>
// kernel: model_forward.1
$region0: #{model_forward.1}
  #allocation0 [shape = 'u32[]', space=smem, size = 0x4, offset = 0x4, fixed_abs, tag = 'smem constant byte address 0x4 - core index']
  #allocation1 [shape = 'u32[72,128]{1,0:T(1,128)}', space=vmem, size = 0x9000, scoped, tag = 'internal scratch']
  %s0 = inlined_call_operand.vmem [shape: f32[64,1], index: 0, kind: input, shape index: {}]
  %s1 = inlined_call_operand.vmem [shape: f32[64,1], index: 1, kind: input, shape index: {}]
  %s2 = inlined_call_operand.vmem [shape: f32[64,1], index: 2, kind: input, shape index: {}]
  %s3 = inlined_call_operand.hbm [shape: f32[1,64], index: 3, kind: input, shape index: {}]
  %s4 = inlined_call_operand.vmem [shape: f32[6,64,128], index: 4, kind: input, shape index: {}]
  %s5 = inlined_call_operand.vmem [shape: f32[1,128], index: 5, kind: input, shape index: {}]
  %s6 = inlined_call_operand.vmem [shape: f32[3,1,128], index: 6, kind: input, shape index: {}]
  %s7 = inlined_call_operand.vmem [shape: f32[3,1,128], index: 7, kind: input, shape index: {}]
  %s8 = inlined_call_operand.hbm [shape: f32[3,128,128], index: 8, kind: input, shape index: {}]
  %s9 = inlined_call_operand.vmem [shape: f32[3,1,128], index: 9, kind: input, shape index: {}]
  %s10 = inlined_call_operand.hbm [shape: f32[1,128], index: 10, kind: input, shape index: {}]
  %s11 = inlined_call_operand.hbm [shape: f32[1,128], index: 11, kind: input, shape index: {}]
  %s12 = inlined_call_operand.hbm [shape: f32[128,128], index: 12, kind: input, shape index: {}]
  %s13 = inlined_call_operand.hbm [shape: f32[1,128], index: 13, kind: input, shape index: {}]
  %s14 = inlined_call_operand.vmem [shape: f32[64,128], index: 14, kind: output, shape index: {}]
  %s15 = sld [smem:[#allocation0]]
  $region90: #{model_forward.1} parent=0
    _
  %s17 = ssub.s32 1, %s15
  %s18 = scalar_select 0, %s17, %s15
  $region1: #{model_forward.1} parent=0
    #allocation2 [shape = 'u8[512]{0}', space=vmem, size = 0x400, scoped, tag = 'input window, operand 3, single buffered']
    #allocation3 [shape = 's32[1]{0}', space=sflag, size = 0x4, scoped, tag = 'scoped memory for model_forward.1']
    #allocation4 [shape = 'u8[196608]{0}', space=vmem, size = 0x30000, scoped, tag = 'input window, operand 8, single buffered']
    #allocation5 [shape = 's32[1]{0}', space=sflag, size = 0x4, scoped, tag = 'scoped memory for model_forward.1']
    #allocation6 [shape = 'u8[512]{0}', space=vmem, size = 0x400, scoped, tag = 'input window, operand 10, single buffered']
    #allocation7 [shape = 'u8[512]{0}', space=vmem, size = 0x400, scoped, tag = 'input window, operand 11, single buffered']
    #allocation8 [shape = 's32[1]{0}', space=sflag, size = 0x4, scoped, tag = 'scoped memory for model_forward.1']
    #allocation9 [shape = 'u8[65536]{0}', space=vmem, size = 0x10000, scoped, tag = 'input window, operand 12, single buffered']
    #allocation10 [shape = 'u8[512]{0}', space=vmem, size = 0x400, scoped, tag = 'input window, operand 13, single buffered']
    #allocation11 [shape = 's32[1]{0}', space=sflag, size = 0x4, scoped, tag = 'scoped memory for model_forward.1']
    %19 = vsyncpa [#allocation3], 0
    %20 = vsyncpa [#allocation5], 0
    %21 = vsyncpa [#allocation8], 0
    %22 = vsyncpa [#allocation11], 0
    // Predicated region
    $region2: #{model_forward.1} parent=1 // pred_check
      _
    $region3: #{model_forward.1} parent=1 // pred_check_branch
      %24 = sbr.rel (0) target = $region5
    $region4: #{model_forward.1} parent=1 // pred_region
      _
    $region5: #{model_forward.1} parent=1 // pred_fallthru
      _
    // Predicated region
    $region6: #{model_forward.1} parent=1 // pred_check
      _
    $region7: #{model_forward.1} parent=1 // pred_check_branch
      %26 = sbr.rel (0) target = $region9
    $region8: #{model_forward.1} parent=1 // pred_region
      _
    $region9: #{model_forward.1} parent=1 // pred_fallthru
      _
    // Predicated region
    $region10: #{model_forward.1} parent=1 // pred_check
      _
    $region11: #{model_forward.1} parent=1 // pred_check_branch
      %28 = sbr.rel (0) target = $region13
    $region12: #{model_forward.1} parent=1 // pred_region
      _
    $region13: #{model_forward.1} parent=1 // pred_fallthru
      _
    // Predicated region
    $region14: #{model_forward.1} parent=1 // pred_check
      _
    $region15: #{model_forward.1} parent=1 // pred_check_branch
      %30 = sbr.rel (0) target = $region17
    $region16: #{model_forward.1} parent=1 // pred_region
      %32 = vsyncadd [#allocation3], 0
      %s34 = sshll.u32 %s3, 4
      %s35 = int_to_ptr.hbm [resolvable:$true] %s34
      %s36 = sshll.u32 [#allocation2], 4
      %s37 = int_to_ptr.vmem [resolvable:$true] %s36
      %39 = dma.hbm_to_vmem [thread:$0]  %s35, 16, %s37, [#allocation3]
    $region17: #{model_forward.1} parent=1 // pred_fallthru
      _
    // Predicated region
    $region18: #{model_forward.1} parent=1 // pred_check
      _
    $region19: #{model_forward.1} parent=1 // pred_check_branch
      %41 = sbr.rel (0) target = $region21
    $region20: #{model_forward.1} parent=1 // pred_region
      _
    $region21: #{model_forward.1} parent=1 // pred_fallthru
      _
    // Predicated region
    $region22: #{model_forward.1} parent=1 // pred_check
      _
    $region23: #{model_forward.1} parent=1 // pred_check_branch
      %43 = sbr.rel (0) target = $region25
    $region24: #{model_forward.1} parent=1 // pred_region
      _
    $region25: #{model_forward.1} parent=1 // pred_fallthru
      _
    // Predicated region
    $region26: #{model_forward.1} parent=1 // pred_check
      _
    $region27: #{model_forward.1} parent=1 // pred_check_branch
      %45 = sbr.rel (0) target = $region29
    $region28: #{model_forward.1} parent=1 // pred_region
      _
    $region29: #{model_forward.1} parent=1 // pred_fallthru
      _
    // Predicated region
    $region30: #{model_forward.1} parent=1 // pred_check
      _
    $region31: #{model_forward.1} parent=1 // pred_check_branch
      %47 = sbr.rel (0) target = $region33
    $region32: #{model_forward.1} parent=1 // pred_region
      _
    $region33: #{model_forward.1} parent=1 // pred_fallthru
      _
    // Predicated region
    $region34: #{model_forward.1} parent=1 // pred_check
      _
    $region35: #{model_forward.1} parent=1 // pred_check_branch
      %49 = sbr.rel (0) target = $region37
    $region36: #{model_forward.1} parent=1 // pred_region
      %51 = vsyncadd [#allocation5], 0
      %s52 = sshll.u32 %s8, 4
      %s53 = int_to_ptr.hbm [resolvable:$true] %s52
      %s54 = sshll.u32 [#allocation4], 4
      %s55 = int_to_ptr.vmem [resolvable:$true] %s54
      %60 = dma.hbm_to_vmem [thread:$0]  %s53, 6144, %s55, [#allocation5], 128, 128, 8
    $region37: #{model_forward.1} parent=1 // pred_fallthru
      _
    // Predicated region
    $region38: #{model_forward.1} parent=1 // pred_check
      _
    $region39: #{model_forward.1} parent=1 // pred_check_branch
      %62 = sbr.rel (0) target = $region41
    $region40: #{model_forward.1} parent=1 // pred_region
      _
    $region41: #{model_forward.1} parent=1 // pred_fallthru
      _
    // Predicated region
    $region42: #{model_forward.1} parent=1 // pred_check
      _
    $region43: #{model_forward.1} parent=1 // pred_check_branch
      %64 = sbr.rel (0) target = $region45
    $region44: #{model_forward.1} parent=1 // pred_region
      %66 = vsyncadd [#allocation5], 0
      %s68 = sshll.u32 %s10, 4
      %s69 = int_to_ptr.hbm [resolvable:$true] %s68
      %s70 = sshll.u32 [#allocation6], 4
      %s71 = int_to_ptr.vmem [resolvable:$true] %s70
      %73 = dma.hbm_to_vmem [thread:$0]  %s69, 16, %s71, [#allocation5]
    $region45: #{model_forward.1} parent=1 // pred_fallthru
      _
    // Predicated region
    $region46: #{model_forward.1} parent=1 // pred_check
      _
    $region47: #{model_forward.1} parent=1 // pred_check_branch
      %75 = sbr.rel (0) target = $region49
    $region48: #{model_forward.1} parent=1 // pred_region
      %77 = vsyncadd [#allocation8], 0
      %s79 = sshll.u32 %s11, 4
      %s80 = int_to_ptr.hbm [resolvable:$true] %s79
      %s81 = sshll.u32 [#allocation7], 4
      %s82 = int_to_ptr.vmem [resolvable:$true] %s81
      %84 = dma.hbm_to_vmem [thread:$0]  %s80, 16, %s82, [#allocation8]
    $region49: #{model_forward.1} parent=1 // pred_fallthru
      _
    // Predicated region
    $region50: #{model_forward.1} parent=1 // pred_check
      _
    $region51: #{model_forward.1} parent=1 // pred_check_branch
      %86 = sbr.rel (0) target = $region53
    $region52: #{model_forward.1} parent=1 // pred_region
      %88 = vsyncadd [#allocation8], 0
      %s89 = sshll.u32 %s12, 4
      %s90 = int_to_ptr.hbm [resolvable:$true] %s89
      %s91 = sshll.u32 [#allocation9], 4
      %s92 = int_to_ptr.vmem [resolvable:$true] %s91
      %97 = dma.hbm_to_vmem [thread:$0]  %s90, 2048, %s92, [#allocation8], 128, 128, 8
    $region53: #{model_forward.1} parent=1 // pred_fallthru
      _
    // Predicated region
    $region54: #{model_forward.1} parent=1 // pred_check
      _
    $region55: #{model_forward.1} parent=1 // pred_check_branch
      %99 = sbr.rel (0) target = $region57
    $region56: #{model_forward.1} parent=1 // pred_region
      %101 = vsyncadd [#allocation11], 0
      %s103 = sshll.u32 %s13, 4
      %s104 = int_to_ptr.hbm [resolvable:$true] %s103
      %s105 = sshll.u32 [#allocation10], 4
      %s106 = int_to_ptr.vmem [resolvable:$true] %s105
      %108 = dma.hbm_to_vmem [thread:$0]  %s104, 16, %s106, [#allocation11]
    $region57: #{model_forward.1} parent=1 // pred_fallthru
      _
    // Predicated region
    $region58: #{model_forward.1} parent=1 // pred_check
      _
    $region59: #{model_forward.1} parent=1 // pred_check_branch
      %110 = sbr.rel (0) target = $region61
    $region60: #{model_forward.1} parent=1 // pred_region
      %112 = dma.done [#allocation3], 16
    $region61: #{model_forward.1} parent=1 // pred_fallthru
      _
    // Predicated region
    $region62: #{model_forward.1} parent=1 // pred_check
      _
    $region63: #{model_forward.1} parent=1 // pred_check_branch
      %114 = sbr.rel (0) target = $region65
    $region64: #{model_forward.1} parent=1 // pred_region
      %116 = dma.done [#allocation5], 6144
    $region65: #{model_forward.1} parent=1 // pred_fallthru
      _
    // Predicated region
    $region66: #{model_forward.1} parent=1 // pred_check
      _
    $region67: #{model_forward.1} parent=1 // pred_check_branch
      %118 = sbr.rel (0) target = $region69
    $region68: #{model_forward.1} parent=1 // pred_region
      %120 = dma.done [#allocation5], 16
    $region69: #{model_forward.1} parent=1 // pred_fallthru
      _
    // Predicated region
    $region70: #{model_forward.1} parent=1 // pred_check
      _
    $region71: #{model_forward.1} parent=1 // pred_check_branch
      %122 = sbr.rel (0) target = $region73
    $region72: #{model_forward.1} parent=1 // pred_region
      %124 = dma.done [#allocation8], 16
    $region73: #{model_forward.1} parent=1 // pred_fallthru
      _
    // Predicated region
    $region74: #{model_forward.1} parent=1 // pred_check
      _
    $region75: #{model_forward.1} parent=1 // pred_check_branch
      %126 = sbr.rel (0) target = $region77
    $region76: #{model_forward.1} parent=1 // pred_region
      %128 = dma.done [#allocation8], 2048
    $region77: #{model_forward.1} parent=1 // pred_fallthru
      _
    // Predicated region
    $region78: #{model_forward.1} parent=1 // pred_check
      _
    $region79: #{model_forward.1} parent=1 // pred_check_branch
      %130 = sbr.rel (0) target = $region81
    $region80: #{model_forward.1} parent=1 // pred_region
      %132 = dma.done [#allocation11], 16
    $region81: #{model_forward.1} parent=1 // pred_fallthru
      _
    %v133 = vld [vmem:[#allocation2] sm:$0x1]
    %v134 = vld [vmem:[%s0] sm:$0xff]
    %v135 = vld [vmem:[%s0 + $0x8] sm:$0xff]
    %v136 = vld [vmem:[%s0 + $0x10] sm:$0xff]
    %v137 = vld [vmem:[%s0 + $0x18] sm:$0xff]
    %v138 = vld [vmem:[%s0 + $0x20] sm:$0xff]
    %v139 = vld [vmem:[%s0 + $0x28] sm:$0xff]
    %v140 = vld [vmem:[%s0 + $0x30] sm:$0xff]
    %v141 = vld [vmem:[%s0 + $0x38] sm:$0xff]
    %v142 = vmul.f32 %v134, 25.0
    %v143 = vmul.f32 %v135, 25.0
    %v144 = vmul.f32 %v136, 25.0
    %v145 = vmul.f32 %v137, 25.0
    %v146 = vmul.f32 %v138, 25.0
    %v147 = vmul.f32 %v139, 25.0
    %v148 = vmul.f32 %v140, 25.0
    %v149 = vmul.f32 %v141, 25.0
    %151 = vset.pattern.permute.xlu0 0
    %152 = vperm.xlu0 %151, %v142
    %v153 = vpop.permute.xlu0 %152
    %156 = vset.pattern.permute.xlu0 0
    %157 = vperm.xlu0 %156, %v143
    %v158 = vpop.permute.xlu0 %157
    %161 = vset.pattern.permute.xlu0 0
    %162 = vperm.xlu0 %161, %v144
    %v163 = vpop.permute.xlu0 %162
    %166 = vset.pattern.permute.xlu0 0
    %167 = vperm.xlu0 %166, %v145
    %v168 = vpop.permute.xlu0 %167
    %171 = vset.pattern.permute.xlu0 0
    %172 = vperm.xlu0 %171, %v146
    %v173 = vpop.permute.xlu0 %172
    %176 = vset.pattern.permute.xlu0 0
    %177 = vperm.xlu0 %176, %v147
    %v178 = vpop.permute.xlu0 %177
    %181 = vset.pattern.permute.xlu0 0
    %182 = vperm.xlu0 %181, %v148
    %v183 = vpop.permute.xlu0 %182
    %186 = vset.pattern.permute.xlu0 0
    %187 = vperm.xlu0 %186, %v149
    %v188 = vpop.permute.xlu0 %187
    %v191 = vperm.slane %v133, 0
    %v193 = vmul.f32 %v153, %v191
    %v194 = vmul.f32 %v158, %v191
    %v195 = vmul.f32 %v163, %v191
    %v196 = vmul.f32 %v168, %v191
    %v197 = vmul.f32 %v173, %v191
    %v198 = vmul.f32 %v178, %v191
    %v199 = vmul.f32 %v183, %v191
    %v200 = vmul.f32 %v188, %v191
    %v201 = vld [vmem:[%s1] sm:$0xff]
    %v202 = vld [vmem:[%s1 + $0x8] sm:$0xff]
    %v203 = vld [vmem:[%s1 + $0x10] sm:$0xff]
    %v204 = vld [vmem:[%s1 + $0x18] sm:$0xff]
    %v205 = vld [vmem:[%s1 + $0x20] sm:$0xff]
    %v206 = vld [vmem:[%s1 + $0x28] sm:$0xff]
    %v207 = vld [vmem:[%s1 + $0x30] sm:$0xff]
    %v208 = vld [vmem:[%s1 + $0x38] sm:$0xff]
    %v209 = vmul.f32 %v201, 25.0
    %v210 = vmul.f32 %v202, 25.0
    %v211 = vmul.f32 %v203, 25.0
    %v212 = vmul.f32 %v204, 25.0
    %v213 = vmul.f32 %v205, 25.0
    %v214 = vmul.f32 %v206, 25.0
    %v215 = vmul.f32 %v207, 25.0
    %v216 = vmul.f32 %v208, 25.0
    %218 = vset.pattern.permute.xlu0 0
    %219 = vperm.xlu0 %218, %v209
    %v220 = vpop.permute.xlu0 %219
    %223 = vset.pattern.permute.xlu0 0
    %224 = vperm.xlu0 %223, %v210
    %v225 = vpop.permute.xlu0 %224
    %228 = vset.pattern.permute.xlu0 0
    %229 = vperm.xlu0 %228, %v211
    %v230 = vpop.permute.xlu0 %229
    %233 = vset.pattern.permute.xlu0 0
    %234 = vperm.xlu0 %233, %v212
    %v235 = vpop.permute.xlu0 %234
    %238 = vset.pattern.permute.xlu0 0
    %239 = vperm.xlu0 %238, %v213
    %v240 = vpop.permute.xlu0 %239
    %243 = vset.pattern.permute.xlu0 0
    %244 = vperm.xlu0 %243, %v214
    %v245 = vpop.permute.xlu0 %244
    %248 = vset.pattern.permute.xlu0 0
    %249 = vperm.xlu0 %248, %v215
    %v250 = vpop.permute.xlu0 %249
    %253 = vset.pattern.permute.xlu0 0
    %254 = vperm.xlu0 %253, %v216
    %v255 = vpop.permute.xlu0 %254
    %v257 = vmul.f32 %v220, %v191
    %v258 = vmul.f32 %v225, %v191
    %v259 = vmul.f32 %v230, %v191
    %v260 = vmul.f32 %v235, %v191
    %v261 = vmul.f32 %v240, %v191
    %v262 = vmul.f32 %v245, %v191
    %v263 = vmul.f32 %v250, %v191
    %v264 = vmul.f32 %v255, %v191
    %v265 = vld [vmem:[%s2] sm:$0xff]
    %v266 = vld [vmem:[%s2 + $0x8] sm:$0xff]
    %v267 = vld [vmem:[%s2 + $0x10] sm:$0xff]
    %v268 = vld [vmem:[%s2 + $0x18] sm:$0xff]
    %v269 = vld [vmem:[%s2 + $0x20] sm:$0xff]
    %v270 = vld [vmem:[%s2 + $0x28] sm:$0xff]
    %v271 = vld [vmem:[%s2 + $0x30] sm:$0xff]
    %v272 = vld [vmem:[%s2 + $0x38] sm:$0xff]
    %274 = vset.pattern.permute.xlu0 0
    %275 = vperm.xlu0 %274, %v265
    %v276 = vpop.permute.xlu0 %275
    %279 = vset.pattern.permute.xlu0 0
    %280 = vperm.xlu0 %279, %v266
    %v281 = vpop.permute.xlu0 %280
    %284 = vset.pattern.permute.xlu0 0
    %285 = vperm.xlu0 %284, %v267
    %v286 = vpop.permute.xlu0 %285
    %289 = vset.pattern.permute.xlu0 0
    %290 = vperm.xlu0 %289, %v268
    %v291 = vpop.permute.xlu0 %290
    %294 = vset.pattern.permute.xlu0 0
    %295 = vperm.xlu0 %294, %v269
    %v296 = vpop.permute.xlu0 %295
    %299 = vset.pattern.permute.xlu0 0
    %300 = vperm.xlu0 %299, %v270
    %v301 = vpop.permute.xlu0 %300
    %304 = vset.pattern.permute.xlu0 0
    %305 = vperm.xlu0 %304, %v271
    %v306 = vpop.permute.xlu0 %305
    %309 = vset.pattern.permute.xlu0 0
    %310 = vperm.xlu0 %309, %v272
    %v311 = vpop.permute.xlu0 %310
    %v313 = vmul.f32 %v276, %v191
    %v314 = vmul.f32 %v281, %v191
    %v315 = vmul.f32 %v286, %v191
    %v316 = vmul.f32 %v291, %v191
    %v317 = vmul.f32 %v296, %v191
    %v318 = vmul.f32 %v301, %v191
    %v319 = vmul.f32 %v306, %v191
    %v320 = vmul.f32 %v311, %v191
    %v321 = vld [vmem:[%s5] sm:$0x1]
    %v322 = vand.u32 2147483647, %v193
    %vm323 = vcmp.le.f32.partialorder %v322, 0.7853982
    %vm324 = vcmp.lt.s32.totalorder %v193, 0
    %v325 = vand.u32 %v193, 2139095040
    %v326 = vshrl.u32 %v325, 23
    %v327 = vsub.s32 %v326, 127
    %v328 = vand.u32 2147483647, %v193
    %v329 = vand.u32 %v328, 8388607
    %v330 = vor.u32 %v329, 8388608
    %v331 = vsub.s32 0, %v330
    %v332 = vadd.s32 %v327, 1
    %vm333 = vcmp.gt.s32.totalorder %v332, 0
    %v334 = vsel %vm333, %v332, 0
    %v335 = vshrl.u32 %v334, 5
    %v336 = vand.u32 %v334, 31
    %v337 = vsub.s32 32, %v336
    %v338 = vshrl.u32 683565275, %v337
    %v339 = vshll.u32 683565275, %v336
    %v340 = vshrl.u32 2475754826, %v337
    %v341 = vor.u32 %v339, %v340
    %v342 = vshll.u32 2475754826, %v336
    %v343 = vshrl.u32 2131351028, %v337
    %v344 = vor.u32 %v342, %v343
    %v345 = vshll.u32 2131351028, %v336
    %v346 = vshrl.u32 2102212464, %v337
    %v347 = vor.u32 %v345, %v346
    %v348 = vshll.u32 2102212464, %v336
    %v349 = vshrl.u32 920167782, %v337
    %v350 = vor.u32 %v348, %v349
    %v351 = vshll.u32 920167782, %v336
    %v352 = vshrl.u32 1326507024, %v337
    %v353 = vor.u32 %v351, %v352
    %vm354 = vcmp.lt.s32.totalorder %v335, 1
    %vm355 = vcmp.lt.s32.totalorder %v335, 2
    %vm356 = vcmp.lt.s32.totalorder %v335, 3
    %vm357 = vcmp.lt.s32.totalorder %v335, 4
    %v358 = vsel %vm354, %v338, %v341
    %v359 = vsel %vm357, %v347, 2102212464
    %v360 = vsel %vm356, %v344, %v359
    %v361 = vsel %vm355, %v358, %v360
    %v362 = vsel %vm354, %v341, %v344
    %v363 = vsel %vm357, %v350, 920167782
    %v364 = vsel %vm356, %v347, %v363
    %v365 = vsel %vm355, %v362, %v364
    %v366 = vsel %vm354, %v344, %v347
    %v367 = vsel %vm357, %v353, 1326507024
    %v368 = vsel %vm356, %v350, %v367
    %v369 = vsel %vm355, %v366, %v368
    %v370 = vshll.u32 %v330, 8
    %v371 = vand.u32 %v370, 65535
    %v372 = vshrl.u32 %v370, 16
    %v373 = vand.u32 %v369, 65535
    %v374 = vshrl.u32 %v369, 16
    %v375 = vmul.u32 %v371, %v373
    %v376 = vmul.u32 %v371, %v374
    %v377 = vmul.u32 %v372, %v373
    %v378 = vmul.u32 %v372, %v374
    %v379 = vshll.u32 %v376, 16
    %v380 = vshrl.u32 %v376, 16
    %v381 = vshll.u32 %v377, 16
    %v382 = vshrl.u32 %v377, 16
    %vm383 = vc.u32 %v375, %v379
    %v384 = vsel %vm383, 1, 0
    %v385 = vadd.s32 %v375, %v379
    %v386 = vadd.s32 %v378, %v384
    %vm387 = vc.u32 %v385, %v381
    %v388 = vsel %vm387, 1, 0
    %v389 = vadd.s32 %v385, %v381
    %v390 = vadd.s32 %v386, %v388
    %v391 = vadd.s32 %v390, %v380
    %v392 = vadd.s32 %v391, %v382
    %v393 = vand.u32 %v370, 65535
    %v394 = vshrl.u32 %v370, 16
    %v395 = vand.u32 %v365, 65535
    %v396 = vshrl.u32 %v365, 16
    %v397 = vmul.u32 %v393, %v395
    %v398 = vmul.u32 %v393, %v396
    %v399 = vmul.u32 %v394, %v395
    %v400 = vmul.u32 %v394, %v396
    %v401 = vshll.u32 %v398, 16
    %v402 = vshrl.u32 %v398, 16
    %v403 = vshll.u32 %v399, 16
    %v404 = vshrl.u32 %v399, 16
    %vm405 = vc.u32 %v397, %v401
    %v406 = vsel %vm405, 1, 0
    %v407 = vadd.s32 %v397, %v401
    %v408 = vadd.s32 %v400, %v406
    %vm409 = vc.u32 %v407, %v403
    %v410 = vsel %vm409, 1, 0
    %v411 = vadd.s32 %v407, %v403
    %v412 = vadd.s32 %v408, %v410
    %v413 = vadd.s32 %v412, %v402
    %v414 = vadd.s32 %v413, %v404
    %v415 = vmul.u32 %v370, %v361
    %v416 = vadd.s32 %v392, %v411
    %vm417 = vc.u32 %v392, %v411
    %v418 = vadd.s32 %v414, 1
    %v419 = vsel %vm417, %v418, %v414
    %v420 = vadd.s32 %v415, %v419
    %v421 = vadd.s32 %v420, 536870912
    %v422 = vshrl.u32 %v421, 30
    %v423 = vshll.u32 %v422, 30
    %v424 = vsub.s32 %v420, %v423
    %vm425 = vcmp.lt.s32.totalorder %v424, 0
    %v426 = vsub.s32 0, %v424
    %v427 = vsel %vm425, %v426, %v424
    %v428 = vclz %v427
    %v429 = vsub.s32 %v428, 2
    %vm430 = vcmp.gt.s32.totalorder 0, %v429
    %v431 = vsel %vm430, 0, %v429
    %v432 = vsub.s32 32, %v431
    %v433 = vshll.u32 %v424, %v431
    %v434 = vshrl.u32 %v416, %v432
    %v435 = vor.u32 %v433, %v434
    %v436 = vsub.s32 4294967266, %v431
    %v437 = vadd.s32 %v436, 127
    %v438 = vshll.u32 %v437, 23
    %v439 = vor.u32 4788187, %v438
    %v440 = vand.u32 2147483647, %v439
    %v442 = vcvt.s32.f32 %v435
    %v443 = vmul.f32 %v442, %v440
    %v444 = vxor.u32 %v443, 2147483648
    %v445 = vsel %vm324, %v444, %v443
    %v446 = vsub.s32 4, %v422
    %v447 = vsel %vm324, %v446, %v422
    %v448 = vsel %vm323, %v193, %v445
    %v449 = vsel %vm323, 0, %v447
    %v450 = vmul.f32 %v448, %v448
    %v451 = vmul.f32 %v450, -0.001358992
    %v452 = vadd.f32 %v451, 0.041655596
    %v453 = vmul.f32 %v450, %v452
    %v454 = vadd.f32 %v453, -0.4999988
    %v455 = vmul.f32 %v450, %v454
    %v456 = vadd.f32 1.0, %v455
    %v457 = vmul.f32 %v448, %v448
    %v458 = vmul.f32 %v457, -0.00019511016
    %v459 = vadd.f32 %v458, 0.008332121
    %v460 = vmul.f32 %v457, %v459
    %v461 = vadd.f32 %v460, -0.16666654
    %v462 = vmul.f32 %v457, %v461
    %v463 = vadd.f32 %v462, 1.0
    %v464 = vmul.f32 %v463, %v448
    %vm465 = vweird.f32 %v193
    %v466 = vadd.s32 %v449, 3
    %v467 = vand.u32 %v466, 3
    %vm468 = vcmp.lt.s32.totalorder %v467, 2
    %vm469 = vcmp.eq.s32.totalorder %v467, 0
    %v470 = vxor.u32 %v464, 2147483648
    %v471 = vsel %vm469, %v456, %v470
    %vm472 = vcmp.eq.s32.totalorder %v467, 2
    %v473 = vxor.u32 %v456, 2147483648
    %v474 = vsel %vm472, %v473, %v464
    %v475 = vsel %vm468, %v471, %v474
    %v476 = vsel %vm465, nan, %v475
    %v477 = vand.u32 2147483647, %v194
    %vm478 = vcmp.le.f32.partialorder %v477, 0.7853982
    %vm479 = vcmp.lt.s32.totalorder %v194, 0
    %v480 = vand.u32 %v194, 2139095040
    %v481 = vshrl.u32 %v480, 23
    %v482 = vsub.s32 %v481, 127
    %v483 = vand.u32 2147483647, %v194
    %v484 = vand.u32 %v483, 8388607
    %v485 = vor.u32 %v484, 8388608
    %v486 = vsub.s32 0, %v485
    %v487 = vadd.s32 %v482, 1
    %vm488 = vcmp.gt.s32.totalorder %v487, 0
    %v489 = vsel %vm488, %v487, 0
    %v490 = vshrl.u32 %v489, 5
    %v491 = vand.u32 %v489, 31
    %v492 = vsub.s32 32, %v491
    %v493 = vshrl.u32 683565275, %v492
    %v494 = vshll.u32 683565275, %v491
    %v495 = vshrl.u32 2475754826, %v492
    %v496 = vor.u32 %v494, %v495
    %v497 = vshll.u32 2475754826, %v491
    %v498 = vshrl.u32 2131351028, %v492
    %v499 = vor.u32 %v497, %v498
    %v500 = vshll.u32 2131351028, %v491
    %v501 = vshrl.u32 2102212464, %v492
    %v502 = vor.u32 %v500, %v501
    %v503 = vshll.u32 2102212464, %v491
    %v504 = vshrl.u32 920167782, %v492
    %v505 = vor.u32 %v503, %v504
    %v506 = vshll.u32 920167782, %v491
    %v507 = vshrl.u32 1326507024, %v492
    %v508 = vor.u32 %v506, %v507
    %vm509 = vcmp.lt.s32.totalorder %v490, 1
    %vm510 = vcmp.lt.s32.totalorder %v490, 2
    %vm511 = vcmp.lt.s32.totalorder %v490, 3
    %vm512 = vcmp.lt.s32.totalorder %v490, 4
    %v513 = vsel %vm509, %v493, %v496
    %v514 = vsel %vm512, %v502, 2102212464
    %v515 = vsel %vm511, %v499, %v514
    %v516 = vsel %vm510, %v513, %v515
    %v517 = vsel %vm509, %v496, %v499
    %v518 = vsel %vm512, %v505, 920167782
    %v519 = vsel %vm511, %v502, %v518
    %v520 = vsel %vm510, %v517, %v519
    %v521 = vsel %vm509, %v499, %v502
    %v522 = vsel %vm512, %v508, 1326507024
    %v523 = vsel %vm511, %v505, %v522
    %v524 = vsel %vm510, %v521, %v523
    %v525 = vshll.u32 %v485, 8
    %v526 = vand.u32 %v525, 65535
    %v527 = vshrl.u32 %v525, 16
    %v528 = vand.u32 %v524, 65535
    %v529 = vshrl.u32 %v524, 16
    %v530 = vmul.u32 %v526, %v528
    %v531 = vmul.u32 %v526, %v529
    %v532 = vmul.u32 %v527, %v528
    %v533 = vmul.u32 %v527, %v529
    %v534 = vshll.u32 %v531, 16
    %v535 = vshrl.u32 %v531, 16
    %v536 = vshll.u32 %v532, 16
    %v537 = vshrl.u32 %v532, 16
    %vm538 = vc.u32 %v530, %v534
    %v539 = vsel %vm538, 1, 0
    %v540 = vadd.s32 %v530, %v534
    %v541 = vadd.s32 %v533, %v539
    %vm542 = vc.u32 %v540, %v536
    %v543 = vsel %vm542, 1, 0
    %v544 = vadd.s32 %v540, %v536
    %v545 = vadd.s32 %v541, %v543
    %v546 = vadd.s32 %v545, %v535
    %v547 = vadd.s32 %v546, %v537
    %v548 = vand.u32 %v525, 65535
    %v549 = vshrl.u32 %v525, 16
    %v550 = vand.u32 %v520, 65535
    %v551 = vshrl.u32 %v520, 16
    %v552 = vmul.u32 %v548, %v550
    %v553 = vmul.u32 %v548, %v551
    %v554 = vmul.u32 %v549, %v550
    %v555 = vmul.u32 %v549, %v551
    %v556 = vshll.u32 %v553, 16
    %v557 = vshrl.u32 %v553, 16
    %v558 = vshll.u32 %v554, 16
    %v559 = vshrl.u32 %v554, 16
    %vm560 = vc.u32 %v552, %v556
    %v561 = vsel %vm560, 1, 0
    %v562 = vadd.s32 %v552, %v556
    %v563 = vadd.s32 %v555, %v561
    %vm564 = vc.u32 %v562, %v558
    %v565 = vsel %vm564, 1, 0
    %v566 = vadd.s32 %v562, %v558
    %v567 = vadd.s32 %v563, %v565
    %v568 = vadd.s32 %v567, %v557
    %v569 = vadd.s32 %v568, %v559
    %v570 = vmul.u32 %v525, %v516
    %v571 = vadd.s32 %v547, %v566
    %vm572 = vc.u32 %v547, %v566
    %v573 = vadd.s32 %v569, 1
    %v574 = vsel %vm572, %v573, %v569
    %v575 = vadd.s32 %v570, %v574
    %v576 = vadd.s32 %v575, 536870912
    %v577 = vshrl.u32 %v576, 30
    %v578 = vshll.u32 %v577, 30
    %v579 = vsub.s32 %v575, %v578
    %vm580 = vcmp.lt.s32.totalorder %v579, 0
    %v581 = vsub.s32 0, %v579
    %v582 = vsel %vm580, %v581, %v579
    %v583 = vclz %v582
    %v584 = vsub.s32 %v583, 2
    %vm585 = vcmp.gt.s32.totalorder 0, %v584
    %v586 = vsel %vm585, 0, %v584
    %v587 = vsub.s32 32, %v586
    %v588 = vshll.u32 %v579, %v586
    %v589 = vshrl.u32 %v571, %v587
    %v590 = vor.u32 %v588, %v589
    %v591 = vsub.s32 4294967266, %v586
    %v592 = vadd.s32 %v591, 127
    %v593 = vshll.u32 %v592, 23
    %v594 = vor.u32 4788187, %v593
    %v595 = vand.u32 2147483647, %v594
    %v597 = vcvt.s32.f32 %v590
    %v598 = vmul.f32 %v597, %v595
    %v599 = vxor.u32 %v598, 2147483648
    %v600 = vsel %vm479, %v599, %v598
    %v601 = vsub.s32 4, %v577
    %v602 = vsel %vm479, %v601, %v577
    %v603 = vsel %vm478, %v194, %v600
    %v604 = vsel %vm478, 0, %v602
    %v605 = vmul.f32 %v603, %v603
    %v606 = vmul.f32 %v605, -0.001358992
    %v607 = vadd.f32 %v606, 0.041655596
    %v608 = vmul.f32 %v605, %v607
    %v609 = vadd.f32 %v608, -0.4999988
    %v610 = vmul.f32 %v605, %v609
    %v611 = vadd.f32 1.0, %v610
    %v612 = vmul.f32 %v603, %v603
    %v613 = vmul.f32 %v612, -0.00019511016
    %v614 = vadd.f32 %v613, 0.008332121
    %v615 = vmul.f32 %v612, %v614
    %v616 = vadd.f32 %v615, -0.16666654
    %v617 = vmul.f32 %v612, %v616
    %v618 = vadd.f32 %v617, 1.0
    %v619 = vmul.f32 %v618, %v603
    %vm620 = vweird.f32 %v194
    %v621 = vadd.s32 %v604, 3
    %v622 = vand.u32 %v621, 3
    %vm623 = vcmp.lt.s32.totalorder %v622, 2
    %vm624 = vcmp.eq.s32.totalorder %v622, 0
    %v625 = vxor.u32 %v619, 2147483648
    %v626 = vsel %vm624, %v611, %v625
    %vm627 = vcmp.eq.s32.totalorder %v622, 2
    %v628 = vxor.u32 %v611, 2147483648
    %v629 = vsel %vm627, %v628, %v619
    %v630 = vsel %vm623, %v626, %v629
    %v631 = vsel %vm620, nan, %v630
    %v632 = vand.u32 2147483647, %v195
    %vm633 = vcmp.le.f32.partialorder %v632, 0.7853982
    %vm634 = vcmp.lt.s32.totalorder %v195, 0
    %v635 = vand.u32 %v195, 2139095040
    %v636 = vshrl.u32 %v635, 23
    %v637 = vsub.s32 %v636, 127
    %v638 = vand.u32 2147483647, %v195
    %v639 = vand.u32 %v638, 8388607
    %v640 = vor.u32 %v639, 8388608
    %v641 = vsub.s32 0, %v640
    %v642 = vadd.s32 %v637, 1
    %vm643 = vcmp.gt.s32.totalorder %v642, 0
    %v644 = vsel %vm643, %v642, 0
    %v645 = vshrl.u32 %v644, 5
    %v646 = vand.u32 %v644, 31
    %v647 = vsub.s32 32, %v646
    %v648 = vshrl.u32 683565275, %v647
    %v649 = vshll.u32 683565275, %v646
    %v650 = vshrl.u32 2475754826, %v647
    %v651 = vor.u32 %v649, %v650
    %v652 = vshll.u32 2475754826, %v646
    %v653 = vshrl.u32 2131351028, %v647
    %v654 = vor.u32 %v652, %v653
    %v655 = vshll.u32 2131351028, %v646
    %v656 = vshrl.u32 2102212464, %v647
    %v657 = vor.u32 %v655, %v656
    %v658 = vshll.u32 2102212464, %v646
    %v659 = vshrl.u32 920167782, %v647
    %v660 = vor.u32 %v658, %v659
    %v661 = vshll.u32 920167782, %v646
    %v662 = vshrl.u32 1326507024, %v647
    %v663 = vor.u32 %v661, %v662
    %vm664 = vcmp.lt.s32.totalorder %v645, 1
    %vm665 = vcmp.lt.s32.totalorder %v645, 2
    %vm666 = vcmp.lt.s32.totalorder %v645, 3
    %vm667 = vcmp.lt.s32.totalorder %v645, 4
    %v668 = vsel %vm664, %v648, %v651
    %v669 = vsel %vm667, %v657, 2102212464
    %v670 = vsel %vm666, %v654, %v669
    %v671 = vsel %vm665, %v668, %v670
    %v672 = vsel %vm664, %v651, %v654
    %v673 = vsel %vm667, %v660, 920167782
    %v674 = vsel %vm666, %v657, %v673
    %v675 = vsel %vm665, %v672, %v674
    %v676 = vsel %vm664, %v654, %v657
    %v677 = vsel %vm667, %v663, 1326507024
    %v678 = vsel %vm666, %v660, %v677
    %v679 = vsel %vm665, %v676, %v678
    %v680 = vshll.u32 %v640, 8
    %v681 = vand.u32 %v680, 65535
    %v682 = vshrl.u32 %v680, 16
    %v683 = vand.u32 %v679, 65535
    %v684 = vshrl.u32 %v679, 16
    %v685 = vmul.u32 %v681, %v683
    %v686 = vmul.u32 %v681, %v684
    %v687 = vmul.u32 %v682, %v683
    %v688 = vmul.u32 %v682, %v684
    %v689 = vshll.u32 %v686, 16
    %v690 = vshrl.u32 %v686, 16
    %v691 = vshll.u32 %v687, 16
    %v692 = vshrl.u32 %v687, 16
    %vm693 = vc.u32 %v685, %v689
    %v694 = vsel %vm693, 1, 0
    %v695 = vadd.s32 %v685, %v689
    %v696 = vadd.s32 %v688, %v694
    %vm697 = vc.u32 %v695, %v691
    %v698 = vsel %vm697, 1, 0
    %v699 = vadd.s32 %v695, %v691
    %v700 = vadd.s32 %v696, %v698
    %v701 = vadd.s32 %v700, %v690
    %v702 = vadd.s32 %v701, %v692
    %v703 = vand.u32 %v680, 65535
    %v704 = vshrl.u32 %v680, 16
    %v705 = vand.u32 %v675, 65535
    %v706 = vshrl.u32 %v675, 16
    %v707 = vmul.u32 %v703, %v705
    %v708 = vmul.u32 %v703, %v706
    %v709 = vmul.u32 %v704, %v705
    %v710 = vmul.u32 %v704, %v706
    %v711 = vshll.u32 %v708, 16
    %v712 = vshrl.u32 %v708, 16
    %v713 = vshll.u32 %v709, 16
    %v714 = vshrl.u32 %v709, 16
    %vm715 = vc.u32 %v707, %v711
    %v716 = vsel %vm715, 1, 0
    %v717 = vadd.s32 %v707, %v711
    %v718 = vadd.s32 %v710, %v716
    %vm719 = vc.u32 %v717, %v713
    %v720 = vsel %vm719, 1, 0
    %v721 = vadd.s32 %v717, %v713
    %v722 = vadd.s32 %v718, %v720
    %v723 = vadd.s32 %v722, %v712
    %v724 = vadd.s32 %v723, %v714
    %v725 = vmul.u32 %v680, %v671
    %v726 = vadd.s32 %v702, %v721
    %vm727 = vc.u32 %v702, %v721
    %v728 = vadd.s32 %v724, 1
    %v729 = vsel %vm727, %v728, %v724
    %v730 = vadd.s32 %v725, %v729
    %v731 = vadd.s32 %v730, 536870912
    %v732 = vshrl.u32 %v731, 30
    %v733 = vshll.u32 %v732, 30
    %v734 = vsub.s32 %v730, %v733
    %vm735 = vcmp.lt.s32.totalorder %v734, 0
    %v736 = vsub.s32 0, %v734
    %v737 = vsel %vm735, %v736, %v734
    %v738 = vclz %v737
    %v739 = vsub.s32 %v738, 2
    %vm740 = vcmp.gt.s32.totalorder 0, %v739
    %v741 = vsel %vm740, 0, %v739
    %v742 = vsub.s32 32, %v741
    %v743 = vshll.u32 %v734, %v741
    %v744 = vshrl.u32 %v726, %v742
    %v745 = vor.u32 %v743, %v744
    %v746 = vsub.s32 4294967266, %v741
    %v747 = vadd.s32 %v746, 127
    %v748 = vshll.u32 %v747, 23
    %v749 = vor.u32 4788187, %v748
    %v750 = vand.u32 2147483647, %v749
    %v752 = vcvt.s32.f32 %v745
    %v753 = vmul.f32 %v752, %v750
    %v754 = vxor.u32 %v753, 2147483648
    %v755 = vsel %vm634, %v754, %v753
    %v756 = vsub.s32 4, %v732
    %v757 = vsel %vm634, %v756, %v732
    %v758 = vsel %vm633, %v195, %v755
    %v759 = vsel %vm633, 0, %v757
    %v760 = vmul.f32 %v758, %v758
    %v761 = vmul.f32 %v760, -0.001358992
    %v762 = vadd.f32 %v761, 0.041655596
    %v763 = vmul.f32 %v760, %v762
    %v764 = vadd.f32 %v763, -0.4999988
    %v765 = vmul.f32 %v760, %v764
    %v766 = vadd.f32 1.0, %v765
    %v767 = vmul.f32 %v758, %v758
    %v768 = vmul.f32 %v767, -0.00019511016
    %v769 = vadd.f32 %v768, 0.008332121
    %v770 = vmul.f32 %v767, %v769
    %v771 = vadd.f32 %v770, -0.16666654
    %v772 = vmul.f32 %v767, %v771
    %v773 = vadd.f32 %v772, 1.0
    %v774 = vmul.f32 %v773, %v758
    %vm775 = vweird.f32 %v195
    %v776 = vadd.s32 %v759, 3
    %v777 = vand.u32 %v776, 3
    %vm778 = vcmp.lt.s32.totalorder %v777, 2
    %vm779 = vcmp.eq.s32.totalorder %v777, 0
    %v780 = vxor.u32 %v774, 2147483648
    %v781 = vsel %vm779, %v766, %v780
    %vm782 = vcmp.eq.s32.totalorder %v777, 2
    %v783 = vxor.u32 %v766, 2147483648
    %v784 = vsel %vm782, %v783, %v774
    %v785 = vsel %vm778, %v781, %v784
    %v786 = vsel %vm775, nan, %v785
    %v787 = vand.u32 2147483647, %v196
    %vm788 = vcmp.le.f32.partialorder %v787, 0.7853982
    %vm789 = vcmp.lt.s32.totalorder %v196, 0
    %v790 = vand.u32 %v196, 2139095040
    %v791 = vshrl.u32 %v790, 23
    %v792 = vsub.s32 %v791, 127
    %v793 = vand.u32 2147483647, %v196
    %v794 = vand.u32 %v793, 8388607
    %v795 = vor.u32 %v794, 8388608
    %v796 = vsub.s32 0, %v795
    %v797 = vadd.s32 %v792, 1
    %vm798 = vcmp.gt.s32.totalorder %v797, 0
    %v799 = vsel %vm798, %v797, 0
    %v800 = vshrl.u32 %v799, 5
    %v801 = vand.u32 %v799, 31
    %v802 = vsub.s32 32, %v801
    %v803 = vshrl.u32 683565275, %v802
    %v804 = vshll.u32 683565275, %v801
    %v805 = vshrl.u32 2475754826, %v802
    %v806 = vor.u32 %v804, %v805
    %v807 = vshll.u32 2475754826, %v801
    %v808 = vshrl.u32 2131351028, %v802
    %v809 = vor.u32 %v807, %v808
    %v810 = vshll.u32 2131351028, %v801
    %v811 = vshrl.u32 2102212464, %v802
    %v812 = vor.u32 %v810, %v811
    %v813 = vshll.u32 2102212464, %v801
    %v814 = vshrl.u32 920167782, %v802
    %v815 = vor.u32 %v813, %v814
    %v816 = vshll.u32 920167782, %v801
    %v817 = vshrl.u32 1326507024, %v802
    %v818 = vor.u32 %v816, %v817
    %vm819 = vcmp.lt.s32.totalorder %v800, 1
    %vm820 = vcmp.lt.s32.totalorder %v800, 2
    %vm821 = vcmp.lt.s32.totalorder %v800, 3
    %vm822 = vcmp.lt.s32.totalorder %v800, 4
    %v823 = vsel %vm819, %v803, %v806
    %v824 = vsel %vm822, %v812, 2102212464
    %v825 = vsel %vm821, %v809, %v824
    %v826 = vsel %vm820, %v823, %v825
    %v827 = vsel %vm819, %v806, %v809
    %v828 = vsel %vm822, %v815, 920167782
    %v829 = vsel %vm821, %v812, %v828
    %v830 = vsel %vm820, %v827, %v829
    %v831 = vsel %vm819, %v809, %v812
    %v832 = vsel %vm822, %v818, 1326507024
    %v833 = vsel %vm821, %v815, %v832
    %v834 = vsel %vm820, %v831, %v833
    %v835 = vshll.u32 %v795, 8
    %v836 = vand.u32 %v835, 65535
    %v837 = vshrl.u32 %v835, 16
    %v838 = vand.u32 %v834, 65535
    %v839 = vshrl.u32 %v834, 16
    %v840 = vmul.u32 %v836, %v838
    %v841 = vmul.u32 %v836, %v839
    %v842 = vmul.u32 %v837, %v838
    %v843 = vmul.u32 %v837, %v839
    %v844 = vshll.u32 %v841, 16
    %v845 = vshrl.u32 %v841, 16
    %v846 = vshll.u32 %v842, 16
    %v847 = vshrl.u32 %v842, 16
    %vm848 = vc.u32 %v840, %v844
    %v849 = vsel %vm848, 1, 0
    %v850 = vadd.s32 %v840, %v844
    %v851 = vadd.s32 %v843, %v849
    %vm852 = vc.u32 %v850, %v846
    %v853 = vsel %vm852, 1, 0
    %v854 = vadd.s32 %v850, %v846
    %v855 = vadd.s32 %v851, %v853
    %v856 = vadd.s32 %v855, %v845
    %v857 = vadd.s32 %v856, %v847
    %v858 = vand.u32 %v835, 65535
    %v859 = vshrl.u32 %v835, 16
    %v860 = vand.u32 %v830, 65535
    %v861 = vshrl.u32 %v830, 16
    %v862 = vmul.u32 %v858, %v860
    %v863 = vmul.u32 %v858, %v861
    %v864 = vmul.u32 %v859, %v860
    %v865 = vmul.u32 %v859, %v861
    %v866 = vshll.u32 %v863, 16
    %v867 = vshrl.u32 %v863, 16
    %v868 = vshll.u32 %v864, 16
    %v869 = vshrl.u32 %v864, 16
    %vm870 = vc.u32 %v862, %v866
    %v871 = vsel %vm870, 1, 0
    %v872 = vadd.s32 %v862, %v866
    %v873 = vadd.s32 %v865, %v871
    %vm874 = vc.u32 %v872, %v868
    %v875 = vsel %vm874, 1, 0
    %v876 = vadd.s32 %v872, %v868
    %v877 = vadd.s32 %v873, %v875
    %v878 = vadd.s32 %v877, %v867
    %v879 = vadd.s32 %v878, %v869
    %v880 = vmul.u32 %v835, %v826
    %v881 = vadd.s32 %v857, %v876
    %vm882 = vc.u32 %v857, %v876
    %v883 = vadd.s32 %v879, 1
    %v884 = vsel %vm882, %v883, %v879
    %v885 = vadd.s32 %v880, %v884
    %v886 = vadd.s32 %v885, 536870912
    %v887 = vshrl.u32 %v886, 30
    %v888 = vshll.u32 %v887, 30
    %v889 = vsub.s32 %v885, %v888
    %vm890 = vcmp.lt.s32.totalorder %v889, 0
    %v891 = vsub.s32 0, %v889
    %v892 = vsel %vm890, %v891, %v889
    %v893 = vclz %v892
    %v894 = vsub.s32 %v893, 2
    %vm895 = vcmp.gt.s32.totalorder 0, %v894
    %v896 = vsel %vm895, 0, %v894
    %v897 = vsub.s32 32, %v896
    %v898 = vshll.u32 %v889, %v896
    %v899 = vshrl.u32 %v881, %v897
    %v900 = vor.u32 %v898, %v899
    %v901 = vsub.s32 4294967266, %v896
    %v902 = vadd.s32 %v901, 127
    %v903 = vshll.u32 %v902, 23
    %v904 = vor.u32 4788187, %v903
    %v905 = vand.u32 2147483647, %v904
    %v907 = vcvt.s32.f32 %v900
    %v908 = vmul.f32 %v907, %v905
    %v909 = vxor.u32 %v908, 2147483648
    %v910 = vsel %vm789, %v909, %v908
    %v911 = vsub.s32 4, %v887
    %v912 = vsel %vm789, %v911, %v887
    %v913 = vsel %vm788, %v196, %v910
    %v914 = vsel %vm788, 0, %v912
    %v915 = vmul.f32 %v913, %v913
    %v916 = vmul.f32 %v915, -0.001358992
    %v917 = vadd.f32 %v916, 0.041655596
    %v918 = vmul.f32 %v915, %v917
    %v919 = vadd.f32 %v918, -0.4999988
    %v920 = vmul.f32 %v915, %v919
    %v921 = vadd.f32 1.0, %v920
    %v922 = vmul.f32 %v913, %v913
    %v923 = vmul.f32 %v922, -0.00019511016
    %v924 = vadd.f32 %v923, 0.008332121
    %v925 = vmul.f32 %v922, %v924
    %v926 = vadd.f32 %v925, -0.16666654
    %v927 = vmul.f32 %v922, %v926
    %v928 = vadd.f32 %v927, 1.0
    %v929 = vmul.f32 %v928, %v913
    %vm930 = vweird.f32 %v196
    %v931 = vadd.s32 %v914, 3
    %v932 = vand.u32 %v931, 3
    %vm933 = vcmp.lt.s32.totalorder %v932, 2
    %vm934 = vcmp.eq.s32.totalorder %v932, 0
    %v935 = vxor.u32 %v929, 2147483648
    %v936 = vsel %vm934, %v921, %v935
    %vm937 = vcmp.eq.s32.totalorder %v932, 2
    %v938 = vxor.u32 %v921, 2147483648
    %v939 = vsel %vm937, %v938, %v929
    %v940 = vsel %vm933, %v936, %v939
    %v941 = vsel %vm930, nan, %v940
    %v942 = vand.u32 2147483647, %v197
    %vm943 = vcmp.le.f32.partialorder %v942, 0.7853982
    %vm944 = vcmp.lt.s32.totalorder %v197, 0
    %v945 = vand.u32 %v197, 2139095040
    %v946 = vshrl.u32 %v945, 23
    %v947 = vsub.s32 %v946, 127
    %v948 = vand.u32 2147483647, %v197
    %v949 = vand.u32 %v948, 8388607
    %v950 = vor.u32 %v949, 8388608
    %v951 = vsub.s32 0, %v950
    %v952 = vadd.s32 %v947, 1
    %vm953 = vcmp.gt.s32.totalorder %v952, 0
    %v954 = vsel %vm953, %v952, 0
    %v955 = vshrl.u32 %v954, 5
    %v956 = vand.u32 %v954, 31
    %v957 = vsub.s32 32, %v956
    %v958 = vshrl.u32 683565275, %v957
    %v959 = vshll.u32 683565275, %v956
    %v960 = vshrl.u32 2475754826, %v957
    %v961 = vor.u32 %v959, %v960
    %v962 = vshll.u32 2475754826, %v956
    %v963 = vshrl.u32 2131351028, %v957
    %v964 = vor.u32 %v962, %v963
    %v965 = vshll.u32 2131351028, %v956
    %v966 = vshrl.u32 2102212464, %v957
    %v967 = vor.u32 %v965, %v966
    %v968 = vshll.u32 2102212464, %v956
    %v969 = vshrl.u32 920167782, %v957
    %v970 = vor.u32 %v968, %v969
    %v971 = vshll.u32 920167782, %v956
    %v972 = vshrl.u32 1326507024, %v957
    %v973 = vor.u32 %v971, %v972
    %vm974 = vcmp.lt.s32.totalorder %v955, 1
    %vm975 = vcmp.lt.s32.totalorder %v955, 2
    %vm976 = vcmp.lt.s32.totalorder %v955, 3
    %vm977 = vcmp.lt.s32.totalorder %v955, 4
    %v978 = vsel %vm974, %v958, %v961
    %v979 = vsel %vm977, %v967, 2102212464
    %v980 = vsel %vm976, %v964, %v979
    %v981 = vsel %vm975, %v978, %v980
    %v982 = vsel %vm974, %v961, %v964
    %v983 = vsel %vm977, %v970, 920167782
    %v984 = vsel %vm976, %v967, %v983
    %v985 = vsel %vm975, %v982, %v984
    %v986 = vsel %vm974, %v964, %v967
    %v987 = vsel %vm977, %v973, 1326507024
    %v988 = vsel %vm976, %v970, %v987
    %v989 = vsel %vm975, %v986, %v988
    %v990 = vshll.u32 %v950, 8
    %v991 = vand.u32 %v990, 65535
    %v992 = vshrl.u32 %v990, 16
    %v993 = vand.u32 %v989, 65535
    %v994 = vshrl.u32 %v989, 16
    %v995 = vmul.u32 %v991, %v993
    %v996 = vmul.u32 %v991, %v994
    %v997 = vmul.u32 %v992, %v993
    %v998 = vmul.u32 %v992, %v994
    %v999 = vshll.u32 %v996, 16
    %v1000 = vshrl.u32 %v996, 16
    %v1001 = vshll.u32 %v997, 16
    %v1002 = vshrl.u32 %v997, 16
    %vm1003 = vc.u32 %v995, %v999
    %v1004 = vsel %vm1003, 1, 0
    %v1005 = vadd.s32 %v995, %v999
    %v1006 = vadd.s32 %v998, %v1004
    %vm1007 = vc.u32 %v1005, %v1001
    %v1008 = vsel %vm1007, 1, 0
    %v1009 = vadd.s32 %v1005, %v1001
    %v1010 = vadd.s32 %v1006, %v1008
    %v1011 = vadd.s32 %v1010, %v1000
    %v1012 = vadd.s32 %v1011, %v1002
    %v1013 = vand.u32 %v990, 65535
    %v1014 = vshrl.u32 %v990, 16
    %v1015 = vand.u32 %v985, 65535
    %v1016 = vshrl.u32 %v985, 16
    %v1017 = vmul.u32 %v1013, %v1015
    %v1018 = vmul.u32 %v1013, %v1016
    %v1019 = vmul.u32 %v1014, %v1015
    %v1020 = vmul.u32 %v1014, %v1016
    %v1021 = vshll.u32 %v1018, 16
    %v1022 = vshrl.u32 %v1018, 16
    %v1023 = vshll.u32 %v1019, 16
    %v1024 = vshrl.u32 %v1019, 16
    %vm1025 = vc.u32 %v1017, %v1021
    %v1026 = vsel %vm1025, 1, 0
    %v1027 = vadd.s32 %v1017, %v1021
    %v1028 = vadd.s32 %v1020, %v1026
    %vm1029 = vc.u32 %v1027, %v1023
    %v1030 = vsel %vm1029, 1, 0
    %v1031 = vadd.s32 %v1027, %v1023
    %v1032 = vadd.s32 %v1028, %v1030
    %v1033 = vadd.s32 %v1032, %v1022
    %v1034 = vadd.s32 %v1033, %v1024
    %v1035 = vmul.u32 %v990, %v981
    %v1036 = vadd.s32 %v1012, %v1031
    %vm1037 = vc.u32 %v1012, %v1031
    %v1038 = vadd.s32 %v1034, 1
    %v1039 = vsel %vm1037, %v1038, %v1034
    %v1040 = vadd.s32 %v1035, %v1039
    %v1041 = vadd.s32 %v1040, 536870912
    %v1042 = vshrl.u32 %v1041, 30
    %v1043 = vshll.u32 %v1042, 30
    %v1044 = vsub.s32 %v1040, %v1043
    %vm1045 = vcmp.lt.s32.totalorder %v1044, 0
    %v1046 = vsub.s32 0, %v1044
    %v1047 = vsel %vm1045, %v1046, %v1044
    %v1048 = vclz %v1047
    %v1049 = vsub.s32 %v1048, 2
    %vm1050 = vcmp.gt.s32.totalorder 0, %v1049
    %v1051 = vsel %vm1050, 0, %v1049
    %v1052 = vsub.s32 32, %v1051
    %v1053 = vshll.u32 %v1044, %v1051
    %v1054 = vshrl.u32 %v1036, %v1052
    %v1055 = vor.u32 %v1053, %v1054
    %v1056 = vsub.s32 4294967266, %v1051
    %v1057 = vadd.s32 %v1056, 127
    %v1058 = vshll.u32 %v1057, 23
    %v1059 = vor.u32 4788187, %v1058
    %v1060 = vand.u32 2147483647, %v1059
    %v1062 = vcvt.s32.f32 %v1055
    %v1063 = vmul.f32 %v1062, %v1060
    %v1064 = vxor.u32 %v1063, 2147483648
    %v1065 = vsel %vm944, %v1064, %v1063
    %v1066 = vsub.s32 4, %v1042
    %v1067 = vsel %vm944, %v1066, %v1042
    %v1068 = vsel %vm943, %v197, %v1065
    %v1069 = vsel %vm943, 0, %v1067
    %v1070 = vmul.f32 %v1068, %v1068
    %v1071 = vmul.f32 %v1070, -0.001358992
    %v1072 = vadd.f32 %v1071, 0.041655596
    %v1073 = vmul.f32 %v1070, %v1072
    %v1074 = vadd.f32 %v1073, -0.4999988
    %v1075 = vmul.f32 %v1070, %v1074
    %v1076 = vadd.f32 1.0, %v1075
    %v1077 = vmul.f32 %v1068, %v1068
    %v1078 = vmul.f32 %v1077, -0.00019511016
    %v1079 = vadd.f32 %v1078, 0.008332121
    %v1080 = vmul.f32 %v1077, %v1079
    %v1081 = vadd.f32 %v1080, -0.16666654
    %v1082 = vmul.f32 %v1077, %v1081
    %v1083 = vadd.f32 %v1082, 1.0
    %v1084 = vmul.f32 %v1083, %v1068
    %vm1085 = vweird.f32 %v197
    %v1086 = vadd.s32 %v1069, 3
    %v1087 = vand.u32 %v1086, 3
    %vm1088 = vcmp.lt.s32.totalorder %v1087, 2
    %vm1089 = vcmp.eq.s32.totalorder %v1087, 0
    %v1090 = vxor.u32 %v1084, 2147483648
    %v1091 = vsel %vm1089, %v1076, %v1090
    %vm1092 = vcmp.eq.s32.totalorder %v1087, 2
    %v1093 = vxor.u32 %v1076, 2147483648
    %v1094 = vsel %vm1092, %v1093, %v1084
    %v1095 = vsel %vm1088, %v1091, %v1094
    %v1096 = vsel %vm1085, nan, %v1095
    %v1097 = vand.u32 2147483647, %v198
    %vm1098 = vcmp.le.f32.partialorder %v1097, 0.7853982
    %vm1099 = vcmp.lt.s32.totalorder %v198, 0
    %v1100 = vand.u32 %v198, 2139095040
    %v1101 = vshrl.u32 %v1100, 23
    %v1102 = vsub.s32 %v1101, 127
    %v1103 = vand.u32 2147483647, %v198
    %v1104 = vand.u32 %v1103, 8388607
    %v1105 = vor.u32 %v1104, 8388608
    %v1106 = vsub.s32 0, %v1105
    %v1107 = vadd.s32 %v1102, 1
    %vm1108 = vcmp.gt.s32.totalorder %v1107, 0
    %v1109 = vsel %vm1108, %v1107, 0
    %v1110 = vshrl.u32 %v1109, 5
    %v1111 = vand.u32 %v1109, 31
    %v1112 = vsub.s32 32, %v1111
    %v1113 = vshrl.u32 683565275, %v1112
    %v1114 = vshll.u32 683565275, %v1111
    %v1115 = vshrl.u32 2475754826, %v1112
    %v1116 = vor.u32 %v1114, %v1115
    %v1117 = vshll.u32 2475754826, %v1111
    %v1118 = vshrl.u32 2131351028, %v1112
    %v1119 = vor.u32 %v1117, %v1118
    %v1120 = vshll.u32 2131351028, %v1111
    %v1121 = vshrl.u32 2102212464, %v1112
    %v1122 = vor.u32 %v1120, %v1121
    %v1123 = vshll.u32 2102212464, %v1111
    %v1124 = vshrl.u32 920167782, %v1112
    %v1125 = vor.u32 %v1123, %v1124
    %v1126 = vshll.u32 920167782, %v1111
    %v1127 = vshrl.u32 1326507024, %v1112
    %v1128 = vor.u32 %v1126, %v1127
    %vm1129 = vcmp.lt.s32.totalorder %v1110, 1
    %vm1130 = vcmp.lt.s32.totalorder %v1110, 2
    %vm1131 = vcmp.lt.s32.totalorder %v1110, 3
    %vm1132 = vcmp.lt.s32.totalorder %v1110, 4
    %v1133 = vsel %vm1129, %v1113, %v1116
    %v1134 = vsel %vm1132, %v1122, 2102212464
    %v1135 = vsel %vm1131, %v1119, %v1134
    %v1136 = vsel %vm1130, %v1133, %v1135
    %v1137 = vsel %vm1129, %v1116, %v1119
    %v1138 = vsel %vm1132, %v1125, 920167782
    %v1139 = vsel %vm1131, %v1122, %v1138
    %v1140 = vsel %vm1130, %v1137, %v1139
    %v1141 = vsel %vm1129, %v1119, %v1122
    %v1142 = vsel %vm1132, %v1128, 1326507024
    %v1143 = vsel %vm1131, %v1125, %v1142
    %v1144 = vsel %vm1130, %v1141, %v1143
    %v1145 = vshll.u32 %v1105, 8
    %v1146 = vand.u32 %v1145, 65535
    %v1147 = vshrl.u32 %v1145, 16
    %v1148 = vand.u32 %v1144, 65535
    %v1149 = vshrl.u32 %v1144, 16
    %v1150 = vmul.u32 %v1146, %v1148
    %v1151 = vmul.u32 %v1146, %v1149
    %v1152 = vmul.u32 %v1147, %v1148
    %v1153 = vmul.u32 %v1147, %v1149
    %v1154 = vshll.u32 %v1151, 16
    %v1155 = vshrl.u32 %v1151, 16
    %v1156 = vshll.u32 %v1152, 16
    %v1157 = vshrl.u32 %v1152, 16
    %vm1158 = vc.u32 %v1150, %v1154
    %v1159 = vsel %vm1158, 1, 0
    %v1160 = vadd.s32 %v1150, %v1154
    %v1161 = vadd.s32 %v1153, %v1159
    %vm1162 = vc.u32 %v1160, %v1156
    %v1163 = vsel %vm1162, 1, 0
    %v1164 = vadd.s32 %v1160, %v1156
    %v1165 = vadd.s32 %v1161, %v1163
    %v1166 = vadd.s32 %v1165, %v1155
    %v1167 = vadd.s32 %v1166, %v1157
    %v1168 = vand.u32 %v1145, 65535
    %v1169 = vshrl.u32 %v1145, 16
    %v1170 = vand.u32 %v1140, 65535
    %v1171 = vshrl.u32 %v1140, 16
    %v1172 = vmul.u32 %v1168, %v1170
    %v1173 = vmul.u32 %v1168, %v1171
    %v1174 = vmul.u32 %v1169, %v1170
    %v1175 = vmul.u32 %v1169, %v1171
    %v1176 = vshll.u32 %v1173, 16
    %v1177 = vshrl.u32 %v1173, 16
    %v1178 = vshll.u32 %v1174, 16
    %v1179 = vshrl.u32 %v1174, 16
    %vm1180 = vc.u32 %v1172, %v1176
    %v1181 = vsel %vm1180, 1, 0
    %v1182 = vadd.s32 %v1172, %v1176
    %v1183 = vadd.s32 %v1175, %v1181
    %vm1184 = vc.u32 %v1182, %v1178
    %v1185 = vsel %vm1184, 1, 0
    %v1186 = vadd.s32 %v1182, %v1178
    %v1187 = vadd.s32 %v1183, %v1185
    %v1188 = vadd.s32 %v1187, %v1177
    %v1189 = vadd.s32 %v1188, %v1179
    %v1190 = vmul.u32 %v1145, %v1136
    %v1191 = vadd.s32 %v1167, %v1186
    %vm1192 = vc.u32 %v1167, %v1186
    %v1193 = vadd.s32 %v1189, 1
    %v1194 = vsel %vm1192, %v1193, %v1189
    %v1195 = vadd.s32 %v1190, %v1194
    %v1196 = vadd.s32 %v1195, 536870912
    %v1197 = vshrl.u32 %v1196, 30
    %v1198 = vshll.u32 %v1197, 30
    %v1199 = vsub.s32 %v1195, %v1198
    %vm1200 = vcmp.lt.s32.totalorder %v1199, 0
    %v1201 = vsub.s32 0, %v1199
    %v1202 = vsel %vm1200, %v1201, %v1199
    %v1203 = vclz %v1202
    %v1204 = vsub.s32 %v1203, 2
    %vm1205 = vcmp.gt.s32.totalorder 0, %v1204
    %v1206 = vsel %vm1205, 0, %v1204
    %v1207 = vsub.s32 32, %v1206
    %v1208 = vshll.u32 %v1199, %v1206
    %v1209 = vshrl.u32 %v1191, %v1207
    %v1210 = vor.u32 %v1208, %v1209
    %v1211 = vsub.s32 4294967266, %v1206
    %v1212 = vadd.s32 %v1211, 127
    %v1213 = vshll.u32 %v1212, 23
    %v1214 = vor.u32 4788187, %v1213
    %v1215 = vand.u32 2147483647, %v1214
    %v1217 = vcvt.s32.f32 %v1210
    %v1218 = vmul.f32 %v1217, %v1215
    %v1219 = vxor.u32 %v1218, 2147483648
    %v1220 = vsel %vm1099, %v1219, %v1218
    %v1221 = vsub.s32 4, %v1197
    %v1222 = vsel %vm1099, %v1221, %v1197
    %v1223 = vsel %vm1098, %v198, %v1220
    %v1224 = vsel %vm1098, 0, %v1222
    %v1225 = vmul.f32 %v1223, %v1223
    %v1226 = vmul.f32 %v1225, -0.001358992
    %v1227 = vadd.f32 %v1226, 0.041655596
    %v1228 = vmul.f32 %v1225, %v1227
    %v1229 = vadd.f32 %v1228, -0.4999988
    %v1230 = vmul.f32 %v1225, %v1229
    %v1231 = vadd.f32 1.0, %v1230
    %v1232 = vmul.f32 %v1223, %v1223
    %v1233 = vmul.f32 %v1232, -0.00019511016
    %v1234 = vadd.f32 %v1233, 0.008332121
    %v1235 = vmul.f32 %v1232, %v1234
    %v1236 = vadd.f32 %v1235, -0.16666654
    %v1237 = vmul.f32 %v1232, %v1236
    %v1238 = vadd.f32 %v1237, 1.0
    %v1239 = vmul.f32 %v1238, %v1223
    %vm1240 = vweird.f32 %v198
    %v1241 = vadd.s32 %v1224, 3
    %v1242 = vand.u32 %v1241, 3
    %vm1243 = vcmp.lt.s32.totalorder %v1242, 2
    %vm1244 = vcmp.eq.s32.totalorder %v1242, 0
    %v1245 = vxor.u32 %v1239, 2147483648
    %v1246 = vsel %vm1244, %v1231, %v1245
    %vm1247 = vcmp.eq.s32.totalorder %v1242, 2
    %v1248 = vxor.u32 %v1231, 2147483648
    %v1249 = vsel %vm1247, %v1248, %v1239
    %v1250 = vsel %vm1243, %v1246, %v1249
    %v1251 = vsel %vm1240, nan, %v1250
    %v1252 = vand.u32 2147483647, %v199
    %vm1253 = vcmp.le.f32.partialorder %v1252, 0.7853982
    %vm1254 = vcmp.lt.s32.totalorder %v199, 0
    %v1255 = vand.u32 %v199, 2139095040
    %v1256 = vshrl.u32 %v1255, 23
    %v1257 = vsub.s32 %v1256, 127
    %v1258 = vand.u32 2147483647, %v199
    %v1259 = vand.u32 %v1258, 8388607
    %v1260 = vor.u32 %v1259, 8388608
    %v1261 = vsub.s32 0, %v1260
    %v1262 = vadd.s32 %v1257, 1
    %vm1263 = vcmp.gt.s32.totalorder %v1262, 0
    %v1264 = vsel %vm1263, %v1262, 0
    %v1265 = vshrl.u32 %v1264, 5
    %v1266 = vand.u32 %v1264, 31
    %v1267 = vsub.s32 32, %v1266
    %v1268 = vshrl.u32 683565275, %v1267
    %v1269 = vshll.u32 683565275, %v1266
    %v1270 = vshrl.u32 2475754826, %v1267
    %v1271 = vor.u32 %v1269, %v1270
    %v1272 = vshll.u32 2475754826, %v1266
    %v1273 = vshrl.u32 2131351028, %v1267
    %v1274 = vor.u32 %v1272, %v1273
    %v1275 = vshll.u32 2131351028, %v1266
    %v1276 = vshrl.u32 2102212464, %v1267
    %v1277 = vor.u32 %v1275, %v1276
    %v1278 = vshll.u32 2102212464, %v1266
    %v1279 = vshrl.u32 920167782, %v1267
    %v1280 = vor.u32 %v1278, %v1279
    %v1281 = vshll.u32 920167782, %v1266
    %v1282 = vshrl.u32 1326507024, %v1267
    %v1283 = vor.u32 %v1281, %v1282
    %vm1284 = vcmp.lt.s32.totalorder %v1265, 1
    %vm1285 = vcmp.lt.s32.totalorder %v1265, 2
    %vm1286 = vcmp.lt.s32.totalorder %v1265, 3
    %vm1287 = vcmp.lt.s32.totalorder %v1265, 4
    %v1288 = vsel %vm1284, %v1268, %v1271
    %v1289 = vsel %vm1287, %v1277, 2102212464
    %v1290 = vsel %vm1286, %v1274, %v1289
    %v1291 = vsel %vm1285, %v1288, %v1290
    %v1292 = vsel %vm1284, %v1271, %v1274
    %v1293 = vsel %vm1287, %v1280, 920167782
    %v1294 = vsel %vm1286, %v1277, %v1293
    %v1295 = vsel %vm1285, %v1292, %v1294
    %v1296 = vsel %vm1284, %v1274, %v1277
    %v1297 = vsel %vm1287, %v1283, 1326507024
    %v1298 = vsel %vm1286, %v1280, %v1297
    %v1299 = vsel %vm1285, %v1296, %v1298
    %v1300 = vshll.u32 %v1260, 8
    %v1301 = vand.u32 %v1300, 65535
    %v1302 = vshrl.u32 %v1300, 16
    %v1303 = vand.u32 %v1299, 65535
    %v1304 = vshrl.u32 %v1299, 16
    %v1305 = vmul.u32 %v1301, %v1303
    %v1306 = vmul.u32 %v1301, %v1304
    %v1307 = vmul.u32 %v1302, %v1303
    %v1308 = vmul.u32 %v1302, %v1304
    %v1309 = vshll.u32 %v1306, 16
    %v1310 = vshrl.u32 %v1306, 16
    %v1311 = vshll.u32 %v1307, 16
    %v1312 = vshrl.u32 %v1307, 16
    %vm1313 = vc.u32 %v1305, %v1309
    %v1314 = vsel %vm1313, 1, 0
    %v1315 = vadd.s32 %v1305, %v1309
    %v1316 = vadd.s32 %v1308, %v1314
    %vm1317 = vc.u32 %v1315, %v1311
    %v1318 = vsel %vm1317, 1, 0
    %v1319 = vadd.s32 %v1315, %v1311
    %v1320 = vadd.s32 %v1316, %v1318
    %v1321 = vadd.s32 %v1320, %v1310
    %v1322 = vadd.s32 %v1321, %v1312
    %v1323 = vand.u32 %v1300, 65535
    %v1324 = vshrl.u32 %v1300, 16
    %v1325 = vand.u32 %v1295, 65535
    %v1326 = vshrl.u32 %v1295, 16
    %v1327 = vmul.u32 %v1323, %v1325
    %v1328 = vmul.u32 %v1323, %v1326
    %v1329 = vmul.u32 %v1324, %v1325
    %v1330 = vmul.u32 %v1324, %v1326
    %v1331 = vshll.u32 %v1328, 16
    %v1332 = vshrl.u32 %v1328, 16
    %v1333 = vshll.u32 %v1329, 16
    %v1334 = vshrl.u32 %v1329, 16
    %vm1335 = vc.u32 %v1327, %v1331
    %v1336 = vsel %vm1335, 1, 0
    %v1337 = vadd.s32 %v1327, %v1331
    %v1338 = vadd.s32 %v1330, %v1336
    %vm1339 = vc.u32 %v1337, %v1333
    %v1340 = vsel %vm1339, 1, 0
    %v1341 = vadd.s32 %v1337, %v1333
    %v1342 = vadd.s32 %v1338, %v1340
    %v1343 = vadd.s32 %v1342, %v1332
    %v1344 = vadd.s32 %v1343, %v1334
    %v1345 = vmul.u32 %v1300, %v1291
    %v1346 = vadd.s32 %v1322, %v1341
    %vm1347 = vc.u32 %v1322, %v1341
    %v1348 = vadd.s32 %v1344, 1
    %v1349 = vsel %vm1347, %v1348, %v1344
    %v1350 = vadd.s32 %v1345, %v1349
    %v1351 = vadd.s32 %v1350, 536870912
    %v1352 = vshrl.u32 %v1351, 30
    %v1353 = vshll.u32 %v1352, 30
    %v1354 = vsub.s32 %v1350, %v1353
    %vm1355 = vcmp.lt.s32.totalorder %v1354, 0
    %v1356 = vsub.s32 0, %v1354
    %v1357 = vsel %vm1355, %v1356, %v1354
    %v1358 = vclz %v1357
    %v1359 = vsub.s32 %v1358, 2
    %vm1360 = vcmp.gt.s32.totalorder 0, %v1359
    %v1361 = vsel %vm1360, 0, %v1359
    %v1362 = vsub.s32 32, %v1361
    %v1363 = vshll.u32 %v1354, %v1361
    %v1364 = vshrl.u32 %v1346, %v1362
    %v1365 = vor.u32 %v1363, %v1364
    %v1366 = vsub.s32 4294967266, %v1361
    %v1367 = vadd.s32 %v1366, 127
    %v1368 = vshll.u32 %v1367, 23
    %v1369 = vor.u32 4788187, %v1368
    %v1370 = vand.u32 2147483647, %v1369
    %v1372 = vcvt.s32.f32 %v1365
    %v1373 = vmul.f32 %v1372, %v1370
    %v1374 = vxor.u32 %v1373, 2147483648
    %v1375 = vsel %vm1254, %v1374, %v1373
    %v1376 = vsub.s32 4, %v1352
    %v1377 = vsel %vm1254, %v1376, %v1352
    %v1378 = vsel %vm1253, %v199, %v1375
    %v1379 = vsel %vm1253, 0, %v1377
    %v1380 = vmul.f32 %v1378, %v1378
    %v1381 = vmul.f32 %v1380, -0.001358992
    %v1382 = vadd.f32 %v1381, 0.041655596
    %v1383 = vmul.f32 %v1380, %v1382
    %v1384 = vadd.f32 %v1383, -0.4999988
    %v1385 = vmul.f32 %v1380, %v1384
    %v1386 = vadd.f32 1.0, %v1385
    %v1387 = vmul.f32 %v1378, %v1378
    %v1388 = vmul.f32 %v1387, -0.00019511016
    %v1389 = vadd.f32 %v1388, 0.008332121
    %v1390 = vmul.f32 %v1387, %v1389
    %v1391 = vadd.f32 %v1390, -0.16666654
    %v1392 = vmul.f32 %v1387, %v1391
    %v1393 = vadd.f32 %v1392, 1.0
    %v1394 = vmul.f32 %v1393, %v1378
    %vm1395 = vweird.f32 %v199
    %v1396 = vadd.s32 %v1379, 3
    %v1397 = vand.u32 %v1396, 3
    %vm1398 = vcmp.lt.s32.totalorder %v1397, 2
    %vm1399 = vcmp.eq.s32.totalorder %v1397, 0
    %v1400 = vxor.u32 %v1394, 2147483648
    %v1401 = vsel %vm1399, %v1386, %v1400
    %vm1402 = vcmp.eq.s32.totalorder %v1397, 2
    %v1403 = vxor.u32 %v1386, 2147483648
    %v1404 = vsel %vm1402, %v1403, %v1394
    %v1405 = vsel %vm1398, %v1401, %v1404
    %v1406 = vsel %vm1395, nan, %v1405
    %v1407 = vand.u32 2147483647, %v200
    %vm1408 = vcmp.le.f32.partialorder %v1407, 0.7853982
    %vm1409 = vcmp.lt.s32.totalorder %v200, 0
    %v1410 = vand.u32 %v200, 2139095040
    %v1411 = vshrl.u32 %v1410, 23
    %v1412 = vsub.s32 %v1411, 127
    %v1413 = vand.u32 2147483647, %v200
    %v1414 = vand.u32 %v1413, 8388607
    %v1415 = vor.u32 %v1414, 8388608
    %v1416 = vsub.s32 0, %v1415
    %v1417 = vadd.s32 %v1412, 1
    %vm1418 = vcmp.gt.s32.totalorder %v1417, 0
    %v1419 = vsel %vm1418, %v1417, 0
    %v1420 = vshrl.u32 %v1419, 5
    %v1421 = vand.u32 %v1419, 31
    %v1422 = vsub.s32 32, %v1421
    %v1423 = vshrl.u32 683565275, %v1422
    %v1424 = vshll.u32 683565275, %v1421
    %v1425 = vshrl.u32 2475754826, %v1422
    %v1426 = vor.u32 %v1424, %v1425
    %v1427 = vshll.u32 2475754826, %v1421
    %v1428 = vshrl.u32 2131351028, %v1422
    %v1429 = vor.u32 %v1427, %v1428
    %v1430 = vshll.u32 2131351028, %v1421
    %v1431 = vshrl.u32 2102212464, %v1422
    %v1432 = vor.u32 %v1430, %v1431
    %v1433 = vshll.u32 2102212464, %v1421
    %v1434 = vshrl.u32 920167782, %v1422
    %v1435 = vor.u32 %v1433, %v1434
    %v1436 = vshll.u32 920167782, %v1421
    %v1437 = vshrl.u32 1326507024, %v1422
    %v1438 = vor.u32 %v1436, %v1437
    %vm1439 = vcmp.lt.s32.totalorder %v1420, 1
    %vm1440 = vcmp.lt.s32.totalorder %v1420, 2
    %vm1441 = vcmp.lt.s32.totalorder %v1420, 3
    %vm1442 = vcmp.lt.s32.totalorder %v1420, 4
    %v1443 = vsel %vm1439, %v1423, %v1426
    %v1444 = vsel %vm1442, %v1432, 2102212464
    %v1445 = vsel %vm1441, %v1429, %v1444
    %v1446 = vsel %vm1440, %v1443, %v1445
    %v1447 = vsel %vm1439, %v1426, %v1429
    %v1448 = vsel %vm1442, %v1435, 920167782
    %v1449 = vsel %vm1441, %v1432, %v1448
    %v1450 = vsel %vm1440, %v1447, %v1449
    %v1451 = vsel %vm1439, %v1429, %v1432
    %v1452 = vsel %vm1442, %v1438, 1326507024
    %v1453 = vsel %vm1441, %v1435, %v1452
    %v1454 = vsel %vm1440, %v1451, %v1453
    %v1455 = vshll.u32 %v1415, 8
    %v1456 = vand.u32 %v1455, 65535
    %v1457 = vshrl.u32 %v1455, 16
    %v1458 = vand.u32 %v1454, 65535
    %v1459 = vshrl.u32 %v1454, 16
    %v1460 = vmul.u32 %v1456, %v1458
    %v1461 = vmul.u32 %v1456, %v1459
    %v1462 = vmul.u32 %v1457, %v1458
    %v1463 = vmul.u32 %v1457, %v1459
    %v1464 = vshll.u32 %v1461, 16
    %v1465 = vshrl.u32 %v1461, 16
    %v1466 = vshll.u32 %v1462, 16
    %v1467 = vshrl.u32 %v1462, 16
    %vm1468 = vc.u32 %v1460, %v1464
    %v1469 = vsel %vm1468, 1, 0
    %v1470 = vadd.s32 %v1460, %v1464
    %v1471 = vadd.s32 %v1463, %v1469
    %vm1472 = vc.u32 %v1470, %v1466
    %v1473 = vsel %vm1472, 1, 0
    %v1474 = vadd.s32 %v1470, %v1466
    %v1475 = vadd.s32 %v1471, %v1473
    %v1476 = vadd.s32 %v1475, %v1465
    %v1477 = vadd.s32 %v1476, %v1467
    %v1478 = vand.u32 %v1455, 65535
    %v1479 = vshrl.u32 %v1455, 16
    %v1480 = vand.u32 %v1450, 65535
    %v1481 = vshrl.u32 %v1450, 16
    %v1482 = vmul.u32 %v1478, %v1480
    %v1483 = vmul.u32 %v1478, %v1481
    %v1484 = vmul.u32 %v1479, %v1480
    %v1485 = vmul.u32 %v1479, %v1481
    %v1486 = vshll.u32 %v1483, 16
    %v1487 = vshrl.u32 %v1483, 16
    %v1488 = vshll.u32 %v1484, 16
    %v1489 = vshrl.u32 %v1484, 16
    %vm1490 = vc.u32 %v1482, %v1486
    %v1491 = vsel %vm1490, 1, 0
    %v1492 = vadd.s32 %v1482, %v1486
    %v1493 = vadd.s32 %v1485, %v1491
    %vm1494 = vc.u32 %v1492, %v1488
    %v1495 = vsel %vm1494, 1, 0
    %v1496 = vadd.s32 %v1492, %v1488
    %v1497 = vadd.s32 %v1493, %v1495
    %v1498 = vadd.s32 %v1497, %v1487
    %v1499 = vadd.s32 %v1498, %v1489
    %v1500 = vmul.u32 %v1455, %v1446
    %v1501 = vadd.s32 %v1477, %v1496
    %vm1502 = vc.u32 %v1477, %v1496
    %v1503 = vadd.s32 %v1499, 1
    %v1504 = vsel %vm1502, %v1503, %v1499
    %v1505 = vadd.s32 %v1500, %v1504
    %v1506 = vadd.s32 %v1505, 536870912
    %v1507 = vshrl.u32 %v1506, 30
    %v1508 = vshll.u32 %v1507, 30
    %v1509 = vsub.s32 %v1505, %v1508
    %vm1510 = vcmp.lt.s32.totalorder %v1509, 0
    %v1511 = vsub.s32 0, %v1509
    %v1512 = vsel %vm1510, %v1511, %v1509
    %v1513 = vclz %v1512
    %v1514 = vsub.s32 %v1513, 2
    %vm1515 = vcmp.gt.s32.totalorder 0, %v1514
    %v1516 = vsel %vm1515, 0, %v1514
    %v1517 = vsub.s32 32, %v1516
    %v1518 = vshll.u32 %v1509, %v1516
    %v1519 = vshrl.u32 %v1501, %v1517
    %v1520 = vor.u32 %v1518, %v1519
    %v1521 = vsub.s32 4294967266, %v1516
    %v1522 = vadd.s32 %v1521, 127
    %v1523 = vshll.u32 %v1522, 23
    %v1524 = vor.u32 4788187, %v1523
    %v1525 = vand.u32 2147483647, %v1524
    %v1527 = vcvt.s32.f32 %v1520
    %v1528 = vmul.f32 %v1527, %v1525
    %v1529 = vxor.u32 %v1528, 2147483648
    %v1530 = vsel %vm1409, %v1529, %v1528
    %v1531 = vsub.s32 4, %v1507
    %v1532 = vsel %vm1409, %v1531, %v1507
    %v1533 = vsel %vm1408, %v200, %v1530
    %v1534 = vsel %vm1408, 0, %v1532
    %v1535 = vmul.f32 %v1533, %v1533
    %v1536 = vmul.f32 %v1535, -0.001358992
    %v1537 = vadd.f32 %v1536, 0.041655596
    %v1538 = vmul.f32 %v1535, %v1537
    %v1539 = vadd.f32 %v1538, -0.4999988
    %v1540 = vmul.f32 %v1535, %v1539
    %v1541 = vadd.f32 1.0, %v1540
    %v1542 = vmul.f32 %v1533, %v1533
    %v1543 = vmul.f32 %v1542, -0.00019511016
    %v1544 = vadd.f32 %v1543, 0.008332121
    %v1545 = vmul.f32 %v1542, %v1544
    %v1546 = vadd.f32 %v1545, -0.16666654
    %v1547 = vmul.f32 %v1542, %v1546
    %v1548 = vadd.f32 %v1547, 1.0
    %v1549 = vmul.f32 %v1548, %v1533
    %vm1550 = vweird.f32 %v200
    %v1551 = vadd.s32 %v1534, 3
    %v1552 = vand.u32 %v1551, 3
    %vm1553 = vcmp.lt.s32.totalorder %v1552, 2
    %vm1554 = vcmp.eq.s32.totalorder %v1552, 0
    %v1555 = vxor.u32 %v1549, 2147483648
    %v1556 = vsel %vm1554, %v1541, %v1555
    %vm1557 = vcmp.eq.s32.totalorder %v1552, 2
    %v1558 = vxor.u32 %v1541, 2147483648
    %v1559 = vsel %vm1557, %v1558, %v1549
    %v1560 = vsel %vm1553, %v1556, %v1559
    %v1561 = vsel %vm1550, nan, %v1560
    %v1562 = vld [vmem:[%s4] sm:$0xff]
    %v1563 = vld [vmem:[%s4 + $0x8] sm:$0xff]
    %v1564 = vld [vmem:[%s4 + $0x10] sm:$0xff]
    %v1565 = vld [vmem:[%s4 + $0x18] sm:$0xff]
    %v1566 = vld [vmem:[%s4 + $0x20] sm:$0xff]
    %v1567 = vld [vmem:[%s4 + $0x28] sm:$0xff]
    %v1568 = vld [vmem:[%s4 + $0x30] sm:$0xff]
    %v1569 = vld [vmem:[%s4 + $0x38] sm:$0xff]
    %vm1570 = vcmask 523264
    %v1572 = vsel %vm1570, %v476, 0
    %v1575 = vsel %vm1570, %v631, 0
    %v1578 = vsel %vm1570, %v786, 0
    %v1581 = vsel %vm1570, %v941, 0
    %v1584 = vsel %vm1570, %v1096, 0
    %v1587 = vsel %vm1570, %v1251, 0
    %v1590 = vsel %vm1570, %v1406, 0
    %v1593 = vsel %vm1570, %v1561, 0
    %1595 = vmatpush.msra.mxu0 0.0
    %1596 = vmatpush.msra.mxu0 0.0
    %1597 = vmatpush.msra.mxu0 0.0
    %1598 = vmatpush.msra.mxu0 0.0
    %1599 = vmatpush.msra.mxu0 0.0
    %1600 = vmatpush.msra.mxu0 0.0
    %1601 = vmatpush.msra.mxu0 0.0
    %1602 = vmatpush.msra.mxu0 0.0
    %1603 = vmatpush.msra.mxu0 %v1569
    %1604 = vmatpush.msra.mxu0 %v1568
    %1605 = vmatpush.msra.mxu0 %v1567
    %1606 = vmatpush.msra.mxu0 %v1566
    %1607 = vmatpush.msra.mxu0 %v1565
    %1608 = vmatpush.msra.mxu0 %v1564
    %1609 = vmatpush.msra.mxu0 %v1563
    %1610 = vmatpush.msra.mxu0 %v1562
    %1611 = vmatmul.f32.gmra.mxu0 %v1572
    %v1612 = vpop.f32.mrf.mxu0
    %v1613 = vadd.f32 0.0, %v1612
    %1614 = vmatmul.f32.gmra.mxu0 %v1575
    %v1615 = vpop.f32.mrf.mxu0
    %v1616 = vadd.f32 0.0, %v1615
    %1617 = vmatmul.f32.gmra.mxu0 %v1578
    %v1618 = vpop.f32.mrf.mxu0
    %v1619 = vadd.f32 0.0, %v1618
    %1620 = vmatmul.f32.gmra.mxu0 %v1581
    %v1621 = vpop.f32.mrf.mxu0
    %v1622 = vadd.f32 0.0, %v1621
    %1623 = vmatmul.f32.gmra.mxu0 %v1584
    %v1624 = vpop.f32.mrf.mxu0
    %v1625 = vadd.f32 0.0, %v1624
    %1626 = vmatmul.f32.gmra.mxu0 %v1587
    %v1627 = vpop.f32.mrf.mxu0
    %v1628 = vadd.f32 0.0, %v1627
    %1629 = vmatmul.f32.gmra.mxu0 %v1590
    %v1630 = vpop.f32.mrf.mxu0
    %v1631 = vadd.f32 0.0, %v1630
    %1632 = vmatmul.f32.gmra.mxu0 %v1593
    %v1633 = vpop.f32.mrf.mxu0
    %v1634 = vadd.f32 0.0, %v1633
    %1635 = vdwg.mxu0
    %v1637 = vperm.slane %v321, 0
    %v1639 = vadd.f32 %v1637, %v1613
    %v1640 = vadd.f32 %v1637, %v1616
    %v1641 = vadd.f32 %v1637, %v1619
    %v1642 = vadd.f32 %v1637, %v1622
    %v1643 = vadd.f32 %v1637, %v1625
    %v1644 = vadd.f32 %v1637, %v1628
    %v1645 = vadd.f32 %v1637, %v1631
    %v1646 = vadd.f32 %v1637, %v1634
    %v1647 = vand.u32 2147483647, %v193
    %vm1648 = vcmp.le.f32.partialorder %v1647, 0.7853982
    %vm1649 = vcmp.lt.s32.totalorder %v193, 0
    %v1650 = vand.u32 %v193, 2139095040
    %v1651 = vshrl.u32 %v1650, 23
    %v1652 = vsub.s32 %v1651, 127
    %v1653 = vand.u32 2147483647, %v193
    %v1654 = vand.u32 %v1653, 8388607
    %v1655 = vor.u32 %v1654, 8388608
    %v1656 = vsub.s32 0, %v1655
    %v1657 = vadd.s32 %v1652, 1
    %vm1658 = vcmp.gt.s32.totalorder %v1657, 0
    %v1659 = vsel %vm1658, %v1657, 0
    %v1660 = vshrl.u32 %v1659, 5
    %v1661 = vand.u32 %v1659, 31
    %v1662 = vsub.s32 32, %v1661
    %v1663 = vshrl.u32 683565275, %v1662
    %v1664 = vshll.u32 683565275, %v1661
    %v1665 = vshrl.u32 2475754826, %v1662
    %v1666 = vor.u32 %v1664, %v1665
    %v1667 = vshll.u32 2475754826, %v1661
    %v1668 = vshrl.u32 2131351028, %v1662
    %v1669 = vor.u32 %v1667, %v1668
    %v1670 = vshll.u32 2131351028, %v1661
    %v1671 = vshrl.u32 2102212464, %v1662
    %v1672 = vor.u32 %v1670, %v1671
    %v1673 = vshll.u32 2102212464, %v1661
    %v1674 = vshrl.u32 920167782, %v1662
    %v1675 = vor.u32 %v1673, %v1674
    %v1676 = vshll.u32 920167782, %v1661
    %v1677 = vshrl.u32 1326507024, %v1662
    %v1678 = vor.u32 %v1676, %v1677
    %vm1679 = vcmp.lt.s32.totalorder %v1660, 1
    %vm1680 = vcmp.lt.s32.totalorder %v1660, 2
    %vm1681 = vcmp.lt.s32.totalorder %v1660, 3
    %vm1682 = vcmp.lt.s32.totalorder %v1660, 4
    %v1683 = vsel %vm1679, %v1663, %v1666
    %v1684 = vsel %vm1682, %v1672, 2102212464
    %v1685 = vsel %vm1681, %v1669, %v1684
    %v1686 = vsel %vm1680, %v1683, %v1685
    %v1687 = vsel %vm1679, %v1666, %v1669
    %v1688 = vsel %vm1682, %v1675, 920167782
    %v1689 = vsel %vm1681, %v1672, %v1688
    %v1690 = vsel %vm1680, %v1687, %v1689
    %v1691 = vsel %vm1679, %v1669, %v1672
    %v1692 = vsel %vm1682, %v1678, 1326507024
    %v1693 = vsel %vm1681, %v1675, %v1692
    %v1694 = vsel %vm1680, %v1691, %v1693
    %v1695 = vshll.u32 %v1655, 8
    %v1696 = vand.u32 %v1695, 65535
    %v1697 = vshrl.u32 %v1695, 16
    %v1698 = vand.u32 %v1694, 65535
    %v1699 = vshrl.u32 %v1694, 16
    %v1700 = vmul.u32 %v1696, %v1698
    %v1701 = vmul.u32 %v1696, %v1699
    %v1702 = vmul.u32 %v1697, %v1698
    %v1703 = vmul.u32 %v1697, %v1699
    %v1704 = vshll.u32 %v1701, 16
    %v1705 = vshrl.u32 %v1701, 16
    %v1706 = vshll.u32 %v1702, 16
    %v1707 = vshrl.u32 %v1702, 16
    %vm1708 = vc.u32 %v1700, %v1704
    %v1709 = vsel %vm1708, 1, 0
    %v1710 = vadd.s32 %v1700, %v1704
    %v1711 = vadd.s32 %v1703, %v1709
    %vm1712 = vc.u32 %v1710, %v1706
    %v1713 = vsel %vm1712, 1, 0
    %v1714 = vadd.s32 %v1710, %v1706
    %v1715 = vadd.s32 %v1711, %v1713
    %v1716 = vadd.s32 %v1715, %v1705
    %v1717 = vadd.s32 %v1716, %v1707
    %v1718 = vand.u32 %v1695, 65535
    %v1719 = vshrl.u32 %v1695, 16
    %v1720 = vand.u32 %v1690, 65535
    %v1721 = vshrl.u32 %v1690, 16
    %v1722 = vmul.u32 %v1718, %v1720
    %v1723 = vmul.u32 %v1718, %v1721
    %v1724 = vmul.u32 %v1719, %v1720
    %v1725 = vmul.u32 %v1719, %v1721
    %v1726 = vshll.u32 %v1723, 16
    %v1727 = vshrl.u32 %v1723, 16
    %v1728 = vshll.u32 %v1724, 16
    %v1729 = vshrl.u32 %v1724, 16
    %vm1730 = vc.u32 %v1722, %v1726
    %v1731 = vsel %vm1730, 1, 0
    %v1732 = vadd.s32 %v1722, %v1726
    %v1733 = vadd.s32 %v1725, %v1731
    %vm1734 = vc.u32 %v1732, %v1728
    %v1735 = vsel %vm1734, 1, 0
    %v1736 = vadd.s32 %v1732, %v1728
    %v1737 = vadd.s32 %v1733, %v1735
    %v1738 = vadd.s32 %v1737, %v1727
    %v1739 = vadd.s32 %v1738, %v1729
    %v1740 = vmul.u32 %v1695, %v1686
    %v1741 = vadd.s32 %v1717, %v1736
    %vm1742 = vc.u32 %v1717, %v1736
    %v1743 = vadd.s32 %v1739, 1
    %v1744 = vsel %vm1742, %v1743, %v1739
    %v1745 = vadd.s32 %v1740, %v1744
    %v1746 = vadd.s32 %v1745, 536870912
    %v1747 = vshrl.u32 %v1746, 30
    %v1748 = vshll.u32 %v1747, 30
    %v1749 = vsub.s32 %v1745, %v1748
    %vm1750 = vcmp.lt.s32.totalorder %v1749, 0
    %v1751 = vsub.s32 0, %v1749
    %v1752 = vsel %vm1750, %v1751, %v1749
    %v1753 = vclz %v1752
    %v1754 = vsub.s32 %v1753, 2
    %vm1755 = vcmp.gt.s32.totalorder 0, %v1754
    %v1756 = vsel %vm1755, 0, %v1754
    %v1757 = vsub.s32 32, %v1756
    %v1758 = vshll.u32 %v1749, %v1756
    %v1759 = vshrl.u32 %v1741, %v1757
    %v1760 = vor.u32 %v1758, %v1759
    %v1761 = vsub.s32 4294967266, %v1756
    %v1762 = vadd.s32 %v1761, 127
    %v1763 = vshll.u32 %v1762, 23
    %v1764 = vor.u32 4788187, %v1763
    %v1765 = vand.u32 2147483647, %v1764
    %v1767 = vcvt.s32.f32 %v1760
    %v1768 = vmul.f32 %v1767, %v1765
    %v1769 = vxor.u32 %v1768, 2147483648
    %v1770 = vsel %vm1649, %v1769, %v1768
    %v1771 = vsub.s32 4, %v1747
    %v1772 = vsel %vm1649, %v1771, %v1747
    %v1773 = vsel %vm1648, %v193, %v1770
    %v1774 = vsel %vm1648, 0, %v1772
    %v1775 = vmul.f32 %v1773, %v1773
    %v1776 = vmul.f32 %v1775, -0.001358992
    %v1777 = vadd.f32 %v1776, 0.041655596
    %v1778 = vmul.f32 %v1775, %v1777
    %v1779 = vadd.f32 %v1778, -0.4999988
    %v1780 = vmul.f32 %v1775, %v1779
    %v1781 = vadd.f32 1.0, %v1780
    %v1782 = vmul.f32 %v1773, %v1773
    %v1783 = vmul.f32 %v1782, -0.00019511016
    %v1784 = vadd.f32 %v1783, 0.008332121
    %v1785 = vmul.f32 %v1782, %v1784
    %v1786 = vadd.f32 %v1785, -0.16666654
    %v1787 = vmul.f32 %v1782, %v1786
    %v1788 = vadd.f32 %v1787, 1.0
    %v1789 = vmul.f32 %v1788, %v1773
    %vm1790 = vweird.f32 %v193
    %v1791 = vand.u32 %v1774, 3
    %vm1792 = vcmp.lt.s32.totalorder %v1791, 2
    %vm1793 = vcmp.eq.s32.totalorder %v1791, 0
    %v1794 = vxor.u32 %v1789, 2147483648
    %v1795 = vsel %vm1793, %v1781, %v1794
    %vm1796 = vcmp.eq.s32.totalorder %v1791, 2
    %v1797 = vxor.u32 %v1781, 2147483648
    %v1798 = vsel %vm1796, %v1797, %v1789
    %v1799 = vsel %vm1792, %v1795, %v1798
    %v1800 = vsel %vm1790, nan, %v1799
    %v1801 = vand.u32 2147483647, %v194
    %vm1802 = vcmp.le.f32.partialorder %v1801, 0.7853982
    %vm1803 = vcmp.lt.s32.totalorder %v194, 0
    %v1804 = vand.u32 %v194, 2139095040
    %v1805 = vshrl.u32 %v1804, 23
    %v1806 = vsub.s32 %v1805, 127
    %v1807 = vand.u32 2147483647, %v194
    %v1808 = vand.u32 %v1807, 8388607
    %v1809 = vor.u32 %v1808, 8388608
    %v1810 = vsub.s32 0, %v1809
    %v1811 = vadd.s32 %v1806, 1
    %vm1812 = vcmp.gt.s32.totalorder %v1811, 0
    %v1813 = vsel %vm1812, %v1811, 0
    %v1814 = vshrl.u32 %v1813, 5
    %v1815 = vand.u32 %v1813, 31
    %v1816 = vsub.s32 32, %v1815
    %v1817 = vshrl.u32 683565275, %v1816
    %v1818 = vshll.u32 683565275, %v1815
    %v1819 = vshrl.u32 2475754826, %v1816
    %v1820 = vor.u32 %v1818, %v1819
    %v1821 = vshll.u32 2475754826, %v1815
    %v1822 = vshrl.u32 2131351028, %v1816
    %v1823 = vor.u32 %v1821, %v1822
    %v1824 = vshll.u32 2131351028, %v1815
    %v1825 = vshrl.u32 2102212464, %v1816
    %v1826 = vor.u32 %v1824, %v1825
    %v1827 = vshll.u32 2102212464, %v1815
    %v1828 = vshrl.u32 920167782, %v1816
    %v1829 = vor.u32 %v1827, %v1828
    %v1830 = vshll.u32 920167782, %v1815
    %v1831 = vshrl.u32 1326507024, %v1816
    %v1832 = vor.u32 %v1830, %v1831
    %vm1833 = vcmp.lt.s32.totalorder %v1814, 1
    %vm1834 = vcmp.lt.s32.totalorder %v1814, 2
    %vm1835 = vcmp.lt.s32.totalorder %v1814, 3
    %vm1836 = vcmp.lt.s32.totalorder %v1814, 4
    %v1837 = vsel %vm1833, %v1817, %v1820
    %v1838 = vsel %vm1836, %v1826, 2102212464
    %v1839 = vsel %vm1835, %v1823, %v1838
    %v1840 = vsel %vm1834, %v1837, %v1839
    %v1841 = vsel %vm1833, %v1820, %v1823
    %v1842 = vsel %vm1836, %v1829, 920167782
    %v1843 = vsel %vm1835, %v1826, %v1842
    %v1844 = vsel %vm1834, %v1841, %v1843
    %v1845 = vsel %vm1833, %v1823, %v1826
    %v1846 = vsel %vm1836, %v1832, 1326507024
    %v1847 = vsel %vm1835, %v1829, %v1846
    %v1848 = vsel %vm1834, %v1845, %v1847
    %v1849 = vshll.u32 %v1809, 8
    %v1850 = vand.u32 %v1849, 65535
    %v1851 = vshrl.u32 %v1849, 16
    %v1852 = vand.u32 %v1848, 65535
    %v1853 = vshrl.u32 %v1848, 16
    %v1854 = vmul.u32 %v1850, %v1852
    %v1855 = vmul.u32 %v1850, %v1853
    %v1856 = vmul.u32 %v1851, %v1852
    %v1857 = vmul.u32 %v1851, %v1853
    %v1858 = vshll.u32 %v1855, 16
    %v1859 = vshrl.u32 %v1855, 16
    %v1860 = vshll.u32 %v1856, 16
    %v1861 = vshrl.u32 %v1856, 16
    %vm1862 = vc.u32 %v1854, %v1858
    %v1863 = vsel %vm1862, 1, 0
    %v1864 = vadd.s32 %v1854, %v1858
    %v1865 = vadd.s32 %v1857, %v1863
    %vm1866 = vc.u32 %v1864, %v1860
    %v1867 = vsel %vm1866, 1, 0
    %v1868 = vadd.s32 %v1864, %v1860
    %v1869 = vadd.s32 %v1865, %v1867
    %v1870 = vadd.s32 %v1869, %v1859
    %v1871 = vadd.s32 %v1870, %v1861
    %v1872 = vand.u32 %v1849, 65535
    %v1873 = vshrl.u32 %v1849, 16
    %v1874 = vand.u32 %v1844, 65535
    %v1875 = vshrl.u32 %v1844, 16
    %v1876 = vmul.u32 %v1872, %v1874
    %v1877 = vmul.u32 %v1872, %v1875
    %v1878 = vmul.u32 %v1873, %v1874
    %v1879 = vmul.u32 %v1873, %v1875
    %v1880 = vshll.u32 %v1877, 16
    %v1881 = vshrl.u32 %v1877, 16
    %v1882 = vshll.u32 %v1878, 16
    %v1883 = vshrl.u32 %v1878, 16
    %vm1884 = vc.u32 %v1876, %v1880
    %v1885 = vsel %vm1884, 1, 0
    %v1886 = vadd.s32 %v1876, %v1880
    %v1887 = vadd.s32 %v1879, %v1885
    %vm1888 = vc.u32 %v1886, %v1882
    %v1889 = vsel %vm1888, 1, 0
    %v1890 = vadd.s32 %v1886, %v1882
    %v1891 = vadd.s32 %v1887, %v1889
    %v1892 = vadd.s32 %v1891, %v1881
    %v1893 = vadd.s32 %v1892, %v1883
    %v1894 = vmul.u32 %v1849, %v1840
    %v1895 = vadd.s32 %v1871, %v1890
    %vm1896 = vc.u32 %v1871, %v1890
    %v1897 = vadd.s32 %v1893, 1
    %v1898 = vsel %vm1896, %v1897, %v1893
    %v1899 = vadd.s32 %v1894, %v1898
    %v1900 = vadd.s32 %v1899, 536870912
    %v1901 = vshrl.u32 %v1900, 30
    %v1902 = vshll.u32 %v1901, 30
    %v1903 = vsub.s32 %v1899, %v1902
    %vm1904 = vcmp.lt.s32.totalorder %v1903, 0
    %v1905 = vsub.s32 0, %v1903
    %v1906 = vsel %vm1904, %v1905, %v1903
    %v1907 = vclz %v1906
    %v1908 = vsub.s32 %v1907, 2
    %vm1909 = vcmp.gt.s32.totalorder 0, %v1908
    %v1910 = vsel %vm1909, 0, %v1908
    %v1911 = vsub.s32 32, %v1910
    %v1912 = vshll.u32 %v1903, %v1910
    %v1913 = vshrl.u32 %v1895, %v1911
    %v1914 = vor.u32 %v1912, %v1913
    %v1915 = vsub.s32 4294967266, %v1910
    %v1916 = vadd.s32 %v1915, 127
    %v1917 = vshll.u32 %v1916, 23
    %v1918 = vor.u32 4788187, %v1917
    %v1919 = vand.u32 2147483647, %v1918
    %v1921 = vcvt.s32.f32 %v1914
    %v1922 = vmul.f32 %v1921, %v1919
    %v1923 = vxor.u32 %v1922, 2147483648
    %v1924 = vsel %vm1803, %v1923, %v1922
    %v1925 = vsub.s32 4, %v1901
    %v1926 = vsel %vm1803, %v1925, %v1901
    %v1927 = vsel %vm1802, %v194, %v1924
    %v1928 = vsel %vm1802, 0, %v1926
    %v1929 = vmul.f32 %v1927, %v1927
    %v1930 = vmul.f32 %v1929, -0.001358992
    %v1931 = vadd.f32 %v1930, 0.041655596
    %v1932 = vmul.f32 %v1929, %v1931
    %v1933 = vadd.f32 %v1932, -0.4999988
    %v1934 = vmul.f32 %v1929, %v1933
    %v1935 = vadd.f32 1.0, %v1934
    %v1936 = vmul.f32 %v1927, %v1927
    %v1937 = vmul.f32 %v1936, -0.00019511016
    %v1938 = vadd.f32 %v1937, 0.008332121
    %v1939 = vmul.f32 %v1936, %v1938
    %v1940 = vadd.f32 %v1939, -0.16666654
    %v1941 = vmul.f32 %v1936, %v1940
    %v1942 = vadd.f32 %v1941, 1.0
    %v1943 = vmul.f32 %v1942, %v1927
    %vm1944 = vweird.f32 %v194
    %v1945 = vand.u32 %v1928, 3
    %vm1946 = vcmp.lt.s32.totalorder %v1945, 2
    %vm1947 = vcmp.eq.s32.totalorder %v1945, 0
    %v1948 = vxor.u32 %v1943, 2147483648
    %v1949 = vsel %vm1947, %v1935, %v1948
    %vm1950 = vcmp.eq.s32.totalorder %v1945, 2
    %v1951 = vxor.u32 %v1935, 2147483648
    %v1952 = vsel %vm1950, %v1951, %v1943
    %v1953 = vsel %vm1946, %v1949, %v1952
    %v1954 = vsel %vm1944, nan, %v1953
    %v1955 = vand.u32 2147483647, %v195
    %vm1956 = vcmp.le.f32.partialorder %v1955, 0.7853982
    %vm1957 = vcmp.lt.s32.totalorder %v195, 0
    %v1958 = vand.u32 %v195, 2139095040
    %v1959 = vshrl.u32 %v1958, 23
    %v1960 = vsub.s32 %v1959, 127
    %v1961 = vand.u32 2147483647, %v195
    %v1962 = vand.u32 %v1961, 8388607
    %v1963 = vor.u32 %v1962, 8388608
    %v1964 = vsub.s32 0, %v1963
    %v1965 = vadd.s32 %v1960, 1
    %vm1966 = vcmp.gt.s32.totalorder %v1965, 0
    %v1967 = vsel %vm1966, %v1965, 0
    %v1968 = vshrl.u32 %v1967, 5
    %v1969 = vand.u32 %v1967, 31
    %v1970 = vsub.s32 32, %v1969
    %v1971 = vshrl.u32 683565275, %v1970
    %v1972 = vshll.u32 683565275, %v1969
    %v1973 = vshrl.u32 2475754826, %v1970
    %v1974 = vor.u32 %v1972, %v1973
    %v1975 = vshll.u32 2475754826, %v1969
    %v1976 = vshrl.u32 2131351028, %v1970
    %v1977 = vor.u32 %v1975, %v1976
    %v1978 = vshll.u32 2131351028, %v1969
    %v1979 = vshrl.u32 2102212464, %v1970
    %v1980 = vor.u32 %v1978, %v1979
    %v1981 = vshll.u32 2102212464, %v1969
    %v1982 = vshrl.u32 920167782, %v1970
    %v1983 = vor.u32 %v1981, %v1982
    %v1984 = vshll.u32 920167782, %v1969
    %v1985 = vshrl.u32 1326507024, %v1970
    %v1986 = vor.u32 %v1984, %v1985
    %vm1987 = vcmp.lt.s32.totalorder %v1968, 1
    %vm1988 = vcmp.lt.s32.totalorder %v1968, 2
    %vm1989 = vcmp.lt.s32.totalorder %v1968, 3
    %vm1990 = vcmp.lt.s32.totalorder %v1968, 4
    %v1991 = vsel %vm1987, %v1971, %v1974
    %v1992 = vsel %vm1990, %v1980, 2102212464
    %v1993 = vsel %vm1989, %v1977, %v1992
    %v1994 = vsel %vm1988, %v1991, %v1993
    %v1995 = vsel %vm1987, %v1974, %v1977
    %v1996 = vsel %vm1990, %v1983, 920167782
    %v1997 = vsel %vm1989, %v1980, %v1996
    %v1998 = vsel %vm1988, %v1995, %v1997
    %v1999 = vsel %vm1987, %v1977, %v1980
    %v2000 = vsel %vm1990, %v1986, 1326507024
    %v2001 = vsel %vm1989, %v1983, %v2000
    %v2002 = vsel %vm1988, %v1999, %v2001
    %v2003 = vshll.u32 %v1963, 8
    %v2004 = vand.u32 %v2003, 65535
    %v2005 = vshrl.u32 %v2003, 16
    %v2006 = vand.u32 %v2002, 65535
    %v2007 = vshrl.u32 %v2002, 16
    %v2008 = vmul.u32 %v2004, %v2006
    %v2009 = vmul.u32 %v2004, %v2007
    %v2010 = vmul.u32 %v2005, %v2006
    %v2011 = vmul.u32 %v2005, %v2007
    %v2012 = vshll.u32 %v2009, 16
    %v2013 = vshrl.u32 %v2009, 16
    %v2014 = vshll.u32 %v2010, 16
    %v2015 = vshrl.u32 %v2010, 16
    %vm2016 = vc.u32 %v2008, %v2012
    %v2017 = vsel %vm2016, 1, 0
    %v2018 = vadd.s32 %v2008, %v2012
    %v2019 = vadd.s32 %v2011, %v2017
    %vm2020 = vc.u32 %v2018, %v2014
    %v2021 = vsel %vm2020, 1, 0
    %v2022 = vadd.s32 %v2018, %v2014
    %v2023 = vadd.s32 %v2019, %v2021
    %v2024 = vadd.s32 %v2023, %v2013
    %v2025 = vadd.s32 %v2024, %v2015
    %v2026 = vand.u32 %v2003, 65535
    %v2027 = vshrl.u32 %v2003, 16
    %v2028 = vand.u32 %v1998, 65535
    %v2029 = vshrl.u32 %v1998, 16
    %v2030 = vmul.u32 %v2026, %v2028
    %v2031 = vmul.u32 %v2026, %v2029
    %v2032 = vmul.u32 %v2027, %v2028
    %v2033 = vmul.u32 %v2027, %v2029
    %v2034 = vshll.u32 %v2031, 16
    %v2035 = vshrl.u32 %v2031, 16
    %v2036 = vshll.u32 %v2032, 16
    %v2037 = vshrl.u32 %v2032, 16
    %vm2038 = vc.u32 %v2030, %v2034
    %v2039 = vsel %vm2038, 1, 0
    %v2040 = vadd.s32 %v2030, %v2034
    %v2041 = vadd.s32 %v2033, %v2039
    %vm2042 = vc.u32 %v2040, %v2036
    %v2043 = vsel %vm2042, 1, 0
    %v2044 = vadd.s32 %v2040, %v2036
    %v2045 = vadd.s32 %v2041, %v2043
    %v2046 = vadd.s32 %v2045, %v2035
    %v2047 = vadd.s32 %v2046, %v2037
    %v2048 = vmul.u32 %v2003, %v1994
    %v2049 = vadd.s32 %v2025, %v2044
    %vm2050 = vc.u32 %v2025, %v2044
    %v2051 = vadd.s32 %v2047, 1
    %v2052 = vsel %vm2050, %v2051, %v2047
    %v2053 = vadd.s32 %v2048, %v2052
    %v2054 = vadd.s32 %v2053, 536870912
    %v2055 = vshrl.u32 %v2054, 30
    %v2056 = vshll.u32 %v2055, 30
    %v2057 = vsub.s32 %v2053, %v2056
    %vm2058 = vcmp.lt.s32.totalorder %v2057, 0
    %v2059 = vsub.s32 0, %v2057
    %v2060 = vsel %vm2058, %v2059, %v2057
    %v2061 = vclz %v2060
    %v2062 = vsub.s32 %v2061, 2
    %vm2063 = vcmp.gt.s32.totalorder 0, %v2062
    %v2064 = vsel %vm2063, 0, %v2062
    %v2065 = vsub.s32 32, %v2064
    %v2066 = vshll.u32 %v2057, %v2064
    %v2067 = vshrl.u32 %v2049, %v2065
    %v2068 = vor.u32 %v2066, %v2067
    %v2069 = vsub.s32 4294967266, %v2064
    %v2070 = vadd.s32 %v2069, 127
    %v2071 = vshll.u32 %v2070, 23
    %v2072 = vor.u32 4788187, %v2071
    %v2073 = vand.u32 2147483647, %v2072
    %v2075 = vcvt.s32.f32 %v2068
    %v2076 = vmul.f32 %v2075, %v2073
    %v2077 = vxor.u32 %v2076, 2147483648
    %v2078 = vsel %vm1957, %v2077, %v2076
    %v2079 = vsub.s32 4, %v2055
    %v2080 = vsel %vm1957, %v2079, %v2055
    %v2081 = vsel %vm1956, %v195, %v2078
    %v2082 = vsel %vm1956, 0, %v2080
    %v2083 = vmul.f32 %v2081, %v2081
    %v2084 = vmul.f32 %v2083, -0.001358992
    %v2085 = vadd.f32 %v2084, 0.041655596
    %v2086 = vmul.f32 %v2083, %v2085
    %v2087 = vadd.f32 %v2086, -0.4999988
    %v2088 = vmul.f32 %v2083, %v2087
    %v2089 = vadd.f32 1.0, %v2088
    %v2090 = vmul.f32 %v2081, %v2081
    %v2091 = vmul.f32 %v2090, -0.00019511016
    %v2092 = vadd.f32 %v2091, 0.008332121
    %v2093 = vmul.f32 %v2090, %v2092
    %v2094 = vadd.f32 %v2093, -0.16666654
    %v2095 = vmul.f32 %v2090, %v2094
    %v2096 = vadd.f32 %v2095, 1.0
    %v2097 = vmul.f32 %v2096, %v2081
    %vm2098 = vweird.f32 %v195
    %v2099 = vand.u32 %v2082, 3
    %vm2100 = vcmp.lt.s32.totalorder %v2099, 2
    %vm2101 = vcmp.eq.s32.totalorder %v2099, 0
    %v2102 = vxor.u32 %v2097, 2147483648
    %v2103 = vsel %vm2101, %v2089, %v2102
    %vm2104 = vcmp.eq.s32.totalorder %v2099, 2
    %v2105 = vxor.u32 %v2089, 2147483648
    %v2106 = vsel %vm2104, %v2105, %v2097
    %v2107 = vsel %vm2100, %v2103, %v2106
    %v2108 = vsel %vm2098, nan, %v2107
    %v2109 = vand.u32 2147483647, %v196
    %vm2110 = vcmp.le.f32.partialorder %v2109, 0.7853982
    %vm2111 = vcmp.lt.s32.totalorder %v196, 0
    %v2112 = vand.u32 %v196, 2139095040
    %v2113 = vshrl.u32 %v2112, 23
    %v2114 = vsub.s32 %v2113, 127
    %v2115 = vand.u32 2147483647, %v196
    %v2116 = vand.u32 %v2115, 8388607
    %v2117 = vor.u32 %v2116, 8388608
    %v2118 = vsub.s32 0, %v2117
    %v2119 = vadd.s32 %v2114, 1
    %vm2120 = vcmp.gt.s32.totalorder %v2119, 0
    %v2121 = vsel %vm2120, %v2119, 0
    %v2122 = vshrl.u32 %v2121, 5
    %v2123 = vand.u32 %v2121, 31
    %v2124 = vsub.s32 32, %v2123
    %v2125 = vshrl.u32 683565275, %v2124
    %v2126 = vshll.u32 683565275, %v2123
    %v2127 = vshrl.u32 2475754826, %v2124
    %v2128 = vor.u32 %v2126, %v2127
    %v2129 = vshll.u32 2475754826, %v2123
    %v2130 = vshrl.u32 2131351028, %v2124
    %v2131 = vor.u32 %v2129, %v2130
    %v2132 = vshll.u32 2131351028, %v2123
    %v2133 = vshrl.u32 2102212464, %v2124
    %v2134 = vor.u32 %v2132, %v2133
    %v2135 = vshll.u32 2102212464, %v2123
    %v2136 = vshrl.u32 920167782, %v2124
    %v2137 = vor.u32 %v2135, %v2136
    %v2138 = vshll.u32 920167782, %v2123
    %v2139 = vshrl.u32 1326507024, %v2124
    %v2140 = vor.u32 %v2138, %v2139
    %vm2141 = vcmp.lt.s32.totalorder %v2122, 1
    %vm2142 = vcmp.lt.s32.totalorder %v2122, 2
    %vm2143 = vcmp.lt.s32.totalorder %v2122, 3
    %vm2144 = vcmp.lt.s32.totalorder %v2122, 4
    %v2145 = vsel %vm2141, %v2125, %v2128
    %v2146 = vsel %vm2144, %v2134, 2102212464
    %v2147 = vsel %vm2143, %v2131, %v2146
    %v2148 = vsel %vm2142, %v2145, %v2147
    %v2149 = vsel %vm2141, %v2128, %v2131
    %v2150 = vsel %vm2144, %v2137, 920167782
    %v2151 = vsel %vm2143, %v2134, %v2150
    %v2152 = vsel %vm2142, %v2149, %v2151
    %v2153 = vsel %vm2141, %v2131, %v2134
    %v2154 = vsel %vm2144, %v2140, 1326507024
    %v2155 = vsel %vm2143, %v2137, %v2154
    %v2156 = vsel %vm2142, %v2153, %v2155
    %v2157 = vshll.u32 %v2117, 8
    %v2158 = vand.u32 %v2157, 65535
    %v2159 = vshrl.u32 %v2157, 16
    %v2160 = vand.u32 %v2156, 65535
    %v2161 = vshrl.u32 %v2156, 16
    %v2162 = vmul.u32 %v2158, %v2160
    %v2163 = vmul.u32 %v2158, %v2161
    %v2164 = vmul.u32 %v2159, %v2160
    %v2165 = vmul.u32 %v2159, %v2161
    %v2166 = vshll.u32 %v2163, 16
    %v2167 = vshrl.u32 %v2163, 16
    %v2168 = vshll.u32 %v2164, 16
    %v2169 = vshrl.u32 %v2164, 16
    %vm2170 = vc.u32 %v2162, %v2166
    %v2171 = vsel %vm2170, 1, 0
    %v2172 = vadd.s32 %v2162, %v2166
    %v2173 = vadd.s32 %v2165, %v2171
    %vm2174 = vc.u32 %v2172, %v2168
    %v2175 = vsel %vm2174, 1, 0
    %v2176 = vadd.s32 %v2172, %v2168
    %v2177 = vadd.s32 %v2173, %v2175
    %v2178 = vadd.s32 %v2177, %v2167
    %v2179 = vadd.s32 %v2178, %v2169
    %v2180 = vand.u32 %v2157, 65535
    %v2181 = vshrl.u32 %v2157, 16
    %v2182 = vand.u32 %v2152, 65535
    %v2183 = vshrl.u32 %v2152, 16
    %v2184 = vmul.u32 %v2180, %v2182
    %v2185 = vmul.u32 %v2180, %v2183
    %v2186 = vmul.u32 %v2181, %v2182
    %v2187 = vmul.u32 %v2181, %v2183
    %v2188 = vshll.u32 %v2185, 16
    %v2189 = vshrl.u32 %v2185, 16
    %v2190 = vshll.u32 %v2186, 16
    %v2191 = vshrl.u32 %v2186, 16
    %vm2192 = vc.u32 %v2184, %v2188
    %v2193 = vsel %vm2192, 1, 0
    %v2194 = vadd.s32 %v2184, %v2188
    %v2195 = vadd.s32 %v2187, %v2193
    %vm2196 = vc.u32 %v2194, %v2190
    %v2197 = vsel %vm2196, 1, 0
    %v2198 = vadd.s32 %v2194, %v2190
    %v2199 = vadd.s32 %v2195, %v2197
    %v2200 = vadd.s32 %v2199, %v2189
    %v2201 = vadd.s32 %v2200, %v2191
    %v2202 = vmul.u32 %v2157, %v2148
    %v2203 = vadd.s32 %v2179, %v2198
    %vm2204 = vc.u32 %v2179, %v2198
    %v2205 = vadd.s32 %v2201, 1
    %v2206 = vsel %vm2204, %v2205, %v2201
    %v2207 = vadd.s32 %v2202, %v2206
    %v2208 = vadd.s32 %v2207, 536870912
    %v2209 = vshrl.u32 %v2208, 30
    %v2210 = vshll.u32 %v2209, 30
    %v2211 = vsub.s32 %v2207, %v2210
    %vm2212 = vcmp.lt.s32.totalorder %v2211, 0
    %v2213 = vsub.s32 0, %v2211
    %v2214 = vsel %vm2212, %v2213, %v2211
    %v2215 = vclz %v2214
    %v2216 = vsub.s32 %v2215, 2
    %vm2217 = vcmp.gt.s32.totalorder 0, %v2216
    %v2218 = vsel %vm2217, 0, %v2216
    %v2219 = vsub.s32 32, %v2218
    %v2220 = vshll.u32 %v2211, %v2218
    %v2221 = vshrl.u32 %v2203, %v2219
    %v2222 = vor.u32 %v2220, %v2221
    %v2223 = vsub.s32 4294967266, %v2218
    %v2224 = vadd.s32 %v2223, 127
    %v2225 = vshll.u32 %v2224, 23
    %v2226 = vor.u32 4788187, %v2225
    %v2227 = vand.u32 2147483647, %v2226
    %v2229 = vcvt.s32.f32 %v2222
    %v2230 = vmul.f32 %v2229, %v2227
    %v2231 = vxor.u32 %v2230, 2147483648
    %v2232 = vsel %vm2111, %v2231, %v2230
    %v2233 = vsub.s32 4, %v2209
    %v2234 = vsel %vm2111, %v2233, %v2209
    %v2235 = vsel %vm2110, %v196, %v2232
    %v2236 = vsel %vm2110, 0, %v2234
    %v2237 = vmul.f32 %v2235, %v2235
    %v2238 = vmul.f32 %v2237, -0.001358992
    %v2239 = vadd.f32 %v2238, 0.041655596
    %v2240 = vmul.f32 %v2237, %v2239
    %v2241 = vadd.f32 %v2240, -0.4999988
    %v2242 = vmul.f32 %v2237, %v2241
    %v2243 = vadd.f32 1.0, %v2242
    %v2244 = vmul.f32 %v2235, %v2235
    %v2245 = vmul.f32 %v2244, -0.00019511016
    %v2246 = vadd.f32 %v2245, 0.008332121
    %v2247 = vmul.f32 %v2244, %v2246
    %v2248 = vadd.f32 %v2247, -0.16666654
    %v2249 = vmul.f32 %v2244, %v2248
    %v2250 = vadd.f32 %v2249, 1.0
    %v2251 = vmul.f32 %v2250, %v2235
    %vm2252 = vweird.f32 %v196
    %v2253 = vand.u32 %v2236, 3
    %vm2254 = vcmp.lt.s32.totalorder %v2253, 2
    %vm2255 = vcmp.eq.s32.totalorder %v2253, 0
    %v2256 = vxor.u32 %v2251, 2147483648
    %v2257 = vsel %vm2255, %v2243, %v2256
    %vm2258 = vcmp.eq.s32.totalorder %v2253, 2
    %v2259 = vxor.u32 %v2243, 2147483648
    %v2260 = vsel %vm2258, %v2259, %v2251
    %v2261 = vsel %vm2254, %v2257, %v2260
    %v2262 = vsel %vm2252, nan, %v2261
    %v2263 = vand.u32 2147483647, %v197
    %vm2264 = vcmp.le.f32.partialorder %v2263, 0.7853982
    %vm2265 = vcmp.lt.s32.totalorder %v197, 0
    %v2266 = vand.u32 %v197, 2139095040
    %v2267 = vshrl.u32 %v2266, 23
    %v2268 = vsub.s32 %v2267, 127
    %v2269 = vand.u32 2147483647, %v197
    %v2270 = vand.u32 %v2269, 8388607
    %v2271 = vor.u32 %v2270, 8388608
    %v2272 = vsub.s32 0, %v2271
    %v2273 = vadd.s32 %v2268, 1
    %vm2274 = vcmp.gt.s32.totalorder %v2273, 0
    %v2275 = vsel %vm2274, %v2273, 0
    %v2276 = vshrl.u32 %v2275, 5
    %v2277 = vand.u32 %v2275, 31
    %v2278 = vsub.s32 32, %v2277
    %v2279 = vshrl.u32 683565275, %v2278
    %v2280 = vshll.u32 683565275, %v2277
    %v2281 = vshrl.u32 2475754826, %v2278
    %v2282 = vor.u32 %v2280, %v2281
    %v2283 = vshll.u32 2475754826, %v2277
    %v2284 = vshrl.u32 2131351028, %v2278
    %v2285 = vor.u32 %v2283, %v2284
    %v2286 = vshll.u32 2131351028, %v2277
    %v2287 = vshrl.u32 2102212464, %v2278
    %v2288 = vor.u32 %v2286, %v2287
    %v2289 = vshll.u32 2102212464, %v2277
    %v2290 = vshrl.u32 920167782, %v2278
    %v2291 = vor.u32 %v2289, %v2290
    %v2292 = vshll.u32 920167782, %v2277
    %v2293 = vshrl.u32 1326507024, %v2278
    %v2294 = vor.u32 %v2292, %v2293
    %vm2295 = vcmp.lt.s32.totalorder %v2276, 1
    %vm2296 = vcmp.lt.s32.totalorder %v2276, 2
    %vm2297 = vcmp.lt.s32.totalorder %v2276, 3
    %vm2298 = vcmp.lt.s32.totalorder %v2276, 4
    %v2299 = vsel %vm2295, %v2279, %v2282
    %v2300 = vsel %vm2298, %v2288, 2102212464
    %v2301 = vsel %vm2297, %v2285, %v2300
    %v2302 = vsel %vm2296, %v2299, %v2301
    %v2303 = vsel %vm2295, %v2282, %v2285
    %v2304 = vsel %vm2298, %v2291, 920167782
    %v2305 = vsel %vm2297, %v2288, %v2304
    %v2306 = vsel %vm2296, %v2303, %v2305
    %v2307 = vsel %vm2295, %v2285, %v2288
    %v2308 = vsel %vm2298, %v2294, 1326507024
    %v2309 = vsel %vm2297, %v2291, %v2308
    %v2310 = vsel %vm2296, %v2307, %v2309
    %v2311 = vshll.u32 %v2271, 8
    %v2312 = vand.u32 %v2311, 65535
    %v2313 = vshrl.u32 %v2311, 16
    %v2314 = vand.u32 %v2310, 65535
    %v2315 = vshrl.u32 %v2310, 16
    %v2316 = vmul.u32 %v2312, %v2314
    %v2317 = vmul.u32 %v2312, %v2315
    %v2318 = vmul.u32 %v2313, %v2314
    %v2319 = vmul.u32 %v2313, %v2315
    %v2320 = vshll.u32 %v2317, 16
    %v2321 = vshrl.u32 %v2317, 16
    %v2322 = vshll.u32 %v2318, 16
    %v2323 = vshrl.u32 %v2318, 16
    %vm2324 = vc.u32 %v2316, %v2320
    %v2325 = vsel %vm2324, 1, 0
    %v2326 = vadd.s32 %v2316, %v2320
    %v2327 = vadd.s32 %v2319, %v2325
    %vm2328 = vc.u32 %v2326, %v2322
    %v2329 = vsel %vm2328, 1, 0
    %v2330 = vadd.s32 %v2326, %v2322
    %v2331 = vadd.s32 %v2327, %v2329
    %v2332 = vadd.s32 %v2331, %v2321
    %v2333 = vadd.s32 %v2332, %v2323
    %v2334 = vand.u32 %v2311, 65535
    %v2335 = vshrl.u32 %v2311, 16
    %v2336 = vand.u32 %v2306, 65535
    %v2337 = vshrl.u32 %v2306, 16
    %v2338 = vmul.u32 %v2334, %v2336
    %v2339 = vmul.u32 %v2334, %v2337
    %v2340 = vmul.u32 %v2335, %v2336
    %v2341 = vmul.u32 %v2335, %v2337
    %v2342 = vshll.u32 %v2339, 16
    %v2343 = vshrl.u32 %v2339, 16
    %v2344 = vshll.u32 %v2340, 16
    %v2345 = vshrl.u32 %v2340, 16
    %vm2346 = vc.u32 %v2338, %v2342
    %v2347 = vsel %vm2346, 1, 0
    %v2348 = vadd.s32 %v2338, %v2342
    %v2349 = vadd.s32 %v2341, %v2347
    %vm2350 = vc.u32 %v2348, %v2344
    %v2351 = vsel %vm2350, 1, 0
    %v2352 = vadd.s32 %v2348, %v2344
    %v2353 = vadd.s32 %v2349, %v2351
    %v2354 = vadd.s32 %v2353, %v2343
    %v2355 = vadd.s32 %v2354, %v2345
    %v2356 = vmul.u32 %v2311, %v2302
    %v2357 = vadd.s32 %v2333, %v2352
    %vm2358 = vc.u32 %v2333, %v2352
    %v2359 = vadd.s32 %v2355, 1
    %v2360 = vsel %vm2358, %v2359, %v2355
    %v2361 = vadd.s32 %v2356, %v2360
    %v2362 = vadd.s32 %v2361, 536870912
    %v2363 = vshrl.u32 %v2362, 30
    %v2364 = vshll.u32 %v2363, 30
    %v2365 = vsub.s32 %v2361, %v2364
    %vm2366 = vcmp.lt.s32.totalorder %v2365, 0
    %v2367 = vsub.s32 0, %v2365
    %v2368 = vsel %vm2366, %v2367, %v2365
    %v2369 = vclz %v2368
    %v2370 = vsub.s32 %v2369, 2
    %vm2371 = vcmp.gt.s32.totalorder 0, %v2370
    %v2372 = vsel %vm2371, 0, %v2370
    %v2373 = vsub.s32 32, %v2372
    %v2374 = vshll.u32 %v2365, %v2372
    %v2375 = vshrl.u32 %v2357, %v2373
    %v2376 = vor.u32 %v2374, %v2375
    %v2377 = vsub.s32 4294967266, %v2372
    %v2378 = vadd.s32 %v2377, 127
    %v2379 = vshll.u32 %v2378, 23
    %v2380 = vor.u32 4788187, %v2379
    %v2381 = vand.u32 2147483647, %v2380
    %v2383 = vcvt.s32.f32 %v2376
    %v2384 = vmul.f32 %v2383, %v2381
    %v2385 = vxor.u32 %v2384, 2147483648
    %v2386 = vsel %vm2265, %v2385, %v2384
    %v2387 = vsub.s32 4, %v2363
    %v2388 = vsel %vm2265, %v2387, %v2363
    %v2389 = vsel %vm2264, %v197, %v2386
    %v2390 = vsel %vm2264, 0, %v2388
    %v2391 = vmul.f32 %v2389, %v2389
    %v2392 = vmul.f32 %v2391, -0.001358992
    %v2393 = vadd.f32 %v2392, 0.041655596
    %v2394 = vmul.f32 %v2391, %v2393
    %v2395 = vadd.f32 %v2394, -0.4999988
    %v2396 = vmul.f32 %v2391, %v2395
    %v2397 = vadd.f32 1.0, %v2396
    %v2398 = vmul.f32 %v2389, %v2389
    %v2399 = vmul.f32 %v2398, -0.00019511016
    %v2400 = vadd.f32 %v2399, 0.008332121
    %v2401 = vmul.f32 %v2398, %v2400
    %v2402 = vadd.f32 %v2401, -0.16666654
    %v2403 = vmul.f32 %v2398, %v2402
    %v2404 = vadd.f32 %v2403, 1.0
    %v2405 = vmul.f32 %v2404, %v2389
    %vm2406 = vweird.f32 %v197
    %v2407 = vand.u32 %v2390, 3
    %vm2408 = vcmp.lt.s32.totalorder %v2407, 2
    %vm2409 = vcmp.eq.s32.totalorder %v2407, 0
    %v2410 = vxor.u32 %v2405, 2147483648
    %v2411 = vsel %vm2409, %v2397, %v2410
    %vm2412 = vcmp.eq.s32.totalorder %v2407, 2
    %v2413 = vxor.u32 %v2397, 2147483648
    %v2414 = vsel %vm2412, %v2413, %v2405
    %v2415 = vsel %vm2408, %v2411, %v2414
    %v2416 = vsel %vm2406, nan, %v2415
    %v2417 = vand.u32 2147483647, %v198
    %vm2418 = vcmp.le.f32.partialorder %v2417, 0.7853982
    %vm2419 = vcmp.lt.s32.totalorder %v198, 0
    %v2420 = vand.u32 %v198, 2139095040
    %v2421 = vshrl.u32 %v2420, 23
    %v2422 = vsub.s32 %v2421, 127
    %v2423 = vand.u32 2147483647, %v198
    %v2424 = vand.u32 %v2423, 8388607
    %v2425 = vor.u32 %v2424, 8388608
    %v2426 = vsub.s32 0, %v2425
    %v2427 = vadd.s32 %v2422, 1
    %vm2428 = vcmp.gt.s32.totalorder %v2427, 0
    %v2429 = vsel %vm2428, %v2427, 0
    %v2430 = vshrl.u32 %v2429, 5
    %v2431 = vand.u32 %v2429, 31
    %v2432 = vsub.s32 32, %v2431
    %v2433 = vshrl.u32 683565275, %v2432
    %v2434 = vshll.u32 683565275, %v2431
    %v2435 = vshrl.u32 2475754826, %v2432
    %v2436 = vor.u32 %v2434, %v2435
    %v2437 = vshll.u32 2475754826, %v2431
    %v2438 = vshrl.u32 2131351028, %v2432
    %v2439 = vor.u32 %v2437, %v2438
    %v2440 = vshll.u32 2131351028, %v2431
    %v2441 = vshrl.u32 2102212464, %v2432
    %v2442 = vor.u32 %v2440, %v2441
    %v2443 = vshll.u32 2102212464, %v2431
    %v2444 = vshrl.u32 920167782, %v2432
    %v2445 = vor.u32 %v2443, %v2444
    %v2446 = vshll.u32 920167782, %v2431
    %v2447 = vshrl.u32 1326507024, %v2432
    %v2448 = vor.u32 %v2446, %v2447
    %vm2449 = vcmp.lt.s32.totalorder %v2430, 1
    %vm2450 = vcmp.lt.s32.totalorder %v2430, 2
    %vm2451 = vcmp.lt.s32.totalorder %v2430, 3
    %vm2452 = vcmp.lt.s32.totalorder %v2430, 4
    %v2453 = vsel %vm2449, %v2433, %v2436
    %v2454 = vsel %vm2452, %v2442, 2102212464
    %v2455 = vsel %vm2451, %v2439, %v2454
    %v2456 = vsel %vm2450, %v2453, %v2455
    %v2457 = vsel %vm2449, %v2436, %v2439
    %v2458 = vsel %vm2452, %v2445, 920167782
    %v2459 = vsel %vm2451, %v2442, %v2458
    %v2460 = vsel %vm2450, %v2457, %v2459
    %v2461 = vsel %vm2449, %v2439, %v2442
    %v2462 = vsel %vm2452, %v2448, 1326507024
    %v2463 = vsel %vm2451, %v2445, %v2462
    %v2464 = vsel %vm2450, %v2461, %v2463
    %v2465 = vshll.u32 %v2425, 8
    %v2466 = vand.u32 %v2465, 65535
    %v2467 = vshrl.u32 %v2465, 16
    %v2468 = vand.u32 %v2464, 65535
    %v2469 = vshrl.u32 %v2464, 16
    %v2470 = vmul.u32 %v2466, %v2468
    %v2471 = vmul.u32 %v2466, %v2469
    %v2472 = vmul.u32 %v2467, %v2468
    %v2473 = vmul.u32 %v2467, %v2469
    %v2474 = vshll.u32 %v2471, 16
    %v2475 = vshrl.u32 %v2471, 16
    %v2476 = vshll.u32 %v2472, 16
    %v2477 = vshrl.u32 %v2472, 16
    %vm2478 = vc.u32 %v2470, %v2474
    %v2479 = vsel %vm2478, 1, 0
    %v2480 = vadd.s32 %v2470, %v2474
    %v2481 = vadd.s32 %v2473, %v2479
    %vm2482 = vc.u32 %v2480, %v2476
    %v2483 = vsel %vm2482, 1, 0
    %v2484 = vadd.s32 %v2480, %v2476
    %v2485 = vadd.s32 %v2481, %v2483
    %v2486 = vadd.s32 %v2485, %v2475
    %v2487 = vadd.s32 %v2486, %v2477
    %v2488 = vand.u32 %v2465, 65535
    %v2489 = vshrl.u32 %v2465, 16
    %v2490 = vand.u32 %v2460, 65535
    %v2491 = vshrl.u32 %v2460, 16
    %v2492 = vmul.u32 %v2488, %v2490
    %v2493 = vmul.u32 %v2488, %v2491
    %v2494 = vmul.u32 %v2489, %v2490
    %v2495 = vmul.u32 %v2489, %v2491
    %v2496 = vshll.u32 %v2493, 16
    %v2497 = vshrl.u32 %v2493, 16
    %v2498 = vshll.u32 %v2494, 16
    %v2499 = vshrl.u32 %v2494, 16
    %vm2500 = vc.u32 %v2492, %v2496
    %v2501 = vsel %vm2500, 1, 0
    %v2502 = vadd.s32 %v2492, %v2496
    %v2503 = vadd.s32 %v2495, %v2501
    %vm2504 = vc.u32 %v2502, %v2498
    %v2505 = vsel %vm2504, 1, 0
    %v2506 = vadd.s32 %v2502, %v2498
    %v2507 = vadd.s32 %v2503, %v2505
    %v2508 = vadd.s32 %v2507, %v2497
    %v2509 = vadd.s32 %v2508, %v2499
    %v2510 = vmul.u32 %v2465, %v2456
    %v2511 = vadd.s32 %v2487, %v2506
    %vm2512 = vc.u32 %v2487, %v2506
    %v2513 = vadd.s32 %v2509, 1
    %v2514 = vsel %vm2512, %v2513, %v2509
    %v2515 = vadd.s32 %v2510, %v2514
    %v2516 = vadd.s32 %v2515, 536870912
    %v2517 = vshrl.u32 %v2516, 30
    %v2518 = vshll.u32 %v2517, 30
    %v2519 = vsub.s32 %v2515, %v2518
    %vm2520 = vcmp.lt.s32.totalorder %v2519, 0
    %v2521 = vsub.s32 0, %v2519
    %v2522 = vsel %vm2520, %v2521, %v2519
    %v2523 = vclz %v2522
    %v2524 = vsub.s32 %v2523, 2
    %vm2525 = vcmp.gt.s32.totalorder 0, %v2524
    %v2526 = vsel %vm2525, 0, %v2524
    %v2527 = vsub.s32 32, %v2526
    %v2528 = vshll.u32 %v2519, %v2526
    %v2529 = vshrl.u32 %v2511, %v2527
    %v2530 = vor.u32 %v2528, %v2529
    %v2531 = vsub.s32 4294967266, %v2526
    %v2532 = vadd.s32 %v2531, 127
    %v2533 = vshll.u32 %v2532, 23
    %v2534 = vor.u32 4788187, %v2533
    %v2535 = vand.u32 2147483647, %v2534
    %v2537 = vcvt.s32.f32 %v2530
    %v2538 = vmul.f32 %v2537, %v2535
    %v2539 = vxor.u32 %v2538, 2147483648
    %v2540 = vsel %vm2419, %v2539, %v2538
    %v2541 = vsub.s32 4, %v2517
    %v2542 = vsel %vm2419, %v2541, %v2517
    %v2543 = vsel %vm2418, %v198, %v2540
    %v2544 = vsel %vm2418, 0, %v2542
    %v2545 = vmul.f32 %v2543, %v2543
    %v2546 = vmul.f32 %v2545, -0.001358992
    %v2547 = vadd.f32 %v2546, 0.041655596
    %v2548 = vmul.f32 %v2545, %v2547
    %v2549 = vadd.f32 %v2548, -0.4999988
    %v2550 = vmul.f32 %v2545, %v2549
    %v2551 = vadd.f32 1.0, %v2550
    %v2552 = vmul.f32 %v2543, %v2543
    %v2553 = vmul.f32 %v2552, -0.00019511016
    %v2554 = vadd.f32 %v2553, 0.008332121
    %v2555 = vmul.f32 %v2552, %v2554
    %v2556 = vadd.f32 %v2555, -0.16666654
    %v2557 = vmul.f32 %v2552, %v2556
    %v2558 = vadd.f32 %v2557, 1.0
    %v2559 = vmul.f32 %v2558, %v2543
    %vm2560 = vweird.f32 %v198
    %v2561 = vand.u32 %v2544, 3
    %vm2562 = vcmp.lt.s32.totalorder %v2561, 2
    %vm2563 = vcmp.eq.s32.totalorder %v2561, 0
    %v2564 = vxor.u32 %v2559, 2147483648
    %v2565 = vsel %vm2563, %v2551, %v2564
    %vm2566 = vcmp.eq.s32.totalorder %v2561, 2
    %v2567 = vxor.u32 %v2551, 2147483648
    %v2568 = vsel %vm2566, %v2567, %v2559
    %v2569 = vsel %vm2562, %v2565, %v2568
    %v2570 = vsel %vm2560, nan, %v2569
    %v2571 = vand.u32 2147483647, %v199
    %vm2572 = vcmp.le.f32.partialorder %v2571, 0.7853982
    %vm2573 = vcmp.lt.s32.totalorder %v199, 0
    %v2574 = vand.u32 %v199, 2139095040
    %v2575 = vshrl.u32 %v2574, 23
    %v2576 = vsub.s32 %v2575, 127
    %v2577 = vand.u32 2147483647, %v199
    %v2578 = vand.u32 %v2577, 8388607
    %v2579 = vor.u32 %v2578, 8388608
    %v2580 = vsub.s32 0, %v2579
    %v2581 = vadd.s32 %v2576, 1
    %vm2582 = vcmp.gt.s32.totalorder %v2581, 0
    %v2583 = vsel %vm2582, %v2581, 0
    %v2584 = vshrl.u32 %v2583, 5
    %v2585 = vand.u32 %v2583, 31
    %v2586 = vsub.s32 32, %v2585
    %v2587 = vshrl.u32 683565275, %v2586
    %v2588 = vshll.u32 683565275, %v2585
    %v2589 = vshrl.u32 2475754826, %v2586
    %v2590 = vor.u32 %v2588, %v2589
    %v2591 = vshll.u32 2475754826, %v2585
    %v2592 = vshrl.u32 2131351028, %v2586
    %v2593 = vor.u32 %v2591, %v2592
    %v2594 = vshll.u32 2131351028, %v2585
    %v2595 = vshrl.u32 2102212464, %v2586
    %v2596 = vor.u32 %v2594, %v2595
    %v2597 = vshll.u32 2102212464, %v2585
    %v2598 = vshrl.u32 920167782, %v2586
    %v2599 = vor.u32 %v2597, %v2598
    %v2600 = vshll.u32 920167782, %v2585
    %v2601 = vshrl.u32 1326507024, %v2586
    %v2602 = vor.u32 %v2600, %v2601
    %vm2603 = vcmp.lt.s32.totalorder %v2584, 1
    %vm2604 = vcmp.lt.s32.totalorder %v2584, 2
    %vm2605 = vcmp.lt.s32.totalorder %v2584, 3
    %vm2606 = vcmp.lt.s32.totalorder %v2584, 4
    %v2607 = vsel %vm2603, %v2587, %v2590
    %v2608 = vsel %vm2606, %v2596, 2102212464
    %v2609 = vsel %vm2605, %v2593, %v2608
    %v2610 = vsel %vm2604, %v2607, %v2609
    %v2611 = vsel %vm2603, %v2590, %v2593
    %v2612 = vsel %vm2606, %v2599, 920167782
    %v2613 = vsel %vm2605, %v2596, %v2612
    %v2614 = vsel %vm2604, %v2611, %v2613
    %v2615 = vsel %vm2603, %v2593, %v2596
    %v2616 = vsel %vm2606, %v2602, 1326507024
    %v2617 = vsel %vm2605, %v2599, %v2616
    %v2618 = vsel %vm2604, %v2615, %v2617
    %v2619 = vshll.u32 %v2579, 8
    %v2620 = vand.u32 %v2619, 65535
    %v2621 = vshrl.u32 %v2619, 16
    %v2622 = vand.u32 %v2618, 65535
    %v2623 = vshrl.u32 %v2618, 16
    %v2624 = vmul.u32 %v2620, %v2622
    %v2625 = vmul.u32 %v2620, %v2623
    %v2626 = vmul.u32 %v2621, %v2622
    %v2627 = vmul.u32 %v2621, %v2623
    %v2628 = vshll.u32 %v2625, 16
    %v2629 = vshrl.u32 %v2625, 16
    %v2630 = vshll.u32 %v2626, 16
    %v2631 = vshrl.u32 %v2626, 16
    %vm2632 = vc.u32 %v2624, %v2628
    %v2633 = vsel %vm2632, 1, 0
    %v2634 = vadd.s32 %v2624, %v2628
    %v2635 = vadd.s32 %v2627, %v2633
    %vm2636 = vc.u32 %v2634, %v2630
    %v2637 = vsel %vm2636, 1, 0
    %v2638 = vadd.s32 %v2634, %v2630
    %v2639 = vadd.s32 %v2635, %v2637
    %v2640 = vadd.s32 %v2639, %v2629
    %v2641 = vadd.s32 %v2640, %v2631
    %v2642 = vand.u32 %v2619, 65535
    %v2643 = vshrl.u32 %v2619, 16
    %v2644 = vand.u32 %v2614, 65535
    %v2645 = vshrl.u32 %v2614, 16
    %v2646 = vmul.u32 %v2642, %v2644
    %v2647 = vmul.u32 %v2642, %v2645
    %v2648 = vmul.u32 %v2643, %v2644
    %v2649 = vmul.u32 %v2643, %v2645
    %v2650 = vshll.u32 %v2647, 16
    %v2651 = vshrl.u32 %v2647, 16
    %v2652 = vshll.u32 %v2648, 16
    %v2653 = vshrl.u32 %v2648, 16
    %vm2654 = vc.u32 %v2646, %v2650
    %v2655 = vsel %vm2654, 1, 0
    %v2656 = vadd.s32 %v2646, %v2650
    %v2657 = vadd.s32 %v2649, %v2655
    %vm2658 = vc.u32 %v2656, %v2652
    %v2659 = vsel %vm2658, 1, 0
    %v2660 = vadd.s32 %v2656, %v2652
    %v2661 = vadd.s32 %v2657, %v2659
    %v2662 = vadd.s32 %v2661, %v2651
    %v2663 = vadd.s32 %v2662, %v2653
    %v2664 = vmul.u32 %v2619, %v2610
    %v2665 = vadd.s32 %v2641, %v2660
    %vm2666 = vc.u32 %v2641, %v2660
    %v2667 = vadd.s32 %v2663, 1
    %v2668 = vsel %vm2666, %v2667, %v2663
    %v2669 = vadd.s32 %v2664, %v2668
    %v2670 = vadd.s32 %v2669, 536870912
    %v2671 = vshrl.u32 %v2670, 30
    %v2672 = vshll.u32 %v2671, 30
    %v2673 = vsub.s32 %v2669, %v2672
    %vm2674 = vcmp.lt.s32.totalorder %v2673, 0
    %v2675 = vsub.s32 0, %v2673
    %v2676 = vsel %vm2674, %v2675, %v2673
    %v2677 = vclz %v2676
    %v2678 = vsub.s32 %v2677, 2
    %vm2679 = vcmp.gt.s32.totalorder 0, %v2678
    %v2680 = vsel %vm2679, 0, %v2678
    %v2681 = vsub.s32 32, %v2680
    %v2682 = vshll.u32 %v2673, %v2680
    %v2683 = vshrl.u32 %v2665, %v2681
    %v2684 = vor.u32 %v2682, %v2683
    %v2685 = vsub.s32 4294967266, %v2680
    %v2686 = vadd.s32 %v2685, 127
    %v2687 = vshll.u32 %v2686, 23
    %v2688 = vor.u32 4788187, %v2687
    %v2689 = vand.u32 2147483647, %v2688
    %v2691 = vcvt.s32.f32 %v2684
    %v2692 = vmul.f32 %v2691, %v2689
    %v2693 = vxor.u32 %v2692, 2147483648
    %v2694 = vsel %vm2573, %v2693, %v2692
    %v2695 = vsub.s32 4, %v2671
    %v2696 = vsel %vm2573, %v2695, %v2671
    %v2697 = vsel %vm2572, %v199, %v2694
    %v2698 = vsel %vm2572, 0, %v2696
    %v2699 = vmul.f32 %v2697, %v2697
    %v2700 = vmul.f32 %v2699, -0.001358992
    %v2701 = vadd.f32 %v2700, 0.041655596
    %v2702 = vmul.f32 %v2699, %v2701
    %v2703 = vadd.f32 %v2702, -0.4999988
    %v2704 = vmul.f32 %v2699, %v2703
    %v2705 = vadd.f32 1.0, %v2704
    %v2706 = vmul.f32 %v2697, %v2697
    %v2707 = vmul.f32 %v2706, -0.00019511016
    %v2708 = vadd.f32 %v2707, 0.008332121
    %v2709 = vmul.f32 %v2706, %v2708
    %v2710 = vadd.f32 %v2709, -0.16666654
    %v2711 = vmul.f32 %v2706, %v2710
    %v2712 = vadd.f32 %v2711, 1.0
    %v2713 = vmul.f32 %v2712, %v2697
    %vm2714 = vweird.f32 %v199
    %v2715 = vand.u32 %v2698, 3
    %vm2716 = vcmp.lt.s32.totalorder %v2715, 2
    %vm2717 = vcmp.eq.s32.totalorder %v2715, 0
    %v2718 = vxor.u32 %v2713, 2147483648
    %v2719 = vsel %vm2717, %v2705, %v2718
    %vm2720 = vcmp.eq.s32.totalorder %v2715, 2
    %v2721 = vxor.u32 %v2705, 2147483648
    %v2722 = vsel %vm2720, %v2721, %v2713
    %v2723 = vsel %vm2716, %v2719, %v2722
    %v2724 = vsel %vm2714, nan, %v2723
    %v2725 = vand.u32 2147483647, %v200
    %vm2726 = vcmp.le.f32.partialorder %v2725, 0.7853982
    %vm2727 = vcmp.lt.s32.totalorder %v200, 0
    %v2728 = vand.u32 %v200, 2139095040
    %v2729 = vshrl.u32 %v2728, 23
    %v2730 = vsub.s32 %v2729, 127
    %v2731 = vand.u32 2147483647, %v200
    %v2732 = vand.u32 %v2731, 8388607
    %v2733 = vor.u32 %v2732, 8388608
    %v2734 = vsub.s32 0, %v2733
    %v2735 = vadd.s32 %v2730, 1
    %vm2736 = vcmp.gt.s32.totalorder %v2735, 0
    %v2737 = vsel %vm2736, %v2735, 0
    %v2738 = vshrl.u32 %v2737, 5
    %v2739 = vand.u32 %v2737, 31
    %v2740 = vsub.s32 32, %v2739
    %v2741 = vshrl.u32 683565275, %v2740
    %v2742 = vshll.u32 683565275, %v2739
    %v2743 = vshrl.u32 2475754826, %v2740
    %v2744 = vor.u32 %v2742, %v2743
    %v2745 = vshll.u32 2475754826, %v2739
    %v2746 = vshrl.u32 2131351028, %v2740
    %v2747 = vor.u32 %v2745, %v2746
    %v2748 = vshll.u32 2131351028, %v2739
    %v2749 = vshrl.u32 2102212464, %v2740
    %v2750 = vor.u32 %v2748, %v2749
    %v2751 = vshll.u32 2102212464, %v2739
    %v2752 = vshrl.u32 920167782, %v2740
    %v2753 = vor.u32 %v2751, %v2752
    %v2754 = vshll.u32 920167782, %v2739
    %v2755 = vshrl.u32 1326507024, %v2740
    %v2756 = vor.u32 %v2754, %v2755
    %vm2757 = vcmp.lt.s32.totalorder %v2738, 1
    %vm2758 = vcmp.lt.s32.totalorder %v2738, 2
    %vm2759 = vcmp.lt.s32.totalorder %v2738, 3
    %vm2760 = vcmp.lt.s32.totalorder %v2738, 4
    %v2761 = vsel %vm2757, %v2741, %v2744
    %v2762 = vsel %vm2760, %v2750, 2102212464
    %v2763 = vsel %vm2759, %v2747, %v2762
    %v2764 = vsel %vm2758, %v2761, %v2763
    %v2765 = vsel %vm2757, %v2744, %v2747
    %v2766 = vsel %vm2760, %v2753, 920167782
    %v2767 = vsel %vm2759, %v2750, %v2766
    %v2768 = vsel %vm2758, %v2765, %v2767
    %v2769 = vsel %vm2757, %v2747, %v2750
    %v2770 = vsel %vm2760, %v2756, 1326507024
    %v2771 = vsel %vm2759, %v2753, %v2770
    %v2772 = vsel %vm2758, %v2769, %v2771
    %v2773 = vshll.u32 %v2733, 8
    %v2774 = vand.u32 %v2773, 65535
    %v2775 = vshrl.u32 %v2773, 16
    %v2776 = vand.u32 %v2772, 65535
    %v2777 = vshrl.u32 %v2772, 16
    %v2778 = vmul.u32 %v2774, %v2776
    %v2779 = vmul.u32 %v2774, %v2777
    %v2780 = vmul.u32 %v2775, %v2776
    %v2781 = vmul.u32 %v2775, %v2777
    %v2782 = vshll.u32 %v2779, 16
    %v2783 = vshrl.u32 %v2779, 16
    %v2784 = vshll.u32 %v2780, 16
    %v2785 = vshrl.u32 %v2780, 16
    %vm2786 = vc.u32 %v2778, %v2782
    %v2787 = vsel %vm2786, 1, 0
    %v2788 = vadd.s32 %v2778, %v2782
    %v2789 = vadd.s32 %v2781, %v2787
    %vm2790 = vc.u32 %v2788, %v2784
    %v2791 = vsel %vm2790, 1, 0
    %v2792 = vadd.s32 %v2788, %v2784
    %v2793 = vadd.s32 %v2789, %v2791
    %v2794 = vadd.s32 %v2793, %v2783
    %v2795 = vadd.s32 %v2794, %v2785
    %v2796 = vand.u32 %v2773, 65535
    %v2797 = vshrl.u32 %v2773, 16
    %v2798 = vand.u32 %v2768, 65535
    %v2799 = vshrl.u32 %v2768, 16
    %v2800 = vmul.u32 %v2796, %v2798
    %v2801 = vmul.u32 %v2796, %v2799
    %v2802 = vmul.u32 %v2797, %v2798
    %v2803 = vmul.u32 %v2797, %v2799
    %v2804 = vshll.u32 %v2801, 16
    %v2805 = vshrl.u32 %v2801, 16
    %v2806 = vshll.u32 %v2802, 16
    %v2807 = vshrl.u32 %v2802, 16
    %vm2808 = vc.u32 %v2800, %v2804
    %v2809 = vsel %vm2808, 1, 0
    %v2810 = vadd.s32 %v2800, %v2804
    %v2811 = vadd.s32 %v2803, %v2809
    %vm2812 = vc.u32 %v2810, %v2806
    %v2813 = vsel %vm2812, 1, 0
    %v2814 = vadd.s32 %v2810, %v2806
    %v2815 = vadd.s32 %v2811, %v2813
    %v2816 = vadd.s32 %v2815, %v2805
    %v2817 = vadd.s32 %v2816, %v2807
    %v2818 = vmul.u32 %v2773, %v2764
    %v2819 = vadd.s32 %v2795, %v2814
    %vm2820 = vc.u32 %v2795, %v2814
    %v2821 = vadd.s32 %v2817, 1
    %v2822 = vsel %vm2820, %v2821, %v2817
    %v2823 = vadd.s32 %v2818, %v2822
    %v2824 = vadd.s32 %v2823, 536870912
    %v2825 = vshrl.u32 %v2824, 30
    %v2826 = vshll.u32 %v2825, 30
    %v2827 = vsub.s32 %v2823, %v2826
    %vm2828 = vcmp.lt.s32.totalorder %v2827, 0
    %v2829 = vsub.s32 0, %v2827
    %v2830 = vsel %vm2828, %v2829, %v2827
    %v2831 = vclz %v2830
    %v2832 = vsub.s32 %v2831, 2
    %vm2833 = vcmp.gt.s32.totalorder 0, %v2832
    %v2834 = vsel %vm2833, 0, %v2832
    %v2835 = vsub.s32 32, %v2834
    %v2836 = vshll.u32 %v2827, %v2834
    %v2837 = vshrl.u32 %v2819, %v2835
    %v2838 = vor.u32 %v2836, %v2837
    %v2839 = vsub.s32 4294967266, %v2834
    %v2840 = vadd.s32 %v2839, 127
    %v2841 = vshll.u32 %v2840, 23
    %v2842 = vor.u32 4788187, %v2841
    %v2843 = vand.u32 2147483647, %v2842
    %v2845 = vcvt.s32.f32 %v2838
    %v2846 = vmul.f32 %v2845, %v2843
    %v2847 = vxor.u32 %v2846, 2147483648
    %v2848 = vsel %vm2727, %v2847, %v2846
    %v2849 = vsub.s32 4, %v2825
    %v2850 = vsel %vm2727, %v2849, %v2825
    %v2851 = vsel %vm2726, %v200, %v2848
    %v2852 = vsel %vm2726, 0, %v2850
    %v2853 = vmul.f32 %v2851, %v2851
    %v2854 = vmul.f32 %v2853, -0.001358992
    %v2855 = vadd.f32 %v2854, 0.041655596
    %v2856 = vmul.f32 %v2853, %v2855
    %v2857 = vadd.f32 %v2856, -0.4999988
    %v2858 = vmul.f32 %v2853, %v2857
    %v2859 = vadd.f32 1.0, %v2858
    %v2860 = vmul.f32 %v2851, %v2851
    %v2861 = vmul.f32 %v2860, -0.00019511016
    %v2862 = vadd.f32 %v2861, 0.008332121
    %v2863 = vmul.f32 %v2860, %v2862
    %v2864 = vadd.f32 %v2863, -0.16666654
    %v2865 = vmul.f32 %v2860, %v2864
    %v2866 = vadd.f32 %v2865, 1.0
    %v2867 = vmul.f32 %v2866, %v2851
    %vm2868 = vweird.f32 %v200
    %v2869 = vand.u32 %v2852, 3
    %vm2870 = vcmp.lt.s32.totalorder %v2869, 2
    %vm2871 = vcmp.eq.s32.totalorder %v2869, 0
    %v2872 = vxor.u32 %v2867, 2147483648
    %v2873 = vsel %vm2871, %v2859, %v2872
    %vm2874 = vcmp.eq.s32.totalorder %v2869, 2
    %v2875 = vxor.u32 %v2859, 2147483648
    %v2876 = vsel %vm2874, %v2875, %v2867
    %v2877 = vsel %vm2870, %v2873, %v2876
    %v2878 = vsel %vm2868, nan, %v2877
    %s2879 = scalar_lea.vmem %s4, 64
    %v2880 = vld [vmem:[%s2879] sm:$0xff]
    %v2881 = vld [vmem:[%s2879 + $0x8] sm:$0xff]
    %v2882 = vld [vmem:[%s2879 + $0x10] sm:$0xff]
    %v2883 = vld [vmem:[%s2879 + $0x18] sm:$0xff]
    %v2884 = vld [vmem:[%s2879 + $0x20] sm:$0xff]
    %v2885 = vld [vmem:[%s2879 + $0x28] sm:$0xff]
    %v2886 = vld [vmem:[%s2879 + $0x30] sm:$0xff]
    %v2887 = vld [vmem:[%s2879 + $0x38] sm:$0xff]
    %v2889 = vsel %vm1570, %v1800, 0
    %v2892 = vsel %vm1570, %v1954, 0
    %v2895 = vsel %vm1570, %v2108, 0
    %v2898 = vsel %vm1570, %v2262, 0
    %v2901 = vsel %vm1570, %v2416, 0
    %v2904 = vsel %vm1570, %v2570, 0
    %v2907 = vsel %vm1570, %v2724, 0
    %v2910 = vsel %vm1570, %v2878, 0
    %2912 = vmatpush.msra.mxu0 0.0
    %2913 = vmatpush.msra.mxu0 0.0
    %2914 = vmatpush.msra.mxu0 0.0
    %2915 = vmatpush.msra.mxu0 0.0
    %2916 = vmatpush.msra.mxu0 0.0
    %2917 = vmatpush.msra.mxu0 0.0
    %2918 = vmatpush.msra.mxu0 0.0
    %2919 = vmatpush.msra.mxu0 0.0
    %2920 = vmatpush.msra.mxu0 %v2887
    %2921 = vmatpush.msra.mxu0 %v2886
    %2922 = vmatpush.msra.mxu0 %v2885
    %2923 = vmatpush.msra.mxu0 %v2884
    %2924 = vmatpush.msra.mxu0 %v2883
    %2925 = vmatpush.msra.mxu0 %v2882
    %2926 = vmatpush.msra.mxu0 %v2881
    %2927 = vmatpush.msra.mxu0 %v2880
    %2928 = vmatmul.f32.gmra.mxu0 %v2889
    %v2929 = vpop.f32.mrf.mxu0
    %v2930 = vadd.f32 0.0, %v2929
    %2931 = vmatmul.f32.gmra.mxu0 %v2892
    %v2932 = vpop.f32.mrf.mxu0
    %v2933 = vadd.f32 0.0, %v2932
    %2934 = vmatmul.f32.gmra.mxu0 %v2895
    %v2935 = vpop.f32.mrf.mxu0
    %v2936 = vadd.f32 0.0, %v2935
    %2937 = vmatmul.f32.gmra.mxu0 %v2898
    %v2938 = vpop.f32.mrf.mxu0
    %v2939 = vadd.f32 0.0, %v2938
    %2940 = vmatmul.f32.gmra.mxu0 %v2901
    %v2941 = vpop.f32.mrf.mxu0
    %v2942 = vadd.f32 0.0, %v2941
    %2943 = vmatmul.f32.gmra.mxu0 %v2904
    %v2944 = vpop.f32.mrf.mxu0
    %v2945 = vadd.f32 0.0, %v2944
    %2946 = vmatmul.f32.gmra.mxu0 %v2907
    %v2947 = vpop.f32.mrf.mxu0
    %v2948 = vadd.f32 0.0, %v2947
    %2949 = vmatmul.f32.gmra.mxu0 %v2910
    %v2950 = vpop.f32.mrf.mxu0
    %v2951 = vadd.f32 0.0, %v2950
    %2952 = vdwg.mxu0
    %v2953 = vadd.f32 %v1639, %v2930
    %v2954 = vadd.f32 %v1640, %v2933
    %v2955 = vadd.f32 %v1641, %v2936
    %v2956 = vadd.f32 %v1642, %v2939
    %v2957 = vadd.f32 %v1643, %v2942
    %v2958 = vadd.f32 %v1644, %v2945
    %v2959 = vadd.f32 %v1645, %v2948
    %v2960 = vadd.f32 %v1646, %v2951
    %v2961 = vand.u32 2147483647, %v257
    %vm2962 = vcmp.le.f32.partialorder %v2961, 0.7853982
    %vm2963 = vcmp.lt.s32.totalorder %v257, 0
    %v2964 = vand.u32 %v257, 2139095040
    %v2965 = vshrl.u32 %v2964, 23
    %v2966 = vsub.s32 %v2965, 127
    %v2967 = vand.u32 2147483647, %v257
    %v2968 = vand.u32 %v2967, 8388607
    %v2969 = vor.u32 %v2968, 8388608
    %v2970 = vsub.s32 0, %v2969
    %v2971 = vadd.s32 %v2966, 1
    %vm2972 = vcmp.gt.s32.totalorder %v2971, 0
    %v2973 = vsel %vm2972, %v2971, 0
    %v2974 = vshrl.u32 %v2973, 5
    %v2975 = vand.u32 %v2973, 31
    %v2976 = vsub.s32 32, %v2975
    %v2977 = vshrl.u32 683565275, %v2976
    %v2978 = vshll.u32 683565275, %v2975
    %v2979 = vshrl.u32 2475754826, %v2976
    %v2980 = vor.u32 %v2978, %v2979
    %v2981 = vshll.u32 2475754826, %v2975
    %v2982 = vshrl.u32 2131351028, %v2976
    %v2983 = vor.u32 %v2981, %v2982
    %v2984 = vshll.u32 2131351028, %v2975
    %v2985 = vshrl.u32 2102212464, %v2976
    %v2986 = vor.u32 %v2984, %v2985
    %v2987 = vshll.u32 2102212464, %v2975
    %v2988 = vshrl.u32 920167782, %v2976
    %v2989 = vor.u32 %v2987, %v2988
    %v2990 = vshll.u32 920167782, %v2975
    %v2991 = vshrl.u32 1326507024, %v2976
    %v2992 = vor.u32 %v2990, %v2991
    %vm2993 = vcmp.lt.s32.totalorder %v2974, 1
    %vm2994 = vcmp.lt.s32.totalorder %v2974, 2
    %vm2995 = vcmp.lt.s32.totalorder %v2974, 3
    %vm2996 = vcmp.lt.s32.totalorder %v2974, 4
    %v2997 = vsel %vm2993, %v2977, %v2980
    %v2998 = vsel %vm2996, %v2986, 2102212464
    %v2999 = vsel %vm2995, %v2983, %v2998
    %v3000 = vsel %vm2994, %v2997, %v2999
    %v3001 = vsel %vm2993, %v2980, %v2983
    %v3002 = vsel %vm2996, %v2989, 920167782
    %v3003 = vsel %vm2995, %v2986, %v3002
    %v3004 = vsel %vm2994, %v3001, %v3003
    %v3005 = vsel %vm2993, %v2983, %v2986
    %v3006 = vsel %vm2996, %v2992, 1326507024
    %v3007 = vsel %vm2995, %v2989, %v3006
    %v3008 = vsel %vm2994, %v3005, %v3007
    %v3009 = vshll.u32 %v2969, 8
    %v3010 = vand.u32 %v3009, 65535
    %v3011 = vshrl.u32 %v3009, 16
    %v3012 = vand.u32 %v3008, 65535
    %v3013 = vshrl.u32 %v3008, 16
    %v3014 = vmul.u32 %v3010, %v3012
    %v3015 = vmul.u32 %v3010, %v3013
    %v3016 = vmul.u32 %v3011, %v3012
    %v3017 = vmul.u32 %v3011, %v3013
    %v3018 = vshll.u32 %v3015, 16
    %v3019 = vshrl.u32 %v3015, 16
    %v3020 = vshll.u32 %v3016, 16
    %v3021 = vshrl.u32 %v3016, 16
    %vm3022 = vc.u32 %v3014, %v3018
    %v3023 = vsel %vm3022, 1, 0
    %v3024 = vadd.s32 %v3014, %v3018
    %v3025 = vadd.s32 %v3017, %v3023
    %vm3026 = vc.u32 %v3024, %v3020
    %v3027 = vsel %vm3026, 1, 0
    %v3028 = vadd.s32 %v3024, %v3020
    %v3029 = vadd.s32 %v3025, %v3027
    %v3030 = vadd.s32 %v3029, %v3019
    %v3031 = vadd.s32 %v3030, %v3021
    %v3032 = vand.u32 %v3009, 65535
    %v3033 = vshrl.u32 %v3009, 16
    %v3034 = vand.u32 %v3004, 65535
    %v3035 = vshrl.u32 %v3004, 16
    %v3036 = vmul.u32 %v3032, %v3034
    %v3037 = vmul.u32 %v3032, %v3035
    %v3038 = vmul.u32 %v3033, %v3034
    %v3039 = vmul.u32 %v3033, %v3035
    %v3040 = vshll.u32 %v3037, 16
    %v3041 = vshrl.u32 %v3037, 16
    %v3042 = vshll.u32 %v3038, 16
    %v3043 = vshrl.u32 %v3038, 16
    %vm3044 = vc.u32 %v3036, %v3040
    %v3045 = vsel %vm3044, 1, 0
    %v3046 = vadd.s32 %v3036, %v3040
    %v3047 = vadd.s32 %v3039, %v3045
    %vm3048 = vc.u32 %v3046, %v3042
    %v3049 = vsel %vm3048, 1, 0
    %v3050 = vadd.s32 %v3046, %v3042
    %v3051 = vadd.s32 %v3047, %v3049
    %v3052 = vadd.s32 %v3051, %v3041
    %v3053 = vadd.s32 %v3052, %v3043
    %v3054 = vmul.u32 %v3009, %v3000
    %v3055 = vadd.s32 %v3031, %v3050
    %vm3056 = vc.u32 %v3031, %v3050
    %v3057 = vadd.s32 %v3053, 1
    %v3058 = vsel %vm3056, %v3057, %v3053
    %v3059 = vadd.s32 %v3054, %v3058
    %v3060 = vadd.s32 %v3059, 536870912
    %v3061 = vshrl.u32 %v3060, 30
    %v3062 = vshll.u32 %v3061, 30
    %v3063 = vsub.s32 %v3059, %v3062
    %vm3064 = vcmp.lt.s32.totalorder %v3063, 0
    %v3065 = vsub.s32 0, %v3063
    %v3066 = vsel %vm3064, %v3065, %v3063
    %v3067 = vclz %v3066
    %v3068 = vsub.s32 %v3067, 2
    %vm3069 = vcmp.gt.s32.totalorder 0, %v3068
    %v3070 = vsel %vm3069, 0, %v3068
    %v3071 = vsub.s32 32, %v3070
    %v3072 = vshll.u32 %v3063, %v3070
    %v3073 = vshrl.u32 %v3055, %v3071
    %v3074 = vor.u32 %v3072, %v3073
    %v3075 = vsub.s32 4294967266, %v3070
    %v3076 = vadd.s32 %v3075, 127
    %v3077 = vshll.u32 %v3076, 23
    %v3078 = vor.u32 4788187, %v3077
    %v3079 = vand.u32 2147483647, %v3078
    %v3081 = vcvt.s32.f32 %v3074
    %v3082 = vmul.f32 %v3081, %v3079
    %v3083 = vxor.u32 %v3082, 2147483648
    %v3084 = vsel %vm2963, %v3083, %v3082
    %v3085 = vsub.s32 4, %v3061
    %v3086 = vsel %vm2963, %v3085, %v3061
    %v3087 = vsel %vm2962, %v257, %v3084
    %v3088 = vsel %vm2962, 0, %v3086
    %v3089 = vmul.f32 %v3087, %v3087
    %v3090 = vmul.f32 %v3089, -0.001358992
    %v3091 = vadd.f32 %v3090, 0.041655596
    %v3092 = vmul.f32 %v3089, %v3091
    %v3093 = vadd.f32 %v3092, -0.4999988
    %v3094 = vmul.f32 %v3089, %v3093
    %v3095 = vadd.f32 1.0, %v3094
    %v3096 = vmul.f32 %v3087, %v3087
    %v3097 = vmul.f32 %v3096, -0.00019511016
    %v3098 = vadd.f32 %v3097, 0.008332121
    %v3099 = vmul.f32 %v3096, %v3098
    %v3100 = vadd.f32 %v3099, -0.16666654
    %v3101 = vmul.f32 %v3096, %v3100
    %v3102 = vadd.f32 %v3101, 1.0
    %v3103 = vmul.f32 %v3102, %v3087
    %vm3104 = vweird.f32 %v257
    %v3105 = vadd.s32 %v3088, 3
    %v3106 = vand.u32 %v3105, 3
    %vm3107 = vcmp.lt.s32.totalorder %v3106, 2
    %vm3108 = vcmp.eq.s32.totalorder %v3106, 0
    %v3109 = vxor.u32 %v3103, 2147483648
    %v3110 = vsel %vm3108, %v3095, %v3109
    %vm3111 = vcmp.eq.s32.totalorder %v3106, 2
    %v3112 = vxor.u32 %v3095, 2147483648
    %v3113 = vsel %vm3111, %v3112, %v3103
    %v3114 = vsel %vm3107, %v3110, %v3113
    %v3115 = vsel %vm3104, nan, %v3114
    %v3116 = vand.u32 2147483647, %v258
    %vm3117 = vcmp.le.f32.partialorder %v3116, 0.7853982
    %vm3118 = vcmp.lt.s32.totalorder %v258, 0
    %v3119 = vand.u32 %v258, 2139095040
    %v3120 = vshrl.u32 %v3119, 23
    %v3121 = vsub.s32 %v3120, 127
    %v3122 = vand.u32 2147483647, %v258
    %v3123 = vand.u32 %v3122, 8388607
    %v3124 = vor.u32 %v3123, 8388608
    %v3125 = vsub.s32 0, %v3124
    %v3126 = vadd.s32 %v3121, 1
    %vm3127 = vcmp.gt.s32.totalorder %v3126, 0
    %v3128 = vsel %vm3127, %v3126, 0
    %v3129 = vshrl.u32 %v3128, 5
    %v3130 = vand.u32 %v3128, 31
    %v3131 = vsub.s32 32, %v3130
    %v3132 = vshrl.u32 683565275, %v3131
    %v3133 = vshll.u32 683565275, %v3130
    %v3134 = vshrl.u32 2475754826, %v3131
    %v3135 = vor.u32 %v3133, %v3134
    %v3136 = vshll.u32 2475754826, %v3130
    %v3137 = vshrl.u32 2131351028, %v3131
    %v3138 = vor.u32 %v3136, %v3137
    %v3139 = vshll.u32 2131351028, %v3130
    %v3140 = vshrl.u32 2102212464, %v3131
    %v3141 = vor.u32 %v3139, %v3140
    %v3142 = vshll.u32 2102212464, %v3130
    %v3143 = vshrl.u32 920167782, %v3131
    %v3144 = vor.u32 %v3142, %v3143
    %v3145 = vshll.u32 920167782, %v3130
    %v3146 = vshrl.u32 1326507024, %v3131
    %v3147 = vor.u32 %v3145, %v3146
    %vm3148 = vcmp.lt.s32.totalorder %v3129, 1
    %vm3149 = vcmp.lt.s32.totalorder %v3129, 2
    %vm3150 = vcmp.lt.s32.totalorder %v3129, 3
    %vm3151 = vcmp.lt.s32.totalorder %v3129, 4
    %v3152 = vsel %vm3148, %v3132, %v3135
    %v3153 = vsel %vm3151, %v3141, 2102212464
    %v3154 = vsel %vm3150, %v3138, %v3153
    %v3155 = vsel %vm3149, %v3152, %v3154
    %v3156 = vsel %vm3148, %v3135, %v3138
    %v3157 = vsel %vm3151, %v3144, 920167782
    %v3158 = vsel %vm3150, %v3141, %v3157
    %v3159 = vsel %vm3149, %v3156, %v3158
    %v3160 = vsel %vm3148, %v3138, %v3141
    %v3161 = vsel %vm3151, %v3147, 1326507024
    %v3162 = vsel %vm3150, %v3144, %v3161
    %v3163 = vsel %vm3149, %v3160, %v3162
    %v3164 = vshll.u32 %v3124, 8
    %v3165 = vand.u32 %v3164, 65535
    %v3166 = vshrl.u32 %v3164, 16
    %v3167 = vand.u32 %v3163, 65535
    %v3168 = vshrl.u32 %v3163, 16
    %v3169 = vmul.u32 %v3165, %v3167
    %v3170 = vmul.u32 %v3165, %v3168
    %v3171 = vmul.u32 %v3166, %v3167
    %v3172 = vmul.u32 %v3166, %v3168
    %v3173 = vshll.u32 %v3170, 16
    %v3174 = vshrl.u32 %v3170, 16
    %v3175 = vshll.u32 %v3171, 16
    %v3176 = vshrl.u32 %v3171, 16
    %vm3177 = vc.u32 %v3169, %v3173
    %v3178 = vsel %vm3177, 1, 0
    %v3179 = vadd.s32 %v3169, %v3173
    %v3180 = vadd.s32 %v3172, %v3178
    %vm3181 = vc.u32 %v3179, %v3175
    %v3182 = vsel %vm3181, 1, 0
    %v3183 = vadd.s32 %v3179, %v3175
    %v3184 = vadd.s32 %v3180, %v3182
    %v3185 = vadd.s32 %v3184, %v3174
    %v3186 = vadd.s32 %v3185, %v3176
    %v3187 = vand.u32 %v3164, 65535
    %v3188 = vshrl.u32 %v3164, 16
    %v3189 = vand.u32 %v3159, 65535
    %v3190 = vshrl.u32 %v3159, 16
    %v3191 = vmul.u32 %v3187, %v3189
    %v3192 = vmul.u32 %v3187, %v3190
    %v3193 = vmul.u32 %v3188, %v3189
    %v3194 = vmul.u32 %v3188, %v3190
    %v3195 = vshll.u32 %v3192, 16
    %v3196 = vshrl.u32 %v3192, 16
    %v3197 = vshll.u32 %v3193, 16
    %v3198 = vshrl.u32 %v3193, 16
    %vm3199 = vc.u32 %v3191, %v3195
    %v3200 = vsel %vm3199, 1, 0
    %v3201 = vadd.s32 %v3191, %v3195
    %v3202 = vadd.s32 %v3194, %v3200
    %vm3203 = vc.u32 %v3201, %v3197
    %v3204 = vsel %vm3203, 1, 0
    %v3205 = vadd.s32 %v3201, %v3197
    %v3206 = vadd.s32 %v3202, %v3204
    %v3207 = vadd.s32 %v3206, %v3196
    %v3208 = vadd.s32 %v3207, %v3198
    %v3209 = vmul.u32 %v3164, %v3155
    %v3210 = vadd.s32 %v3186, %v3205
    %vm3211 = vc.u32 %v3186, %v3205
    %v3212 = vadd.s32 %v3208, 1
    %v3213 = vsel %vm3211, %v3212, %v3208
    %v3214 = vadd.s32 %v3209, %v3213
    %v3215 = vadd.s32 %v3214, 536870912
    %v3216 = vshrl.u32 %v3215, 30
    %v3217 = vshll.u32 %v3216, 30
    %v3218 = vsub.s32 %v3214, %v3217
    %vm3219 = vcmp.lt.s32.totalorder %v3218, 0
    %v3220 = vsub.s32 0, %v3218
    %v3221 = vsel %vm3219, %v3220, %v3218
    %v3222 = vclz %v3221
    %v3223 = vsub.s32 %v3222, 2
    %vm3224 = vcmp.gt.s32.totalorder 0, %v3223
    %v3225 = vsel %vm3224, 0, %v3223
    %v3226 = vsub.s32 32, %v3225
    %v3227 = vshll.u32 %v3218, %v3225
    %v3228 = vshrl.u32 %v3210, %v3226
    %v3229 = vor.u32 %v3227, %v3228
    %v3230 = vsub.s32 4294967266, %v3225
    %v3231 = vadd.s32 %v3230, 127
    %v3232 = vshll.u32 %v3231, 23
    %v3233 = vor.u32 4788187, %v3232
    %v3234 = vand.u32 2147483647, %v3233
    %v3236 = vcvt.s32.f32 %v3229
    %v3237 = vmul.f32 %v3236, %v3234
    %v3238 = vxor.u32 %v3237, 2147483648
    %v3239 = vsel %vm3118, %v3238, %v3237
    %v3240 = vsub.s32 4, %v3216
    %v3241 = vsel %vm3118, %v3240, %v3216
    %v3242 = vsel %vm3117, %v258, %v3239
    %v3243 = vsel %vm3117, 0, %v3241
    %v3244 = vmul.f32 %v3242, %v3242
    %v3245 = vmul.f32 %v3244, -0.001358992
    %v3246 = vadd.f32 %v3245, 0.041655596
    %v3247 = vmul.f32 %v3244, %v3246
    %v3248 = vadd.f32 %v3247, -0.4999988
    %v3249 = vmul.f32 %v3244, %v3248
    %v3250 = vadd.f32 1.0, %v3249
    %v3251 = vmul.f32 %v3242, %v3242
    %v3252 = vmul.f32 %v3251, -0.00019511016
    %v3253 = vadd.f32 %v3252, 0.008332121
    %v3254 = vmul.f32 %v3251, %v3253
    %v3255 = vadd.f32 %v3254, -0.16666654
    %v3256 = vmul.f32 %v3251, %v3255
    %v3257 = vadd.f32 %v3256, 1.0
    %v3258 = vmul.f32 %v3257, %v3242
    %vm3259 = vweird.f32 %v258
    %v3260 = vadd.s32 %v3243, 3
    %v3261 = vand.u32 %v3260, 3
    %vm3262 = vcmp.lt.s32.totalorder %v3261, 2
    %vm3263 = vcmp.eq.s32.totalorder %v3261, 0
    %v3264 = vxor.u32 %v3258, 2147483648
    %v3265 = vsel %vm3263, %v3250, %v3264
    %vm3266 = vcmp.eq.s32.totalorder %v3261, 2
    %v3267 = vxor.u32 %v3250, 2147483648
    %v3268 = vsel %vm3266, %v3267, %v3258
    %v3269 = vsel %vm3262, %v3265, %v3268
    %v3270 = vsel %vm3259, nan, %v3269
    %v3271 = vand.u32 2147483647, %v259
    %vm3272 = vcmp.le.f32.partialorder %v3271, 0.7853982
    %vm3273 = vcmp.lt.s32.totalorder %v259, 0
    %v3274 = vand.u32 %v259, 2139095040
    %v3275 = vshrl.u32 %v3274, 23
    %v3276 = vsub.s32 %v3275, 127
    %v3277 = vand.u32 2147483647, %v259
    %v3278 = vand.u32 %v3277, 8388607
    %v3279 = vor.u32 %v3278, 8388608
    %v3280 = vsub.s32 0, %v3279
    %v3281 = vadd.s32 %v3276, 1
    %vm3282 = vcmp.gt.s32.totalorder %v3281, 0
    %v3283 = vsel %vm3282, %v3281, 0
    %v3284 = vshrl.u32 %v3283, 5
    %v3285 = vand.u32 %v3283, 31
    %v3286 = vsub.s32 32, %v3285
    %v3287 = vshrl.u32 683565275, %v3286
    %v3288 = vshll.u32 683565275, %v3285
    %v3289 = vshrl.u32 2475754826, %v3286
    %v3290 = vor.u32 %v3288, %v3289
    %v3291 = vshll.u32 2475754826, %v3285
    %v3292 = vshrl.u32 2131351028, %v3286
    %v3293 = vor.u32 %v3291, %v3292
    %v3294 = vshll.u32 2131351028, %v3285
    %v3295 = vshrl.u32 2102212464, %v3286
    %v3296 = vor.u32 %v3294, %v3295
    %v3297 = vshll.u32 2102212464, %v3285
    %v3298 = vshrl.u32 920167782, %v3286
    %v3299 = vor.u32 %v3297, %v3298
    %v3300 = vshll.u32 920167782, %v3285
    %v3301 = vshrl.u32 1326507024, %v3286
    %v3302 = vor.u32 %v3300, %v3301
    %vm3303 = vcmp.lt.s32.totalorder %v3284, 1
    %vm3304 = vcmp.lt.s32.totalorder %v3284, 2
    %vm3305 = vcmp.lt.s32.totalorder %v3284, 3
    %vm3306 = vcmp.lt.s32.totalorder %v3284, 4
    %v3307 = vsel %vm3303, %v3287, %v3290
    %v3308 = vsel %vm3306, %v3296, 2102212464
    %v3309 = vsel %vm3305, %v3293, %v3308
    %v3310 = vsel %vm3304, %v3307, %v3309
    %v3311 = vsel %vm3303, %v3290, %v3293
    %v3312 = vsel %vm3306, %v3299, 920167782
    %v3313 = vsel %vm3305, %v3296, %v3312
    %v3314 = vsel %vm3304, %v3311, %v3313
    %v3315 = vsel %vm3303, %v3293, %v3296
    %v3316 = vsel %vm3306, %v3302, 1326507024
    %v3317 = vsel %vm3305, %v3299, %v3316
    %v3318 = vsel %vm3304, %v3315, %v3317
    %v3319 = vshll.u32 %v3279, 8
    %v3320 = vand.u32 %v3319, 65535
    %v3321 = vshrl.u32 %v3319, 16
    %v3322 = vand.u32 %v3318, 65535
    %v3323 = vshrl.u32 %v3318, 16
    %v3324 = vmul.u32 %v3320, %v3322
    %v3325 = vmul.u32 %v3320, %v3323
    %v3326 = vmul.u32 %v3321, %v3322
    %v3327 = vmul.u32 %v3321, %v3323
    %v3328 = vshll.u32 %v3325, 16
    %v3329 = vshrl.u32 %v3325, 16
    %v3330 = vshll.u32 %v3326, 16
    %v3331 = vshrl.u32 %v3326, 16
    %vm3332 = vc.u32 %v3324, %v3328
    %v3333 = vsel %vm3332, 1, 0
    %v3334 = vadd.s32 %v3324, %v3328
    %v3335 = vadd.s32 %v3327, %v3333
    %vm3336 = vc.u32 %v3334, %v3330
    %v3337 = vsel %vm3336, 1, 0
    %v3338 = vadd.s32 %v3334, %v3330
    %v3339 = vadd.s32 %v3335, %v3337
    %v3340 = vadd.s32 %v3339, %v3329
    %v3341 = vadd.s32 %v3340, %v3331
    %v3342 = vand.u32 %v3319, 65535
    %v3343 = vshrl.u32 %v3319, 16
    %v3344 = vand.u32 %v3314, 65535
    %v3345 = vshrl.u32 %v3314, 16
    %v3346 = vmul.u32 %v3342, %v3344
    %v3347 = vmul.u32 %v3342, %v3345
    %v3348 = vmul.u32 %v3343, %v3344
    %v3349 = vmul.u32 %v3343, %v3345
    %v3350 = vshll.u32 %v3347, 16
    %v3351 = vshrl.u32 %v3347, 16
    %v3352 = vshll.u32 %v3348, 16
    %v3353 = vshrl.u32 %v3348, 16
    %vm3354 = vc.u32 %v3346, %v3350
    %v3355 = vsel %vm3354, 1, 0
    %v3356 = vadd.s32 %v3346, %v3350
    %v3357 = vadd.s32 %v3349, %v3355
    %vm3358 = vc.u32 %v3356, %v3352
    %v3359 = vsel %vm3358, 1, 0
    %v3360 = vadd.s32 %v3356, %v3352
    %v3361 = vadd.s32 %v3357, %v3359
    %v3362 = vadd.s32 %v3361, %v3351
    %v3363 = vadd.s32 %v3362, %v3353
    %v3364 = vmul.u32 %v3319, %v3310
    %v3365 = vadd.s32 %v3341, %v3360
    %vm3366 = vc.u32 %v3341, %v3360
    %v3367 = vadd.s32 %v3363, 1
    %v3368 = vsel %vm3366, %v3367, %v3363
    %v3369 = vadd.s32 %v3364, %v3368
    %v3370 = vadd.s32 %v3369, 536870912
    %v3371 = vshrl.u32 %v3370, 30
    %v3372 = vshll.u32 %v3371, 30
    %v3373 = vsub.s32 %v3369, %v3372
    %vm3374 = vcmp.lt.s32.totalorder %v3373, 0
    %v3375 = vsub.s32 0, %v3373
    %v3376 = vsel %vm3374, %v3375, %v3373
    %v3377 = vclz %v3376
    %v3378 = vsub.s32 %v3377, 2
    %vm3379 = vcmp.gt.s32.totalorder 0, %v3378
    %v3380 = vsel %vm3379, 0, %v3378
    %v3381 = vsub.s32 32, %v3380
    %v3382 = vshll.u32 %v3373, %v3380
    %v3383 = vshrl.u32 %v3365, %v3381
    %v3384 = vor.u32 %v3382, %v3383
    %v3385 = vsub.s32 4294967266, %v3380
    %v3386 = vadd.s32 %v3385, 127
    %v3387 = vshll.u32 %v3386, 23
    %v3388 = vor.u32 4788187, %v3387
    %v3389 = vand.u32 2147483647, %v3388
    %v3391 = vcvt.s32.f32 %v3384
    %v3392 = vmul.f32 %v3391, %v3389
    %v3393 = vxor.u32 %v3392, 2147483648
    %v3394 = vsel %vm3273, %v3393, %v3392
    %v3395 = vsub.s32 4, %v3371
    %v3396 = vsel %vm3273, %v3395, %v3371
    %v3397 = vsel %vm3272, %v259, %v3394
    %v3398 = vsel %vm3272, 0, %v3396
    %v3399 = vmul.f32 %v3397, %v3397
    %v3400 = vmul.f32 %v3399, -0.001358992
    %v3401 = vadd.f32 %v3400, 0.041655596
    %v3402 = vmul.f32 %v3399, %v3401
    %v3403 = vadd.f32 %v3402, -0.4999988
    %v3404 = vmul.f32 %v3399, %v3403
    %v3405 = vadd.f32 1.0, %v3404
    %v3406 = vmul.f32 %v3397, %v3397
    %v3407 = vmul.f32 %v3406, -0.00019511016
    %v3408 = vadd.f32 %v3407, 0.008332121
    %v3409 = vmul.f32 %v3406, %v3408
    %v3410 = vadd.f32 %v3409, -0.16666654
    %v3411 = vmul.f32 %v3406, %v3410
    %v3412 = vadd.f32 %v3411, 1.0
    %v3413 = vmul.f32 %v3412, %v3397
    %vm3414 = vweird.f32 %v259
    %v3415 = vadd.s32 %v3398, 3
    %v3416 = vand.u32 %v3415, 3
    %vm3417 = vcmp.lt.s32.totalorder %v3416, 2
    %vm3418 = vcmp.eq.s32.totalorder %v3416, 0
    %v3419 = vxor.u32 %v3413, 2147483648
    %v3420 = vsel %vm3418, %v3405, %v3419
    %vm3421 = vcmp.eq.s32.totalorder %v3416, 2
    %v3422 = vxor.u32 %v3405, 2147483648
    %v3423 = vsel %vm3421, %v3422, %v3413
    %v3424 = vsel %vm3417, %v3420, %v3423
    %v3425 = vsel %vm3414, nan, %v3424
    %v3426 = vand.u32 2147483647, %v260
    %vm3427 = vcmp.le.f32.partialorder %v3426, 0.7853982
    %vm3428 = vcmp.lt.s32.totalorder %v260, 0
    %v3429 = vand.u32 %v260, 2139095040
    %v3430 = vshrl.u32 %v3429, 23
    %v3431 = vsub.s32 %v3430, 127
    %v3432 = vand.u32 2147483647, %v260
    %v3433 = vand.u32 %v3432, 8388607
    %v3434 = vor.u32 %v3433, 8388608
    %v3435 = vsub.s32 0, %v3434
    %v3436 = vadd.s32 %v3431, 1
    %vm3437 = vcmp.gt.s32.totalorder %v3436, 0
    %v3438 = vsel %vm3437, %v3436, 0
    %v3439 = vshrl.u32 %v3438, 5
    %v3440 = vand.u32 %v3438, 31
    %v3441 = vsub.s32 32, %v3440
    %v3442 = vshrl.u32 683565275, %v3441
    %v3443 = vshll.u32 683565275, %v3440
    %v3444 = vshrl.u32 2475754826, %v3441
    %v3445 = vor.u32 %v3443, %v3444
    %v3446 = vshll.u32 2475754826, %v3440
    %v3447 = vshrl.u32 2131351028, %v3441
    %v3448 = vor.u32 %v3446, %v3447
    %v3449 = vshll.u32 2131351028, %v3440
    %v3450 = vshrl.u32 2102212464, %v3441
    %v3451 = vor.u32 %v3449, %v3450
    %v3452 = vshll.u32 2102212464, %v3440
    %v3453 = vshrl.u32 920167782, %v3441
    %v3454 = vor.u32 %v3452, %v3453
    %v3455 = vshll.u32 920167782, %v3440
    %v3456 = vshrl.u32 1326507024, %v3441
    %v3457 = vor.u32 %v3455, %v3456
    %vm3458 = vcmp.lt.s32.totalorder %v3439, 1
    %vm3459 = vcmp.lt.s32.totalorder %v3439, 2
    %vm3460 = vcmp.lt.s32.totalorder %v3439, 3
    %vm3461 = vcmp.lt.s32.totalorder %v3439, 4
    %v3462 = vsel %vm3458, %v3442, %v3445
    %v3463 = vsel %vm3461, %v3451, 2102212464
    %v3464 = vsel %vm3460, %v3448, %v3463
    %v3465 = vsel %vm3459, %v3462, %v3464
    %v3466 = vsel %vm3458, %v3445, %v3448
    %v3467 = vsel %vm3461, %v3454, 920167782
    %v3468 = vsel %vm3460, %v3451, %v3467
    %v3469 = vsel %vm3459, %v3466, %v3468
    %v3470 = vsel %vm3458, %v3448, %v3451
    %v3471 = vsel %vm3461, %v3457, 1326507024
    %v3472 = vsel %vm3460, %v3454, %v3471
    %v3473 = vsel %vm3459, %v3470, %v3472
    %v3474 = vshll.u32 %v3434, 8
    %v3475 = vand.u32 %v3474, 65535
    %v3476 = vshrl.u32 %v3474, 16
    %v3477 = vand.u32 %v3473, 65535
    %v3478 = vshrl.u32 %v3473, 16
    %v3479 = vmul.u32 %v3475, %v3477
    %v3480 = vmul.u32 %v3475, %v3478
    %v3481 = vmul.u32 %v3476, %v3477
    %v3482 = vmul.u32 %v3476, %v3478
    %v3483 = vshll.u32 %v3480, 16
    %v3484 = vshrl.u32 %v3480, 16
    %v3485 = vshll.u32 %v3481, 16
    %v3486 = vshrl.u32 %v3481, 16
    %vm3487 = vc.u32 %v3479, %v3483
    %v3488 = vsel %vm3487, 1, 0
    %v3489 = vadd.s32 %v3479, %v3483
    %v3490 = vadd.s32 %v3482, %v3488
    %vm3491 = vc.u32 %v3489, %v3485
    %v3492 = vsel %vm3491, 1, 0
    %v3493 = vadd.s32 %v3489, %v3485
    %v3494 = vadd.s32 %v3490, %v3492
    %v3495 = vadd.s32 %v3494, %v3484
    %v3496 = vadd.s32 %v3495, %v3486
    %v3497 = vand.u32 %v3474, 65535
    %v3498 = vshrl.u32 %v3474, 16
    %v3499 = vand.u32 %v3469, 65535
    %v3500 = vshrl.u32 %v3469, 16
    %v3501 = vmul.u32 %v3497, %v3499
    %v3502 = vmul.u32 %v3497, %v3500
    %v3503 = vmul.u32 %v3498, %v3499
    %v3504 = vmul.u32 %v3498, %v3500
    %v3505 = vshll.u32 %v3502, 16
    %v3506 = vshrl.u32 %v3502, 16
    %v3507 = vshll.u32 %v3503, 16
    %v3508 = vshrl.u32 %v3503, 16
    %vm3509 = vc.u32 %v3501, %v3505
    %v3510 = vsel %vm3509, 1, 0
    %v3511 = vadd.s32 %v3501, %v3505
    %v3512 = vadd.s32 %v3504, %v3510
    %vm3513 = vc.u32 %v3511, %v3507
    %v3514 = vsel %vm3513, 1, 0
    %v3515 = vadd.s32 %v3511, %v3507
    %v3516 = vadd.s32 %v3512, %v3514
    %v3517 = vadd.s32 %v3516, %v3506
    %v3518 = vadd.s32 %v3517, %v3508
    %v3519 = vmul.u32 %v3474, %v3465
    %v3520 = vadd.s32 %v3496, %v3515
    %vm3521 = vc.u32 %v3496, %v3515
    %v3522 = vadd.s32 %v3518, 1
    %v3523 = vsel %vm3521, %v3522, %v3518
    %v3524 = vadd.s32 %v3519, %v3523
    %v3525 = vadd.s32 %v3524, 536870912
    %v3526 = vshrl.u32 %v3525, 30
    %v3527 = vshll.u32 %v3526, 30
    %v3528 = vsub.s32 %v3524, %v3527
    %vm3529 = vcmp.lt.s32.totalorder %v3528, 0
    %v3530 = vsub.s32 0, %v3528
    %v3531 = vsel %vm3529, %v3530, %v3528
    %v3532 = vclz %v3531
    %v3533 = vsub.s32 %v3532, 2
    %vm3534 = vcmp.gt.s32.totalorder 0, %v3533
    %v3535 = vsel %vm3534, 0, %v3533
    %v3536 = vsub.s32 32, %v3535
    %v3537 = vshll.u32 %v3528, %v3535
    %v3538 = vshrl.u32 %v3520, %v3536
    %v3539 = vor.u32 %v3537, %v3538
    %v3540 = vsub.s32 4294967266, %v3535
    %v3541 = vadd.s32 %v3540, 127
    %v3542 = vshll.u32 %v3541, 23
    %v3543 = vor.u32 4788187, %v3542
    %v3544 = vand.u32 2147483647, %v3543
    %v3546 = vcvt.s32.f32 %v3539
    %v3547 = vmul.f32 %v3546, %v3544
    %v3548 = vxor.u32 %v3547, 2147483648
    %v3549 = vsel %vm3428, %v3548, %v3547
    %v3550 = vsub.s32 4, %v3526
    %v3551 = vsel %vm3428, %v3550, %v3526
    %v3552 = vsel %vm3427, %v260, %v3549
    %v3553 = vsel %vm3427, 0, %v3551
    %v3554 = vmul.f32 %v3552, %v3552
    %v3555 = vmul.f32 %v3554, -0.001358992
    %v3556 = vadd.f32 %v3555, 0.041655596
    %v3557 = vmul.f32 %v3554, %v3556
    %v3558 = vadd.f32 %v3557, -0.4999988
    %v3559 = vmul.f32 %v3554, %v3558
    %v3560 = vadd.f32 1.0, %v3559
    %v3561 = vmul.f32 %v3552, %v3552
    %v3562 = vmul.f32 %v3561, -0.00019511016
    %v3563 = vadd.f32 %v3562, 0.008332121
    %v3564 = vmul.f32 %v3561, %v3563
    %v3565 = vadd.f32 %v3564, -0.16666654
    %v3566 = vmul.f32 %v3561, %v3565
    %v3567 = vadd.f32 %v3566, 1.0
    %v3568 = vmul.f32 %v3567, %v3552
    %vm3569 = vweird.f32 %v260
    %v3570 = vadd.s32 %v3553, 3
    %v3571 = vand.u32 %v3570, 3
    %vm3572 = vcmp.lt.s32.totalorder %v3571, 2
    %vm3573 = vcmp.eq.s32.totalorder %v3571, 0
    %v3574 = vxor.u32 %v3568, 2147483648
    %v3575 = vsel %vm3573, %v3560, %v3574
    %vm3576 = vcmp.eq.s32.totalorder %v3571, 2
    %v3577 = vxor.u32 %v3560, 2147483648
    %v3578 = vsel %vm3576, %v3577, %v3568
    %v3579 = vsel %vm3572, %v3575, %v3578
    %v3580 = vsel %vm3569, nan, %v3579
    %v3581 = vand.u32 2147483647, %v261
    %vm3582 = vcmp.le.f32.partialorder %v3581, 0.7853982
    %vm3583 = vcmp.lt.s32.totalorder %v261, 0
    %v3584 = vand.u32 %v261, 2139095040
    %v3585 = vshrl.u32 %v3584, 23
    %v3586 = vsub.s32 %v3585, 127
    %v3587 = vand.u32 2147483647, %v261
    %v3588 = vand.u32 %v3587, 8388607
    %v3589 = vor.u32 %v3588, 8388608
    %v3590 = vsub.s32 0, %v3589
    %v3591 = vadd.s32 %v3586, 1
    %vm3592 = vcmp.gt.s32.totalorder %v3591, 0
    %v3593 = vsel %vm3592, %v3591, 0
    %v3594 = vshrl.u32 %v3593, 5
    %v3595 = vand.u32 %v3593, 31
    %v3596 = vsub.s32 32, %v3595
    %v3597 = vshrl.u32 683565275, %v3596
    %v3598 = vshll.u32 683565275, %v3595
    %v3599 = vshrl.u32 2475754826, %v3596
    %v3600 = vor.u32 %v3598, %v3599
    %v3601 = vshll.u32 2475754826, %v3595
    %v3602 = vshrl.u32 2131351028, %v3596
    %v3603 = vor.u32 %v3601, %v3602
    %v3604 = vshll.u32 2131351028, %v3595
    %v3605 = vshrl.u32 2102212464, %v3596
    %v3606 = vor.u32 %v3604, %v3605
    %v3607 = vshll.u32 2102212464, %v3595
    %v3608 = vshrl.u32 920167782, %v3596
    %v3609 = vor.u32 %v3607, %v3608
    %v3610 = vshll.u32 920167782, %v3595
    %v3611 = vshrl.u32 1326507024, %v3596
    %v3612 = vor.u32 %v3610, %v3611
    %vm3613 = vcmp.lt.s32.totalorder %v3594, 1
    %vm3614 = vcmp.lt.s32.totalorder %v3594, 2
    %vm3615 = vcmp.lt.s32.totalorder %v3594, 3
    %vm3616 = vcmp.lt.s32.totalorder %v3594, 4
    %v3617 = vsel %vm3613, %v3597, %v3600
    %v3618 = vsel %vm3616, %v3606, 2102212464
    %v3619 = vsel %vm3615, %v3603, %v3618
    %v3620 = vsel %vm3614, %v3617, %v3619
    %v3621 = vsel %vm3613, %v3600, %v3603
    %v3622 = vsel %vm3616, %v3609, 920167782
    %v3623 = vsel %vm3615, %v3606, %v3622
    %v3624 = vsel %vm3614, %v3621, %v3623
    %v3625 = vsel %vm3613, %v3603, %v3606
    %v3626 = vsel %vm3616, %v3612, 1326507024
    %v3627 = vsel %vm3615, %v3609, %v3626
    %v3628 = vsel %vm3614, %v3625, %v3627
    %v3629 = vshll.u32 %v3589, 8
    %v3630 = vand.u32 %v3629, 65535
    %v3631 = vshrl.u32 %v3629, 16
    %v3632 = vand.u32 %v3628, 65535
    %v3633 = vshrl.u32 %v3628, 16
    %v3634 = vmul.u32 %v3630, %v3632
    %v3635 = vmul.u32 %v3630, %v3633
    %v3636 = vmul.u32 %v3631, %v3632
    %v3637 = vmul.u32 %v3631, %v3633
    %v3638 = vshll.u32 %v3635, 16
    %v3639 = vshrl.u32 %v3635, 16
    %v3640 = vshll.u32 %v3636, 16
    %v3641 = vshrl.u32 %v3636, 16
    %vm3642 = vc.u32 %v3634, %v3638
    %v3643 = vsel %vm3642, 1, 0
    %v3644 = vadd.s32 %v3634, %v3638
    %v3645 = vadd.s32 %v3637, %v3643
    %vm3646 = vc.u32 %v3644, %v3640
    %v3647 = vsel %vm3646, 1, 0
    %v3648 = vadd.s32 %v3644, %v3640
    %v3649 = vadd.s32 %v3645, %v3647
    %v3650 = vadd.s32 %v3649, %v3639
    %v3651 = vadd.s32 %v3650, %v3641
    %v3652 = vand.u32 %v3629, 65535
    %v3653 = vshrl.u32 %v3629, 16
    %v3654 = vand.u32 %v3624, 65535
    %v3655 = vshrl.u32 %v3624, 16
    %v3656 = vmul.u32 %v3652, %v3654
    %v3657 = vmul.u32 %v3652, %v3655
    %v3658 = vmul.u32 %v3653, %v3654
    %v3659 = vmul.u32 %v3653, %v3655
    %v3660 = vshll.u32 %v3657, 16
    %v3661 = vshrl.u32 %v3657, 16
    %v3662 = vshll.u32 %v3658, 16
    %v3663 = vshrl.u32 %v3658, 16
    %vm3664 = vc.u32 %v3656, %v3660
    %v3665 = vsel %vm3664, 1, 0
    %v3666 = vadd.s32 %v3656, %v3660
    %v3667 = vadd.s32 %v3659, %v3665
    %vm3668 = vc.u32 %v3666, %v3662
    %v3669 = vsel %vm3668, 1, 0
    %v3670 = vadd.s32 %v3666, %v3662
    %v3671 = vadd.s32 %v3667, %v3669
    %v3672 = vadd.s32 %v3671, %v3661
    %v3673 = vadd.s32 %v3672, %v3663
    %v3674 = vmul.u32 %v3629, %v3620
    %v3675 = vadd.s32 %v3651, %v3670
    %vm3676 = vc.u32 %v3651, %v3670
    %v3677 = vadd.s32 %v3673, 1
    %v3678 = vsel %vm3676, %v3677, %v3673
    %v3679 = vadd.s32 %v3674, %v3678
    %v3680 = vadd.s32 %v3679, 536870912
    %v3681 = vshrl.u32 %v3680, 30
    %v3682 = vshll.u32 %v3681, 30
    %v3683 = vsub.s32 %v3679, %v3682
    %vm3684 = vcmp.lt.s32.totalorder %v3683, 0
    %v3685 = vsub.s32 0, %v3683
    %v3686 = vsel %vm3684, %v3685, %v3683
    %v3687 = vclz %v3686
    %v3688 = vsub.s32 %v3687, 2
    %vm3689 = vcmp.gt.s32.totalorder 0, %v3688
    %v3690 = vsel %vm3689, 0, %v3688
    %v3691 = vsub.s32 32, %v3690
    %v3692 = vshll.u32 %v3683, %v3690
    %v3693 = vshrl.u32 %v3675, %v3691
    %v3694 = vor.u32 %v3692, %v3693
    %v3695 = vsub.s32 4294967266, %v3690
    %v3696 = vadd.s32 %v3695, 127
    %v3697 = vshll.u32 %v3696, 23
    %v3698 = vor.u32 4788187, %v3697
    %v3699 = vand.u32 2147483647, %v3698
    %v3701 = vcvt.s32.f32 %v3694
    %v3702 = vmul.f32 %v3701, %v3699
    %v3703 = vxor.u32 %v3702, 2147483648
    %v3704 = vsel %vm3583, %v3703, %v3702
    %v3705 = vsub.s32 4, %v3681
    %v3706 = vsel %vm3583, %v3705, %v3681
    %v3707 = vsel %vm3582, %v261, %v3704
    %v3708 = vsel %vm3582, 0, %v3706
    %v3709 = vmul.f32 %v3707, %v3707
    %v3710 = vmul.f32 %v3709, -0.001358992
    %v3711 = vadd.f32 %v3710, 0.041655596
    %v3712 = vmul.f32 %v3709, %v3711
    %v3713 = vadd.f32 %v3712, -0.4999988
    %v3714 = vmul.f32 %v3709, %v3713
    %v3715 = vadd.f32 1.0, %v3714
    %v3716 = vmul.f32 %v3707, %v3707
    %v3717 = vmul.f32 %v3716, -0.00019511016
    %v3718 = vadd.f32 %v3717, 0.008332121
    %v3719 = vmul.f32 %v3716, %v3718
    %v3720 = vadd.f32 %v3719, -0.16666654
    %v3721 = vmul.f32 %v3716, %v3720
    %v3722 = vadd.f32 %v3721, 1.0
    %v3723 = vmul.f32 %v3722, %v3707
    %vm3724 = vweird.f32 %v261
    %v3725 = vadd.s32 %v3708, 3
    %v3726 = vand.u32 %v3725, 3
    %vm3727 = vcmp.lt.s32.totalorder %v3726, 2
    %vm3728 = vcmp.eq.s32.totalorder %v3726, 0
    %v3729 = vxor.u32 %v3723, 2147483648
    %v3730 = vsel %vm3728, %v3715, %v3729
    %vm3731 = vcmp.eq.s32.totalorder %v3726, 2
    %v3732 = vxor.u32 %v3715, 2147483648
    %v3733 = vsel %vm3731, %v3732, %v3723
    %v3734 = vsel %vm3727, %v3730, %v3733
    %v3735 = vsel %vm3724, nan, %v3734
    %v3736 = vand.u32 2147483647, %v262
    %vm3737 = vcmp.le.f32.partialorder %v3736, 0.7853982
    %vm3738 = vcmp.lt.s32.totalorder %v262, 0
    %v3739 = vand.u32 %v262, 2139095040
    %v3740 = vshrl.u32 %v3739, 23
    %v3741 = vsub.s32 %v3740, 127
    %v3742 = vand.u32 2147483647, %v262
    %v3743 = vand.u32 %v3742, 8388607
    %v3744 = vor.u32 %v3743, 8388608
    %v3745 = vsub.s32 0, %v3744
    %v3746 = vadd.s32 %v3741, 1
    %vm3747 = vcmp.gt.s32.totalorder %v3746, 0
    %v3748 = vsel %vm3747, %v3746, 0
    %v3749 = vshrl.u32 %v3748, 5
    %v3750 = vand.u32 %v3748, 31
    %v3751 = vsub.s32 32, %v3750
    %v3752 = vshrl.u32 683565275, %v3751
    %v3753 = vshll.u32 683565275, %v3750
    %v3754 = vshrl.u32 2475754826, %v3751
    %v3755 = vor.u32 %v3753, %v3754
    %v3756 = vshll.u32 2475754826, %v3750
    %v3757 = vshrl.u32 2131351028, %v3751
    %v3758 = vor.u32 %v3756, %v3757
    %v3759 = vshll.u32 2131351028, %v3750
    %v3760 = vshrl.u32 2102212464, %v3751
    %v3761 = vor.u32 %v3759, %v3760
    %v3762 = vshll.u32 2102212464, %v3750
    %v3763 = vshrl.u32 920167782, %v3751
    %v3764 = vor.u32 %v3762, %v3763
    %v3765 = vshll.u32 920167782, %v3750
    %v3766 = vshrl.u32 1326507024, %v3751
    %v3767 = vor.u32 %v3765, %v3766
    %vm3768 = vcmp.lt.s32.totalorder %v3749, 1
    %vm3769 = vcmp.lt.s32.totalorder %v3749, 2
    %vm3770 = vcmp.lt.s32.totalorder %v3749, 3
    %vm3771 = vcmp.lt.s32.totalorder %v3749, 4
    %v3772 = vsel %vm3768, %v3752, %v3755
    %v3773 = vsel %vm3771, %v3761, 2102212464
    %v3774 = vsel %vm3770, %v3758, %v3773
    %v3775 = vsel %vm3769, %v3772, %v3774
    %v3776 = vsel %vm3768, %v3755, %v3758
    %v3777 = vsel %vm3771, %v3764, 920167782
    %v3778 = vsel %vm3770, %v3761, %v3777
    %v3779 = vsel %vm3769, %v3776, %v3778
    %v3780 = vsel %vm3768, %v3758, %v3761
    %v3781 = vsel %vm3771, %v3767, 1326507024
    %v3782 = vsel %vm3770, %v3764, %v3781
    %v3783 = vsel %vm3769, %v3780, %v3782
    %v3784 = vshll.u32 %v3744, 8
    %v3785 = vand.u32 %v3784, 65535
    %v3786 = vshrl.u32 %v3784, 16
    %v3787 = vand.u32 %v3783, 65535
    %v3788 = vshrl.u32 %v3783, 16
    %v3789 = vmul.u32 %v3785, %v3787
    %v3790 = vmul.u32 %v3785, %v3788
    %v3791 = vmul.u32 %v3786, %v3787
    %v3792 = vmul.u32 %v3786, %v3788
    %v3793 = vshll.u32 %v3790, 16
    %v3794 = vshrl.u32 %v3790, 16
    %v3795 = vshll.u32 %v3791, 16
    %v3796 = vshrl.u32 %v3791, 16
    %vm3797 = vc.u32 %v3789, %v3793
    %v3798 = vsel %vm3797, 1, 0
    %v3799 = vadd.s32 %v3789, %v3793
    %v3800 = vadd.s32 %v3792, %v3798
    %vm3801 = vc.u32 %v3799, %v3795
    %v3802 = vsel %vm3801, 1, 0
    %v3803 = vadd.s32 %v3799, %v3795
    %v3804 = vadd.s32 %v3800, %v3802
    %v3805 = vadd.s32 %v3804, %v3794
    %v3806 = vadd.s32 %v3805, %v3796
    %v3807 = vand.u32 %v3784, 65535
    %v3808 = vshrl.u32 %v3784, 16
    %v3809 = vand.u32 %v3779, 65535
    %v3810 = vshrl.u32 %v3779, 16
    %v3811 = vmul.u32 %v3807, %v3809
    %v3812 = vmul.u32 %v3807, %v3810
    %v3813 = vmul.u32 %v3808, %v3809
    %v3814 = vmul.u32 %v3808, %v3810
    %v3815 = vshll.u32 %v3812, 16
    %v3816 = vshrl.u32 %v3812, 16
    %v3817 = vshll.u32 %v3813, 16
    %v3818 = vshrl.u32 %v3813, 16
    %vm3819 = vc.u32 %v3811, %v3815
    %v3820 = vsel %vm3819, 1, 0
    %v3821 = vadd.s32 %v3811, %v3815
    %v3822 = vadd.s32 %v3814, %v3820
    %vm3823 = vc.u32 %v3821, %v3817
    %v3824 = vsel %vm3823, 1, 0
    %v3825 = vadd.s32 %v3821, %v3817
    %v3826 = vadd.s32 %v3822, %v3824
    %v3827 = vadd.s32 %v3826, %v3816
    %v3828 = vadd.s32 %v3827, %v3818
    %v3829 = vmul.u32 %v3784, %v3775
    %v3830 = vadd.s32 %v3806, %v3825
    %vm3831 = vc.u32 %v3806, %v3825
    %v3832 = vadd.s32 %v3828, 1
    %v3833 = vsel %vm3831, %v3832, %v3828
    %v3834 = vadd.s32 %v3829, %v3833
    %v3835 = vadd.s32 %v3834, 536870912
    %v3836 = vshrl.u32 %v3835, 30
    %v3837 = vshll.u32 %v3836, 30
    %v3838 = vsub.s32 %v3834, %v3837
    %vm3839 = vcmp.lt.s32.totalorder %v3838, 0
    %v3840 = vsub.s32 0, %v3838
    %v3841 = vsel %vm3839, %v3840, %v3838
    %v3842 = vclz %v3841
    %v3843 = vsub.s32 %v3842, 2
    %vm3844 = vcmp.gt.s32.totalorder 0, %v3843
    %v3845 = vsel %vm3844, 0, %v3843
    %v3846 = vsub.s32 32, %v3845
    %v3847 = vshll.u32 %v3838, %v3845
    %v3848 = vshrl.u32 %v3830, %v3846
    %v3849 = vor.u32 %v3847, %v3848
    %v3850 = vsub.s32 4294967266, %v3845
    %v3851 = vadd.s32 %v3850, 127
    %v3852 = vshll.u32 %v3851, 23
    %v3853 = vor.u32 4788187, %v3852
    %v3854 = vand.u32 2147483647, %v3853
    %v3856 = vcvt.s32.f32 %v3849
    %v3857 = vmul.f32 %v3856, %v3854
    %v3858 = vxor.u32 %v3857, 2147483648
    %v3859 = vsel %vm3738, %v3858, %v3857
    %v3860 = vsub.s32 4, %v3836
    %v3861 = vsel %vm3738, %v3860, %v3836
    %v3862 = vsel %vm3737, %v262, %v3859
    %v3863 = vsel %vm3737, 0, %v3861
    %v3864 = vmul.f32 %v3862, %v3862
    %v3865 = vmul.f32 %v3864, -0.001358992
    %v3866 = vadd.f32 %v3865, 0.041655596
    %v3867 = vmul.f32 %v3864, %v3866
    %v3868 = vadd.f32 %v3867, -0.4999988
    %v3869 = vmul.f32 %v3864, %v3868
    %v3870 = vadd.f32 1.0, %v3869
    %v3871 = vmul.f32 %v3862, %v3862
    %v3872 = vmul.f32 %v3871, -0.00019511016
    %v3873 = vadd.f32 %v3872, 0.008332121
    %v3874 = vmul.f32 %v3871, %v3873
    %v3875 = vadd.f32 %v3874, -0.16666654
    %v3876 = vmul.f32 %v3871, %v3875
    %v3877 = vadd.f32 %v3876, 1.0
    %v3878 = vmul.f32 %v3877, %v3862
    %vm3879 = vweird.f32 %v262
    %v3880 = vadd.s32 %v3863, 3
    %v3881 = vand.u32 %v3880, 3
    %vm3882 = vcmp.lt.s32.totalorder %v3881, 2
    %vm3883 = vcmp.eq.s32.totalorder %v3881, 0
    %v3884 = vxor.u32 %v3878, 2147483648
    %v3885 = vsel %vm3883, %v3870, %v3884
    %vm3886 = vcmp.eq.s32.totalorder %v3881, 2
    %v3887 = vxor.u32 %v3870, 2147483648
    %v3888 = vsel %vm3886, %v3887, %v3878
    %v3889 = vsel %vm3882, %v3885, %v3888
    %v3890 = vsel %vm3879, nan, %v3889
    %v3891 = vand.u32 2147483647, %v263
    %vm3892 = vcmp.le.f32.partialorder %v3891, 0.7853982
    %vm3893 = vcmp.lt.s32.totalorder %v263, 0
    %v3894 = vand.u32 %v263, 2139095040
    %v3895 = vshrl.u32 %v3894, 23
    %v3896 = vsub.s32 %v3895, 127
    %v3897 = vand.u32 2147483647, %v263
    %v3898 = vand.u32 %v3897, 8388607
    %v3899 = vor.u32 %v3898, 8388608
    %v3900 = vsub.s32 0, %v3899
    %v3901 = vadd.s32 %v3896, 1
    %vm3902 = vcmp.gt.s32.totalorder %v3901, 0
    %v3903 = vsel %vm3902, %v3901, 0
    %v3904 = vshrl.u32 %v3903, 5
    %v3905 = vand.u32 %v3903, 31
    %v3906 = vsub.s32 32, %v3905
    %v3907 = vshrl.u32 683565275, %v3906
    %v3908 = vshll.u32 683565275, %v3905
    %v3909 = vshrl.u32 2475754826, %v3906
    %v3910 = vor.u32 %v3908, %v3909
    %v3911 = vshll.u32 2475754826, %v3905
    %v3912 = vshrl.u32 2131351028, %v3906
    %v3913 = vor.u32 %v3911, %v3912
    %v3914 = vshll.u32 2131351028, %v3905
    %v3915 = vshrl.u32 2102212464, %v3906
    %v3916 = vor.u32 %v3914, %v3915
    %v3917 = vshll.u32 2102212464, %v3905
    %v3918 = vshrl.u32 920167782, %v3906
    %v3919 = vor.u32 %v3917, %v3918
    %v3920 = vshll.u32 920167782, %v3905
    %v3921 = vshrl.u32 1326507024, %v3906
    %v3922 = vor.u32 %v3920, %v3921
    %vm3923 = vcmp.lt.s32.totalorder %v3904, 1
    %vm3924 = vcmp.lt.s32.totalorder %v3904, 2
    %vm3925 = vcmp.lt.s32.totalorder %v3904, 3
    %vm3926 = vcmp.lt.s32.totalorder %v3904, 4
    %v3927 = vsel %vm3923, %v3907, %v3910
    %v3928 = vsel %vm3926, %v3916, 2102212464
    %v3929 = vsel %vm3925, %v3913, %v3928
    %v3930 = vsel %vm3924, %v3927, %v3929
    %v3931 = vsel %vm3923, %v3910, %v3913
    %v3932 = vsel %vm3926, %v3919, 920167782
    %v3933 = vsel %vm3925, %v3916, %v3932
    %v3934 = vsel %vm3924, %v3931, %v3933
    %v3935 = vsel %vm3923, %v3913, %v3916
    %v3936 = vsel %vm3926, %v3922, 1326507024
    %v3937 = vsel %vm3925, %v3919, %v3936
    %v3938 = vsel %vm3924, %v3935, %v3937
    %v3939 = vshll.u32 %v3899, 8
    %v3940 = vand.u32 %v3939, 65535
    %v3941 = vshrl.u32 %v3939, 16
    %v3942 = vand.u32 %v3938, 65535
    %v3943 = vshrl.u32 %v3938, 16
    %v3944 = vmul.u32 %v3940, %v3942
    %v3945 = vmul.u32 %v3940, %v3943
    %v3946 = vmul.u32 %v3941, %v3942
    %v3947 = vmul.u32 %v3941, %v3943
    %v3948 = vshll.u32 %v3945, 16
    %v3949 = vshrl.u32 %v3945, 16
    %v3950 = vshll.u32 %v3946, 16
    %v3951 = vshrl.u32 %v3946, 16
    %vm3952 = vc.u32 %v3944, %v3948
    %v3953 = vsel %vm3952, 1, 0
    %v3954 = vadd.s32 %v3944, %v3948
    %v3955 = vadd.s32 %v3947, %v3953
    %vm3956 = vc.u32 %v3954, %v3950
    %v3957 = vsel %vm3956, 1, 0
    %v3958 = vadd.s32 %v3954, %v3950
    %v3959 = vadd.s32 %v3955, %v3957
    %v3960 = vadd.s32 %v3959, %v3949
    %v3961 = vadd.s32 %v3960, %v3951
    %v3962 = vand.u32 %v3939, 65535
    %v3963 = vshrl.u32 %v3939, 16
    %v3964 = vand.u32 %v3934, 65535
    %v3965 = vshrl.u32 %v3934, 16
    %v3966 = vmul.u32 %v3962, %v3964
    %v3967 = vmul.u32 %v3962, %v3965
    %v3968 = vmul.u32 %v3963, %v3964
    %v3969 = vmul.u32 %v3963, %v3965
    %v3970 = vshll.u32 %v3967, 16
    %v3971 = vshrl.u32 %v3967, 16
    %v3972 = vshll.u32 %v3968, 16
    %v3973 = vshrl.u32 %v3968, 16
    %vm3974 = vc.u32 %v3966, %v3970
    %v3975 = vsel %vm3974, 1, 0
    %v3976 = vadd.s32 %v3966, %v3970
    %v3977 = vadd.s32 %v3969, %v3975
    %vm3978 = vc.u32 %v3976, %v3972
    %v3979 = vsel %vm3978, 1, 0
    %v3980 = vadd.s32 %v3976, %v3972
    %v3981 = vadd.s32 %v3977, %v3979
    %v3982 = vadd.s32 %v3981, %v3971
    %v3983 = vadd.s32 %v3982, %v3973
    %v3984 = vmul.u32 %v3939, %v3930
    %v3985 = vadd.s32 %v3961, %v3980
    %vm3986 = vc.u32 %v3961, %v3980
    %v3987 = vadd.s32 %v3983, 1
    %v3988 = vsel %vm3986, %v3987, %v3983
    %v3989 = vadd.s32 %v3984, %v3988
    %v3990 = vadd.s32 %v3989, 536870912
    %v3991 = vshrl.u32 %v3990, 30
    %v3992 = vshll.u32 %v3991, 30
    %v3993 = vsub.s32 %v3989, %v3992
    %vm3994 = vcmp.lt.s32.totalorder %v3993, 0
    %v3995 = vsub.s32 0, %v3993
    %v3996 = vsel %vm3994, %v3995, %v3993
    %v3997 = vclz %v3996
    %v3998 = vsub.s32 %v3997, 2
    %vm3999 = vcmp.gt.s32.totalorder 0, %v3998
    %v4000 = vsel %vm3999, 0, %v3998
    %v4001 = vsub.s32 32, %v4000
    %v4002 = vshll.u32 %v3993, %v4000
    %v4003 = vshrl.u32 %v3985, %v4001
    %v4004 = vor.u32 %v4002, %v4003
    %v4005 = vsub.s32 4294967266, %v4000
    %v4006 = vadd.s32 %v4005, 127
    %v4007 = vshll.u32 %v4006, 23
    %v4008 = vor.u32 4788187, %v4007
    %v4009 = vand.u32 2147483647, %v4008
    %v4011 = vcvt.s32.f32 %v4004
    %v4012 = vmul.f32 %v4011, %v4009
    %v4013 = vxor.u32 %v4012, 2147483648
    %v4014 = vsel %vm3893, %v4013, %v4012
    %v4015 = vsub.s32 4, %v3991
    %v4016 = vsel %vm3893, %v4015, %v3991
    %v4017 = vsel %vm3892, %v263, %v4014
    %v4018 = vsel %vm3892, 0, %v4016
    %v4019 = vmul.f32 %v4017, %v4017
    %v4020 = vmul.f32 %v4019, -0.001358992
    %v4021 = vadd.f32 %v4020, 0.041655596
    %v4022 = vmul.f32 %v4019, %v4021
    %v4023 = vadd.f32 %v4022, -0.4999988
    %v4024 = vmul.f32 %v4019, %v4023
    %v4025 = vadd.f32 1.0, %v4024
    %v4026 = vmul.f32 %v4017, %v4017
    %v4027 = vmul.f32 %v4026, -0.00019511016
    %v4028 = vadd.f32 %v4027, 0.008332121
    %v4029 = vmul.f32 %v4026, %v4028
    %v4030 = vadd.f32 %v4029, -0.16666654
    %v4031 = vmul.f32 %v4026, %v4030
    %v4032 = vadd.f32 %v4031, 1.0
    %v4033 = vmul.f32 %v4032, %v4017
    %vm4034 = vweird.f32 %v263
    %v4035 = vadd.s32 %v4018, 3
    %v4036 = vand.u32 %v4035, 3
    %vm4037 = vcmp.lt.s32.totalorder %v4036, 2
    %vm4038 = vcmp.eq.s32.totalorder %v4036, 0
    %v4039 = vxor.u32 %v4033, 2147483648
    %v4040 = vsel %vm4038, %v4025, %v4039
    %vm4041 = vcmp.eq.s32.totalorder %v4036, 2
    %v4042 = vxor.u32 %v4025, 2147483648
    %v4043 = vsel %vm4041, %v4042, %v4033
    %v4044 = vsel %vm4037, %v4040, %v4043
    %v4045 = vsel %vm4034, nan, %v4044
    %v4046 = vand.u32 2147483647, %v264
    %vm4047 = vcmp.le.f32.partialorder %v4046, 0.7853982
    %vm4048 = vcmp.lt.s32.totalorder %v264, 0
    %v4049 = vand.u32 %v264, 2139095040
    %v4050 = vshrl.u32 %v4049, 23
    %v4051 = vsub.s32 %v4050, 127
    %v4052 = vand.u32 2147483647, %v264
    %v4053 = vand.u32 %v4052, 8388607
    %v4054 = vor.u32 %v4053, 8388608
    %v4055 = vsub.s32 0, %v4054
    %v4056 = vadd.s32 %v4051, 1
    %vm4057 = vcmp.gt.s32.totalorder %v4056, 0
    %v4058 = vsel %vm4057, %v4056, 0
    %v4059 = vshrl.u32 %v4058, 5
    %v4060 = vand.u32 %v4058, 31
    %v4061 = vsub.s32 32, %v4060
    %v4062 = vshrl.u32 683565275, %v4061
    %v4063 = vshll.u32 683565275, %v4060
    %v4064 = vshrl.u32 2475754826, %v4061
    %v4065 = vor.u32 %v4063, %v4064
    %v4066 = vshll.u32 2475754826, %v4060
    %v4067 = vshrl.u32 2131351028, %v4061
    %v4068 = vor.u32 %v4066, %v4067
    %v4069 = vshll.u32 2131351028, %v4060
    %v4070 = vshrl.u32 2102212464, %v4061
    %v4071 = vor.u32 %v4069, %v4070
    %v4072 = vshll.u32 2102212464, %v4060
    %v4073 = vshrl.u32 920167782, %v4061
    %v4074 = vor.u32 %v4072, %v4073
    %v4075 = vshll.u32 920167782, %v4060
    %v4076 = vshrl.u32 1326507024, %v4061
    %v4077 = vor.u32 %v4075, %v4076
    %vm4078 = vcmp.lt.s32.totalorder %v4059, 1
    %vm4079 = vcmp.lt.s32.totalorder %v4059, 2
    %vm4080 = vcmp.lt.s32.totalorder %v4059, 3
    %vm4081 = vcmp.lt.s32.totalorder %v4059, 4
    %v4082 = vsel %vm4078, %v4062, %v4065
    %v4083 = vsel %vm4081, %v4071, 2102212464
    %v4084 = vsel %vm4080, %v4068, %v4083
    %v4085 = vsel %vm4079, %v4082, %v4084
    %v4086 = vsel %vm4078, %v4065, %v4068
    %v4087 = vsel %vm4081, %v4074, 920167782
    %v4088 = vsel %vm4080, %v4071, %v4087
    %v4089 = vsel %vm4079, %v4086, %v4088
    %v4090 = vsel %vm4078, %v4068, %v4071
    %v4091 = vsel %vm4081, %v4077, 1326507024
    %v4092 = vsel %vm4080, %v4074, %v4091
    %v4093 = vsel %vm4079, %v4090, %v4092
    %v4094 = vshll.u32 %v4054, 8
    %v4095 = vand.u32 %v4094, 65535
    %v4096 = vshrl.u32 %v4094, 16
    %v4097 = vand.u32 %v4093, 65535
    %v4098 = vshrl.u32 %v4093, 16
    %v4099 = vmul.u32 %v4095, %v4097
    %v4100 = vmul.u32 %v4095, %v4098
    %v4101 = vmul.u32 %v4096, %v4097
    %v4102 = vmul.u32 %v4096, %v4098
    %v4103 = vshll.u32 %v4100, 16
    %v4104 = vshrl.u32 %v4100, 16
    %v4105 = vshll.u32 %v4101, 16
    %v4106 = vshrl.u32 %v4101, 16
    %vm4107 = vc.u32 %v4099, %v4103
    %v4108 = vsel %vm4107, 1, 0
    %v4109 = vadd.s32 %v4099, %v4103
    %v4110 = vadd.s32 %v4102, %v4108
    %vm4111 = vc.u32 %v4109, %v4105
    %v4112 = vsel %vm4111, 1, 0
    %v4113 = vadd.s32 %v4109, %v4105
    %v4114 = vadd.s32 %v4110, %v4112
    %v4115 = vadd.s32 %v4114, %v4104
    %v4116 = vadd.s32 %v4115, %v4106
    %v4117 = vand.u32 %v4094, 65535
    %v4118 = vshrl.u32 %v4094, 16
    %v4119 = vand.u32 %v4089, 65535
    %v4120 = vshrl.u32 %v4089, 16
    %v4121 = vmul.u32 %v4117, %v4119
    %v4122 = vmul.u32 %v4117, %v4120
    %v4123 = vmul.u32 %v4118, %v4119
    %v4124 = vmul.u32 %v4118, %v4120
    %v4125 = vshll.u32 %v4122, 16
    %v4126 = vshrl.u32 %v4122, 16
    %v4127 = vshll.u32 %v4123, 16
    %v4128 = vshrl.u32 %v4123, 16
    %vm4129 = vc.u32 %v4121, %v4125
    %v4130 = vsel %vm4129, 1, 0
    %v4131 = vadd.s32 %v4121, %v4125
    %v4132 = vadd.s32 %v4124, %v4130
    %vm4133 = vc.u32 %v4131, %v4127
    %v4134 = vsel %vm4133, 1, 0
    %v4135 = vadd.s32 %v4131, %v4127
    %v4136 = vadd.s32 %v4132, %v4134
    %v4137 = vadd.s32 %v4136, %v4126
    %v4138 = vadd.s32 %v4137, %v4128
    %v4139 = vmul.u32 %v4094, %v4085
    %v4140 = vadd.s32 %v4116, %v4135
    %vm4141 = vc.u32 %v4116, %v4135
    %v4142 = vadd.s32 %v4138, 1
    %v4143 = vsel %vm4141, %v4142, %v4138
    %v4144 = vadd.s32 %v4139, %v4143
    %v4145 = vadd.s32 %v4144, 536870912
    %v4146 = vshrl.u32 %v4145, 30
    %v4147 = vshll.u32 %v4146, 30
    %v4148 = vsub.s32 %v4144, %v4147
    %vm4149 = vcmp.lt.s32.totalorder %v4148, 0
    %v4150 = vsub.s32 0, %v4148
    %v4151 = vsel %vm4149, %v4150, %v4148
    %v4152 = vclz %v4151
    %v4153 = vsub.s32 %v4152, 2
    %vm4154 = vcmp.gt.s32.totalorder 0, %v4153
    %v4155 = vsel %vm4154, 0, %v4153
    %v4156 = vsub.s32 32, %v4155
    %v4157 = vshll.u32 %v4148, %v4155
    %v4158 = vshrl.u32 %v4140, %v4156
    %v4159 = vor.u32 %v4157, %v4158
    %v4160 = vsub.s32 4294967266, %v4155
    %v4161 = vadd.s32 %v4160, 127
    %v4162 = vshll.u32 %v4161, 23
    %v4163 = vor.u32 4788187, %v4162
    %v4164 = vand.u32 2147483647, %v4163
    %v4166 = vcvt.s32.f32 %v4159
    %v4167 = vmul.f32 %v4166, %v4164
    %v4168 = vxor.u32 %v4167, 2147483648
    %v4169 = vsel %vm4048, %v4168, %v4167
    %v4170 = vsub.s32 4, %v4146
    %v4171 = vsel %vm4048, %v4170, %v4146
    %v4172 = vsel %vm4047, %v264, %v4169
    %v4173 = vsel %vm4047, 0, %v4171
    %v4174 = vmul.f32 %v4172, %v4172
    %v4175 = vmul.f32 %v4174, -0.001358992
    %v4176 = vadd.f32 %v4175, 0.041655596
    %v4177 = vmul.f32 %v4174, %v4176
    %v4178 = vadd.f32 %v4177, -0.4999988
    %v4179 = vmul.f32 %v4174, %v4178
    %v4180 = vadd.f32 1.0, %v4179
    %v4181 = vmul.f32 %v4172, %v4172
    %v4182 = vmul.f32 %v4181, -0.00019511016
    %v4183 = vadd.f32 %v4182, 0.008332121
    %v4184 = vmul.f32 %v4181, %v4183
    %v4185 = vadd.f32 %v4184, -0.16666654
    %v4186 = vmul.f32 %v4181, %v4185
    %v4187 = vadd.f32 %v4186, 1.0
    %v4188 = vmul.f32 %v4187, %v4172
    %vm4189 = vweird.f32 %v264
    %v4190 = vadd.s32 %v4173, 3
    %v4191 = vand.u32 %v4190, 3
    %vm4192 = vcmp.lt.s32.totalorder %v4191, 2
    %vm4193 = vcmp.eq.s32.totalorder %v4191, 0
    %v4194 = vxor.u32 %v4188, 2147483648
    %v4195 = vsel %vm4193, %v4180, %v4194
    %vm4196 = vcmp.eq.s32.totalorder %v4191, 2
    %v4197 = vxor.u32 %v4180, 2147483648
    %v4198 = vsel %vm4196, %v4197, %v4188
    %v4199 = vsel %vm4192, %v4195, %v4198
    %v4200 = vsel %vm4189, nan, %v4199
    %s4201 = scalar_lea.vmem %s4, 128
    %v4202 = vld [vmem:[%s4201] sm:$0xff]
    %v4203 = vld [vmem:[%s4201 + $0x8] sm:$0xff]
    %v4204 = vld [vmem:[%s4201 + $0x10] sm:$0xff]
    %v4205 = vld [vmem:[%s4201 + $0x18] sm:$0xff]
    %v4206 = vld [vmem:[%s4201 + $0x20] sm:$0xff]
    %v4207 = vld [vmem:[%s4201 + $0x28] sm:$0xff]
    %v4208 = vld [vmem:[%s4201 + $0x30] sm:$0xff]
    %v4209 = vld [vmem:[%s4201 + $0x38] sm:$0xff]
    %v4211 = vsel %vm1570, %v3115, 0
    %v4214 = vsel %vm1570, %v3270, 0
    %v4217 = vsel %vm1570, %v3425, 0
    %v4220 = vsel %vm1570, %v3580, 0
    %v4223 = vsel %vm1570, %v3735, 0
    %v4226 = vsel %vm1570, %v3890, 0
    %v4229 = vsel %vm1570, %v4045, 0
    %v4232 = vsel %vm1570, %v4200, 0
    %4234 = vmatpush.msra.mxu0 0.0
    %4235 = vmatpush.msra.mxu0 0.0
    %4236 = vmatpush.msra.mxu0 0.0
    %4237 = vmatpush.msra.mxu0 0.0
    %4238 = vmatpush.msra.mxu0 0.0
    %4239 = vmatpush.msra.mxu0 0.0
    %4240 = vmatpush.msra.mxu0 0.0
    %4241 = vmatpush.msra.mxu0 0.0
    %4242 = vmatpush.msra.mxu0 %v4209
    %4243 = vmatpush.msra.mxu0 %v4208
    %4244 = vmatpush.msra.mxu0 %v4207
    %4245 = vmatpush.msra.mxu0 %v4206
    %4246 = vmatpush.msra.mxu0 %v4205
    %4247 = vmatpush.msra.mxu0 %v4204
    %4248 = vmatpush.msra.mxu0 %v4203
    %4249 = vmatpush.msra.mxu0 %v4202
    %4250 = vmatmul.f32.gmra.mxu0 %v4211
    %v4251 = vpop.f32.mrf.mxu0
    %v4252 = vadd.f32 0.0, %v4251
    %4253 = vmatmul.f32.gmra.mxu0 %v4214
    %v4254 = vpop.f32.mrf.mxu0
    %v4255 = vadd.f32 0.0, %v4254
    %4256 = vmatmul.f32.gmra.mxu0 %v4217
    %v4257 = vpop.f32.mrf.mxu0
    %v4258 = vadd.f32 0.0, %v4257
    %4259 = vmatmul.f32.gmra.mxu0 %v4220
    %v4260 = vpop.f32.mrf.mxu0
    %v4261 = vadd.f32 0.0, %v4260
    %4262 = vmatmul.f32.gmra.mxu0 %v4223
    %v4263 = vpop.f32.mrf.mxu0
    %v4264 = vadd.f32 0.0, %v4263
    %4265 = vmatmul.f32.gmra.mxu0 %v4226
    %v4266 = vpop.f32.mrf.mxu0
    %v4267 = vadd.f32 0.0, %v4266
    %4268 = vmatmul.f32.gmra.mxu0 %v4229
    %v4269 = vpop.f32.mrf.mxu0
    %v4270 = vadd.f32 0.0, %v4269
    %4271 = vmatmul.f32.gmra.mxu0 %v4232
    %v4272 = vpop.f32.mrf.mxu0
    %v4273 = vadd.f32 0.0, %v4272
    %4274 = vdwg.mxu0
    %v4275 = vadd.f32 %v2953, %v4252
    %v4276 = vadd.f32 %v2954, %v4255
    %v4277 = vadd.f32 %v2955, %v4258
    %v4278 = vadd.f32 %v2956, %v4261
    %v4279 = vadd.f32 %v2957, %v4264
    %v4280 = vadd.f32 %v2958, %v4267
    %v4281 = vadd.f32 %v2959, %v4270
    %v4282 = vadd.f32 %v2960, %v4273
    %v4283 = vand.u32 2147483647, %v257
    %vm4284 = vcmp.le.f32.partialorder %v4283, 0.7853982
    %vm4285 = vcmp.lt.s32.totalorder %v257, 0
    %v4286 = vand.u32 %v257, 2139095040
    %v4287 = vshrl.u32 %v4286, 23
    %v4288 = vsub.s32 %v4287, 127
    %v4289 = vand.u32 2147483647, %v257
    %v4290 = vand.u32 %v4289, 8388607
    %v4291 = vor.u32 %v4290, 8388608
    %v4292 = vsub.s32 0, %v4291
    %v4293 = vadd.s32 %v4288, 1
    %vm4294 = vcmp.gt.s32.totalorder %v4293, 0
    %v4295 = vsel %vm4294, %v4293, 0
    %v4296 = vshrl.u32 %v4295, 5
    %v4297 = vand.u32 %v4295, 31
    %v4298 = vsub.s32 32, %v4297
    %v4299 = vshrl.u32 683565275, %v4298
    %v4300 = vshll.u32 683565275, %v4297
    %v4301 = vshrl.u32 2475754826, %v4298
    %v4302 = vor.u32 %v4300, %v4301
    %v4303 = vshll.u32 2475754826, %v4297
    %v4304 = vshrl.u32 2131351028, %v4298
    %v4305 = vor.u32 %v4303, %v4304
    %v4306 = vshll.u32 2131351028, %v4297
    %v4307 = vshrl.u32 2102212464, %v4298
    %v4308 = vor.u32 %v4306, %v4307
    %v4309 = vshll.u32 2102212464, %v4297
    %v4310 = vshrl.u32 920167782, %v4298
    %v4311 = vor.u32 %v4309, %v4310
    %v4312 = vshll.u32 920167782, %v4297
    %v4313 = vshrl.u32 1326507024, %v4298
    %v4314 = vor.u32 %v4312, %v4313
    %vm4315 = vcmp.lt.s32.totalorder %v4296, 1
    %vm4316 = vcmp.lt.s32.totalorder %v4296, 2
    %vm4317 = vcmp.lt.s32.totalorder %v4296, 3
    %vm4318 = vcmp.lt.s32.totalorder %v4296, 4
    %v4319 = vsel %vm4315, %v4299, %v4302
    %v4320 = vsel %vm4318, %v4308, 2102212464
    %v4321 = vsel %vm4317, %v4305, %v4320
    %v4322 = vsel %vm4316, %v4319, %v4321
    %v4323 = vsel %vm4315, %v4302, %v4305
    %v4324 = vsel %vm4318, %v4311, 920167782
    %v4325 = vsel %vm4317, %v4308, %v4324
    %v4326 = vsel %vm4316, %v4323, %v4325
    %v4327 = vsel %vm4315, %v4305, %v4308
    %v4328 = vsel %vm4318, %v4314, 1326507024
    %v4329 = vsel %vm4317, %v4311, %v4328
    %v4330 = vsel %vm4316, %v4327, %v4329
    %v4331 = vshll.u32 %v4291, 8
    %v4332 = vand.u32 %v4331, 65535
    %v4333 = vshrl.u32 %v4331, 16
    %v4334 = vand.u32 %v4330, 65535
    %v4335 = vshrl.u32 %v4330, 16
    %v4336 = vmul.u32 %v4332, %v4334
    %v4337 = vmul.u32 %v4332, %v4335
    %v4338 = vmul.u32 %v4333, %v4334
    %v4339 = vmul.u32 %v4333, %v4335
    %v4340 = vshll.u32 %v4337, 16
    %v4341 = vshrl.u32 %v4337, 16
    %v4342 = vshll.u32 %v4338, 16
    %v4343 = vshrl.u32 %v4338, 16
    %vm4344 = vc.u32 %v4336, %v4340
    %v4345 = vsel %vm4344, 1, 0
    %v4346 = vadd.s32 %v4336, %v4340
    %v4347 = vadd.s32 %v4339, %v4345
    %vm4348 = vc.u32 %v4346, %v4342
    %v4349 = vsel %vm4348, 1, 0
    %v4350 = vadd.s32 %v4346, %v4342
    %v4351 = vadd.s32 %v4347, %v4349
    %v4352 = vadd.s32 %v4351, %v4341
    %v4353 = vadd.s32 %v4352, %v4343
    %v4354 = vand.u32 %v4331, 65535
    %v4355 = vshrl.u32 %v4331, 16
    %v4356 = vand.u32 %v4326, 65535
    %v4357 = vshrl.u32 %v4326, 16
    %v4358 = vmul.u32 %v4354, %v4356
    %v4359 = vmul.u32 %v4354, %v4357
    %v4360 = vmul.u32 %v4355, %v4356
    %v4361 = vmul.u32 %v4355, %v4357
    %v4362 = vshll.u32 %v4359, 16
    %v4363 = vshrl.u32 %v4359, 16
    %v4364 = vshll.u32 %v4360, 16
    %v4365 = vshrl.u32 %v4360, 16
    %vm4366 = vc.u32 %v4358, %v4362
    %v4367 = vsel %vm4366, 1, 0
    %v4368 = vadd.s32 %v4358, %v4362
    %v4369 = vadd.s32 %v4361, %v4367
    %vm4370 = vc.u32 %v4368, %v4364
    %v4371 = vsel %vm4370, 1, 0
    %v4372 = vadd.s32 %v4368, %v4364
    %v4373 = vadd.s32 %v4369, %v4371
    %v4374 = vadd.s32 %v4373, %v4363
    %v4375 = vadd.s32 %v4374, %v4365
    %v4376 = vmul.u32 %v4331, %v4322
    %v4377 = vadd.s32 %v4353, %v4372
    %vm4378 = vc.u32 %v4353, %v4372
    %v4379 = vadd.s32 %v4375, 1
    %v4380 = vsel %vm4378, %v4379, %v4375
    %v4381 = vadd.s32 %v4376, %v4380
    %v4382 = vadd.s32 %v4381, 536870912
    %v4383 = vshrl.u32 %v4382, 30
    %v4384 = vshll.u32 %v4383, 30
    %v4385 = vsub.s32 %v4381, %v4384
    %vm4386 = vcmp.lt.s32.totalorder %v4385, 0
    %v4387 = vsub.s32 0, %v4385
    %v4388 = vsel %vm4386, %v4387, %v4385
    %v4389 = vclz %v4388
    %v4390 = vsub.s32 %v4389, 2
    %vm4391 = vcmp.gt.s32.totalorder 0, %v4390
    %v4392 = vsel %vm4391, 0, %v4390
    %v4393 = vsub.s32 32, %v4392
    %v4394 = vshll.u32 %v4385, %v4392
    %v4395 = vshrl.u32 %v4377, %v4393
    %v4396 = vor.u32 %v4394, %v4395
    %v4397 = vsub.s32 4294967266, %v4392
    %v4398 = vadd.s32 %v4397, 127
    %v4399 = vshll.u32 %v4398, 23
    %v4400 = vor.u32 4788187, %v4399
    %v4401 = vand.u32 2147483647, %v4400
    %v4403 = vcvt.s32.f32 %v4396
    %v4404 = vmul.f32 %v4403, %v4401
    %v4405 = vxor.u32 %v4404, 2147483648
    %v4406 = vsel %vm4285, %v4405, %v4404
    %v4407 = vsub.s32 4, %v4383
    %v4408 = vsel %vm4285, %v4407, %v4383
    %v4409 = vsel %vm4284, %v257, %v4406
    %v4410 = vsel %vm4284, 0, %v4408
    %v4411 = vmul.f32 %v4409, %v4409
    %v4412 = vmul.f32 %v4411, -0.001358992
    %v4413 = vadd.f32 %v4412, 0.041655596
    %v4414 = vmul.f32 %v4411, %v4413
    %v4415 = vadd.f32 %v4414, -0.4999988
    %v4416 = vmul.f32 %v4411, %v4415
    %v4417 = vadd.f32 1.0, %v4416
    %v4418 = vmul.f32 %v4409, %v4409
    %v4419 = vmul.f32 %v4418, -0.00019511016
    %v4420 = vadd.f32 %v4419, 0.008332121
    %v4421 = vmul.f32 %v4418, %v4420
    %v4422 = vadd.f32 %v4421, -0.16666654
    %v4423 = vmul.f32 %v4418, %v4422
    %v4424 = vadd.f32 %v4423, 1.0
    %v4425 = vmul.f32 %v4424, %v4409
    %vm4426 = vweird.f32 %v257
    %v4427 = vand.u32 %v4410, 3
    %vm4428 = vcmp.lt.s32.totalorder %v4427, 2
    %vm4429 = vcmp.eq.s32.totalorder %v4427, 0
    %v4430 = vxor.u32 %v4425, 2147483648
    %v4431 = vsel %vm4429, %v4417, %v4430
    %vm4432 = vcmp.eq.s32.totalorder %v4427, 2
    %v4433 = vxor.u32 %v4417, 2147483648
    %v4434 = vsel %vm4432, %v4433, %v4425
    %v4435 = vsel %vm4428, %v4431, %v4434
    %v4436 = vsel %vm4426, nan, %v4435
    %v4437 = vand.u32 2147483647, %v258
    %vm4438 = vcmp.le.f32.partialorder %v4437, 0.7853982
    %vm4439 = vcmp.lt.s32.totalorder %v258, 0
    %v4440 = vand.u32 %v258, 2139095040
    %v4441 = vshrl.u32 %v4440, 23
    %v4442 = vsub.s32 %v4441, 127
    %v4443 = vand.u32 2147483647, %v258
    %v4444 = vand.u32 %v4443, 8388607
    %v4445 = vor.u32 %v4444, 8388608
    %v4446 = vsub.s32 0, %v4445
    %v4447 = vadd.s32 %v4442, 1
    %vm4448 = vcmp.gt.s32.totalorder %v4447, 0
    %v4449 = vsel %vm4448, %v4447, 0
    %v4450 = vshrl.u32 %v4449, 5
    %v4451 = vand.u32 %v4449, 31
    %v4452 = vsub.s32 32, %v4451
    %v4453 = vshrl.u32 683565275, %v4452
    %v4454 = vshll.u32 683565275, %v4451
    %v4455 = vshrl.u32 2475754826, %v4452
    %v4456 = vor.u32 %v4454, %v4455
    %v4457 = vshll.u32 2475754826, %v4451
    %v4458 = vshrl.u32 2131351028, %v4452
    %v4459 = vor.u32 %v4457, %v4458
    %v4460 = vshll.u32 2131351028, %v4451
    %v4461 = vshrl.u32 2102212464, %v4452
    %v4462 = vor.u32 %v4460, %v4461
    %v4463 = vshll.u32 2102212464, %v4451
    %v4464 = vshrl.u32 920167782, %v4452
    %v4465 = vor.u32 %v4463, %v4464
    %v4466 = vshll.u32 920167782, %v4451
    %v4467 = vshrl.u32 1326507024, %v4452
    %v4468 = vor.u32 %v4466, %v4467
    %vm4469 = vcmp.lt.s32.totalorder %v4450, 1
    %vm4470 = vcmp.lt.s32.totalorder %v4450, 2
    %vm4471 = vcmp.lt.s32.totalorder %v4450, 3
    %vm4472 = vcmp.lt.s32.totalorder %v4450, 4
    %v4473 = vsel %vm4469, %v4453, %v4456
    %v4474 = vsel %vm4472, %v4462, 2102212464
    %v4475 = vsel %vm4471, %v4459, %v4474
    %v4476 = vsel %vm4470, %v4473, %v4475
    %v4477 = vsel %vm4469, %v4456, %v4459
    %v4478 = vsel %vm4472, %v4465, 920167782
    %v4479 = vsel %vm4471, %v4462, %v4478
    %v4480 = vsel %vm4470, %v4477, %v4479
    %v4481 = vsel %vm4469, %v4459, %v4462
    %v4482 = vsel %vm4472, %v4468, 1326507024
    %v4483 = vsel %vm4471, %v4465, %v4482
    %v4484 = vsel %vm4470, %v4481, %v4483
    %v4485 = vshll.u32 %v4445, 8
    %v4486 = vand.u32 %v4485, 65535
    %v4487 = vshrl.u32 %v4485, 16
    %v4488 = vand.u32 %v4484, 65535
    %v4489 = vshrl.u32 %v4484, 16
    %v4490 = vmul.u32 %v4486, %v4488
    %v4491 = vmul.u32 %v4486, %v4489
    %v4492 = vmul.u32 %v4487, %v4488
    %v4493 = vmul.u32 %v4487, %v4489
    %v4494 = vshll.u32 %v4491, 16
    %v4495 = vshrl.u32 %v4491, 16
    %v4496 = vshll.u32 %v4492, 16
    %v4497 = vshrl.u32 %v4492, 16
    %vm4498 = vc.u32 %v4490, %v4494
    %v4499 = vsel %vm4498, 1, 0
    %v4500 = vadd.s32 %v4490, %v4494
    %v4501 = vadd.s32 %v4493, %v4499
    %vm4502 = vc.u32 %v4500, %v4496
    %v4503 = vsel %vm4502, 1, 0
    %v4504 = vadd.s32 %v4500, %v4496
    %v4505 = vadd.s32 %v4501, %v4503
    %v4506 = vadd.s32 %v4505, %v4495
    %v4507 = vadd.s32 %v4506, %v4497
    %v4508 = vand.u32 %v4485, 65535
    %v4509 = vshrl.u32 %v4485, 16
    %v4510 = vand.u32 %v4480, 65535
    %v4511 = vshrl.u32 %v4480, 16
    %v4512 = vmul.u32 %v4508, %v4510
    %v4513 = vmul.u32 %v4508, %v4511
    %v4514 = vmul.u32 %v4509, %v4510
    %v4515 = vmul.u32 %v4509, %v4511
    %v4516 = vshll.u32 %v4513, 16
    %v4517 = vshrl.u32 %v4513, 16
    %v4518 = vshll.u32 %v4514, 16
    %v4519 = vshrl.u32 %v4514, 16
    %vm4520 = vc.u32 %v4512, %v4516
    %v4521 = vsel %vm4520, 1, 0
    %v4522 = vadd.s32 %v4512, %v4516
    %v4523 = vadd.s32 %v4515, %v4521
    %vm4524 = vc.u32 %v4522, %v4518
    %v4525 = vsel %vm4524, 1, 0
    %v4526 = vadd.s32 %v4522, %v4518
    %v4527 = vadd.s32 %v4523, %v4525
    %v4528 = vadd.s32 %v4527, %v4517
    %v4529 = vadd.s32 %v4528, %v4519
    %v4530 = vmul.u32 %v4485, %v4476
    %v4531 = vadd.s32 %v4507, %v4526
    %vm4532 = vc.u32 %v4507, %v4526
    %v4533 = vadd.s32 %v4529, 1
    %v4534 = vsel %vm4532, %v4533, %v4529
    %v4535 = vadd.s32 %v4530, %v4534
    %v4536 = vadd.s32 %v4535, 536870912
    %v4537 = vshrl.u32 %v4536, 30
    %v4538 = vshll.u32 %v4537, 30
    %v4539 = vsub.s32 %v4535, %v4538
    %vm4540 = vcmp.lt.s32.totalorder %v4539, 0
    %v4541 = vsub.s32 0, %v4539
    %v4542 = vsel %vm4540, %v4541, %v4539
    %v4543 = vclz %v4542
    %v4544 = vsub.s32 %v4543, 2
    %vm4545 = vcmp.gt.s32.totalorder 0, %v4544
    %v4546 = vsel %vm4545, 0, %v4544
    %v4547 = vsub.s32 32, %v4546
    %v4548 = vshll.u32 %v4539, %v4546
    %v4549 = vshrl.u32 %v4531, %v4547
    %v4550 = vor.u32 %v4548, %v4549
    %v4551 = vsub.s32 4294967266, %v4546
    %v4552 = vadd.s32 %v4551, 127
    %v4553 = vshll.u32 %v4552, 23
    %v4554 = vor.u32 4788187, %v4553
    %v4555 = vand.u32 2147483647, %v4554
    %v4557 = vcvt.s32.f32 %v4550
    %v4558 = vmul.f32 %v4557, %v4555
    %v4559 = vxor.u32 %v4558, 2147483648
    %v4560 = vsel %vm4439, %v4559, %v4558
    %v4561 = vsub.s32 4, %v4537
    %v4562 = vsel %vm4439, %v4561, %v4537
    %v4563 = vsel %vm4438, %v258, %v4560
    %v4564 = vsel %vm4438, 0, %v4562
    %v4565 = vmul.f32 %v4563, %v4563
    %v4566 = vmul.f32 %v4565, -0.001358992
    %v4567 = vadd.f32 %v4566, 0.041655596
    %v4568 = vmul.f32 %v4565, %v4567
    %v4569 = vadd.f32 %v4568, -0.4999988
    %v4570 = vmul.f32 %v4565, %v4569
    %v4571 = vadd.f32 1.0, %v4570
    %v4572 = vmul.f32 %v4563, %v4563
    %v4573 = vmul.f32 %v4572, -0.00019511016
    %v4574 = vadd.f32 %v4573, 0.008332121
    %v4575 = vmul.f32 %v4572, %v4574
    %v4576 = vadd.f32 %v4575, -0.16666654
    %v4577 = vmul.f32 %v4572, %v4576
    %v4578 = vadd.f32 %v4577, 1.0
    %v4579 = vmul.f32 %v4578, %v4563
    %vm4580 = vweird.f32 %v258
    %v4581 = vand.u32 %v4564, 3
    %vm4582 = vcmp.lt.s32.totalorder %v4581, 2
    %vm4583 = vcmp.eq.s32.totalorder %v4581, 0
    %v4584 = vxor.u32 %v4579, 2147483648
    %v4585 = vsel %vm4583, %v4571, %v4584
    %vm4586 = vcmp.eq.s32.totalorder %v4581, 2
    %v4587 = vxor.u32 %v4571, 2147483648
    %v4588 = vsel %vm4586, %v4587, %v4579
    %v4589 = vsel %vm4582, %v4585, %v4588
    %v4590 = vsel %vm4580, nan, %v4589
    %v4591 = vand.u32 2147483647, %v259
    %vm4592 = vcmp.le.f32.partialorder %v4591, 0.7853982
    %vm4593 = vcmp.lt.s32.totalorder %v259, 0
    %v4594 = vand.u32 %v259, 2139095040
    %v4595 = vshrl.u32 %v4594, 23
    %v4596 = vsub.s32 %v4595, 127
    %v4597 = vand.u32 2147483647, %v259
    %v4598 = vand.u32 %v4597, 8388607
    %v4599 = vor.u32 %v4598, 8388608
    %v4600 = vsub.s32 0, %v4599
    %v4601 = vadd.s32 %v4596, 1
    %vm4602 = vcmp.gt.s32.totalorder %v4601, 0
    %v4603 = vsel %vm4602, %v4601, 0
    %v4604 = vshrl.u32 %v4603, 5
    %v4605 = vand.u32 %v4603, 31
    %v4606 = vsub.s32 32, %v4605
    %v4607 = vshrl.u32 683565275, %v4606
    %v4608 = vshll.u32 683565275, %v4605
    %v4609 = vshrl.u32 2475754826, %v4606
    %v4610 = vor.u32 %v4608, %v4609
    %v4611 = vshll.u32 2475754826, %v4605
    %v4612 = vshrl.u32 2131351028, %v4606
    %v4613 = vor.u32 %v4611, %v4612
    %v4614 = vshll.u32 2131351028, %v4605
    %v4615 = vshrl.u32 2102212464, %v4606
    %v4616 = vor.u32 %v4614, %v4615
    %v4617 = vshll.u32 2102212464, %v4605
    %v4618 = vshrl.u32 920167782, %v4606
    %v4619 = vor.u32 %v4617, %v4618
    %v4620 = vshll.u32 920167782, %v4605
    %v4621 = vshrl.u32 1326507024, %v4606
    %v4622 = vor.u32 %v4620, %v4621
    %vm4623 = vcmp.lt.s32.totalorder %v4604, 1
    %vm4624 = vcmp.lt.s32.totalorder %v4604, 2
    %vm4625 = vcmp.lt.s32.totalorder %v4604, 3
    %vm4626 = vcmp.lt.s32.totalorder %v4604, 4
    %v4627 = vsel %vm4623, %v4607, %v4610
    %v4628 = vsel %vm4626, %v4616, 2102212464
    %v4629 = vsel %vm4625, %v4613, %v4628
    %v4630 = vsel %vm4624, %v4627, %v4629
    %v4631 = vsel %vm4623, %v4610, %v4613
    %v4632 = vsel %vm4626, %v4619, 920167782
    %v4633 = vsel %vm4625, %v4616, %v4632
    %v4634 = vsel %vm4624, %v4631, %v4633
    %v4635 = vsel %vm4623, %v4613, %v4616
    %v4636 = vsel %vm4626, %v4622, 1326507024
    %v4637 = vsel %vm4625, %v4619, %v4636
    %v4638 = vsel %vm4624, %v4635, %v4637
    %v4639 = vshll.u32 %v4599, 8
    %v4640 = vand.u32 %v4639, 65535
    %v4641 = vshrl.u32 %v4639, 16
    %v4642 = vand.u32 %v4638, 65535
    %v4643 = vshrl.u32 %v4638, 16
    %v4644 = vmul.u32 %v4640, %v4642
    %v4645 = vmul.u32 %v4640, %v4643
    %v4646 = vmul.u32 %v4641, %v4642
    %v4647 = vmul.u32 %v4641, %v4643
    %v4648 = vshll.u32 %v4645, 16
    %v4649 = vshrl.u32 %v4645, 16
    %v4650 = vshll.u32 %v4646, 16
    %v4651 = vshrl.u32 %v4646, 16
    %vm4652 = vc.u32 %v4644, %v4648
    %v4653 = vsel %vm4652, 1, 0
    %v4654 = vadd.s32 %v4644, %v4648
    %v4655 = vadd.s32 %v4647, %v4653
    %vm4656 = vc.u32 %v4654, %v4650
    %v4657 = vsel %vm4656, 1, 0
    %v4658 = vadd.s32 %v4654, %v4650
    %v4659 = vadd.s32 %v4655, %v4657
    %v4660 = vadd.s32 %v4659, %v4649
    %v4661 = vadd.s32 %v4660, %v4651
    %v4662 = vand.u32 %v4639, 65535
    %v4663 = vshrl.u32 %v4639, 16
    %v4664 = vand.u32 %v4634, 65535
    %v4665 = vshrl.u32 %v4634, 16
    %v4666 = vmul.u32 %v4662, %v4664
    %v4667 = vmul.u32 %v4662, %v4665
    %v4668 = vmul.u32 %v4663, %v4664
    %v4669 = vmul.u32 %v4663, %v4665
    %v4670 = vshll.u32 %v4667, 16
    %v4671 = vshrl.u32 %v4667, 16
    %v4672 = vshll.u32 %v4668, 16
    %v4673 = vshrl.u32 %v4668, 16
    %vm4674 = vc.u32 %v4666, %v4670
    %v4675 = vsel %vm4674, 1, 0
    %v4676 = vadd.s32 %v4666, %v4670
    %v4677 = vadd.s32 %v4669, %v4675
    %vm4678 = vc.u32 %v4676, %v4672
    %v4679 = vsel %vm4678, 1, 0
    %v4680 = vadd.s32 %v4676, %v4672
    %v4681 = vadd.s32 %v4677, %v4679
    %v4682 = vadd.s32 %v4681, %v4671
    %v4683 = vadd.s32 %v4682, %v4673
    %v4684 = vmul.u32 %v4639, %v4630
    %v4685 = vadd.s32 %v4661, %v4680
    %vm4686 = vc.u32 %v4661, %v4680
    %v4687 = vadd.s32 %v4683, 1
    %v4688 = vsel %vm4686, %v4687, %v4683
    %v4689 = vadd.s32 %v4684, %v4688
    %v4690 = vadd.s32 %v4689, 536870912
    %v4691 = vshrl.u32 %v4690, 30
    %v4692 = vshll.u32 %v4691, 30
    %v4693 = vsub.s32 %v4689, %v4692
    %vm4694 = vcmp.lt.s32.totalorder %v4693, 0
    %v4695 = vsub.s32 0, %v4693
    %v4696 = vsel %vm4694, %v4695, %v4693
    %v4697 = vclz %v4696
    %v4698 = vsub.s32 %v4697, 2
    %vm4699 = vcmp.gt.s32.totalorder 0, %v4698
    %v4700 = vsel %vm4699, 0, %v4698
    %v4701 = vsub.s32 32, %v4700
    %v4702 = vshll.u32 %v4693, %v4700
    %v4703 = vshrl.u32 %v4685, %v4701
    %v4704 = vor.u32 %v4702, %v4703
    %v4705 = vsub.s32 4294967266, %v4700
    %v4706 = vadd.s32 %v4705, 127
    %v4707 = vshll.u32 %v4706, 23
    %v4708 = vor.u32 4788187, %v4707
    %v4709 = vand.u32 2147483647, %v4708
    %v4711 = vcvt.s32.f32 %v4704
    %v4712 = vmul.f32 %v4711, %v4709
    %v4713 = vxor.u32 %v4712, 2147483648
    %v4714 = vsel %vm4593, %v4713, %v4712
    %v4715 = vsub.s32 4, %v4691
    %v4716 = vsel %vm4593, %v4715, %v4691
    %v4717 = vsel %vm4592, %v259, %v4714
    %v4718 = vsel %vm4592, 0, %v4716
    %v4719 = vmul.f32 %v4717, %v4717
    %v4720 = vmul.f32 %v4719, -0.001358992
    %v4721 = vadd.f32 %v4720, 0.041655596
    %v4722 = vmul.f32 %v4719, %v4721
    %v4723 = vadd.f32 %v4722, -0.4999988
    %v4724 = vmul.f32 %v4719, %v4723
    %v4725 = vadd.f32 1.0, %v4724
    %v4726 = vmul.f32 %v4717, %v4717
    %v4727 = vmul.f32 %v4726, -0.00019511016
    %v4728 = vadd.f32 %v4727, 0.008332121
    %v4729 = vmul.f32 %v4726, %v4728
    %v4730 = vadd.f32 %v4729, -0.16666654
    %v4731 = vmul.f32 %v4726, %v4730
    %v4732 = vadd.f32 %v4731, 1.0
    %v4733 = vmul.f32 %v4732, %v4717
    %vm4734 = vweird.f32 %v259
    %v4735 = vand.u32 %v4718, 3
    %vm4736 = vcmp.lt.s32.totalorder %v4735, 2
    %vm4737 = vcmp.eq.s32.totalorder %v4735, 0
    %v4738 = vxor.u32 %v4733, 2147483648
    %v4739 = vsel %vm4737, %v4725, %v4738
    %vm4740 = vcmp.eq.s32.totalorder %v4735, 2
    %v4741 = vxor.u32 %v4725, 2147483648
    %v4742 = vsel %vm4740, %v4741, %v4733
    %v4743 = vsel %vm4736, %v4739, %v4742
    %v4744 = vsel %vm4734, nan, %v4743
    %v4745 = vand.u32 2147483647, %v260
    %vm4746 = vcmp.le.f32.partialorder %v4745, 0.7853982
    %vm4747 = vcmp.lt.s32.totalorder %v260, 0
    %v4748 = vand.u32 %v260, 2139095040
    %v4749 = vshrl.u32 %v4748, 23
    %v4750 = vsub.s32 %v4749, 127
    %v4751 = vand.u32 2147483647, %v260
    %v4752 = vand.u32 %v4751, 8388607
    %v4753 = vor.u32 %v4752, 8388608
    %v4754 = vsub.s32 0, %v4753
    %v4755 = vadd.s32 %v4750, 1
    %vm4756 = vcmp.gt.s32.totalorder %v4755, 0
    %v4757 = vsel %vm4756, %v4755, 0
    %v4758 = vshrl.u32 %v4757, 5
    %v4759 = vand.u32 %v4757, 31
    %v4760 = vsub.s32 32, %v4759
    %v4761 = vshrl.u32 683565275, %v4760
    %v4762 = vshll.u32 683565275, %v4759
    %v4763 = vshrl.u32 2475754826, %v4760
    %v4764 = vor.u32 %v4762, %v4763
    %v4765 = vshll.u32 2475754826, %v4759
    %v4766 = vshrl.u32 2131351028, %v4760
    %v4767 = vor.u32 %v4765, %v4766
    %v4768 = vshll.u32 2131351028, %v4759
    %v4769 = vshrl.u32 2102212464, %v4760
    %v4770 = vor.u32 %v4768, %v4769
    %v4771 = vshll.u32 2102212464, %v4759
    %v4772 = vshrl.u32 920167782, %v4760
    %v4773 = vor.u32 %v4771, %v4772
    %v4774 = vshll.u32 920167782, %v4759
    %v4775 = vshrl.u32 1326507024, %v4760
    %v4776 = vor.u32 %v4774, %v4775
    %vm4777 = vcmp.lt.s32.totalorder %v4758, 1
    %vm4778 = vcmp.lt.s32.totalorder %v4758, 2
    %vm4779 = vcmp.lt.s32.totalorder %v4758, 3
    %vm4780 = vcmp.lt.s32.totalorder %v4758, 4
    %v4781 = vsel %vm4777, %v4761, %v4764
    %v4782 = vsel %vm4780, %v4770, 2102212464
    %v4783 = vsel %vm4779, %v4767, %v4782
    %v4784 = vsel %vm4778, %v4781, %v4783
    %v4785 = vsel %vm4777, %v4764, %v4767
    %v4786 = vsel %vm4780, %v4773, 920167782
    %v4787 = vsel %vm4779, %v4770, %v4786
    %v4788 = vsel %vm4778, %v4785, %v4787
    %v4789 = vsel %vm4777, %v4767, %v4770
    %v4790 = vsel %vm4780, %v4776, 1326507024
    %v4791 = vsel %vm4779, %v4773, %v4790
    %v4792 = vsel %vm4778, %v4789, %v4791
    %v4793 = vshll.u32 %v4753, 8
    %v4794 = vand.u32 %v4793, 65535
    %v4795 = vshrl.u32 %v4793, 16
    %v4796 = vand.u32 %v4792, 65535
    %v4797 = vshrl.u32 %v4792, 16
    %v4798 = vmul.u32 %v4794, %v4796
    %v4799 = vmul.u32 %v4794, %v4797
    %v4800 = vmul.u32 %v4795, %v4796
    %v4801 = vmul.u32 %v4795, %v4797
    %v4802 = vshll.u32 %v4799, 16
    %v4803 = vshrl.u32 %v4799, 16
    %v4804 = vshll.u32 %v4800, 16
    %v4805 = vshrl.u32 %v4800, 16
    %vm4806 = vc.u32 %v4798, %v4802
    %v4807 = vsel %vm4806, 1, 0
    %v4808 = vadd.s32 %v4798, %v4802
    %v4809 = vadd.s32 %v4801, %v4807
    %vm4810 = vc.u32 %v4808, %v4804
    %v4811 = vsel %vm4810, 1, 0
    %v4812 = vadd.s32 %v4808, %v4804
    %v4813 = vadd.s32 %v4809, %v4811
    %v4814 = vadd.s32 %v4813, %v4803
    %v4815 = vadd.s32 %v4814, %v4805
    %v4816 = vand.u32 %v4793, 65535
    %v4817 = vshrl.u32 %v4793, 16
    %v4818 = vand.u32 %v4788, 65535
    %v4819 = vshrl.u32 %v4788, 16
    %v4820 = vmul.u32 %v4816, %v4818
    %v4821 = vmul.u32 %v4816, %v4819
    %v4822 = vmul.u32 %v4817, %v4818
    %v4823 = vmul.u32 %v4817, %v4819
    %v4824 = vshll.u32 %v4821, 16
    %v4825 = vshrl.u32 %v4821, 16
    %v4826 = vshll.u32 %v4822, 16
    %v4827 = vshrl.u32 %v4822, 16
    %vm4828 = vc.u32 %v4820, %v4824
    %v4829 = vsel %vm4828, 1, 0
    %v4830 = vadd.s32 %v4820, %v4824
    %v4831 = vadd.s32 %v4823, %v4829
    %vm4832 = vc.u32 %v4830, %v4826
    %v4833 = vsel %vm4832, 1, 0
    %v4834 = vadd.s32 %v4830, %v4826
    %v4835 = vadd.s32 %v4831, %v4833
    %v4836 = vadd.s32 %v4835, %v4825
    %v4837 = vadd.s32 %v4836, %v4827
    %v4838 = vmul.u32 %v4793, %v4784
    %v4839 = vadd.s32 %v4815, %v4834
    %vm4840 = vc.u32 %v4815, %v4834
    %v4841 = vadd.s32 %v4837, 1
    %v4842 = vsel %vm4840, %v4841, %v4837
    %v4843 = vadd.s32 %v4838, %v4842
    %v4844 = vadd.s32 %v4843, 536870912
    %v4845 = vshrl.u32 %v4844, 30
    %v4846 = vshll.u32 %v4845, 30
    %v4847 = vsub.s32 %v4843, %v4846
    %vm4848 = vcmp.lt.s32.totalorder %v4847, 0
    %v4849 = vsub.s32 0, %v4847
    %v4850 = vsel %vm4848, %v4849, %v4847
    %v4851 = vclz %v4850
    %v4852 = vsub.s32 %v4851, 2
    %vm4853 = vcmp.gt.s32.totalorder 0, %v4852
    %v4854 = vsel %vm4853, 0, %v4852
    %v4855 = vsub.s32 32, %v4854
    %v4856 = vshll.u32 %v4847, %v4854
    %v4857 = vshrl.u32 %v4839, %v4855
    %v4858 = vor.u32 %v4856, %v4857
    %v4859 = vsub.s32 4294967266, %v4854
    %v4860 = vadd.s32 %v4859, 127
    %v4861 = vshll.u32 %v4860, 23
    %v4862 = vor.u32 4788187, %v4861
    %v4863 = vand.u32 2147483647, %v4862
    %v4865 = vcvt.s32.f32 %v4858
    %v4866 = vmul.f32 %v4865, %v4863
    %v4867 = vxor.u32 %v4866, 2147483648
    %v4868 = vsel %vm4747, %v4867, %v4866
    %v4869 = vsub.s32 4, %v4845
    %v4870 = vsel %vm4747, %v4869, %v4845
    %v4871 = vsel %vm4746, %v260, %v4868
    %v4872 = vsel %vm4746, 0, %v4870
    %v4873 = vmul.f32 %v4871, %v4871
    %v4874 = vmul.f32 %v4873, -0.001358992
    %v4875 = vadd.f32 %v4874, 0.041655596
    %v4876 = vmul.f32 %v4873, %v4875
    %v4877 = vadd.f32 %v4876, -0.4999988
    %v4878 = vmul.f32 %v4873, %v4877
    %v4879 = vadd.f32 1.0, %v4878
    %v4880 = vmul.f32 %v4871, %v4871
    %v4881 = vmul.f32 %v4880, -0.00019511016
    %v4882 = vadd.f32 %v4881, 0.008332121
    %v4883 = vmul.f32 %v4880, %v4882
    %v4884 = vadd.f32 %v4883, -0.16666654
    %v4885 = vmul.f32 %v4880, %v4884
    %v4886 = vadd.f32 %v4885, 1.0
    %v4887 = vmul.f32 %v4886, %v4871
    %vm4888 = vweird.f32 %v260
    %v4889 = vand.u32 %v4872, 3
    %vm4890 = vcmp.lt.s32.totalorder %v4889, 2
    %vm4891 = vcmp.eq.s32.totalorder %v4889, 0
    %v4892 = vxor.u32 %v4887, 2147483648
    %v4893 = vsel %vm4891, %v4879, %v4892
    %vm4894 = vcmp.eq.s32.totalorder %v4889, 2
    %v4895 = vxor.u32 %v4879, 2147483648
    %v4896 = vsel %vm4894, %v4895, %v4887
    %v4897 = vsel %vm4890, %v4893, %v4896
    %v4898 = vsel %vm4888, nan, %v4897
    %v4899 = vand.u32 2147483647, %v261
    %vm4900 = vcmp.le.f32.partialorder %v4899, 0.7853982
    %vm4901 = vcmp.lt.s32.totalorder %v261, 0
    %v4902 = vand.u32 %v261, 2139095040
    %v4903 = vshrl.u32 %v4902, 23
    %v4904 = vsub.s32 %v4903, 127
    %v4905 = vand.u32 2147483647, %v261
    %v4906 = vand.u32 %v4905, 8388607
    %v4907 = vor.u32 %v4906, 8388608
    %v4908 = vsub.s32 0, %v4907
    %v4909 = vadd.s32 %v4904, 1
    %vm4910 = vcmp.gt.s32.totalorder %v4909, 0
    %v4911 = vsel %vm4910, %v4909, 0
    %v4912 = vshrl.u32 %v4911, 5
    %v4913 = vand.u32 %v4911, 31
    %v4914 = vsub.s32 32, %v4913
    %v4915 = vshrl.u32 683565275, %v4914
    %v4916 = vshll.u32 683565275, %v4913
    %v4917 = vshrl.u32 2475754826, %v4914
    %v4918 = vor.u32 %v4916, %v4917
    %v4919 = vshll.u32 2475754826, %v4913
    %v4920 = vshrl.u32 2131351028, %v4914
    %v4921 = vor.u32 %v4919, %v4920
    %v4922 = vshll.u32 2131351028, %v4913
    %v4923 = vshrl.u32 2102212464, %v4914
    %v4924 = vor.u32 %v4922, %v4923
    %v4925 = vshll.u32 2102212464, %v4913
    %v4926 = vshrl.u32 920167782, %v4914
    %v4927 = vor.u32 %v4925, %v4926
    %v4928 = vshll.u32 920167782, %v4913
    %v4929 = vshrl.u32 1326507024, %v4914
    %v4930 = vor.u32 %v4928, %v4929
    %vm4931 = vcmp.lt.s32.totalorder %v4912, 1
    %vm4932 = vcmp.lt.s32.totalorder %v4912, 2
    %vm4933 = vcmp.lt.s32.totalorder %v4912, 3
    %vm4934 = vcmp.lt.s32.totalorder %v4912, 4
    %v4935 = vsel %vm4931, %v4915, %v4918
    %v4936 = vsel %vm4934, %v4924, 2102212464
    %v4937 = vsel %vm4933, %v4921, %v4936
    %v4938 = vsel %vm4932, %v4935, %v4937
    %v4939 = vsel %vm4931, %v4918, %v4921
    %v4940 = vsel %vm4934, %v4927, 920167782
    %v4941 = vsel %vm4933, %v4924, %v4940
    %v4942 = vsel %vm4932, %v4939, %v4941
    %v4943 = vsel %vm4931, %v4921, %v4924
    %v4944 = vsel %vm4934, %v4930, 1326507024
    %v4945 = vsel %vm4933, %v4927, %v4944
    %v4946 = vsel %vm4932, %v4943, %v4945
    %v4947 = vshll.u32 %v4907, 8
    %v4948 = vand.u32 %v4947, 65535
    %v4949 = vshrl.u32 %v4947, 16
    %v4950 = vand.u32 %v4946, 65535
    %v4951 = vshrl.u32 %v4946, 16
    %v4952 = vmul.u32 %v4948, %v4950
    %v4953 = vmul.u32 %v4948, %v4951
    %v4954 = vmul.u32 %v4949, %v4950
    %v4955 = vmul.u32 %v4949, %v4951
    %v4956 = vshll.u32 %v4953, 16
    %v4957 = vshrl.u32 %v4953, 16
    %v4958 = vshll.u32 %v4954, 16
    %v4959 = vshrl.u32 %v4954, 16
    %vm4960 = vc.u32 %v4952, %v4956
    %v4961 = vsel %vm4960, 1, 0
    %v4962 = vadd.s32 %v4952, %v4956
    %v4963 = vadd.s32 %v4955, %v4961
    %vm4964 = vc.u32 %v4962, %v4958
    %v4965 = vsel %vm4964, 1, 0
    %v4966 = vadd.s32 %v4962, %v4958
    %v4967 = vadd.s32 %v4963, %v4965
    %v4968 = vadd.s32 %v4967, %v4957
    %v4969 = vadd.s32 %v4968, %v4959
    %v4970 = vand.u32 %v4947, 65535
    %v4971 = vshrl.u32 %v4947, 16
    %v4972 = vand.u32 %v4942, 65535
    %v4973 = vshrl.u32 %v4942, 16
    %v4974 = vmul.u32 %v4970, %v4972
    %v4975 = vmul.u32 %v4970, %v4973
    %v4976 = vmul.u32 %v4971, %v4972
    %v4977 = vmul.u32 %v4971, %v4973
    %v4978 = vshll.u32 %v4975, 16
    %v4979 = vshrl.u32 %v4975, 16
    %v4980 = vshll.u32 %v4976, 16
    %v4981 = vshrl.u32 %v4976, 16
    %vm4982 = vc.u32 %v4974, %v4978
    %v4983 = vsel %vm4982, 1, 0
    %v4984 = vadd.s32 %v4974, %v4978
    %v4985 = vadd.s32 %v4977, %v4983
    %vm4986 = vc.u32 %v4984, %v4980
    %v4987 = vsel %vm4986, 1, 0
    %v4988 = vadd.s32 %v4984, %v4980
    %v4989 = vadd.s32 %v4985, %v4987
    %v4990 = vadd.s32 %v4989, %v4979
    %v4991 = vadd.s32 %v4990, %v4981
    %v4992 = vmul.u32 %v4947, %v4938
    %v4993 = vadd.s32 %v4969, %v4988
    %vm4994 = vc.u32 %v4969, %v4988
    %v4995 = vadd.s32 %v4991, 1
    %v4996 = vsel %vm4994, %v4995, %v4991
    %v4997 = vadd.s32 %v4992, %v4996
    %v4998 = vadd.s32 %v4997, 536870912
    %v4999 = vshrl.u32 %v4998, 30
    %v5000 = vshll.u32 %v4999, 30
    %v5001 = vsub.s32 %v4997, %v5000
    %vm5002 = vcmp.lt.s32.totalorder %v5001, 0
    %v5003 = vsub.s32 0, %v5001
    %v5004 = vsel %vm5002, %v5003, %v5001
    %v5005 = vclz %v5004
    %v5006 = vsub.s32 %v5005, 2
    %vm5007 = vcmp.gt.s32.totalorder 0, %v5006
    %v5008 = vsel %vm5007, 0, %v5006
    %v5009 = vsub.s32 32, %v5008
    %v5010 = vshll.u32 %v5001, %v5008
    %v5011 = vshrl.u32 %v4993, %v5009
    %v5012 = vor.u32 %v5010, %v5011
    %v5013 = vsub.s32 4294967266, %v5008
    %v5014 = vadd.s32 %v5013, 127
    %v5015 = vshll.u32 %v5014, 23
    %v5016 = vor.u32 4788187, %v5015
    %v5017 = vand.u32 2147483647, %v5016
    %v5019 = vcvt.s32.f32 %v5012
    %v5020 = vmul.f32 %v5019, %v5017
    %v5021 = vxor.u32 %v5020, 2147483648
    %v5022 = vsel %vm4901, %v5021, %v5020
    %v5023 = vsub.s32 4, %v4999
    %v5024 = vsel %vm4901, %v5023, %v4999
    %v5025 = vsel %vm4900, %v261, %v5022
    %v5026 = vsel %vm4900, 0, %v5024
    %v5027 = vmul.f32 %v5025, %v5025
    %v5028 = vmul.f32 %v5027, -0.001358992
    %v5029 = vadd.f32 %v5028, 0.041655596
    %v5030 = vmul.f32 %v5027, %v5029
    %v5031 = vadd.f32 %v5030, -0.4999988
    %v5032 = vmul.f32 %v5027, %v5031
    %v5033 = vadd.f32 1.0, %v5032
    %v5034 = vmul.f32 %v5025, %v5025
    %v5035 = vmul.f32 %v5034, -0.00019511016
    %v5036 = vadd.f32 %v5035, 0.008332121
    %v5037 = vmul.f32 %v5034, %v5036
    %v5038 = vadd.f32 %v5037, -0.16666654
    %v5039 = vmul.f32 %v5034, %v5038
    %v5040 = vadd.f32 %v5039, 1.0
    %v5041 = vmul.f32 %v5040, %v5025
    %vm5042 = vweird.f32 %v261
    %v5043 = vand.u32 %v5026, 3
    %vm5044 = vcmp.lt.s32.totalorder %v5043, 2
    %vm5045 = vcmp.eq.s32.totalorder %v5043, 0
    %v5046 = vxor.u32 %v5041, 2147483648
    %v5047 = vsel %vm5045, %v5033, %v5046
    %vm5048 = vcmp.eq.s32.totalorder %v5043, 2
    %v5049 = vxor.u32 %v5033, 2147483648
    %v5050 = vsel %vm5048, %v5049, %v5041
    %v5051 = vsel %vm5044, %v5047, %v5050
    %v5052 = vsel %vm5042, nan, %v5051
    %v5053 = vand.u32 2147483647, %v262
    %vm5054 = vcmp.le.f32.partialorder %v5053, 0.7853982
    %vm5055 = vcmp.lt.s32.totalorder %v262, 0
    %v5056 = vand.u32 %v262, 2139095040
    %v5057 = vshrl.u32 %v5056, 23
    %v5058 = vsub.s32 %v5057, 127
    %v5059 = vand.u32 2147483647, %v262
    %v5060 = vand.u32 %v5059, 8388607
    %v5061 = vor.u32 %v5060, 8388608
    %v5062 = vsub.s32 0, %v5061
    %v5063 = vadd.s32 %v5058, 1
    %vm5064 = vcmp.gt.s32.totalorder %v5063, 0
    %v5065 = vsel %vm5064, %v5063, 0
    %v5066 = vshrl.u32 %v5065, 5
    %v5067 = vand.u32 %v5065, 31
    %v5068 = vsub.s32 32, %v5067
    %v5069 = vshrl.u32 683565275, %v5068
    %v5070 = vshll.u32 683565275, %v5067
    %v5071 = vshrl.u32 2475754826, %v5068
    %v5072 = vor.u32 %v5070, %v5071
    %v5073 = vshll.u32 2475754826, %v5067
    %v5074 = vshrl.u32 2131351028, %v5068
    %v5075 = vor.u32 %v5073, %v5074
    %v5076 = vshll.u32 2131351028, %v5067
    %v5077 = vshrl.u32 2102212464, %v5068
    %v5078 = vor.u32 %v5076, %v5077
    %v5079 = vshll.u32 2102212464, %v5067
    %v5080 = vshrl.u32 920167782, %v5068
    %v5081 = vor.u32 %v5079, %v5080
    %v5082 = vshll.u32 920167782, %v5067
    %v5083 = vshrl.u32 1326507024, %v5068
    %v5084 = vor.u32 %v5082, %v5083
    %vm5085 = vcmp.lt.s32.totalorder %v5066, 1
    %vm5086 = vcmp.lt.s32.totalorder %v5066, 2
    %vm5087 = vcmp.lt.s32.totalorder %v5066, 3
    %vm5088 = vcmp.lt.s32.totalorder %v5066, 4
    %v5089 = vsel %vm5085, %v5069, %v5072
    %v5090 = vsel %vm5088, %v5078, 2102212464
    %v5091 = vsel %vm5087, %v5075, %v5090
    %v5092 = vsel %vm5086, %v5089, %v5091
    %v5093 = vsel %vm5085, %v5072, %v5075
    %v5094 = vsel %vm5088, %v5081, 920167782
    %v5095 = vsel %vm5087, %v5078, %v5094
    %v5096 = vsel %vm5086, %v5093, %v5095
    %v5097 = vsel %vm5085, %v5075, %v5078
    %v5098 = vsel %vm5088, %v5084, 1326507024
    %v5099 = vsel %vm5087, %v5081, %v5098
    %v5100 = vsel %vm5086, %v5097, %v5099
    %v5101 = vshll.u32 %v5061, 8
    %v5102 = vand.u32 %v5101, 65535
    %v5103 = vshrl.u32 %v5101, 16
    %v5104 = vand.u32 %v5100, 65535
    %v5105 = vshrl.u32 %v5100, 16
    %v5106 = vmul.u32 %v5102, %v5104
    %v5107 = vmul.u32 %v5102, %v5105
    %v5108 = vmul.u32 %v5103, %v5104
    %v5109 = vmul.u32 %v5103, %v5105
    %v5110 = vshll.u32 %v5107, 16
    %v5111 = vshrl.u32 %v5107, 16
    %v5112 = vshll.u32 %v5108, 16
    %v5113 = vshrl.u32 %v5108, 16
    %vm5114 = vc.u32 %v5106, %v5110
    %v5115 = vsel %vm5114, 1, 0
    %v5116 = vadd.s32 %v5106, %v5110
    %v5117 = vadd.s32 %v5109, %v5115
    %vm5118 = vc.u32 %v5116, %v5112
    %v5119 = vsel %vm5118, 1, 0
    %v5120 = vadd.s32 %v5116, %v5112
    %v5121 = vadd.s32 %v5117, %v5119
    %v5122 = vadd.s32 %v5121, %v5111
    %v5123 = vadd.s32 %v5122, %v5113
    %v5124 = vand.u32 %v5101, 65535
    %v5125 = vshrl.u32 %v5101, 16
    %v5126 = vand.u32 %v5096, 65535
    %v5127 = vshrl.u32 %v5096, 16
    %v5128 = vmul.u32 %v5124, %v5126
    %v5129 = vmul.u32 %v5124, %v5127
    %v5130 = vmul.u32 %v5125, %v5126
    %v5131 = vmul.u32 %v5125, %v5127
    %v5132 = vshll.u32 %v5129, 16
    %v5133 = vshrl.u32 %v5129, 16
    %v5134 = vshll.u32 %v5130, 16
    %v5135 = vshrl.u32 %v5130, 16
    %vm5136 = vc.u32 %v5128, %v5132
    %v5137 = vsel %vm5136, 1, 0
    %v5138 = vadd.s32 %v5128, %v5132
    %v5139 = vadd.s32 %v5131, %v5137
    %vm5140 = vc.u32 %v5138, %v5134
    %v5141 = vsel %vm5140, 1, 0
    %v5142 = vadd.s32 %v5138, %v5134
    %v5143 = vadd.s32 %v5139, %v5141
    %v5144 = vadd.s32 %v5143, %v5133
    %v5145 = vadd.s32 %v5144, %v5135
    %v5146 = vmul.u32 %v5101, %v5092
    %v5147 = vadd.s32 %v5123, %v5142
    %vm5148 = vc.u32 %v5123, %v5142
    %v5149 = vadd.s32 %v5145, 1
    %v5150 = vsel %vm5148, %v5149, %v5145
    %v5151 = vadd.s32 %v5146, %v5150
    %v5152 = vadd.s32 %v5151, 536870912
    %v5153 = vshrl.u32 %v5152, 30
    %v5154 = vshll.u32 %v5153, 30
    %v5155 = vsub.s32 %v5151, %v5154
    %vm5156 = vcmp.lt.s32.totalorder %v5155, 0
    %v5157 = vsub.s32 0, %v5155
    %v5158 = vsel %vm5156, %v5157, %v5155
    %v5159 = vclz %v5158
    %v5160 = vsub.s32 %v5159, 2
    %vm5161 = vcmp.gt.s32.totalorder 0, %v5160
    %v5162 = vsel %vm5161, 0, %v5160
    %v5163 = vsub.s32 32, %v5162
    %v5164 = vshll.u32 %v5155, %v5162
    %v5165 = vshrl.u32 %v5147, %v5163
    %v5166 = vor.u32 %v5164, %v5165
    %v5167 = vsub.s32 4294967266, %v5162
    %v5168 = vadd.s32 %v5167, 127
    %v5169 = vshll.u32 %v5168, 23
    %v5170 = vor.u32 4788187, %v5169
    %v5171 = vand.u32 2147483647, %v5170
    %v5173 = vcvt.s32.f32 %v5166
    %v5174 = vmul.f32 %v5173, %v5171
    %v5175 = vxor.u32 %v5174, 2147483648
    %v5176 = vsel %vm5055, %v5175, %v5174
    %v5177 = vsub.s32 4, %v5153
    %v5178 = vsel %vm5055, %v5177, %v5153
    %v5179 = vsel %vm5054, %v262, %v5176
    %v5180 = vsel %vm5054, 0, %v5178
    %v5181 = vmul.f32 %v5179, %v5179
    %v5182 = vmul.f32 %v5181, -0.001358992
    %v5183 = vadd.f32 %v5182, 0.041655596
    %v5184 = vmul.f32 %v5181, %v5183
    %v5185 = vadd.f32 %v5184, -0.4999988
    %v5186 = vmul.f32 %v5181, %v5185
    %v5187 = vadd.f32 1.0, %v5186
    %v5188 = vmul.f32 %v5179, %v5179
    %v5189 = vmul.f32 %v5188, -0.00019511016
    %v5190 = vadd.f32 %v5189, 0.008332121
    %v5191 = vmul.f32 %v5188, %v5190
    %v5192 = vadd.f32 %v5191, -0.16666654
    %v5193 = vmul.f32 %v5188, %v5192
    %v5194 = vadd.f32 %v5193, 1.0
    %v5195 = vmul.f32 %v5194, %v5179
    %vm5196 = vweird.f32 %v262
    %v5197 = vand.u32 %v5180, 3
    %vm5198 = vcmp.lt.s32.totalorder %v5197, 2
    %vm5199 = vcmp.eq.s32.totalorder %v5197, 0
    %v5200 = vxor.u32 %v5195, 2147483648
    %v5201 = vsel %vm5199, %v5187, %v5200
    %vm5202 = vcmp.eq.s32.totalorder %v5197, 2
    %v5203 = vxor.u32 %v5187, 2147483648
    %v5204 = vsel %vm5202, %v5203, %v5195
    %v5205 = vsel %vm5198, %v5201, %v5204
    %v5206 = vsel %vm5196, nan, %v5205
    %v5207 = vand.u32 2147483647, %v263
    %vm5208 = vcmp.le.f32.partialorder %v5207, 0.7853982
    %vm5209 = vcmp.lt.s32.totalorder %v263, 0
    %v5210 = vand.u32 %v263, 2139095040
    %v5211 = vshrl.u32 %v5210, 23
    %v5212 = vsub.s32 %v5211, 127
    %v5213 = vand.u32 2147483647, %v263
    %v5214 = vand.u32 %v5213, 8388607
    %v5215 = vor.u32 %v5214, 8388608
    %v5216 = vsub.s32 0, %v5215
    %v5217 = vadd.s32 %v5212, 1
    %vm5218 = vcmp.gt.s32.totalorder %v5217, 0
    %v5219 = vsel %vm5218, %v5217, 0
    %v5220 = vshrl.u32 %v5219, 5
    %v5221 = vand.u32 %v5219, 31
    %v5222 = vsub.s32 32, %v5221
    %v5223 = vshrl.u32 683565275, %v5222
    %v5224 = vshll.u32 683565275, %v5221
    %v5225 = vshrl.u32 2475754826, %v5222
    %v5226 = vor.u32 %v5224, %v5225
    %v5227 = vshll.u32 2475754826, %v5221
    %v5228 = vshrl.u32 2131351028, %v5222
    %v5229 = vor.u32 %v5227, %v5228
    %v5230 = vshll.u32 2131351028, %v5221
    %v5231 = vshrl.u32 2102212464, %v5222
    %v5232 = vor.u32 %v5230, %v5231
    %v5233 = vshll.u32 2102212464, %v5221
    %v5234 = vshrl.u32 920167782, %v5222
    %v5235 = vor.u32 %v5233, %v5234
    %v5236 = vshll.u32 920167782, %v5221
    %v5237 = vshrl.u32 1326507024, %v5222
    %v5238 = vor.u32 %v5236, %v5237
    %vm5239 = vcmp.lt.s32.totalorder %v5220, 1
    %vm5240 = vcmp.lt.s32.totalorder %v5220, 2
    %vm5241 = vcmp.lt.s32.totalorder %v5220, 3
    %vm5242 = vcmp.lt.s32.totalorder %v5220, 4
    %v5243 = vsel %vm5239, %v5223, %v5226
    %v5244 = vsel %vm5242, %v5232, 2102212464
    %v5245 = vsel %vm5241, %v5229, %v5244
    %v5246 = vsel %vm5240, %v5243, %v5245
    %v5247 = vsel %vm5239, %v5226, %v5229
    %v5248 = vsel %vm5242, %v5235, 920167782
    %v5249 = vsel %vm5241, %v5232, %v5248
    %v5250 = vsel %vm5240, %v5247, %v5249
    %v5251 = vsel %vm5239, %v5229, %v5232
    %v5252 = vsel %vm5242, %v5238, 1326507024
    %v5253 = vsel %vm5241, %v5235, %v5252
    %v5254 = vsel %vm5240, %v5251, %v5253
    %v5255 = vshll.u32 %v5215, 8
    %v5256 = vand.u32 %v5255, 65535
    %v5257 = vshrl.u32 %v5255, 16
    %v5258 = vand.u32 %v5254, 65535
    %v5259 = vshrl.u32 %v5254, 16
    %v5260 = vmul.u32 %v5256, %v5258
    %v5261 = vmul.u32 %v5256, %v5259
    %v5262 = vmul.u32 %v5257, %v5258
    %v5263 = vmul.u32 %v5257, %v5259
    %v5264 = vshll.u32 %v5261, 16
    %v5265 = vshrl.u32 %v5261, 16
    %v5266 = vshll.u32 %v5262, 16
    %v5267 = vshrl.u32 %v5262, 16
    %vm5268 = vc.u32 %v5260, %v5264
    %v5269 = vsel %vm5268, 1, 0
    %v5270 = vadd.s32 %v5260, %v5264
    %v5271 = vadd.s32 %v5263, %v5269
    %vm5272 = vc.u32 %v5270, %v5266
    %v5273 = vsel %vm5272, 1, 0
    %v5274 = vadd.s32 %v5270, %v5266
    %v5275 = vadd.s32 %v5271, %v5273
    %v5276 = vadd.s32 %v5275, %v5265
    %v5277 = vadd.s32 %v5276, %v5267
    %v5278 = vand.u32 %v5255, 65535
    %v5279 = vshrl.u32 %v5255, 16
    %v5280 = vand.u32 %v5250, 65535
    %v5281 = vshrl.u32 %v5250, 16
    %v5282 = vmul.u32 %v5278, %v5280
    %v5283 = vmul.u32 %v5278, %v5281
    %v5284 = vmul.u32 %v5279, %v5280
    %v5285 = vmul.u32 %v5279, %v5281
    %v5286 = vshll.u32 %v5283, 16
    %v5287 = vshrl.u32 %v5283, 16
    %v5288 = vshll.u32 %v5284, 16
    %v5289 = vshrl.u32 %v5284, 16
    %vm5290 = vc.u32 %v5282, %v5286
    %v5291 = vsel %vm5290, 1, 0
    %v5292 = vadd.s32 %v5282, %v5286
    %v5293 = vadd.s32 %v5285, %v5291
    %vm5294 = vc.u32 %v5292, %v5288
    %v5295 = vsel %vm5294, 1, 0
    %v5296 = vadd.s32 %v5292, %v5288
    %v5297 = vadd.s32 %v5293, %v5295
    %v5298 = vadd.s32 %v5297, %v5287
    %v5299 = vadd.s32 %v5298, %v5289
    %v5300 = vmul.u32 %v5255, %v5246
    %v5301 = vadd.s32 %v5277, %v5296
    %vm5302 = vc.u32 %v5277, %v5296
    %v5303 = vadd.s32 %v5299, 1
    %v5304 = vsel %vm5302, %v5303, %v5299
    %v5305 = vadd.s32 %v5300, %v5304
    %v5306 = vadd.s32 %v5305, 536870912
    %v5307 = vshrl.u32 %v5306, 30
    %v5308 = vshll.u32 %v5307, 30
    %v5309 = vsub.s32 %v5305, %v5308
    %vm5310 = vcmp.lt.s32.totalorder %v5309, 0
    %v5311 = vsub.s32 0, %v5309
    %v5312 = vsel %vm5310, %v5311, %v5309
    %v5313 = vclz %v5312
    %v5314 = vsub.s32 %v5313, 2
    %vm5315 = vcmp.gt.s32.totalorder 0, %v5314
    %v5316 = vsel %vm5315, 0, %v5314
    %v5317 = vsub.s32 32, %v5316
    %v5318 = vshll.u32 %v5309, %v5316
    %v5319 = vshrl.u32 %v5301, %v5317
    %v5320 = vor.u32 %v5318, %v5319
    %v5321 = vsub.s32 4294967266, %v5316
    %v5322 = vadd.s32 %v5321, 127
    %v5323 = vshll.u32 %v5322, 23
    %v5324 = vor.u32 4788187, %v5323
    %v5325 = vand.u32 2147483647, %v5324
    %v5327 = vcvt.s32.f32 %v5320
    %v5328 = vmul.f32 %v5327, %v5325
    %v5329 = vxor.u32 %v5328, 2147483648
    %v5330 = vsel %vm5209, %v5329, %v5328
    %v5331 = vsub.s32 4, %v5307
    %v5332 = vsel %vm5209, %v5331, %v5307
    %v5333 = vsel %vm5208, %v263, %v5330
    %v5334 = vsel %vm5208, 0, %v5332
    %v5335 = vmul.f32 %v5333, %v5333
    %v5336 = vmul.f32 %v5335, -0.001358992
    %v5337 = vadd.f32 %v5336, 0.041655596
    %v5338 = vmul.f32 %v5335, %v5337
    %v5339 = vadd.f32 %v5338, -0.4999988
    %v5340 = vmul.f32 %v5335, %v5339
    %v5341 = vadd.f32 1.0, %v5340
    %v5342 = vmul.f32 %v5333, %v5333
    %v5343 = vmul.f32 %v5342, -0.00019511016
    %v5344 = vadd.f32 %v5343, 0.008332121
    %v5345 = vmul.f32 %v5342, %v5344
    %v5346 = vadd.f32 %v5345, -0.16666654
    %v5347 = vmul.f32 %v5342, %v5346
    %v5348 = vadd.f32 %v5347, 1.0
    %v5349 = vmul.f32 %v5348, %v5333
    %vm5350 = vweird.f32 %v263
    %v5351 = vand.u32 %v5334, 3
    %vm5352 = vcmp.lt.s32.totalorder %v5351, 2
    %vm5353 = vcmp.eq.s32.totalorder %v5351, 0
    %v5354 = vxor.u32 %v5349, 2147483648
    %v5355 = vsel %vm5353, %v5341, %v5354
    %vm5356 = vcmp.eq.s32.totalorder %v5351, 2
    %v5357 = vxor.u32 %v5341, 2147483648
    %v5358 = vsel %vm5356, %v5357, %v5349
    %v5359 = vsel %vm5352, %v5355, %v5358
    %v5360 = vsel %vm5350, nan, %v5359
    %v5361 = vand.u32 2147483647, %v264
    %vm5362 = vcmp.le.f32.partialorder %v5361, 0.7853982
    %vm5363 = vcmp.lt.s32.totalorder %v264, 0
    %v5364 = vand.u32 %v264, 2139095040
    %v5365 = vshrl.u32 %v5364, 23
    %v5366 = vsub.s32 %v5365, 127
    %v5367 = vand.u32 2147483647, %v264
    %v5368 = vand.u32 %v5367, 8388607
    %v5369 = vor.u32 %v5368, 8388608
    %v5370 = vsub.s32 0, %v5369
    %v5371 = vadd.s32 %v5366, 1
    %vm5372 = vcmp.gt.s32.totalorder %v5371, 0
    %v5373 = vsel %vm5372, %v5371, 0
    %v5374 = vshrl.u32 %v5373, 5
    %v5375 = vand.u32 %v5373, 31
    %v5376 = vsub.s32 32, %v5375
    %v5377 = vshrl.u32 683565275, %v5376
    %v5378 = vshll.u32 683565275, %v5375
    %v5379 = vshrl.u32 2475754826, %v5376
    %v5380 = vor.u32 %v5378, %v5379
    %v5381 = vshll.u32 2475754826, %v5375
    %v5382 = vshrl.u32 2131351028, %v5376
    %v5383 = vor.u32 %v5381, %v5382
    %v5384 = vshll.u32 2131351028, %v5375
    %v5385 = vshrl.u32 2102212464, %v5376
    %v5386 = vor.u32 %v5384, %v5385
    %v5387 = vshll.u32 2102212464, %v5375
    %v5388 = vshrl.u32 920167782, %v5376
    %v5389 = vor.u32 %v5387, %v5388
    %v5390 = vshll.u32 920167782, %v5375
    %v5391 = vshrl.u32 1326507024, %v5376
    %v5392 = vor.u32 %v5390, %v5391
    %vm5393 = vcmp.lt.s32.totalorder %v5374, 1
    %vm5394 = vcmp.lt.s32.totalorder %v5374, 2
    %vm5395 = vcmp.lt.s32.totalorder %v5374, 3
    %vm5396 = vcmp.lt.s32.totalorder %v5374, 4
    %v5397 = vsel %vm5393, %v5377, %v5380
    %v5398 = vsel %vm5396, %v5386, 2102212464
    %v5399 = vsel %vm5395, %v5383, %v5398
    %v5400 = vsel %vm5394, %v5397, %v5399
    %v5401 = vsel %vm5393, %v5380, %v5383
    %v5402 = vsel %vm5396, %v5389, 920167782
    %v5403 = vsel %vm5395, %v5386, %v5402
    %v5404 = vsel %vm5394, %v5401, %v5403
    %v5405 = vsel %vm5393, %v5383, %v5386
    %v5406 = vsel %vm5396, %v5392, 1326507024
    %v5407 = vsel %vm5395, %v5389, %v5406
    %v5408 = vsel %vm5394, %v5405, %v5407
    %v5409 = vshll.u32 %v5369, 8
    %v5410 = vand.u32 %v5409, 65535
    %v5411 = vshrl.u32 %v5409, 16
    %v5412 = vand.u32 %v5408, 65535
    %v5413 = vshrl.u32 %v5408, 16
    %v5414 = vmul.u32 %v5410, %v5412
    %v5415 = vmul.u32 %v5410, %v5413
    %v5416 = vmul.u32 %v5411, %v5412
    %v5417 = vmul.u32 %v5411, %v5413
    %v5418 = vshll.u32 %v5415, 16
    %v5419 = vshrl.u32 %v5415, 16
    %v5420 = vshll.u32 %v5416, 16
    %v5421 = vshrl.u32 %v5416, 16
    %vm5422 = vc.u32 %v5414, %v5418
    %v5423 = vsel %vm5422, 1, 0
    %v5424 = vadd.s32 %v5414, %v5418
    %v5425 = vadd.s32 %v5417, %v5423
    %vm5426 = vc.u32 %v5424, %v5420
    %v5427 = vsel %vm5426, 1, 0
    %v5428 = vadd.s32 %v5424, %v5420
    %v5429 = vadd.s32 %v5425, %v5427
    %v5430 = vadd.s32 %v5429, %v5419
    %v5431 = vadd.s32 %v5430, %v5421
    %v5432 = vand.u32 %v5409, 65535
    %v5433 = vshrl.u32 %v5409, 16
    %v5434 = vand.u32 %v5404, 65535
    %v5435 = vshrl.u32 %v5404, 16
    %v5436 = vmul.u32 %v5432, %v5434
    %v5437 = vmul.u32 %v5432, %v5435
    %v5438 = vmul.u32 %v5433, %v5434
    %v5439 = vmul.u32 %v5433, %v5435
    %v5440 = vshll.u32 %v5437, 16
    %v5441 = vshrl.u32 %v5437, 16
    %v5442 = vshll.u32 %v5438, 16
    %v5443 = vshrl.u32 %v5438, 16
    %vm5444 = vc.u32 %v5436, %v5440
    %v5445 = vsel %vm5444, 1, 0
    %v5446 = vadd.s32 %v5436, %v5440
    %v5447 = vadd.s32 %v5439, %v5445
    %vm5448 = vc.u32 %v5446, %v5442
    %v5449 = vsel %vm5448, 1, 0
    %v5450 = vadd.s32 %v5446, %v5442
    %v5451 = vadd.s32 %v5447, %v5449
    %v5452 = vadd.s32 %v5451, %v5441
    %v5453 = vadd.s32 %v5452, %v5443
    %v5454 = vmul.u32 %v5409, %v5400
    %v5455 = vadd.s32 %v5431, %v5450
    %vm5456 = vc.u32 %v5431, %v5450
    %v5457 = vadd.s32 %v5453, 1
    %v5458 = vsel %vm5456, %v5457, %v5453
    %v5459 = vadd.s32 %v5454, %v5458
    %v5460 = vadd.s32 %v5459, 536870912
    %v5461 = vshrl.u32 %v5460, 30
    %v5462 = vshll.u32 %v5461, 30
    %v5463 = vsub.s32 %v5459, %v5462
    %vm5464 = vcmp.lt.s32.totalorder %v5463, 0
    %v5465 = vsub.s32 0, %v5463
    %v5466 = vsel %vm5464, %v5465, %v5463
    %v5467 = vclz %v5466
    %v5468 = vsub.s32 %v5467, 2
    %vm5469 = vcmp.gt.s32.totalorder 0, %v5468
    %v5470 = vsel %vm5469, 0, %v5468
    %v5471 = vsub.s32 32, %v5470
    %v5472 = vshll.u32 %v5463, %v5470
    %v5473 = vshrl.u32 %v5455, %v5471
    %v5474 = vor.u32 %v5472, %v5473
    %v5475 = vsub.s32 4294967266, %v5470
    %v5476 = vadd.s32 %v5475, 127
    %v5477 = vshll.u32 %v5476, 23
    %v5478 = vor.u32 4788187, %v5477
    %v5479 = vand.u32 2147483647, %v5478
    %v5481 = vcvt.s32.f32 %v5474
    %v5482 = vmul.f32 %v5481, %v5479
    %v5483 = vxor.u32 %v5482, 2147483648
    %v5484 = vsel %vm5363, %v5483, %v5482
    %v5485 = vsub.s32 4, %v5461
    %v5486 = vsel %vm5363, %v5485, %v5461
    %v5487 = vsel %vm5362, %v264, %v5484
    %v5488 = vsel %vm5362, 0, %v5486
    %v5489 = vmul.f32 %v5487, %v5487
    %v5490 = vmul.f32 %v5489, -0.001358992
    %v5491 = vadd.f32 %v5490, 0.041655596
    %v5492 = vmul.f32 %v5489, %v5491
    %v5493 = vadd.f32 %v5492, -0.4999988
    %v5494 = vmul.f32 %v5489, %v5493
    %v5495 = vadd.f32 1.0, %v5494
    %v5496 = vmul.f32 %v5487, %v5487
    %v5497 = vmul.f32 %v5496, -0.00019511016
    %v5498 = vadd.f32 %v5497, 0.008332121
    %v5499 = vmul.f32 %v5496, %v5498
    %v5500 = vadd.f32 %v5499, -0.16666654
    %v5501 = vmul.f32 %v5496, %v5500
    %v5502 = vadd.f32 %v5501, 1.0
    %v5503 = vmul.f32 %v5502, %v5487
    %vm5504 = vweird.f32 %v264
    %v5505 = vand.u32 %v5488, 3
    %vm5506 = vcmp.lt.s32.totalorder %v5505, 2
    %vm5507 = vcmp.eq.s32.totalorder %v5505, 0
    %v5508 = vxor.u32 %v5503, 2147483648
    %v5509 = vsel %vm5507, %v5495, %v5508
    %vm5510 = vcmp.eq.s32.totalorder %v5505, 2
    %v5511 = vxor.u32 %v5495, 2147483648
    %v5512 = vsel %vm5510, %v5511, %v5503
    %v5513 = vsel %vm5506, %v5509, %v5512
    %v5514 = vsel %vm5504, nan, %v5513
    %s5515 = scalar_lea.vmem %s4, 192
    %v5516 = vld [vmem:[%s5515] sm:$0xff]
    %v5517 = vld [vmem:[%s5515 + $0x8] sm:$0xff]
    %v5518 = vld [vmem:[%s5515 + $0x10] sm:$0xff]
    %v5519 = vld [vmem:[%s5515 + $0x18] sm:$0xff]
    %v5520 = vld [vmem:[%s5515 + $0x20] sm:$0xff]
    %v5521 = vld [vmem:[%s5515 + $0x28] sm:$0xff]
    %v5522 = vld [vmem:[%s5515 + $0x30] sm:$0xff]
    %v5523 = vld [vmem:[%s5515 + $0x38] sm:$0xff]
    %v5525 = vsel %vm1570, %v4436, 0
    %v5528 = vsel %vm1570, %v4590, 0
    %v5531 = vsel %vm1570, %v4744, 0
    %v5534 = vsel %vm1570, %v4898, 0
    %v5537 = vsel %vm1570, %v5052, 0
    %v5540 = vsel %vm1570, %v5206, 0
    %v5543 = vsel %vm1570, %v5360, 0
    %v5546 = vsel %vm1570, %v5514, 0
    %5548 = vmatpush.msra.mxu0 0.0
    %5549 = vmatpush.msra.mxu0 0.0
    %5550 = vmatpush.msra.mxu0 0.0
    %5551 = vmatpush.msra.mxu0 0.0
    %5552 = vmatpush.msra.mxu0 0.0
    %5553 = vmatpush.msra.mxu0 0.0
    %5554 = vmatpush.msra.mxu0 0.0
    %5555 = vmatpush.msra.mxu0 0.0
    %5556 = vmatpush.msra.mxu0 %v5523
    %5557 = vmatpush.msra.mxu0 %v5522
    %5558 = vmatpush.msra.mxu0 %v5521
    %5559 = vmatpush.msra.mxu0 %v5520
    %5560 = vmatpush.msra.mxu0 %v5519
    %5561 = vmatpush.msra.mxu0 %v5518
    %5562 = vmatpush.msra.mxu0 %v5517
    %5563 = vmatpush.msra.mxu0 %v5516
    %5564 = vmatmul.f32.gmra.mxu0 %v5525
    %v5565 = vpop.f32.mrf.mxu0
    %v5566 = vadd.f32 0.0, %v5565
    %5567 = vmatmul.f32.gmra.mxu0 %v5528
    %v5568 = vpop.f32.mrf.mxu0
    %v5569 = vadd.f32 0.0, %v5568
    %5570 = vmatmul.f32.gmra.mxu0 %v5531
    %v5571 = vpop.f32.mrf.mxu0
    %v5572 = vadd.f32 0.0, %v5571
    %5573 = vmatmul.f32.gmra.mxu0 %v5534
    %v5574 = vpop.f32.mrf.mxu0
    %v5575 = vadd.f32 0.0, %v5574
    %5576 = vmatmul.f32.gmra.mxu0 %v5537
    %v5577 = vpop.f32.mrf.mxu0
    %v5578 = vadd.f32 0.0, %v5577
    %5579 = vmatmul.f32.gmra.mxu0 %v5540
    %v5580 = vpop.f32.mrf.mxu0
    %v5581 = vadd.f32 0.0, %v5580
    %5582 = vmatmul.f32.gmra.mxu0 %v5543
    %v5583 = vpop.f32.mrf.mxu0
    %v5584 = vadd.f32 0.0, %v5583
    %5585 = vmatmul.f32.gmra.mxu0 %v5546
    %v5586 = vpop.f32.mrf.mxu0
    %v5587 = vadd.f32 0.0, %v5586
    %5588 = vdwg.mxu0
    %v5589 = vadd.f32 %v4275, %v5566
    %v5590 = vadd.f32 %v4276, %v5569
    %v5591 = vadd.f32 %v4277, %v5572
    %v5592 = vadd.f32 %v4278, %v5575
    %v5593 = vadd.f32 %v4279, %v5578
    %v5594 = vadd.f32 %v4280, %v5581
    %v5595 = vadd.f32 %v4281, %v5584
    %v5596 = vadd.f32 %v4282, %v5587
    %v5597 = vand.u32 2147483647, %v313
    %vm5598 = vcmp.le.f32.partialorder %v5597, 0.7853982
    %vm5599 = vcmp.lt.s32.totalorder %v313, 0
    %v5600 = vand.u32 %v313, 2139095040
    %v5601 = vshrl.u32 %v5600, 23
    %v5602 = vsub.s32 %v5601, 127
    %v5603 = vand.u32 2147483647, %v313
    %v5604 = vand.u32 %v5603, 8388607
    %v5605 = vor.u32 %v5604, 8388608
    %v5606 = vsub.s32 0, %v5605
    %v5607 = vadd.s32 %v5602, 1
    %vm5608 = vcmp.gt.s32.totalorder %v5607, 0
    %v5609 = vsel %vm5608, %v5607, 0
    %v5610 = vshrl.u32 %v5609, 5
    %v5611 = vand.u32 %v5609, 31
    %v5612 = vsub.s32 32, %v5611
    %v5613 = vshrl.u32 683565275, %v5612
    %v5614 = vshll.u32 683565275, %v5611
    %v5615 = vshrl.u32 2475754826, %v5612
    %v5616 = vor.u32 %v5614, %v5615
    %v5617 = vshll.u32 2475754826, %v5611
    %v5618 = vshrl.u32 2131351028, %v5612
    %v5619 = vor.u32 %v5617, %v5618
    %v5620 = vshll.u32 2131351028, %v5611
    %v5621 = vshrl.u32 2102212464, %v5612
    %v5622 = vor.u32 %v5620, %v5621
    %v5623 = vshll.u32 2102212464, %v5611
    %v5624 = vshrl.u32 920167782, %v5612
    %v5625 = vor.u32 %v5623, %v5624
    %v5626 = vshll.u32 920167782, %v5611
    %v5627 = vshrl.u32 1326507024, %v5612
    %v5628 = vor.u32 %v5626, %v5627
    %vm5629 = vcmp.lt.s32.totalorder %v5610, 1
    %vm5630 = vcmp.lt.s32.totalorder %v5610, 2
    %vm5631 = vcmp.lt.s32.totalorder %v5610, 3
    %vm5632 = vcmp.lt.s32.totalorder %v5610, 4
    %v5633 = vsel %vm5629, %v5613, %v5616
    %v5634 = vsel %vm5632, %v5622, 2102212464
    %v5635 = vsel %vm5631, %v5619, %v5634
    %v5636 = vsel %vm5630, %v5633, %v5635
    %v5637 = vsel %vm5629, %v5616, %v5619
    %v5638 = vsel %vm5632, %v5625, 920167782
    %v5639 = vsel %vm5631, %v5622, %v5638
    %v5640 = vsel %vm5630, %v5637, %v5639
    %v5641 = vsel %vm5629, %v5619, %v5622
    %v5642 = vsel %vm5632, %v5628, 1326507024
    %v5643 = vsel %vm5631, %v5625, %v5642
    %v5644 = vsel %vm5630, %v5641, %v5643
    %v5645 = vshll.u32 %v5605, 8
    %v5646 = vand.u32 %v5645, 65535
    %v5647 = vshrl.u32 %v5645, 16
    %v5648 = vand.u32 %v5644, 65535
    %v5649 = vshrl.u32 %v5644, 16
    %v5650 = vmul.u32 %v5646, %v5648
    %v5651 = vmul.u32 %v5646, %v5649
    %v5652 = vmul.u32 %v5647, %v5648
    %v5653 = vmul.u32 %v5647, %v5649
    %v5654 = vshll.u32 %v5651, 16
    %v5655 = vshrl.u32 %v5651, 16
    %v5656 = vshll.u32 %v5652, 16
    %v5657 = vshrl.u32 %v5652, 16
    %vm5658 = vc.u32 %v5650, %v5654
    %v5659 = vsel %vm5658, 1, 0
    %v5660 = vadd.s32 %v5650, %v5654
    %v5661 = vadd.s32 %v5653, %v5659
    %vm5662 = vc.u32 %v5660, %v5656
    %v5663 = vsel %vm5662, 1, 0
    %v5664 = vadd.s32 %v5660, %v5656
    %v5665 = vadd.s32 %v5661, %v5663
    %v5666 = vadd.s32 %v5665, %v5655
    %v5667 = vadd.s32 %v5666, %v5657
    %v5668 = vand.u32 %v5645, 65535
    %v5669 = vshrl.u32 %v5645, 16
    %v5670 = vand.u32 %v5640, 65535
    %v5671 = vshrl.u32 %v5640, 16
    %v5672 = vmul.u32 %v5668, %v5670
    %v5673 = vmul.u32 %v5668, %v5671
    %v5674 = vmul.u32 %v5669, %v5670
    %v5675 = vmul.u32 %v5669, %v5671
    %v5676 = vshll.u32 %v5673, 16
    %v5677 = vshrl.u32 %v5673, 16
    %v5678 = vshll.u32 %v5674, 16
    %v5679 = vshrl.u32 %v5674, 16
    %vm5680 = vc.u32 %v5672, %v5676
    %v5681 = vsel %vm5680, 1, 0
    %v5682 = vadd.s32 %v5672, %v5676
    %v5683 = vadd.s32 %v5675, %v5681
    %vm5684 = vc.u32 %v5682, %v5678
    %v5685 = vsel %vm5684, 1, 0
    %v5686 = vadd.s32 %v5682, %v5678
    %v5687 = vadd.s32 %v5683, %v5685
    %v5688 = vadd.s32 %v5687, %v5677
    %v5689 = vadd.s32 %v5688, %v5679
    %v5690 = vmul.u32 %v5645, %v5636
    %v5691 = vadd.s32 %v5667, %v5686
    %vm5692 = vc.u32 %v5667, %v5686
    %v5693 = vadd.s32 %v5689, 1
    %v5694 = vsel %vm5692, %v5693, %v5689
    %v5695 = vadd.s32 %v5690, %v5694
    %v5696 = vadd.s32 %v5695, 536870912
    %v5697 = vshrl.u32 %v5696, 30
    %v5698 = vshll.u32 %v5697, 30
    %v5699 = vsub.s32 %v5695, %v5698
    %vm5700 = vcmp.lt.s32.totalorder %v5699, 0
    %v5701 = vsub.s32 0, %v5699
    %v5702 = vsel %vm5700, %v5701, %v5699
    %v5703 = vclz %v5702
    %v5704 = vsub.s32 %v5703, 2
    %vm5705 = vcmp.gt.s32.totalorder 0, %v5704
    %v5706 = vsel %vm5705, 0, %v5704
    %v5707 = vsub.s32 32, %v5706
    %v5708 = vshll.u32 %v5699, %v5706
    %v5709 = vshrl.u32 %v5691, %v5707
    %v5710 = vor.u32 %v5708, %v5709
    %v5711 = vsub.s32 4294967266, %v5706
    %v5712 = vadd.s32 %v5711, 127
    %v5713 = vshll.u32 %v5712, 23
    %v5714 = vor.u32 4788187, %v5713
    %v5715 = vand.u32 2147483647, %v5714
    %v5717 = vcvt.s32.f32 %v5710
    %v5718 = vmul.f32 %v5717, %v5715
    %v5719 = vxor.u32 %v5718, 2147483648
    %v5720 = vsel %vm5599, %v5719, %v5718
    %v5721 = vsub.s32 4, %v5697
    %v5722 = vsel %vm5599, %v5721, %v5697
    %v5723 = vsel %vm5598, %v313, %v5720
    %v5724 = vsel %vm5598, 0, %v5722
    %v5725 = vmul.f32 %v5723, %v5723
    %v5726 = vmul.f32 %v5725, -0.001358992
    %v5727 = vadd.f32 %v5726, 0.041655596
    %v5728 = vmul.f32 %v5725, %v5727
    %v5729 = vadd.f32 %v5728, -0.4999988
    %v5730 = vmul.f32 %v5725, %v5729
    %v5731 = vadd.f32 1.0, %v5730
    %v5732 = vmul.f32 %v5723, %v5723
    %v5733 = vmul.f32 %v5732, -0.00019511016
    %v5734 = vadd.f32 %v5733, 0.008332121
    %v5735 = vmul.f32 %v5732, %v5734
    %v5736 = vadd.f32 %v5735, -0.16666654
    %v5737 = vmul.f32 %v5732, %v5736
    %v5738 = vadd.f32 %v5737, 1.0
    %v5739 = vmul.f32 %v5738, %v5723
    %vm5740 = vweird.f32 %v313
    %v5741 = vadd.s32 %v5724, 3
    %v5742 = vand.u32 %v5741, 3
    %vm5743 = vcmp.lt.s32.totalorder %v5742, 2
    %vm5744 = vcmp.eq.s32.totalorder %v5742, 0
    %v5745 = vxor.u32 %v5739, 2147483648
    %v5746 = vsel %vm5744, %v5731, %v5745
    %vm5747 = vcmp.eq.s32.totalorder %v5742, 2
    %v5748 = vxor.u32 %v5731, 2147483648
    %v5749 = vsel %vm5747, %v5748, %v5739
    %v5750 = vsel %vm5743, %v5746, %v5749
    %v5751 = vsel %vm5740, nan, %v5750
    %v5752 = vand.u32 2147483647, %v314
    %vm5753 = vcmp.le.f32.partialorder %v5752, 0.7853982
    %vm5754 = vcmp.lt.s32.totalorder %v314, 0
    %v5755 = vand.u32 %v314, 2139095040
    %v5756 = vshrl.u32 %v5755, 23
    %v5757 = vsub.s32 %v5756, 127
    %v5758 = vand.u32 2147483647, %v314
    %v5759 = vand.u32 %v5758, 8388607
    %v5760 = vor.u32 %v5759, 8388608
    %v5761 = vsub.s32 0, %v5760
    %v5762 = vadd.s32 %v5757, 1
    %vm5763 = vcmp.gt.s32.totalorder %v5762, 0
    %v5764 = vsel %vm5763, %v5762, 0
    %v5765 = vshrl.u32 %v5764, 5
    %v5766 = vand.u32 %v5764, 31
    %v5767 = vsub.s32 32, %v5766
    %v5768 = vshrl.u32 683565275, %v5767
    %v5769 = vshll.u32 683565275, %v5766
    %v5770 = vshrl.u32 2475754826, %v5767
    %v5771 = vor.u32 %v5769, %v5770
    %v5772 = vshll.u32 2475754826, %v5766
    %v5773 = vshrl.u32 2131351028, %v5767
    %v5774 = vor.u32 %v5772, %v5773
    %v5775 = vshll.u32 2131351028, %v5766
    %v5776 = vshrl.u32 2102212464, %v5767
    %v5777 = vor.u32 %v5775, %v5776
    %v5778 = vshll.u32 2102212464, %v5766
    %v5779 = vshrl.u32 920167782, %v5767
    %v5780 = vor.u32 %v5778, %v5779
    %v5781 = vshll.u32 920167782, %v5766
    %v5782 = vshrl.u32 1326507024, %v5767
    %v5783 = vor.u32 %v5781, %v5782
    %vm5784 = vcmp.lt.s32.totalorder %v5765, 1
    %vm5785 = vcmp.lt.s32.totalorder %v5765, 2
    %vm5786 = vcmp.lt.s32.totalorder %v5765, 3
    %vm5787 = vcmp.lt.s32.totalorder %v5765, 4
    %v5788 = vsel %vm5784, %v5768, %v5771
    %v5789 = vsel %vm5787, %v5777, 2102212464
    %v5790 = vsel %vm5786, %v5774, %v5789
    %v5791 = vsel %vm5785, %v5788, %v5790
    %v5792 = vsel %vm5784, %v5771, %v5774
    %v5793 = vsel %vm5787, %v5780, 920167782
    %v5794 = vsel %vm5786, %v5777, %v5793
    %v5795 = vsel %vm5785, %v5792, %v5794
    %v5796 = vsel %vm5784, %v5774, %v5777
    %v5797 = vsel %vm5787, %v5783, 1326507024
    %v5798 = vsel %vm5786, %v5780, %v5797
    %v5799 = vsel %vm5785, %v5796, %v5798
    %v5800 = vshll.u32 %v5760, 8
    %v5801 = vand.u32 %v5800, 65535
    %v5802 = vshrl.u32 %v5800, 16
    %v5803 = vand.u32 %v5799, 65535
    %v5804 = vshrl.u32 %v5799, 16
    %v5805 = vmul.u32 %v5801, %v5803
    %v5806 = vmul.u32 %v5801, %v5804
    %v5807 = vmul.u32 %v5802, %v5803
    %v5808 = vmul.u32 %v5802, %v5804
    %v5809 = vshll.u32 %v5806, 16
    %v5810 = vshrl.u32 %v5806, 16
    %v5811 = vshll.u32 %v5807, 16
    %v5812 = vshrl.u32 %v5807, 16
    %vm5813 = vc.u32 %v5805, %v5809
    %v5814 = vsel %vm5813, 1, 0
    %v5815 = vadd.s32 %v5805, %v5809
    %v5816 = vadd.s32 %v5808, %v5814
    %vm5817 = vc.u32 %v5815, %v5811
    %v5818 = vsel %vm5817, 1, 0
    %v5819 = vadd.s32 %v5815, %v5811
    %v5820 = vadd.s32 %v5816, %v5818
    %v5821 = vadd.s32 %v5820, %v5810
    %v5822 = vadd.s32 %v5821, %v5812
    %v5823 = vand.u32 %v5800, 65535
    %v5824 = vshrl.u32 %v5800, 16
    %v5825 = vand.u32 %v5795, 65535
    %v5826 = vshrl.u32 %v5795, 16
    %v5827 = vmul.u32 %v5823, %v5825
    %v5828 = vmul.u32 %v5823, %v5826
    %v5829 = vmul.u32 %v5824, %v5825
    %v5830 = vmul.u32 %v5824, %v5826
    %v5831 = vshll.u32 %v5828, 16
    %v5832 = vshrl.u32 %v5828, 16
    %v5833 = vshll.u32 %v5829, 16
    %v5834 = vshrl.u32 %v5829, 16
    %vm5835 = vc.u32 %v5827, %v5831
    %v5836 = vsel %vm5835, 1, 0
    %v5837 = vadd.s32 %v5827, %v5831
    %v5838 = vadd.s32 %v5830, %v5836
    %vm5839 = vc.u32 %v5837, %v5833
    %v5840 = vsel %vm5839, 1, 0
    %v5841 = vadd.s32 %v5837, %v5833
    %v5842 = vadd.s32 %v5838, %v5840
    %v5843 = vadd.s32 %v5842, %v5832
    %v5844 = vadd.s32 %v5843, %v5834
    %v5845 = vmul.u32 %v5800, %v5791
    %v5846 = vadd.s32 %v5822, %v5841
    %vm5847 = vc.u32 %v5822, %v5841
    %v5848 = vadd.s32 %v5844, 1
    %v5849 = vsel %vm5847, %v5848, %v5844
    %v5850 = vadd.s32 %v5845, %v5849
    %v5851 = vadd.s32 %v5850, 536870912
    %v5852 = vshrl.u32 %v5851, 30
    %v5853 = vshll.u32 %v5852, 30
    %v5854 = vsub.s32 %v5850, %v5853
    %vm5855 = vcmp.lt.s32.totalorder %v5854, 0
    %v5856 = vsub.s32 0, %v5854
    %v5857 = vsel %vm5855, %v5856, %v5854
    %v5858 = vclz %v5857
    %v5859 = vsub.s32 %v5858, 2
    %vm5860 = vcmp.gt.s32.totalorder 0, %v5859
    %v5861 = vsel %vm5860, 0, %v5859
    %v5862 = vsub.s32 32, %v5861
    %v5863 = vshll.u32 %v5854, %v5861
    %v5864 = vshrl.u32 %v5846, %v5862
    %v5865 = vor.u32 %v5863, %v5864
    %v5866 = vsub.s32 4294967266, %v5861
    %v5867 = vadd.s32 %v5866, 127
    %v5868 = vshll.u32 %v5867, 23
    %v5869 = vor.u32 4788187, %v5868
    %v5870 = vand.u32 2147483647, %v5869
    %v5872 = vcvt.s32.f32 %v5865
    %v5873 = vmul.f32 %v5872, %v5870
    %v5874 = vxor.u32 %v5873, 2147483648
    %v5875 = vsel %vm5754, %v5874, %v5873
    %v5876 = vsub.s32 4, %v5852
    %v5877 = vsel %vm5754, %v5876, %v5852
    %v5878 = vsel %vm5753, %v314, %v5875
    %v5879 = vsel %vm5753, 0, %v5877
    %v5880 = vmul.f32 %v5878, %v5878
    %v5881 = vmul.f32 %v5880, -0.001358992
    %v5882 = vadd.f32 %v5881, 0.041655596
    %v5883 = vmul.f32 %v5880, %v5882
    %v5884 = vadd.f32 %v5883, -0.4999988
    %v5885 = vmul.f32 %v5880, %v5884
    %v5886 = vadd.f32 1.0, %v5885
    %v5887 = vmul.f32 %v5878, %v5878
    %v5888 = vmul.f32 %v5887, -0.00019511016
    %v5889 = vadd.f32 %v5888, 0.008332121
    %v5890 = vmul.f32 %v5887, %v5889
    %v5891 = vadd.f32 %v5890, -0.16666654
    %v5892 = vmul.f32 %v5887, %v5891
    %v5893 = vadd.f32 %v5892, 1.0
    %v5894 = vmul.f32 %v5893, %v5878
    %vm5895 = vweird.f32 %v314
    %v5896 = vadd.s32 %v5879, 3
    %v5897 = vand.u32 %v5896, 3
    %vm5898 = vcmp.lt.s32.totalorder %v5897, 2
    %vm5899 = vcmp.eq.s32.totalorder %v5897, 0
    %v5900 = vxor.u32 %v5894, 2147483648
    %v5901 = vsel %vm5899, %v5886, %v5900
    %vm5902 = vcmp.eq.s32.totalorder %v5897, 2
    %v5903 = vxor.u32 %v5886, 2147483648
    %v5904 = vsel %vm5902, %v5903, %v5894
    %v5905 = vsel %vm5898, %v5901, %v5904
    %v5906 = vsel %vm5895, nan, %v5905
    %v5907 = vand.u32 2147483647, %v315
    %vm5908 = vcmp.le.f32.partialorder %v5907, 0.7853982
    %vm5909 = vcmp.lt.s32.totalorder %v315, 0
    %v5910 = vand.u32 %v315, 2139095040
    %v5911 = vshrl.u32 %v5910, 23
    %v5912 = vsub.s32 %v5911, 127
    %v5913 = vand.u32 2147483647, %v315
    %v5914 = vand.u32 %v5913, 8388607
    %v5915 = vor.u32 %v5914, 8388608
    %v5916 = vsub.s32 0, %v5915
    %v5917 = vadd.s32 %v5912, 1
    %vm5918 = vcmp.gt.s32.totalorder %v5917, 0
    %v5919 = vsel %vm5918, %v5917, 0
    %v5920 = vshrl.u32 %v5919, 5
    %v5921 = vand.u32 %v5919, 31
    %v5922 = vsub.s32 32, %v5921
    %v5923 = vshrl.u32 683565275, %v5922
    %v5924 = vshll.u32 683565275, %v5921
    %v5925 = vshrl.u32 2475754826, %v5922
    %v5926 = vor.u32 %v5924, %v5925
    %v5927 = vshll.u32 2475754826, %v5921
    %v5928 = vshrl.u32 2131351028, %v5922
    %v5929 = vor.u32 %v5927, %v5928
    %v5930 = vshll.u32 2131351028, %v5921
    %v5931 = vshrl.u32 2102212464, %v5922
    %v5932 = vor.u32 %v5930, %v5931
    %v5933 = vshll.u32 2102212464, %v5921
    %v5934 = vshrl.u32 920167782, %v5922
    %v5935 = vor.u32 %v5933, %v5934
    %v5936 = vshll.u32 920167782, %v5921
    %v5937 = vshrl.u32 1326507024, %v5922
    %v5938 = vor.u32 %v5936, %v5937
    %vm5939 = vcmp.lt.s32.totalorder %v5920, 1
    %vm5940 = vcmp.lt.s32.totalorder %v5920, 2
    %vm5941 = vcmp.lt.s32.totalorder %v5920, 3
    %vm5942 = vcmp.lt.s32.totalorder %v5920, 4
    %v5943 = vsel %vm5939, %v5923, %v5926
    %v5944 = vsel %vm5942, %v5932, 2102212464
    %v5945 = vsel %vm5941, %v5929, %v5944
    %v5946 = vsel %vm5940, %v5943, %v5945
    %v5947 = vsel %vm5939, %v5926, %v5929
    %v5948 = vsel %vm5942, %v5935, 920167782
    %v5949 = vsel %vm5941, %v5932, %v5948
    %v5950 = vsel %vm5940, %v5947, %v5949
    %v5951 = vsel %vm5939, %v5929, %v5932
    %v5952 = vsel %vm5942, %v5938, 1326507024
    %v5953 = vsel %vm5941, %v5935, %v5952
    %v5954 = vsel %vm5940, %v5951, %v5953
    %v5955 = vshll.u32 %v5915, 8
    %v5956 = vand.u32 %v5955, 65535
    %v5957 = vshrl.u32 %v5955, 16
    %v5958 = vand.u32 %v5954, 65535
    %v5959 = vshrl.u32 %v5954, 16
    %v5960 = vmul.u32 %v5956, %v5958
    %v5961 = vmul.u32 %v5956, %v5959
    %v5962 = vmul.u32 %v5957, %v5958
    %v5963 = vmul.u32 %v5957, %v5959
    %v5964 = vshll.u32 %v5961, 16
    %v5965 = vshrl.u32 %v5961, 16
    %v5966 = vshll.u32 %v5962, 16
    %v5967 = vshrl.u32 %v5962, 16
    %vm5968 = vc.u32 %v5960, %v5964
    %v5969 = vsel %vm5968, 1, 0
    %v5970 = vadd.s32 %v5960, %v5964
    %v5971 = vadd.s32 %v5963, %v5969
    %vm5972 = vc.u32 %v5970, %v5966
    %v5973 = vsel %vm5972, 1, 0
    %v5974 = vadd.s32 %v5970, %v5966
    %v5975 = vadd.s32 %v5971, %v5973
    %v5976 = vadd.s32 %v5975, %v5965
    %v5977 = vadd.s32 %v5976, %v5967
    %v5978 = vand.u32 %v5955, 65535
    %v5979 = vshrl.u32 %v5955, 16
    %v5980 = vand.u32 %v5950, 65535
    %v5981 = vshrl.u32 %v5950, 16
    %v5982 = vmul.u32 %v5978, %v5980
    %v5983 = vmul.u32 %v5978, %v5981
    %v5984 = vmul.u32 %v5979, %v5980
    %v5985 = vmul.u32 %v5979, %v5981
    %v5986 = vshll.u32 %v5983, 16
    %v5987 = vshrl.u32 %v5983, 16
    %v5988 = vshll.u32 %v5984, 16
    %v5989 = vshrl.u32 %v5984, 16
    %vm5990 = vc.u32 %v5982, %v5986
    %v5991 = vsel %vm5990, 1, 0
    %v5992 = vadd.s32 %v5982, %v5986
    %v5993 = vadd.s32 %v5985, %v5991
    %vm5994 = vc.u32 %v5992, %v5988
    %v5995 = vsel %vm5994, 1, 0
    %v5996 = vadd.s32 %v5992, %v5988
    %v5997 = vadd.s32 %v5993, %v5995
    %v5998 = vadd.s32 %v5997, %v5987
    %v5999 = vadd.s32 %v5998, %v5989
    %v6000 = vmul.u32 %v5955, %v5946
    %v6001 = vadd.s32 %v5977, %v5996
    %vm6002 = vc.u32 %v5977, %v5996
    %v6003 = vadd.s32 %v5999, 1
    %v6004 = vsel %vm6002, %v6003, %v5999
    %v6005 = vadd.s32 %v6000, %v6004
    %v6006 = vadd.s32 %v6005, 536870912
    %v6007 = vshrl.u32 %v6006, 30
    %v6008 = vshll.u32 %v6007, 30
    %v6009 = vsub.s32 %v6005, %v6008
    %vm6010 = vcmp.lt.s32.totalorder %v6009, 0
    %v6011 = vsub.s32 0, %v6009
    %v6012 = vsel %vm6010, %v6011, %v6009
    %v6013 = vclz %v6012
    %v6014 = vsub.s32 %v6013, 2
    %vm6015 = vcmp.gt.s32.totalorder 0, %v6014
    %v6016 = vsel %vm6015, 0, %v6014
    %v6017 = vsub.s32 32, %v6016
    %v6018 = vshll.u32 %v6009, %v6016
    %v6019 = vshrl.u32 %v6001, %v6017
    %v6020 = vor.u32 %v6018, %v6019
    %v6021 = vsub.s32 4294967266, %v6016
    %v6022 = vadd.s32 %v6021, 127
    %v6023 = vshll.u32 %v6022, 23
    %v6024 = vor.u32 4788187, %v6023
    %v6025 = vand.u32 2147483647, %v6024
    %v6027 = vcvt.s32.f32 %v6020
    %v6028 = vmul.f32 %v6027, %v6025
    %v6029 = vxor.u32 %v6028, 2147483648
    %v6030 = vsel %vm5909, %v6029, %v6028
    %v6031 = vsub.s32 4, %v6007
    %v6032 = vsel %vm5909, %v6031, %v6007
    %v6033 = vsel %vm5908, %v315, %v6030
    %v6034 = vsel %vm5908, 0, %v6032
    %v6035 = vmul.f32 %v6033, %v6033
    %v6036 = vmul.f32 %v6035, -0.001358992
    %v6037 = vadd.f32 %v6036, 0.041655596
    %v6038 = vmul.f32 %v6035, %v6037
    %v6039 = vadd.f32 %v6038, -0.4999988
    %v6040 = vmul.f32 %v6035, %v6039
    %v6041 = vadd.f32 1.0, %v6040
    %v6042 = vmul.f32 %v6033, %v6033
    %v6043 = vmul.f32 %v6042, -0.00019511016
    %v6044 = vadd.f32 %v6043, 0.008332121
    %v6045 = vmul.f32 %v6042, %v6044
    %v6046 = vadd.f32 %v6045, -0.16666654
    %v6047 = vmul.f32 %v6042, %v6046
    %v6048 = vadd.f32 %v6047, 1.0
    %v6049 = vmul.f32 %v6048, %v6033
    %vm6050 = vweird.f32 %v315
    %v6051 = vadd.s32 %v6034, 3
    %v6052 = vand.u32 %v6051, 3
    %vm6053 = vcmp.lt.s32.totalorder %v6052, 2
    %vm6054 = vcmp.eq.s32.totalorder %v6052, 0
    %v6055 = vxor.u32 %v6049, 2147483648
    %v6056 = vsel %vm6054, %v6041, %v6055
    %vm6057 = vcmp.eq.s32.totalorder %v6052, 2
    %v6058 = vxor.u32 %v6041, 2147483648
    %v6059 = vsel %vm6057, %v6058, %v6049
    %v6060 = vsel %vm6053, %v6056, %v6059
    %v6061 = vsel %vm6050, nan, %v6060
    %v6062 = vand.u32 2147483647, %v316
    %vm6063 = vcmp.le.f32.partialorder %v6062, 0.7853982
    %vm6064 = vcmp.lt.s32.totalorder %v316, 0
    %v6065 = vand.u32 %v316, 2139095040
    %v6066 = vshrl.u32 %v6065, 23
    %v6067 = vsub.s32 %v6066, 127
    %v6068 = vand.u32 2147483647, %v316
    %v6069 = vand.u32 %v6068, 8388607
    %v6070 = vor.u32 %v6069, 8388608
    %v6071 = vsub.s32 0, %v6070
    %v6072 = vadd.s32 %v6067, 1
    %vm6073 = vcmp.gt.s32.totalorder %v6072, 0
    %v6074 = vsel %vm6073, %v6072, 0
    %v6075 = vshrl.u32 %v6074, 5
    %v6076 = vand.u32 %v6074, 31
    %v6077 = vsub.s32 32, %v6076
    %v6078 = vshrl.u32 683565275, %v6077
    %v6079 = vshll.u32 683565275, %v6076
    %v6080 = vshrl.u32 2475754826, %v6077
    %v6081 = vor.u32 %v6079, %v6080
    %v6082 = vshll.u32 2475754826, %v6076
    %v6083 = vshrl.u32 2131351028, %v6077
    %v6084 = vor.u32 %v6082, %v6083
    %v6085 = vshll.u32 2131351028, %v6076
    %v6086 = vshrl.u32 2102212464, %v6077
    %v6087 = vor.u32 %v6085, %v6086
    %v6088 = vshll.u32 2102212464, %v6076
    %v6089 = vshrl.u32 920167782, %v6077
    %v6090 = vor.u32 %v6088, %v6089
    %v6091 = vshll.u32 920167782, %v6076
    %v6092 = vshrl.u32 1326507024, %v6077
    %v6093 = vor.u32 %v6091, %v6092
    %vm6094 = vcmp.lt.s32.totalorder %v6075, 1
    %vm6095 = vcmp.lt.s32.totalorder %v6075, 2
    %vm6096 = vcmp.lt.s32.totalorder %v6075, 3
    %vm6097 = vcmp.lt.s32.totalorder %v6075, 4
    %v6098 = vsel %vm6094, %v6078, %v6081
    %v6099 = vsel %vm6097, %v6087, 2102212464
    %v6100 = vsel %vm6096, %v6084, %v6099
    %v6101 = vsel %vm6095, %v6098, %v6100
    %v6102 = vsel %vm6094, %v6081, %v6084
    %v6103 = vsel %vm6097, %v6090, 920167782
    %v6104 = vsel %vm6096, %v6087, %v6103
    %v6105 = vsel %vm6095, %v6102, %v6104
    %v6106 = vsel %vm6094, %v6084, %v6087
    %v6107 = vsel %vm6097, %v6093, 1326507024
    %v6108 = vsel %vm6096, %v6090, %v6107
    %v6109 = vsel %vm6095, %v6106, %v6108
    %v6110 = vshll.u32 %v6070, 8
    %v6111 = vand.u32 %v6110, 65535
    %v6112 = vshrl.u32 %v6110, 16
    %v6113 = vand.u32 %v6109, 65535
    %v6114 = vshrl.u32 %v6109, 16
    %v6115 = vmul.u32 %v6111, %v6113
    %v6116 = vmul.u32 %v6111, %v6114
    %v6117 = vmul.u32 %v6112, %v6113
    %v6118 = vmul.u32 %v6112, %v6114
    %v6119 = vshll.u32 %v6116, 16
    %v6120 = vshrl.u32 %v6116, 16
    %v6121 = vshll.u32 %v6117, 16
    %v6122 = vshrl.u32 %v6117, 16
    %vm6123 = vc.u32 %v6115, %v6119
    %v6124 = vsel %vm6123, 1, 0
    %v6125 = vadd.s32 %v6115, %v6119
    %v6126 = vadd.s32 %v6118, %v6124
    %vm6127 = vc.u32 %v6125, %v6121
    %v6128 = vsel %vm6127, 1, 0
    %v6129 = vadd.s32 %v6125, %v6121
    %v6130 = vadd.s32 %v6126, %v6128
    %v6131 = vadd.s32 %v6130, %v6120
    %v6132 = vadd.s32 %v6131, %v6122
    %v6133 = vand.u32 %v6110, 65535
    %v6134 = vshrl.u32 %v6110, 16
    %v6135 = vand.u32 %v6105, 65535
    %v6136 = vshrl.u32 %v6105, 16
    %v6137 = vmul.u32 %v6133, %v6135
    %v6138 = vmul.u32 %v6133, %v6136
    %v6139 = vmul.u32 %v6134, %v6135
    %v6140 = vmul.u32 %v6134, %v6136
    %v6141 = vshll.u32 %v6138, 16
    %v6142 = vshrl.u32 %v6138, 16
    %v6143 = vshll.u32 %v6139, 16
    %v6144 = vshrl.u32 %v6139, 16
    %vm6145 = vc.u32 %v6137, %v6141
    %v6146 = vsel %vm6145, 1, 0
    %v6147 = vadd.s32 %v6137, %v6141
    %v6148 = vadd.s32 %v6140, %v6146
    %vm6149 = vc.u32 %v6147, %v6143
    %v6150 = vsel %vm6149, 1, 0
    %v6151 = vadd.s32 %v6147, %v6143
    %v6152 = vadd.s32 %v6148, %v6150
    %v6153 = vadd.s32 %v6152, %v6142
    %v6154 = vadd.s32 %v6153, %v6144
    %v6155 = vmul.u32 %v6110, %v6101
    %v6156 = vadd.s32 %v6132, %v6151
    %vm6157 = vc.u32 %v6132, %v6151
    %v6158 = vadd.s32 %v6154, 1
    %v6159 = vsel %vm6157, %v6158, %v6154
    %v6160 = vadd.s32 %v6155, %v6159
    %v6161 = vadd.s32 %v6160, 536870912
    %v6162 = vshrl.u32 %v6161, 30
    %v6163 = vshll.u32 %v6162, 30
    %v6164 = vsub.s32 %v6160, %v6163
    %vm6165 = vcmp.lt.s32.totalorder %v6164, 0
    %v6166 = vsub.s32 0, %v6164
    %v6167 = vsel %vm6165, %v6166, %v6164
    %v6168 = vclz %v6167
    %v6169 = vsub.s32 %v6168, 2
    %vm6170 = vcmp.gt.s32.totalorder 0, %v6169
    %v6171 = vsel %vm6170, 0, %v6169
    %v6172 = vsub.s32 32, %v6171
    %v6173 = vshll.u32 %v6164, %v6171
    %v6174 = vshrl.u32 %v6156, %v6172
    %v6175 = vor.u32 %v6173, %v6174
    %v6176 = vsub.s32 4294967266, %v6171
    %v6177 = vadd.s32 %v6176, 127
    %v6178 = vshll.u32 %v6177, 23
    %v6179 = vor.u32 4788187, %v6178
    %v6180 = vand.u32 2147483647, %v6179
    %v6182 = vcvt.s32.f32 %v6175
    %v6183 = vmul.f32 %v6182, %v6180
    %v6184 = vxor.u32 %v6183, 2147483648
    %v6185 = vsel %vm6064, %v6184, %v6183
    %v6186 = vsub.s32 4, %v6162
    %v6187 = vsel %vm6064, %v6186, %v6162
    %v6188 = vsel %vm6063, %v316, %v6185
    %v6189 = vsel %vm6063, 0, %v6187
    %v6190 = vmul.f32 %v6188, %v6188
    %v6191 = vmul.f32 %v6190, -0.001358992
    %v6192 = vadd.f32 %v6191, 0.041655596
    %v6193 = vmul.f32 %v6190, %v6192
    %v6194 = vadd.f32 %v6193, -0.4999988
    %v6195 = vmul.f32 %v6190, %v6194
    %v6196 = vadd.f32 1.0, %v6195
    %v6197 = vmul.f32 %v6188, %v6188
    %v6198 = vmul.f32 %v6197, -0.00019511016
    %v6199 = vadd.f32 %v6198, 0.008332121
    %v6200 = vmul.f32 %v6197, %v6199
    %v6201 = vadd.f32 %v6200, -0.16666654
    %v6202 = vmul.f32 %v6197, %v6201
    %v6203 = vadd.f32 %v6202, 1.0
    %v6204 = vmul.f32 %v6203, %v6188
    %vm6205 = vweird.f32 %v316
    %v6206 = vadd.s32 %v6189, 3
    %v6207 = vand.u32 %v6206, 3
    %vm6208 = vcmp.lt.s32.totalorder %v6207, 2
    %vm6209 = vcmp.eq.s32.totalorder %v6207, 0
    %v6210 = vxor.u32 %v6204, 2147483648
    %v6211 = vsel %vm6209, %v6196, %v6210
    %vm6212 = vcmp.eq.s32.totalorder %v6207, 2
    %v6213 = vxor.u32 %v6196, 2147483648
    %v6214 = vsel %vm6212, %v6213, %v6204
    %v6215 = vsel %vm6208, %v6211, %v6214
    %v6216 = vsel %vm6205, nan, %v6215
    %v6217 = vand.u32 2147483647, %v317
    %vm6218 = vcmp.le.f32.partialorder %v6217, 0.7853982
    %vm6219 = vcmp.lt.s32.totalorder %v317, 0
    %v6220 = vand.u32 %v317, 2139095040
    %v6221 = vshrl.u32 %v6220, 23
    %v6222 = vsub.s32 %v6221, 127
    %v6223 = vand.u32 2147483647, %v317
    %v6224 = vand.u32 %v6223, 8388607
    %v6225 = vor.u32 %v6224, 8388608
    %v6226 = vsub.s32 0, %v6225
    %v6227 = vadd.s32 %v6222, 1
    %vm6228 = vcmp.gt.s32.totalorder %v6227, 0
    %v6229 = vsel %vm6228, %v6227, 0
    %v6230 = vshrl.u32 %v6229, 5
    %v6231 = vand.u32 %v6229, 31
    %v6232 = vsub.s32 32, %v6231
    %v6233 = vshrl.u32 683565275, %v6232
    %v6234 = vshll.u32 683565275, %v6231
    %v6235 = vshrl.u32 2475754826, %v6232
    %v6236 = vor.u32 %v6234, %v6235
    %v6237 = vshll.u32 2475754826, %v6231
    %v6238 = vshrl.u32 2131351028, %v6232
    %v6239 = vor.u32 %v6237, %v6238
    %v6240 = vshll.u32 2131351028, %v6231
    %v6241 = vshrl.u32 2102212464, %v6232
    %v6242 = vor.u32 %v6240, %v6241
    %v6243 = vshll.u32 2102212464, %v6231
    %v6244 = vshrl.u32 920167782, %v6232
    %v6245 = vor.u32 %v6243, %v6244
    %v6246 = vshll.u32 920167782, %v6231
    %v6247 = vshrl.u32 1326507024, %v6232
    %v6248 = vor.u32 %v6246, %v6247
    %vm6249 = vcmp.lt.s32.totalorder %v6230, 1
    %vm6250 = vcmp.lt.s32.totalorder %v6230, 2
    %vm6251 = vcmp.lt.s32.totalorder %v6230, 3
    %vm6252 = vcmp.lt.s32.totalorder %v6230, 4
    %v6253 = vsel %vm6249, %v6233, %v6236
    %v6254 = vsel %vm6252, %v6242, 2102212464
    %v6255 = vsel %vm6251, %v6239, %v6254
    %v6256 = vsel %vm6250, %v6253, %v6255
    %v6257 = vsel %vm6249, %v6236, %v6239
    %v6258 = vsel %vm6252, %v6245, 920167782
    %v6259 = vsel %vm6251, %v6242, %v6258
    %v6260 = vsel %vm6250, %v6257, %v6259
    %v6261 = vsel %vm6249, %v6239, %v6242
    %v6262 = vsel %vm6252, %v6248, 1326507024
    %v6263 = vsel %vm6251, %v6245, %v6262
    %v6264 = vsel %vm6250, %v6261, %v6263
    %v6265 = vshll.u32 %v6225, 8
    %v6266 = vand.u32 %v6265, 65535
    %v6267 = vshrl.u32 %v6265, 16
    %v6268 = vand.u32 %v6264, 65535
    %v6269 = vshrl.u32 %v6264, 16
    %v6270 = vmul.u32 %v6266, %v6268
    %v6271 = vmul.u32 %v6266, %v6269
    %v6272 = vmul.u32 %v6267, %v6268
    %v6273 = vmul.u32 %v6267, %v6269
    %v6274 = vshll.u32 %v6271, 16
    %v6275 = vshrl.u32 %v6271, 16
    %v6276 = vshll.u32 %v6272, 16
    %v6277 = vshrl.u32 %v6272, 16
    %vm6278 = vc.u32 %v6270, %v6274
    %v6279 = vsel %vm6278, 1, 0
    %v6280 = vadd.s32 %v6270, %v6274
    %v6281 = vadd.s32 %v6273, %v6279
    %vm6282 = vc.u32 %v6280, %v6276
    %v6283 = vsel %vm6282, 1, 0
    %v6284 = vadd.s32 %v6280, %v6276
    %v6285 = vadd.s32 %v6281, %v6283
    %v6286 = vadd.s32 %v6285, %v6275
    %v6287 = vadd.s32 %v6286, %v6277
    %v6288 = vand.u32 %v6265, 65535
    %v6289 = vshrl.u32 %v6265, 16
    %v6290 = vand.u32 %v6260, 65535
    %v6291 = vshrl.u32 %v6260, 16
    %v6292 = vmul.u32 %v6288, %v6290
    %v6293 = vmul.u32 %v6288, %v6291
    %v6294 = vmul.u32 %v6289, %v6290
    %v6295 = vmul.u32 %v6289, %v6291
    %v6296 = vshll.u32 %v6293, 16
    %v6297 = vshrl.u32 %v6293, 16
    %v6298 = vshll.u32 %v6294, 16
    %v6299 = vshrl.u32 %v6294, 16
    %vm6300 = vc.u32 %v6292, %v6296
    %v6301 = vsel %vm6300, 1, 0
    %v6302 = vadd.s32 %v6292, %v6296
    %v6303 = vadd.s32 %v6295, %v6301
    %vm6304 = vc.u32 %v6302, %v6298
    %v6305 = vsel %vm6304, 1, 0
    %v6306 = vadd.s32 %v6302, %v6298
    %v6307 = vadd.s32 %v6303, %v6305
    %v6308 = vadd.s32 %v6307, %v6297
    %v6309 = vadd.s32 %v6308, %v6299
    %v6310 = vmul.u32 %v6265, %v6256
    %v6311 = vadd.s32 %v6287, %v6306
    %vm6312 = vc.u32 %v6287, %v6306
    %v6313 = vadd.s32 %v6309, 1
    %v6314 = vsel %vm6312, %v6313, %v6309
    %v6315 = vadd.s32 %v6310, %v6314
    %v6316 = vadd.s32 %v6315, 536870912
    %v6317 = vshrl.u32 %v6316, 30
    %v6318 = vshll.u32 %v6317, 30
    %v6319 = vsub.s32 %v6315, %v6318
    %vm6320 = vcmp.lt.s32.totalorder %v6319, 0
    %v6321 = vsub.s32 0, %v6319
    %v6322 = vsel %vm6320, %v6321, %v6319
    %v6323 = vclz %v6322
    %v6324 = vsub.s32 %v6323, 2
    %vm6325 = vcmp.gt.s32.totalorder 0, %v6324
    %v6326 = vsel %vm6325, 0, %v6324
    %v6327 = vsub.s32 32, %v6326
    %v6328 = vshll.u32 %v6319, %v6326
    %v6329 = vshrl.u32 %v6311, %v6327
    %v6330 = vor.u32 %v6328, %v6329
    %v6331 = vsub.s32 4294967266, %v6326
    %v6332 = vadd.s32 %v6331, 127
    %v6333 = vshll.u32 %v6332, 23
    %v6334 = vor.u32 4788187, %v6333
    %v6335 = vand.u32 2147483647, %v6334
    %v6337 = vcvt.s32.f32 %v6330
    %v6338 = vmul.f32 %v6337, %v6335
    %v6339 = vxor.u32 %v6338, 2147483648
    %v6340 = vsel %vm6219, %v6339, %v6338
    %v6341 = vsub.s32 4, %v6317
    %v6342 = vsel %vm6219, %v6341, %v6317
    %v6343 = vsel %vm6218, %v317, %v6340
    %v6344 = vsel %vm6218, 0, %v6342
    %v6345 = vmul.f32 %v6343, %v6343
    %v6346 = vmul.f32 %v6345, -0.001358992
    %v6347 = vadd.f32 %v6346, 0.041655596
    %v6348 = vmul.f32 %v6345, %v6347
    %v6349 = vadd.f32 %v6348, -0.4999988
    %v6350 = vmul.f32 %v6345, %v6349
    %v6351 = vadd.f32 1.0, %v6350
    %v6352 = vmul.f32 %v6343, %v6343
    %v6353 = vmul.f32 %v6352, -0.00019511016
    %v6354 = vadd.f32 %v6353, 0.008332121
    %v6355 = vmul.f32 %v6352, %v6354
    %v6356 = vadd.f32 %v6355, -0.16666654
    %v6357 = vmul.f32 %v6352, %v6356
    %v6358 = vadd.f32 %v6357, 1.0
    %v6359 = vmul.f32 %v6358, %v6343
    %vm6360 = vweird.f32 %v317
    %v6361 = vadd.s32 %v6344, 3
    %v6362 = vand.u32 %v6361, 3
    %vm6363 = vcmp.lt.s32.totalorder %v6362, 2
    %vm6364 = vcmp.eq.s32.totalorder %v6362, 0
    %v6365 = vxor.u32 %v6359, 2147483648
    %v6366 = vsel %vm6364, %v6351, %v6365
    %vm6367 = vcmp.eq.s32.totalorder %v6362, 2
    %v6368 = vxor.u32 %v6351, 2147483648
    %v6369 = vsel %vm6367, %v6368, %v6359
    %v6370 = vsel %vm6363, %v6366, %v6369
    %v6371 = vsel %vm6360, nan, %v6370
    %v6372 = vand.u32 2147483647, %v318
    %vm6373 = vcmp.le.f32.partialorder %v6372, 0.7853982
    %vm6374 = vcmp.lt.s32.totalorder %v318, 0
    %v6375 = vand.u32 %v318, 2139095040
    %v6376 = vshrl.u32 %v6375, 23
    %v6377 = vsub.s32 %v6376, 127
    %v6378 = vand.u32 2147483647, %v318
    %v6379 = vand.u32 %v6378, 8388607
    %v6380 = vor.u32 %v6379, 8388608
    %v6381 = vsub.s32 0, %v6380
    %v6382 = vadd.s32 %v6377, 1
    %vm6383 = vcmp.gt.s32.totalorder %v6382, 0
    %v6384 = vsel %vm6383, %v6382, 0
    %v6385 = vshrl.u32 %v6384, 5
    %v6386 = vand.u32 %v6384, 31
    %v6387 = vsub.s32 32, %v6386
    %v6388 = vshrl.u32 683565275, %v6387
    %v6389 = vshll.u32 683565275, %v6386
    %v6390 = vshrl.u32 2475754826, %v6387
    %v6391 = vor.u32 %v6389, %v6390
    %v6392 = vshll.u32 2475754826, %v6386
    %v6393 = vshrl.u32 2131351028, %v6387
    %v6394 = vor.u32 %v6392, %v6393
    %v6395 = vshll.u32 2131351028, %v6386
    %v6396 = vshrl.u32 2102212464, %v6387
    %v6397 = vor.u32 %v6395, %v6396
    %v6398 = vshll.u32 2102212464, %v6386
    %v6399 = vshrl.u32 920167782, %v6387
    %v6400 = vor.u32 %v6398, %v6399
    %v6401 = vshll.u32 920167782, %v6386
    %v6402 = vshrl.u32 1326507024, %v6387
    %v6403 = vor.u32 %v6401, %v6402
    %vm6404 = vcmp.lt.s32.totalorder %v6385, 1
    %vm6405 = vcmp.lt.s32.totalorder %v6385, 2
    %vm6406 = vcmp.lt.s32.totalorder %v6385, 3
    %vm6407 = vcmp.lt.s32.totalorder %v6385, 4
    %v6408 = vsel %vm6404, %v6388, %v6391
    %v6409 = vsel %vm6407, %v6397, 2102212464
    %v6410 = vsel %vm6406, %v6394, %v6409
    %v6411 = vsel %vm6405, %v6408, %v6410
    %v6412 = vsel %vm6404, %v6391, %v6394
    %v6413 = vsel %vm6407, %v6400, 920167782
    %v6414 = vsel %vm6406, %v6397, %v6413
    %v6415 = vsel %vm6405, %v6412, %v6414
    %v6416 = vsel %vm6404, %v6394, %v6397
    %v6417 = vsel %vm6407, %v6403, 1326507024
    %v6418 = vsel %vm6406, %v6400, %v6417
    %v6419 = vsel %vm6405, %v6416, %v6418
    %v6420 = vshll.u32 %v6380, 8
    %v6421 = vand.u32 %v6420, 65535
    %v6422 = vshrl.u32 %v6420, 16
    %v6423 = vand.u32 %v6419, 65535
    %v6424 = vshrl.u32 %v6419, 16
    %v6425 = vmul.u32 %v6421, %v6423
    %v6426 = vmul.u32 %v6421, %v6424
    %v6427 = vmul.u32 %v6422, %v6423
    %v6428 = vmul.u32 %v6422, %v6424
    %v6429 = vshll.u32 %v6426, 16
    %v6430 = vshrl.u32 %v6426, 16
    %v6431 = vshll.u32 %v6427, 16
    %v6432 = vshrl.u32 %v6427, 16
    %vm6433 = vc.u32 %v6425, %v6429
    %v6434 = vsel %vm6433, 1, 0
    %v6435 = vadd.s32 %v6425, %v6429
    %v6436 = vadd.s32 %v6428, %v6434
    %vm6437 = vc.u32 %v6435, %v6431
    %v6438 = vsel %vm6437, 1, 0
    %v6439 = vadd.s32 %v6435, %v6431
    %v6440 = vadd.s32 %v6436, %v6438
    %v6441 = vadd.s32 %v6440, %v6430
    %v6442 = vadd.s32 %v6441, %v6432
    %v6443 = vand.u32 %v6420, 65535
    %v6444 = vshrl.u32 %v6420, 16
    %v6445 = vand.u32 %v6415, 65535
    %v6446 = vshrl.u32 %v6415, 16
    %v6447 = vmul.u32 %v6443, %v6445
    %v6448 = vmul.u32 %v6443, %v6446
    %v6449 = vmul.u32 %v6444, %v6445
    %v6450 = vmul.u32 %v6444, %v6446
    %v6451 = vshll.u32 %v6448, 16
    %v6452 = vshrl.u32 %v6448, 16
    %v6453 = vshll.u32 %v6449, 16
    %v6454 = vshrl.u32 %v6449, 16
    %vm6455 = vc.u32 %v6447, %v6451
    %v6456 = vsel %vm6455, 1, 0
    %v6457 = vadd.s32 %v6447, %v6451
    %v6458 = vadd.s32 %v6450, %v6456
    %vm6459 = vc.u32 %v6457, %v6453
    %v6460 = vsel %vm6459, 1, 0
    %v6461 = vadd.s32 %v6457, %v6453
    %v6462 = vadd.s32 %v6458, %v6460
    %v6463 = vadd.s32 %v6462, %v6452
    %v6464 = vadd.s32 %v6463, %v6454
    %v6465 = vmul.u32 %v6420, %v6411
    %v6466 = vadd.s32 %v6442, %v6461
    %vm6467 = vc.u32 %v6442, %v6461
    %v6468 = vadd.s32 %v6464, 1
    %v6469 = vsel %vm6467, %v6468, %v6464
    %v6470 = vadd.s32 %v6465, %v6469
    %v6471 = vadd.s32 %v6470, 536870912
    %v6472 = vshrl.u32 %v6471, 30
    %v6473 = vshll.u32 %v6472, 30
    %v6474 = vsub.s32 %v6470, %v6473
    %vm6475 = vcmp.lt.s32.totalorder %v6474, 0
    %v6476 = vsub.s32 0, %v6474
    %v6477 = vsel %vm6475, %v6476, %v6474
    %v6478 = vclz %v6477
    %v6479 = vsub.s32 %v6478, 2
    %vm6480 = vcmp.gt.s32.totalorder 0, %v6479
    %v6481 = vsel %vm6480, 0, %v6479
    %v6482 = vsub.s32 32, %v6481
    %v6483 = vshll.u32 %v6474, %v6481
    %v6484 = vshrl.u32 %v6466, %v6482
    %v6485 = vor.u32 %v6483, %v6484
    %v6486 = vsub.s32 4294967266, %v6481
    %v6487 = vadd.s32 %v6486, 127
    %v6488 = vshll.u32 %v6487, 23
    %v6489 = vor.u32 4788187, %v6488
    %v6490 = vand.u32 2147483647, %v6489
    %v6492 = vcvt.s32.f32 %v6485
    %v6493 = vmul.f32 %v6492, %v6490
    %v6494 = vxor.u32 %v6493, 2147483648
    %v6495 = vsel %vm6374, %v6494, %v6493
    %v6496 = vsub.s32 4, %v6472
    %v6497 = vsel %vm6374, %v6496, %v6472
    %v6498 = vsel %vm6373, %v318, %v6495
    %v6499 = vsel %vm6373, 0, %v6497
    %v6500 = vmul.f32 %v6498, %v6498
    %v6501 = vmul.f32 %v6500, -0.001358992
    %v6502 = vadd.f32 %v6501, 0.041655596
    %v6503 = vmul.f32 %v6500, %v6502
    %v6504 = vadd.f32 %v6503, -0.4999988
    %v6505 = vmul.f32 %v6500, %v6504
    %v6506 = vadd.f32 1.0, %v6505
    %v6507 = vmul.f32 %v6498, %v6498
    %v6508 = vmul.f32 %v6507, -0.00019511016
    %v6509 = vadd.f32 %v6508, 0.008332121
    %v6510 = vmul.f32 %v6507, %v6509
    %v6511 = vadd.f32 %v6510, -0.16666654
    %v6512 = vmul.f32 %v6507, %v6511
    %v6513 = vadd.f32 %v6512, 1.0
    %v6514 = vmul.f32 %v6513, %v6498
    %vm6515 = vweird.f32 %v318
    %v6516 = vadd.s32 %v6499, 3
    %v6517 = vand.u32 %v6516, 3
    %vm6518 = vcmp.lt.s32.totalorder %v6517, 2
    %vm6519 = vcmp.eq.s32.totalorder %v6517, 0
    %v6520 = vxor.u32 %v6514, 2147483648
    %v6521 = vsel %vm6519, %v6506, %v6520
    %vm6522 = vcmp.eq.s32.totalorder %v6517, 2
    %v6523 = vxor.u32 %v6506, 2147483648
    %v6524 = vsel %vm6522, %v6523, %v6514
    %v6525 = vsel %vm6518, %v6521, %v6524
    %v6526 = vsel %vm6515, nan, %v6525
    %v6527 = vand.u32 2147483647, %v319
    %vm6528 = vcmp.le.f32.partialorder %v6527, 0.7853982
    %vm6529 = vcmp.lt.s32.totalorder %v319, 0
    %v6530 = vand.u32 %v319, 2139095040
    %v6531 = vshrl.u32 %v6530, 23
    %v6532 = vsub.s32 %v6531, 127
    %v6533 = vand.u32 2147483647, %v319
    %v6534 = vand.u32 %v6533, 8388607
    %v6535 = vor.u32 %v6534, 8388608
    %v6536 = vsub.s32 0, %v6535
    %v6537 = vadd.s32 %v6532, 1
    %vm6538 = vcmp.gt.s32.totalorder %v6537, 0
    %v6539 = vsel %vm6538, %v6537, 0
    %v6540 = vshrl.u32 %v6539, 5
    %v6541 = vand.u32 %v6539, 31
    %v6542 = vsub.s32 32, %v6541
    %v6543 = vshrl.u32 683565275, %v6542
    %v6544 = vshll.u32 683565275, %v6541
    %v6545 = vshrl.u32 2475754826, %v6542
    %v6546 = vor.u32 %v6544, %v6545
    %v6547 = vshll.u32 2475754826, %v6541
    %v6548 = vshrl.u32 2131351028, %v6542
    %v6549 = vor.u32 %v6547, %v6548
    %v6550 = vshll.u32 2131351028, %v6541
    %v6551 = vshrl.u32 2102212464, %v6542
    %v6552 = vor.u32 %v6550, %v6551
    %v6553 = vshll.u32 2102212464, %v6541
    %v6554 = vshrl.u32 920167782, %v6542
    %v6555 = vor.u32 %v6553, %v6554
    %v6556 = vshll.u32 920167782, %v6541
    %v6557 = vshrl.u32 1326507024, %v6542
    %v6558 = vor.u32 %v6556, %v6557
    %vm6559 = vcmp.lt.s32.totalorder %v6540, 1
    %vm6560 = vcmp.lt.s32.totalorder %v6540, 2
    %vm6561 = vcmp.lt.s32.totalorder %v6540, 3
    %vm6562 = vcmp.lt.s32.totalorder %v6540, 4
    %v6563 = vsel %vm6559, %v6543, %v6546
    %v6564 = vsel %vm6562, %v6552, 2102212464
    %v6565 = vsel %vm6561, %v6549, %v6564
    %v6566 = vsel %vm6560, %v6563, %v6565
    %v6567 = vsel %vm6559, %v6546, %v6549
    %v6568 = vsel %vm6562, %v6555, 920167782
    %v6569 = vsel %vm6561, %v6552, %v6568
    %v6570 = vsel %vm6560, %v6567, %v6569
    %v6571 = vsel %vm6559, %v6549, %v6552
    %v6572 = vsel %vm6562, %v6558, 1326507024
    %v6573 = vsel %vm6561, %v6555, %v6572
    %v6574 = vsel %vm6560, %v6571, %v6573
    %v6575 = vshll.u32 %v6535, 8
    %v6576 = vand.u32 %v6575, 65535
    %v6577 = vshrl.u32 %v6575, 16
    %v6578 = vand.u32 %v6574, 65535
    %v6579 = vshrl.u32 %v6574, 16
    %v6580 = vmul.u32 %v6576, %v6578
    %v6581 = vmul.u32 %v6576, %v6579
    %v6582 = vmul.u32 %v6577, %v6578
    %v6583 = vmul.u32 %v6577, %v6579
    %v6584 = vshll.u32 %v6581, 16
    %v6585 = vshrl.u32 %v6581, 16
    %v6586 = vshll.u32 %v6582, 16
    %v6587 = vshrl.u32 %v6582, 16
    %vm6588 = vc.u32 %v6580, %v6584
    %v6589 = vsel %vm6588, 1, 0
    %v6590 = vadd.s32 %v6580, %v6584
    %v6591 = vadd.s32 %v6583, %v6589
    %vm6592 = vc.u32 %v6590, %v6586
    %v6593 = vsel %vm6592, 1, 0
    %v6594 = vadd.s32 %v6590, %v6586
    %v6595 = vadd.s32 %v6591, %v6593
    %v6596 = vadd.s32 %v6595, %v6585
    %v6597 = vadd.s32 %v6596, %v6587
    %v6598 = vand.u32 %v6575, 65535
    %v6599 = vshrl.u32 %v6575, 16
    %v6600 = vand.u32 %v6570, 65535
    %v6601 = vshrl.u32 %v6570, 16
    %v6602 = vmul.u32 %v6598, %v6600
    %v6603 = vmul.u32 %v6598, %v6601
    %v6604 = vmul.u32 %v6599, %v6600
    %v6605 = vmul.u32 %v6599, %v6601
    %v6606 = vshll.u32 %v6603, 16
    %v6607 = vshrl.u32 %v6603, 16
    %v6608 = vshll.u32 %v6604, 16
    %v6609 = vshrl.u32 %v6604, 16
    %vm6610 = vc.u32 %v6602, %v6606
    %v6611 = vsel %vm6610, 1, 0
    %v6612 = vadd.s32 %v6602, %v6606
    %v6613 = vadd.s32 %v6605, %v6611
    %vm6614 = vc.u32 %v6612, %v6608
    %v6615 = vsel %vm6614, 1, 0
    %v6616 = vadd.s32 %v6612, %v6608
    %v6617 = vadd.s32 %v6613, %v6615
    %v6618 = vadd.s32 %v6617, %v6607
    %v6619 = vadd.s32 %v6618, %v6609
    %v6620 = vmul.u32 %v6575, %v6566
    %v6621 = vadd.s32 %v6597, %v6616
    %vm6622 = vc.u32 %v6597, %v6616
    %v6623 = vadd.s32 %v6619, 1
    %v6624 = vsel %vm6622, %v6623, %v6619
    %v6625 = vadd.s32 %v6620, %v6624
    %v6626 = vadd.s32 %v6625, 536870912
    %v6627 = vshrl.u32 %v6626, 30
    %v6628 = vshll.u32 %v6627, 30
    %v6629 = vsub.s32 %v6625, %v6628
    %vm6630 = vcmp.lt.s32.totalorder %v6629, 0
    %v6631 = vsub.s32 0, %v6629
    %v6632 = vsel %vm6630, %v6631, %v6629
    %v6633 = vclz %v6632
    %v6634 = vsub.s32 %v6633, 2
    %vm6635 = vcmp.gt.s32.totalorder 0, %v6634
    %v6636 = vsel %vm6635, 0, %v6634
    %v6637 = vsub.s32 32, %v6636
    %v6638 = vshll.u32 %v6629, %v6636
    %v6639 = vshrl.u32 %v6621, %v6637
    %v6640 = vor.u32 %v6638, %v6639
    %v6641 = vsub.s32 4294967266, %v6636
    %v6642 = vadd.s32 %v6641, 127
    %v6643 = vshll.u32 %v6642, 23
    %v6644 = vor.u32 4788187, %v6643
    %v6645 = vand.u32 2147483647, %v6644
    %v6647 = vcvt.s32.f32 %v6640
    %v6648 = vmul.f32 %v6647, %v6645
    %v6649 = vxor.u32 %v6648, 2147483648
    %v6650 = vsel %vm6529, %v6649, %v6648
    %v6651 = vsub.s32 4, %v6627
    %v6652 = vsel %vm6529, %v6651, %v6627
    %v6653 = vsel %vm6528, %v319, %v6650
    %v6654 = vsel %vm6528, 0, %v6652
    %v6655 = vmul.f32 %v6653, %v6653
    %v6656 = vmul.f32 %v6655, -0.001358992
    %v6657 = vadd.f32 %v6656, 0.041655596
    %v6658 = vmul.f32 %v6655, %v6657
    %v6659 = vadd.f32 %v6658, -0.4999988
    %v6660 = vmul.f32 %v6655, %v6659
    %v6661 = vadd.f32 1.0, %v6660
    %v6662 = vmul.f32 %v6653, %v6653
    %v6663 = vmul.f32 %v6662, -0.00019511016
    %v6664 = vadd.f32 %v6663, 0.008332121
    %v6665 = vmul.f32 %v6662, %v6664
    %v6666 = vadd.f32 %v6665, -0.16666654
    %v6667 = vmul.f32 %v6662, %v6666
    %v6668 = vadd.f32 %v6667, 1.0
    %v6669 = vmul.f32 %v6668, %v6653
    %vm6670 = vweird.f32 %v319
    %v6671 = vadd.s32 %v6654, 3
    %v6672 = vand.u32 %v6671, 3
    %vm6673 = vcmp.lt.s32.totalorder %v6672, 2
    %vm6674 = vcmp.eq.s32.totalorder %v6672, 0
    %v6675 = vxor.u32 %v6669, 2147483648
    %v6676 = vsel %vm6674, %v6661, %v6675
    %vm6677 = vcmp.eq.s32.totalorder %v6672, 2
    %v6678 = vxor.u32 %v6661, 2147483648
    %v6679 = vsel %vm6677, %v6678, %v6669
    %v6680 = vsel %vm6673, %v6676, %v6679
    %v6681 = vsel %vm6670, nan, %v6680
    %v6682 = vand.u32 2147483647, %v320
    %vm6683 = vcmp.le.f32.partialorder %v6682, 0.7853982
    %vm6684 = vcmp.lt.s32.totalorder %v320, 0
    %v6685 = vand.u32 %v320, 2139095040
    %v6686 = vshrl.u32 %v6685, 23
    %v6687 = vsub.s32 %v6686, 127
    %v6688 = vand.u32 2147483647, %v320
    %v6689 = vand.u32 %v6688, 8388607
    %v6690 = vor.u32 %v6689, 8388608
    %v6691 = vsub.s32 0, %v6690
    %v6692 = vadd.s32 %v6687, 1
    %vm6693 = vcmp.gt.s32.totalorder %v6692, 0
    %v6694 = vsel %vm6693, %v6692, 0
    %v6695 = vshrl.u32 %v6694, 5
    %v6696 = vand.u32 %v6694, 31
    %v6697 = vsub.s32 32, %v6696
    %v6698 = vshrl.u32 683565275, %v6697
    %v6699 = vshll.u32 683565275, %v6696
    %v6700 = vshrl.u32 2475754826, %v6697
    %v6701 = vor.u32 %v6699, %v6700
    %v6702 = vshll.u32 2475754826, %v6696
    %v6703 = vshrl.u32 2131351028, %v6697
    %v6704 = vor.u32 %v6702, %v6703
    %v6705 = vshll.u32 2131351028, %v6696
    %v6706 = vshrl.u32 2102212464, %v6697
    %v6707 = vor.u32 %v6705, %v6706
    %v6708 = vshll.u32 2102212464, %v6696
    %v6709 = vshrl.u32 920167782, %v6697
    %v6710 = vor.u32 %v6708, %v6709
    %v6711 = vshll.u32 920167782, %v6696
    %v6712 = vshrl.u32 1326507024, %v6697
    %v6713 = vor.u32 %v6711, %v6712
    %vm6714 = vcmp.lt.s32.totalorder %v6695, 1
    %vm6715 = vcmp.lt.s32.totalorder %v6695, 2
    %vm6716 = vcmp.lt.s32.totalorder %v6695, 3
    %vm6717 = vcmp.lt.s32.totalorder %v6695, 4
    %v6718 = vsel %vm6714, %v6698, %v6701
    %v6719 = vsel %vm6717, %v6707, 2102212464
    %v6720 = vsel %vm6716, %v6704, %v6719
    %v6721 = vsel %vm6715, %v6718, %v6720
    %v6722 = vsel %vm6714, %v6701, %v6704
    %v6723 = vsel %vm6717, %v6710, 920167782
    %v6724 = vsel %vm6716, %v6707, %v6723
    %v6725 = vsel %vm6715, %v6722, %v6724
    %v6726 = vsel %vm6714, %v6704, %v6707
    %v6727 = vsel %vm6717, %v6713, 1326507024
    %v6728 = vsel %vm6716, %v6710, %v6727
    %v6729 = vsel %vm6715, %v6726, %v6728
    %v6730 = vshll.u32 %v6690, 8
    %v6731 = vand.u32 %v6730, 65535
    %v6732 = vshrl.u32 %v6730, 16
    %v6733 = vand.u32 %v6729, 65535
    %v6734 = vshrl.u32 %v6729, 16
    %v6735 = vmul.u32 %v6731, %v6733
    %v6736 = vmul.u32 %v6731, %v6734
    %v6737 = vmul.u32 %v6732, %v6733
    %v6738 = vmul.u32 %v6732, %v6734
    %v6739 = vshll.u32 %v6736, 16
    %v6740 = vshrl.u32 %v6736, 16
    %v6741 = vshll.u32 %v6737, 16
    %v6742 = vshrl.u32 %v6737, 16
    %vm6743 = vc.u32 %v6735, %v6739
    %v6744 = vsel %vm6743, 1, 0
    %v6745 = vadd.s32 %v6735, %v6739
    %v6746 = vadd.s32 %v6738, %v6744
    %vm6747 = vc.u32 %v6745, %v6741
    %v6748 = vsel %vm6747, 1, 0
    %v6749 = vadd.s32 %v6745, %v6741
    %v6750 = vadd.s32 %v6746, %v6748
    %v6751 = vadd.s32 %v6750, %v6740
    %v6752 = vadd.s32 %v6751, %v6742
    %v6753 = vand.u32 %v6730, 65535
    %v6754 = vshrl.u32 %v6730, 16
    %v6755 = vand.u32 %v6725, 65535
    %v6756 = vshrl.u32 %v6725, 16
    %v6757 = vmul.u32 %v6753, %v6755
    %v6758 = vmul.u32 %v6753, %v6756
    %v6759 = vmul.u32 %v6754, %v6755
    %v6760 = vmul.u32 %v6754, %v6756
    %v6761 = vshll.u32 %v6758, 16
    %v6762 = vshrl.u32 %v6758, 16
    %v6763 = vshll.u32 %v6759, 16
    %v6764 = vshrl.u32 %v6759, 16
    %vm6765 = vc.u32 %v6757, %v6761
    %v6766 = vsel %vm6765, 1, 0
    %v6767 = vadd.s32 %v6757, %v6761
    %v6768 = vadd.s32 %v6760, %v6766
    %vm6769 = vc.u32 %v6767, %v6763
    %v6770 = vsel %vm6769, 1, 0
    %v6771 = vadd.s32 %v6767, %v6763
    %v6772 = vadd.s32 %v6768, %v6770
    %v6773 = vadd.s32 %v6772, %v6762
    %v6774 = vadd.s32 %v6773, %v6764
    %v6775 = vmul.u32 %v6730, %v6721
    %v6776 = vadd.s32 %v6752, %v6771
    %vm6777 = vc.u32 %v6752, %v6771
    %v6778 = vadd.s32 %v6774, 1
    %v6779 = vsel %vm6777, %v6778, %v6774
    %v6780 = vadd.s32 %v6775, %v6779
    %v6781 = vadd.s32 %v6780, 536870912
    %v6782 = vshrl.u32 %v6781, 30
    %v6783 = vshll.u32 %v6782, 30
    %v6784 = vsub.s32 %v6780, %v6783
    %vm6785 = vcmp.lt.s32.totalorder %v6784, 0
    %v6786 = vsub.s32 0, %v6784
    %v6787 = vsel %vm6785, %v6786, %v6784
    %v6788 = vclz %v6787
    %v6789 = vsub.s32 %v6788, 2
    %vm6790 = vcmp.gt.s32.totalorder 0, %v6789
    %v6791 = vsel %vm6790, 0, %v6789
    %v6792 = vsub.s32 32, %v6791
    %v6793 = vshll.u32 %v6784, %v6791
    %v6794 = vshrl.u32 %v6776, %v6792
    %v6795 = vor.u32 %v6793, %v6794
    %v6796 = vsub.s32 4294967266, %v6791
    %v6797 = vadd.s32 %v6796, 127
    %v6798 = vshll.u32 %v6797, 23
    %v6799 = vor.u32 4788187, %v6798
    %v6800 = vand.u32 2147483647, %v6799
    %v6802 = vcvt.s32.f32 %v6795
    %v6803 = vmul.f32 %v6802, %v6800
    %v6804 = vxor.u32 %v6803, 2147483648
    %v6805 = vsel %vm6684, %v6804, %v6803
    %v6806 = vsub.s32 4, %v6782
    %v6807 = vsel %vm6684, %v6806, %v6782
    %v6808 = vsel %vm6683, %v320, %v6805
    %v6809 = vsel %vm6683, 0, %v6807
    %v6810 = vmul.f32 %v6808, %v6808
    %v6811 = vmul.f32 %v6810, -0.001358992
    %v6812 = vadd.f32 %v6811, 0.041655596
    %v6813 = vmul.f32 %v6810, %v6812
    %v6814 = vadd.f32 %v6813, -0.4999988
    %v6815 = vmul.f32 %v6810, %v6814
    %v6816 = vadd.f32 1.0, %v6815
    %v6817 = vmul.f32 %v6808, %v6808
    %v6818 = vmul.f32 %v6817, -0.00019511016
    %v6819 = vadd.f32 %v6818, 0.008332121
    %v6820 = vmul.f32 %v6817, %v6819
    %v6821 = vadd.f32 %v6820, -0.16666654
    %v6822 = vmul.f32 %v6817, %v6821
    %v6823 = vadd.f32 %v6822, 1.0
    %v6824 = vmul.f32 %v6823, %v6808
    %vm6825 = vweird.f32 %v320
    %v6826 = vadd.s32 %v6809, 3
    %v6827 = vand.u32 %v6826, 3
    %vm6828 = vcmp.lt.s32.totalorder %v6827, 2
    %vm6829 = vcmp.eq.s32.totalorder %v6827, 0
    %v6830 = vxor.u32 %v6824, 2147483648
    %v6831 = vsel %vm6829, %v6816, %v6830
    %vm6832 = vcmp.eq.s32.totalorder %v6827, 2
    %v6833 = vxor.u32 %v6816, 2147483648
    %v6834 = vsel %vm6832, %v6833, %v6824
    %v6835 = vsel %vm6828, %v6831, %v6834
    %v6836 = vsel %vm6825, nan, %v6835
    %s6837 = scalar_lea.vmem %s4, 256
    %v6838 = vld [vmem:[%s6837] sm:$0xff]
    %v6839 = vld [vmem:[%s6837 + $0x8] sm:$0xff]
    %v6840 = vld [vmem:[%s6837 + $0x10] sm:$0xff]
    %v6841 = vld [vmem:[%s6837 + $0x18] sm:$0xff]
    %v6842 = vld [vmem:[%s6837 + $0x20] sm:$0xff]
    %v6843 = vld [vmem:[%s6837 + $0x28] sm:$0xff]
    %v6844 = vld [vmem:[%s6837 + $0x30] sm:$0xff]
    %v6845 = vld [vmem:[%s6837 + $0x38] sm:$0xff]
    %v6847 = vsel %vm1570, %v5751, 0
    %v6850 = vsel %vm1570, %v5906, 0
    %v6853 = vsel %vm1570, %v6061, 0
    %v6856 = vsel %vm1570, %v6216, 0
    %v6859 = vsel %vm1570, %v6371, 0
    %v6862 = vsel %vm1570, %v6526, 0
    %v6865 = vsel %vm1570, %v6681, 0
    %v6868 = vsel %vm1570, %v6836, 0
    %6870 = vmatpush.msra.mxu0 0.0
    %6871 = vmatpush.msra.mxu0 0.0
    %6872 = vmatpush.msra.mxu0 0.0
    %6873 = vmatpush.msra.mxu0 0.0
    %6874 = vmatpush.msra.mxu0 0.0
    %6875 = vmatpush.msra.mxu0 0.0
    %6876 = vmatpush.msra.mxu0 0.0
    %6877 = vmatpush.msra.mxu0 0.0
    %6878 = vmatpush.msra.mxu0 %v6845
    %6879 = vmatpush.msra.mxu0 %v6844
    %6880 = vmatpush.msra.mxu0 %v6843
    %6881 = vmatpush.msra.mxu0 %v6842
    %6882 = vmatpush.msra.mxu0 %v6841
    %6883 = vmatpush.msra.mxu0 %v6840
    %6884 = vmatpush.msra.mxu0 %v6839
    %6885 = vmatpush.msra.mxu0 %v6838
    %6886 = vmatmul.f32.gmra.mxu0 %v6847
    %v6887 = vpop.f32.mrf.mxu0
    %v6888 = vadd.f32 0.0, %v6887
    %6889 = vmatmul.f32.gmra.mxu0 %v6850
    %v6890 = vpop.f32.mrf.mxu0
    %v6891 = vadd.f32 0.0, %v6890
    %6892 = vmatmul.f32.gmra.mxu0 %v6853
    %v6893 = vpop.f32.mrf.mxu0
    %v6894 = vadd.f32 0.0, %v6893
    %6895 = vmatmul.f32.gmra.mxu0 %v6856
    %v6896 = vpop.f32.mrf.mxu0
    %v6897 = vadd.f32 0.0, %v6896
    %6898 = vmatmul.f32.gmra.mxu0 %v6859
    %v6899 = vpop.f32.mrf.mxu0
    %v6900 = vadd.f32 0.0, %v6899
    %6901 = vmatmul.f32.gmra.mxu0 %v6862
    %v6902 = vpop.f32.mrf.mxu0
    %v6903 = vadd.f32 0.0, %v6902
    %6904 = vmatmul.f32.gmra.mxu0 %v6865
    %v6905 = vpop.f32.mrf.mxu0
    %v6906 = vadd.f32 0.0, %v6905
    %6907 = vmatmul.f32.gmra.mxu0 %v6868
    %v6908 = vpop.f32.mrf.mxu0
    %v6909 = vadd.f32 0.0, %v6908
    %6910 = vdwg.mxu0
    %v6911 = vadd.f32 %v5589, %v6888
    %v6912 = vadd.f32 %v5590, %v6891
    %v6913 = vadd.f32 %v5591, %v6894
    %v6914 = vadd.f32 %v5592, %v6897
    %v6915 = vadd.f32 %v5593, %v6900
    %v6916 = vadd.f32 %v5594, %v6903
    %v6917 = vadd.f32 %v5595, %v6906
    %v6918 = vadd.f32 %v5596, %v6909
    %v6919 = vand.u32 2147483647, %v313
    %vm6920 = vcmp.le.f32.partialorder %v6919, 0.7853982
    %vm6921 = vcmp.lt.s32.totalorder %v313, 0
    %v6922 = vand.u32 %v313, 2139095040
    %v6923 = vshrl.u32 %v6922, 23
    %v6924 = vsub.s32 %v6923, 127
    %v6925 = vand.u32 2147483647, %v313
    %v6926 = vand.u32 %v6925, 8388607
    %v6927 = vor.u32 %v6926, 8388608
    %v6928 = vsub.s32 0, %v6927
    %v6929 = vadd.s32 %v6924, 1
    %vm6930 = vcmp.gt.s32.totalorder %v6929, 0
    %v6931 = vsel %vm6930, %v6929, 0
    %v6932 = vshrl.u32 %v6931, 5
    %v6933 = vand.u32 %v6931, 31
    %v6934 = vsub.s32 32, %v6933
    %v6935 = vshrl.u32 683565275, %v6934
    %v6936 = vshll.u32 683565275, %v6933
    %v6937 = vshrl.u32 2475754826, %v6934
    %v6938 = vor.u32 %v6936, %v6937
    %v6939 = vshll.u32 2475754826, %v6933
    %v6940 = vshrl.u32 2131351028, %v6934
    %v6941 = vor.u32 %v6939, %v6940
    %v6942 = vshll.u32 2131351028, %v6933
    %v6943 = vshrl.u32 2102212464, %v6934
    %v6944 = vor.u32 %v6942, %v6943
    %v6945 = vshll.u32 2102212464, %v6933
    %v6946 = vshrl.u32 920167782, %v6934
    %v6947 = vor.u32 %v6945, %v6946
    %v6948 = vshll.u32 920167782, %v6933
    %v6949 = vshrl.u32 1326507024, %v6934
    %v6950 = vor.u32 %v6948, %v6949
    %vm6951 = vcmp.lt.s32.totalorder %v6932, 1
    %vm6952 = vcmp.lt.s32.totalorder %v6932, 2
    %vm6953 = vcmp.lt.s32.totalorder %v6932, 3
    %vm6954 = vcmp.lt.s32.totalorder %v6932, 4
    %v6955 = vsel %vm6951, %v6935, %v6938
    %v6956 = vsel %vm6954, %v6944, 2102212464
    %v6957 = vsel %vm6953, %v6941, %v6956
    %v6958 = vsel %vm6952, %v6955, %v6957
    %v6959 = vsel %vm6951, %v6938, %v6941
    %v6960 = vsel %vm6954, %v6947, 920167782
    %v6961 = vsel %vm6953, %v6944, %v6960
    %v6962 = vsel %vm6952, %v6959, %v6961
    %v6963 = vsel %vm6951, %v6941, %v6944
    %v6964 = vsel %vm6954, %v6950, 1326507024
    %v6965 = vsel %vm6953, %v6947, %v6964
    %v6966 = vsel %vm6952, %v6963, %v6965
    %v6967 = vshll.u32 %v6927, 8
    %v6968 = vand.u32 %v6967, 65535
    %v6969 = vshrl.u32 %v6967, 16
    %v6970 = vand.u32 %v6966, 65535
    %v6971 = vshrl.u32 %v6966, 16
    %v6972 = vmul.u32 %v6968, %v6970
    %v6973 = vmul.u32 %v6968, %v6971
    %v6974 = vmul.u32 %v6969, %v6970
    %v6975 = vmul.u32 %v6969, %v6971
    %v6976 = vshll.u32 %v6973, 16
    %v6977 = vshrl.u32 %v6973, 16
    %v6978 = vshll.u32 %v6974, 16
    %v6979 = vshrl.u32 %v6974, 16
    %vm6980 = vc.u32 %v6972, %v6976
    %v6981 = vsel %vm6980, 1, 0
    %v6982 = vadd.s32 %v6972, %v6976
    %v6983 = vadd.s32 %v6975, %v6981
    %vm6984 = vc.u32 %v6982, %v6978
    %v6985 = vsel %vm6984, 1, 0
    %v6986 = vadd.s32 %v6982, %v6978
    %v6987 = vadd.s32 %v6983, %v6985
    %v6988 = vadd.s32 %v6987, %v6977
    %v6989 = vadd.s32 %v6988, %v6979
    %v6990 = vand.u32 %v6967, 65535
    %v6991 = vshrl.u32 %v6967, 16
    %v6992 = vand.u32 %v6962, 65535
    %v6993 = vshrl.u32 %v6962, 16
    %v6994 = vmul.u32 %v6990, %v6992
    %v6995 = vmul.u32 %v6990, %v6993
    %v6996 = vmul.u32 %v6991, %v6992
    %v6997 = vmul.u32 %v6991, %v6993
    %v6998 = vshll.u32 %v6995, 16
    %v6999 = vshrl.u32 %v6995, 16
    %v7000 = vshll.u32 %v6996, 16
    %v7001 = vshrl.u32 %v6996, 16
    %vm7002 = vc.u32 %v6994, %v6998
    %v7003 = vsel %vm7002, 1, 0
    %v7004 = vadd.s32 %v6994, %v6998
    %v7005 = vadd.s32 %v6997, %v7003
    %vm7006 = vc.u32 %v7004, %v7000
    %v7007 = vsel %vm7006, 1, 0
    %v7008 = vadd.s32 %v7004, %v7000
    %v7009 = vadd.s32 %v7005, %v7007
    %v7010 = vadd.s32 %v7009, %v6999
    %v7011 = vadd.s32 %v7010, %v7001
    %v7012 = vmul.u32 %v6967, %v6958
    %v7013 = vadd.s32 %v6989, %v7008
    %vm7014 = vc.u32 %v6989, %v7008
    %v7015 = vadd.s32 %v7011, 1
    %v7016 = vsel %vm7014, %v7015, %v7011
    %v7017 = vadd.s32 %v7012, %v7016
    %v7018 = vadd.s32 %v7017, 536870912
    %v7019 = vshrl.u32 %v7018, 30
    %v7020 = vshll.u32 %v7019, 30
    %v7021 = vsub.s32 %v7017, %v7020
    %vm7022 = vcmp.lt.s32.totalorder %v7021, 0
    %v7023 = vsub.s32 0, %v7021
    %v7024 = vsel %vm7022, %v7023, %v7021
    %v7025 = vclz %v7024
    %v7026 = vsub.s32 %v7025, 2
    %vm7027 = vcmp.gt.s32.totalorder 0, %v7026
    %v7028 = vsel %vm7027, 0, %v7026
    %v7029 = vsub.s32 32, %v7028
    %v7030 = vshll.u32 %v7021, %v7028
    %v7031 = vshrl.u32 %v7013, %v7029
    %v7032 = vor.u32 %v7030, %v7031
    %v7033 = vsub.s32 4294967266, %v7028
    %v7034 = vadd.s32 %v7033, 127
    %v7035 = vshll.u32 %v7034, 23
    %v7036 = vor.u32 4788187, %v7035
    %v7037 = vand.u32 2147483647, %v7036
    %v7039 = vcvt.s32.f32 %v7032
    %v7040 = vmul.f32 %v7039, %v7037
    %v7041 = vxor.u32 %v7040, 2147483648
    %v7042 = vsel %vm6921, %v7041, %v7040
    %v7043 = vsub.s32 4, %v7019
    %v7044 = vsel %vm6921, %v7043, %v7019
    %v7045 = vsel %vm6920, %v313, %v7042
    %v7046 = vsel %vm6920, 0, %v7044
    %v7047 = vmul.f32 %v7045, %v7045
    %v7048 = vmul.f32 %v7047, -0.001358992
    %v7049 = vadd.f32 %v7048, 0.041655596
    %v7050 = vmul.f32 %v7047, %v7049
    %v7051 = vadd.f32 %v7050, -0.4999988
    %v7052 = vmul.f32 %v7047, %v7051
    %v7053 = vadd.f32 1.0, %v7052
    %v7054 = vmul.f32 %v7045, %v7045
    %v7055 = vmul.f32 %v7054, -0.00019511016
    %v7056 = vadd.f32 %v7055, 0.008332121
    %v7057 = vmul.f32 %v7054, %v7056
    %v7058 = vadd.f32 %v7057, -0.16666654
    %v7059 = vmul.f32 %v7054, %v7058
    %v7060 = vadd.f32 %v7059, 1.0
    %v7061 = vmul.f32 %v7060, %v7045
    %vm7062 = vweird.f32 %v313
    %v7063 = vand.u32 %v7046, 3
    %vm7064 = vcmp.lt.s32.totalorder %v7063, 2
    %vm7065 = vcmp.eq.s32.totalorder %v7063, 0
    %v7066 = vxor.u32 %v7061, 2147483648
    %v7067 = vsel %vm7065, %v7053, %v7066
    %vm7068 = vcmp.eq.s32.totalorder %v7063, 2
    %v7069 = vxor.u32 %v7053, 2147483648
    %v7070 = vsel %vm7068, %v7069, %v7061
    %v7071 = vsel %vm7064, %v7067, %v7070
    %v7072 = vsel %vm7062, nan, %v7071
    %v7073 = vand.u32 2147483647, %v314
    %vm7074 = vcmp.le.f32.partialorder %v7073, 0.7853982
    %vm7075 = vcmp.lt.s32.totalorder %v314, 0
    %v7076 = vand.u32 %v314, 2139095040
    %v7077 = vshrl.u32 %v7076, 23
    %v7078 = vsub.s32 %v7077, 127
    %v7079 = vand.u32 2147483647, %v314
    %v7080 = vand.u32 %v7079, 8388607
    %v7081 = vor.u32 %v7080, 8388608
    %v7082 = vsub.s32 0, %v7081
    %v7083 = vadd.s32 %v7078, 1
    %vm7084 = vcmp.gt.s32.totalorder %v7083, 0
    %v7085 = vsel %vm7084, %v7083, 0
    %v7086 = vshrl.u32 %v7085, 5
    %v7087 = vand.u32 %v7085, 31
    %v7088 = vsub.s32 32, %v7087
    %v7089 = vshrl.u32 683565275, %v7088
    %v7090 = vshll.u32 683565275, %v7087
    %v7091 = vshrl.u32 2475754826, %v7088
    %v7092 = vor.u32 %v7090, %v7091
    %v7093 = vshll.u32 2475754826, %v7087
    %v7094 = vshrl.u32 2131351028, %v7088
    %v7095 = vor.u32 %v7093, %v7094
    %v7096 = vshll.u32 2131351028, %v7087
    %v7097 = vshrl.u32 2102212464, %v7088
    %v7098 = vor.u32 %v7096, %v7097
    %v7099 = vshll.u32 2102212464, %v7087
    %v7100 = vshrl.u32 920167782, %v7088
    %v7101 = vor.u32 %v7099, %v7100
    %v7102 = vshll.u32 920167782, %v7087
    %v7103 = vshrl.u32 1326507024, %v7088
    %v7104 = vor.u32 %v7102, %v7103
    %vm7105 = vcmp.lt.s32.totalorder %v7086, 1
    %vm7106 = vcmp.lt.s32.totalorder %v7086, 2
    %vm7107 = vcmp.lt.s32.totalorder %v7086, 3
    %vm7108 = vcmp.lt.s32.totalorder %v7086, 4
    %v7109 = vsel %vm7105, %v7089, %v7092
    %v7110 = vsel %vm7108, %v7098, 2102212464
    %v7111 = vsel %vm7107, %v7095, %v7110
    %v7112 = vsel %vm7106, %v7109, %v7111
    %v7113 = vsel %vm7105, %v7092, %v7095
    %v7114 = vsel %vm7108, %v7101, 920167782
    %v7115 = vsel %vm7107, %v7098, %v7114
    %v7116 = vsel %vm7106, %v7113, %v7115
    %v7117 = vsel %vm7105, %v7095, %v7098
    %v7118 = vsel %vm7108, %v7104, 1326507024
    %v7119 = vsel %vm7107, %v7101, %v7118
    %v7120 = vsel %vm7106, %v7117, %v7119
    %v7121 = vshll.u32 %v7081, 8
    %v7122 = vand.u32 %v7121, 65535
    %v7123 = vshrl.u32 %v7121, 16
    %v7124 = vand.u32 %v7120, 65535
    %v7125 = vshrl.u32 %v7120, 16
    %v7126 = vmul.u32 %v7122, %v7124
    %v7127 = vmul.u32 %v7122, %v7125
    %v7128 = vmul.u32 %v7123, %v7124
    %v7129 = vmul.u32 %v7123, %v7125
    %v7130 = vshll.u32 %v7127, 16
    %v7131 = vshrl.u32 %v7127, 16
    %v7132 = vshll.u32 %v7128, 16
    %v7133 = vshrl.u32 %v7128, 16
    %vm7134 = vc.u32 %v7126, %v7130
    %v7135 = vsel %vm7134, 1, 0
    %v7136 = vadd.s32 %v7126, %v7130
    %v7137 = vadd.s32 %v7129, %v7135
    %vm7138 = vc.u32 %v7136, %v7132
    %v7139 = vsel %vm7138, 1, 0
    %v7140 = vadd.s32 %v7136, %v7132
    %v7141 = vadd.s32 %v7137, %v7139
    %v7142 = vadd.s32 %v7141, %v7131
    %v7143 = vadd.s32 %v7142, %v7133
    %v7144 = vand.u32 %v7121, 65535
    %v7145 = vshrl.u32 %v7121, 16
    %v7146 = vand.u32 %v7116, 65535
    %v7147 = vshrl.u32 %v7116, 16
    %v7148 = vmul.u32 %v7144, %v7146
    %v7149 = vmul.u32 %v7144, %v7147
    %v7150 = vmul.u32 %v7145, %v7146
    %v7151 = vmul.u32 %v7145, %v7147
    %v7152 = vshll.u32 %v7149, 16
    %v7153 = vshrl.u32 %v7149, 16
    %v7154 = vshll.u32 %v7150, 16
    %v7155 = vshrl.u32 %v7150, 16
    %vm7156 = vc.u32 %v7148, %v7152
    %v7157 = vsel %vm7156, 1, 0
    %v7158 = vadd.s32 %v7148, %v7152
    %v7159 = vadd.s32 %v7151, %v7157
    %vm7160 = vc.u32 %v7158, %v7154
    %v7161 = vsel %vm7160, 1, 0
    %v7162 = vadd.s32 %v7158, %v7154
    %v7163 = vadd.s32 %v7159, %v7161
    %v7164 = vadd.s32 %v7163, %v7153
    %v7165 = vadd.s32 %v7164, %v7155
    %v7166 = vmul.u32 %v7121, %v7112
    %v7167 = vadd.s32 %v7143, %v7162
    %vm7168 = vc.u32 %v7143, %v7162
    %v7169 = vadd.s32 %v7165, 1
    %v7170 = vsel %vm7168, %v7169, %v7165
    %v7171 = vadd.s32 %v7166, %v7170
    %v7172 = vadd.s32 %v7171, 536870912
    %v7173 = vshrl.u32 %v7172, 30
    %v7174 = vshll.u32 %v7173, 30
    %v7175 = vsub.s32 %v7171, %v7174
    %vm7176 = vcmp.lt.s32.totalorder %v7175, 0
    %v7177 = vsub.s32 0, %v7175
    %v7178 = vsel %vm7176, %v7177, %v7175
    %v7179 = vclz %v7178
    %v7180 = vsub.s32 %v7179, 2
    %vm7181 = vcmp.gt.s32.totalorder 0, %v7180
    %v7182 = vsel %vm7181, 0, %v7180
    %v7183 = vsub.s32 32, %v7182
    %v7184 = vshll.u32 %v7175, %v7182
    %v7185 = vshrl.u32 %v7167, %v7183
    %v7186 = vor.u32 %v7184, %v7185
    %v7187 = vsub.s32 4294967266, %v7182
    %v7188 = vadd.s32 %v7187, 127
    %v7189 = vshll.u32 %v7188, 23
    %v7190 = vor.u32 4788187, %v7189
    %v7191 = vand.u32 2147483647, %v7190
    %v7193 = vcvt.s32.f32 %v7186
    %v7194 = vmul.f32 %v7193, %v7191
    %v7195 = vxor.u32 %v7194, 2147483648
    %v7196 = vsel %vm7075, %v7195, %v7194
    %v7197 = vsub.s32 4, %v7173
    %v7198 = vsel %vm7075, %v7197, %v7173
    %v7199 = vsel %vm7074, %v314, %v7196
    %v7200 = vsel %vm7074, 0, %v7198
    %v7201 = vmul.f32 %v7199, %v7199
    %v7202 = vmul.f32 %v7201, -0.001358992
    %v7203 = vadd.f32 %v7202, 0.041655596
    %v7204 = vmul.f32 %v7201, %v7203
    %v7205 = vadd.f32 %v7204, -0.4999988
    %v7206 = vmul.f32 %v7201, %v7205
    %v7207 = vadd.f32 1.0, %v7206
    %v7208 = vmul.f32 %v7199, %v7199
    %v7209 = vmul.f32 %v7208, -0.00019511016
    %v7210 = vadd.f32 %v7209, 0.008332121
    %v7211 = vmul.f32 %v7208, %v7210
    %v7212 = vadd.f32 %v7211, -0.16666654
    %v7213 = vmul.f32 %v7208, %v7212
    %v7214 = vadd.f32 %v7213, 1.0
    %v7215 = vmul.f32 %v7214, %v7199
    %vm7216 = vweird.f32 %v314
    %v7217 = vand.u32 %v7200, 3
    %vm7218 = vcmp.lt.s32.totalorder %v7217, 2
    %vm7219 = vcmp.eq.s32.totalorder %v7217, 0
    %v7220 = vxor.u32 %v7215, 2147483648
    %v7221 = vsel %vm7219, %v7207, %v7220
    %vm7222 = vcmp.eq.s32.totalorder %v7217, 2
    %v7223 = vxor.u32 %v7207, 2147483648
    %v7224 = vsel %vm7222, %v7223, %v7215
    %v7225 = vsel %vm7218, %v7221, %v7224
    %v7226 = vsel %vm7216, nan, %v7225
    %v7227 = vand.u32 2147483647, %v315
    %vm7228 = vcmp.le.f32.partialorder %v7227, 0.7853982
    %vm7229 = vcmp.lt.s32.totalorder %v315, 0
    %v7230 = vand.u32 %v315, 2139095040
    %v7231 = vshrl.u32 %v7230, 23
    %v7232 = vsub.s32 %v7231, 127
    %v7233 = vand.u32 2147483647, %v315
    %v7234 = vand.u32 %v7233, 8388607
    %v7235 = vor.u32 %v7234, 8388608
    %v7236 = vsub.s32 0, %v7235
    %v7237 = vadd.s32 %v7232, 1
    %vm7238 = vcmp.gt.s32.totalorder %v7237, 0
    %v7239 = vsel %vm7238, %v7237, 0
    %v7240 = vshrl.u32 %v7239, 5
    %v7241 = vand.u32 %v7239, 31
    %v7242 = vsub.s32 32, %v7241
    %v7243 = vshrl.u32 683565275, %v7242
    %v7244 = vshll.u32 683565275, %v7241
    %v7245 = vshrl.u32 2475754826, %v7242
    %v7246 = vor.u32 %v7244, %v7245
    %v7247 = vshll.u32 2475754826, %v7241
    %v7248 = vshrl.u32 2131351028, %v7242
    %v7249 = vor.u32 %v7247, %v7248
    %v7250 = vshll.u32 2131351028, %v7241
    %v7251 = vshrl.u32 2102212464, %v7242
    %v7252 = vor.u32 %v7250, %v7251
    %v7253 = vshll.u32 2102212464, %v7241
    %v7254 = vshrl.u32 920167782, %v7242
    %v7255 = vor.u32 %v7253, %v7254
    %v7256 = vshll.u32 920167782, %v7241
    %v7257 = vshrl.u32 1326507024, %v7242
    %v7258 = vor.u32 %v7256, %v7257
    %vm7259 = vcmp.lt.s32.totalorder %v7240, 1
    %vm7260 = vcmp.lt.s32.totalorder %v7240, 2
    %vm7261 = vcmp.lt.s32.totalorder %v7240, 3
    %vm7262 = vcmp.lt.s32.totalorder %v7240, 4
    %v7263 = vsel %vm7259, %v7243, %v7246
    %v7264 = vsel %vm7262, %v7252, 2102212464
    %v7265 = vsel %vm7261, %v7249, %v7264
    %v7266 = vsel %vm7260, %v7263, %v7265
    %v7267 = vsel %vm7259, %v7246, %v7249
    %v7268 = vsel %vm7262, %v7255, 920167782
    %v7269 = vsel %vm7261, %v7252, %v7268
    %v7270 = vsel %vm7260, %v7267, %v7269
    %v7271 = vsel %vm7259, %v7249, %v7252
    %v7272 = vsel %vm7262, %v7258, 1326507024
    %v7273 = vsel %vm7261, %v7255, %v7272
    %v7274 = vsel %vm7260, %v7271, %v7273
    %v7275 = vshll.u32 %v7235, 8
    %v7276 = vand.u32 %v7275, 65535
    %v7277 = vshrl.u32 %v7275, 16
    %v7278 = vand.u32 %v7274, 65535
    %v7279 = vshrl.u32 %v7274, 16
    %v7280 = vmul.u32 %v7276, %v7278
    %v7281 = vmul.u32 %v7276, %v7279
    %v7282 = vmul.u32 %v7277, %v7278
    %v7283 = vmul.u32 %v7277, %v7279
    %v7284 = vshll.u32 %v7281, 16
    %v7285 = vshrl.u32 %v7281, 16
    %v7286 = vshll.u32 %v7282, 16
    %v7287 = vshrl.u32 %v7282, 16
    %vm7288 = vc.u32 %v7280, %v7284
    %v7289 = vsel %vm7288, 1, 0
    %v7290 = vadd.s32 %v7280, %v7284
    %v7291 = vadd.s32 %v7283, %v7289
    %vm7292 = vc.u32 %v7290, %v7286
    %v7293 = vsel %vm7292, 1, 0
    %v7294 = vadd.s32 %v7290, %v7286
    %v7295 = vadd.s32 %v7291, %v7293
    %v7296 = vadd.s32 %v7295, %v7285
    %v7297 = vadd.s32 %v7296, %v7287
    %v7298 = vand.u32 %v7275, 65535
    %v7299 = vshrl.u32 %v7275, 16
    %v7300 = vand.u32 %v7270, 65535
    %v7301 = vshrl.u32 %v7270, 16
    %v7302 = vmul.u32 %v7298, %v7300
    %v7303 = vmul.u32 %v7298, %v7301
    %v7304 = vmul.u32 %v7299, %v7300
    %v7305 = vmul.u32 %v7299, %v7301
    %v7306 = vshll.u32 %v7303, 16
    %v7307 = vshrl.u32 %v7303, 16
    %v7308 = vshll.u32 %v7304, 16
    %v7309 = vshrl.u32 %v7304, 16
    %vm7310 = vc.u32 %v7302, %v7306
    %v7311 = vsel %vm7310, 1, 0
    %v7312 = vadd.s32 %v7302, %v7306
    %v7313 = vadd.s32 %v7305, %v7311
    %vm7314 = vc.u32 %v7312, %v7308
    %v7315 = vsel %vm7314, 1, 0
    %v7316 = vadd.s32 %v7312, %v7308
    %v7317 = vadd.s32 %v7313, %v7315
    %v7318 = vadd.s32 %v7317, %v7307
    %v7319 = vadd.s32 %v7318, %v7309
    %v7320 = vmul.u32 %v7275, %v7266
    %v7321 = vadd.s32 %v7297, %v7316
    %vm7322 = vc.u32 %v7297, %v7316
    %v7323 = vadd.s32 %v7319, 1
    %v7324 = vsel %vm7322, %v7323, %v7319
    %v7325 = vadd.s32 %v7320, %v7324
    %v7326 = vadd.s32 %v7325, 536870912
    %v7327 = vshrl.u32 %v7326, 30
    %v7328 = vshll.u32 %v7327, 30
    %v7329 = vsub.s32 %v7325, %v7328
    %vm7330 = vcmp.lt.s32.totalorder %v7329, 0
    %v7331 = vsub.s32 0, %v7329
    %v7332 = vsel %vm7330, %v7331, %v7329
    %v7333 = vclz %v7332
    %v7334 = vsub.s32 %v7333, 2
    %vm7335 = vcmp.gt.s32.totalorder 0, %v7334
    %v7336 = vsel %vm7335, 0, %v7334
    %v7337 = vsub.s32 32, %v7336
    %v7338 = vshll.u32 %v7329, %v7336
    %v7339 = vshrl.u32 %v7321, %v7337
    %v7340 = vor.u32 %v7338, %v7339
    %v7341 = vsub.s32 4294967266, %v7336
    %v7342 = vadd.s32 %v7341, 127
    %v7343 = vshll.u32 %v7342, 23
    %v7344 = vor.u32 4788187, %v7343
    %v7345 = vand.u32 2147483647, %v7344
    %v7347 = vcvt.s32.f32 %v7340
    %v7348 = vmul.f32 %v7347, %v7345
    %v7349 = vxor.u32 %v7348, 2147483648
    %v7350 = vsel %vm7229, %v7349, %v7348
    %v7351 = vsub.s32 4, %v7327
    %v7352 = vsel %vm7229, %v7351, %v7327
    %v7353 = vsel %vm7228, %v315, %v7350
    %v7354 = vsel %vm7228, 0, %v7352
    %v7355 = vmul.f32 %v7353, %v7353
    %v7356 = vmul.f32 %v7355, -0.001358992
    %v7357 = vadd.f32 %v7356, 0.041655596
    %v7358 = vmul.f32 %v7355, %v7357
    %v7359 = vadd.f32 %v7358, -0.4999988
    %v7360 = vmul.f32 %v7355, %v7359
    %v7361 = vadd.f32 1.0, %v7360
    %v7362 = vmul.f32 %v7353, %v7353
    %v7363 = vmul.f32 %v7362, -0.00019511016
    %v7364 = vadd.f32 %v7363, 0.008332121
    %v7365 = vmul.f32 %v7362, %v7364
    %v7366 = vadd.f32 %v7365, -0.16666654
    %v7367 = vmul.f32 %v7362, %v7366
    %v7368 = vadd.f32 %v7367, 1.0
    %v7369 = vmul.f32 %v7368, %v7353
    %vm7370 = vweird.f32 %v315
    %v7371 = vand.u32 %v7354, 3
    %vm7372 = vcmp.lt.s32.totalorder %v7371, 2
    %vm7373 = vcmp.eq.s32.totalorder %v7371, 0
    %v7374 = vxor.u32 %v7369, 2147483648
    %v7375 = vsel %vm7373, %v7361, %v7374
    %vm7376 = vcmp.eq.s32.totalorder %v7371, 2
    %v7377 = vxor.u32 %v7361, 2147483648
    %v7378 = vsel %vm7376, %v7377, %v7369
    %v7379 = vsel %vm7372, %v7375, %v7378
    %v7380 = vsel %vm7370, nan, %v7379
    %v7381 = vand.u32 2147483647, %v316
    %vm7382 = vcmp.le.f32.partialorder %v7381, 0.7853982
    %vm7383 = vcmp.lt.s32.totalorder %v316, 0
    %v7384 = vand.u32 %v316, 2139095040
    %v7385 = vshrl.u32 %v7384, 23
    %v7386 = vsub.s32 %v7385, 127
    %v7387 = vand.u32 2147483647, %v316
    %v7388 = vand.u32 %v7387, 8388607
    %v7389 = vor.u32 %v7388, 8388608
    %v7390 = vsub.s32 0, %v7389
    %v7391 = vadd.s32 %v7386, 1
    %vm7392 = vcmp.gt.s32.totalorder %v7391, 0
    %v7393 = vsel %vm7392, %v7391, 0
    %v7394 = vshrl.u32 %v7393, 5
    %v7395 = vand.u32 %v7393, 31
    %v7396 = vsub.s32 32, %v7395
    %v7397 = vshrl.u32 683565275, %v7396
    %v7398 = vshll.u32 683565275, %v7395
    %v7399 = vshrl.u32 2475754826, %v7396
    %v7400 = vor.u32 %v7398, %v7399
    %v7401 = vshll.u32 2475754826, %v7395
    %v7402 = vshrl.u32 2131351028, %v7396
    %v7403 = vor.u32 %v7401, %v7402
    %v7404 = vshll.u32 2131351028, %v7395
    %v7405 = vshrl.u32 2102212464, %v7396
    %v7406 = vor.u32 %v7404, %v7405
    %v7407 = vshll.u32 2102212464, %v7395
    %v7408 = vshrl.u32 920167782, %v7396
    %v7409 = vor.u32 %v7407, %v7408
    %v7410 = vshll.u32 920167782, %v7395
    %v7411 = vshrl.u32 1326507024, %v7396
    %v7412 = vor.u32 %v7410, %v7411
    %vm7413 = vcmp.lt.s32.totalorder %v7394, 1
    %vm7414 = vcmp.lt.s32.totalorder %v7394, 2
    %vm7415 = vcmp.lt.s32.totalorder %v7394, 3
    %vm7416 = vcmp.lt.s32.totalorder %v7394, 4
    %v7417 = vsel %vm7413, %v7397, %v7400
    %v7418 = vsel %vm7416, %v7406, 2102212464
    %v7419 = vsel %vm7415, %v7403, %v7418
    %v7420 = vsel %vm7414, %v7417, %v7419
    %v7421 = vsel %vm7413, %v7400, %v7403
    %v7422 = vsel %vm7416, %v7409, 920167782
    %v7423 = vsel %vm7415, %v7406, %v7422
    %v7424 = vsel %vm7414, %v7421, %v7423
    %v7425 = vsel %vm7413, %v7403, %v7406
    %v7426 = vsel %vm7416, %v7412, 1326507024
    %v7427 = vsel %vm7415, %v7409, %v7426
    %v7428 = vsel %vm7414, %v7425, %v7427
    %v7429 = vshll.u32 %v7389, 8
    %v7430 = vand.u32 %v7429, 65535
    %v7431 = vshrl.u32 %v7429, 16
    %v7432 = vand.u32 %v7428, 65535
    %v7433 = vshrl.u32 %v7428, 16
    %v7434 = vmul.u32 %v7430, %v7432
    %v7435 = vmul.u32 %v7430, %v7433
    %v7436 = vmul.u32 %v7431, %v7432
    %v7437 = vmul.u32 %v7431, %v7433
    %v7438 = vshll.u32 %v7435, 16
    %v7439 = vshrl.u32 %v7435, 16
    %v7440 = vshll.u32 %v7436, 16
    %v7441 = vshrl.u32 %v7436, 16
    %vm7442 = vc.u32 %v7434, %v7438
    %v7443 = vsel %vm7442, 1, 0
    %v7444 = vadd.s32 %v7434, %v7438
    %v7445 = vadd.s32 %v7437, %v7443
    %vm7446 = vc.u32 %v7444, %v7440
    %v7447 = vsel %vm7446, 1, 0
    %v7448 = vadd.s32 %v7444, %v7440
    %v7449 = vadd.s32 %v7445, %v7447
    %v7450 = vadd.s32 %v7449, %v7439
    %v7451 = vadd.s32 %v7450, %v7441
    %v7452 = vand.u32 %v7429, 65535
    %v7453 = vshrl.u32 %v7429, 16
    %v7454 = vand.u32 %v7424, 65535
    %v7455 = vshrl.u32 %v7424, 16
    %v7456 = vmul.u32 %v7452, %v7454
    %v7457 = vmul.u32 %v7452, %v7455
    %v7458 = vmul.u32 %v7453, %v7454
    %v7459 = vmul.u32 %v7453, %v7455
    %v7460 = vshll.u32 %v7457, 16
    %v7461 = vshrl.u32 %v7457, 16
    %v7462 = vshll.u32 %v7458, 16
    %v7463 = vshrl.u32 %v7458, 16
    %vm7464 = vc.u32 %v7456, %v7460
    %v7465 = vsel %vm7464, 1, 0
    %v7466 = vadd.s32 %v7456, %v7460
    %v7467 = vadd.s32 %v7459, %v7465
    %vm7468 = vc.u32 %v7466, %v7462
    %v7469 = vsel %vm7468, 1, 0
    %v7470 = vadd.s32 %v7466, %v7462
    %v7471 = vadd.s32 %v7467, %v7469
    %v7472 = vadd.s32 %v7471, %v7461
    %v7473 = vadd.s32 %v7472, %v7463
    %v7474 = vmul.u32 %v7429, %v7420
    %v7475 = vadd.s32 %v7451, %v7470
    %vm7476 = vc.u32 %v7451, %v7470
    %v7477 = vadd.s32 %v7473, 1
    %v7478 = vsel %vm7476, %v7477, %v7473
    %v7479 = vadd.s32 %v7474, %v7478
    %v7480 = vadd.s32 %v7479, 536870912
    %v7481 = vshrl.u32 %v7480, 30
    %v7482 = vshll.u32 %v7481, 30
    %v7483 = vsub.s32 %v7479, %v7482
    %vm7484 = vcmp.lt.s32.totalorder %v7483, 0
    %v7485 = vsub.s32 0, %v7483
    %v7486 = vsel %vm7484, %v7485, %v7483
    %v7487 = vclz %v7486
    %v7488 = vsub.s32 %v7487, 2
    %vm7489 = vcmp.gt.s32.totalorder 0, %v7488
    %v7490 = vsel %vm7489, 0, %v7488
    %v7491 = vsub.s32 32, %v7490
    %v7492 = vshll.u32 %v7483, %v7490
    %v7493 = vshrl.u32 %v7475, %v7491
    %v7494 = vor.u32 %v7492, %v7493
    %v7495 = vsub.s32 4294967266, %v7490
    %v7496 = vadd.s32 %v7495, 127
    %v7497 = vshll.u32 %v7496, 23
    %v7498 = vor.u32 4788187, %v7497
    %v7499 = vand.u32 2147483647, %v7498
    %v7501 = vcvt.s32.f32 %v7494
    %v7502 = vmul.f32 %v7501, %v7499
    %v7503 = vxor.u32 %v7502, 2147483648
    %v7504 = vsel %vm7383, %v7503, %v7502
    %v7505 = vsub.s32 4, %v7481
    %v7506 = vsel %vm7383, %v7505, %v7481
    %v7507 = vsel %vm7382, %v316, %v7504
    %v7508 = vsel %vm7382, 0, %v7506
    %v7509 = vmul.f32 %v7507, %v7507
    %v7510 = vmul.f32 %v7509, -0.001358992
    %v7511 = vadd.f32 %v7510, 0.041655596
    %v7512 = vmul.f32 %v7509, %v7511
    %v7513 = vadd.f32 %v7512, -0.4999988
    %v7514 = vmul.f32 %v7509, %v7513
    %v7515 = vadd.f32 1.0, %v7514
    %v7516 = vmul.f32 %v7507, %v7507
    %v7517 = vmul.f32 %v7516, -0.00019511016
    %v7518 = vadd.f32 %v7517, 0.008332121
    %v7519 = vmul.f32 %v7516, %v7518
    %v7520 = vadd.f32 %v7519, -0.16666654
    %v7521 = vmul.f32 %v7516, %v7520
    %v7522 = vadd.f32 %v7521, 1.0
    %v7523 = vmul.f32 %v7522, %v7507
    %vm7524 = vweird.f32 %v316
    %v7525 = vand.u32 %v7508, 3
    %vm7526 = vcmp.lt.s32.totalorder %v7525, 2
    %vm7527 = vcmp.eq.s32.totalorder %v7525, 0
    %v7528 = vxor.u32 %v7523, 2147483648
    %v7529 = vsel %vm7527, %v7515, %v7528
    %vm7530 = vcmp.eq.s32.totalorder %v7525, 2
    %v7531 = vxor.u32 %v7515, 2147483648
    %v7532 = vsel %vm7530, %v7531, %v7523
    %v7533 = vsel %vm7526, %v7529, %v7532
    %v7534 = vsel %vm7524, nan, %v7533
    %v7535 = vand.u32 2147483647, %v317
    %vm7536 = vcmp.le.f32.partialorder %v7535, 0.7853982
    %vm7537 = vcmp.lt.s32.totalorder %v317, 0
    %v7538 = vand.u32 %v317, 2139095040
    %v7539 = vshrl.u32 %v7538, 23
    %v7540 = vsub.s32 %v7539, 127
    %v7541 = vand.u32 2147483647, %v317
    %v7542 = vand.u32 %v7541, 8388607
    %v7543 = vor.u32 %v7542, 8388608
    %v7544 = vsub.s32 0, %v7543
    %v7545 = vadd.s32 %v7540, 1
    %vm7546 = vcmp.gt.s32.totalorder %v7545, 0
    %v7547 = vsel %vm7546, %v7545, 0
    %v7548 = vshrl.u32 %v7547, 5
    %v7549 = vand.u32 %v7547, 31
    %v7550 = vsub.s32 32, %v7549
    %v7551 = vshrl.u32 683565275, %v7550
    %v7552 = vshll.u32 683565275, %v7549
    %v7553 = vshrl.u32 2475754826, %v7550
    %v7554 = vor.u32 %v7552, %v7553
    %v7555 = vshll.u32 2475754826, %v7549
    %v7556 = vshrl.u32 2131351028, %v7550
    %v7557 = vor.u32 %v7555, %v7556
    %v7558 = vshll.u32 2131351028, %v7549
    %v7559 = vshrl.u32 2102212464, %v7550
    %v7560 = vor.u32 %v7558, %v7559
    %v7561 = vshll.u32 2102212464, %v7549
    %v7562 = vshrl.u32 920167782, %v7550
    %v7563 = vor.u32 %v7561, %v7562
    %v7564 = vshll.u32 920167782, %v7549
    %v7565 = vshrl.u32 1326507024, %v7550
    %v7566 = vor.u32 %v7564, %v7565
    %vm7567 = vcmp.lt.s32.totalorder %v7548, 1
    %vm7568 = vcmp.lt.s32.totalorder %v7548, 2
    %vm7569 = vcmp.lt.s32.totalorder %v7548, 3
    %vm7570 = vcmp.lt.s32.totalorder %v7548, 4
    %v7571 = vsel %vm7567, %v7551, %v7554
    %v7572 = vsel %vm7570, %v7560, 2102212464
    %v7573 = vsel %vm7569, %v7557, %v7572
    %v7574 = vsel %vm7568, %v7571, %v7573
    %v7575 = vsel %vm7567, %v7554, %v7557
    %v7576 = vsel %vm7570, %v7563, 920167782
    %v7577 = vsel %vm7569, %v7560, %v7576
    %v7578 = vsel %vm7568, %v7575, %v7577
    %v7579 = vsel %vm7567, %v7557, %v7560
    %v7580 = vsel %vm7570, %v7566, 1326507024
    %v7581 = vsel %vm7569, %v7563, %v7580
    %v7582 = vsel %vm7568, %v7579, %v7581
    %v7583 = vshll.u32 %v7543, 8
    %v7584 = vand.u32 %v7583, 65535
    %v7585 = vshrl.u32 %v7583, 16
    %v7586 = vand.u32 %v7582, 65535
    %v7587 = vshrl.u32 %v7582, 16
    %v7588 = vmul.u32 %v7584, %v7586
    %v7589 = vmul.u32 %v7584, %v7587
    %v7590 = vmul.u32 %v7585, %v7586
    %v7591 = vmul.u32 %v7585, %v7587
    %v7592 = vshll.u32 %v7589, 16
    %v7593 = vshrl.u32 %v7589, 16
    %v7594 = vshll.u32 %v7590, 16
    %v7595 = vshrl.u32 %v7590, 16
    %vm7596 = vc.u32 %v7588, %v7592
    %v7597 = vsel %vm7596, 1, 0
    %v7598 = vadd.s32 %v7588, %v7592
    %v7599 = vadd.s32 %v7591, %v7597
    %vm7600 = vc.u32 %v7598, %v7594
    %v7601 = vsel %vm7600, 1, 0
    %v7602 = vadd.s32 %v7598, %v7594
    %v7603 = vadd.s32 %v7599, %v7601
    %v7604 = vadd.s32 %v7603, %v7593
    %v7605 = vadd.s32 %v7604, %v7595
    %v7606 = vand.u32 %v7583, 65535
    %v7607 = vshrl.u32 %v7583, 16
    %v7608 = vand.u32 %v7578, 65535
    %v7609 = vshrl.u32 %v7578, 16
    %v7610 = vmul.u32 %v7606, %v7608
    %v7611 = vmul.u32 %v7606, %v7609
    %v7612 = vmul.u32 %v7607, %v7608
    %v7613 = vmul.u32 %v7607, %v7609
    %v7614 = vshll.u32 %v7611, 16
    %v7615 = vshrl.u32 %v7611, 16
    %v7616 = vshll.u32 %v7612, 16
    %v7617 = vshrl.u32 %v7612, 16
    %vm7618 = vc.u32 %v7610, %v7614
    %v7619 = vsel %vm7618, 1, 0
    %v7620 = vadd.s32 %v7610, %v7614
    %v7621 = vadd.s32 %v7613, %v7619
    %vm7622 = vc.u32 %v7620, %v7616
    %v7623 = vsel %vm7622, 1, 0
    %v7624 = vadd.s32 %v7620, %v7616
    %v7625 = vadd.s32 %v7621, %v7623
    %v7626 = vadd.s32 %v7625, %v7615
    %v7627 = vadd.s32 %v7626, %v7617
    %v7628 = vmul.u32 %v7583, %v7574
    %v7629 = vadd.s32 %v7605, %v7624
    %vm7630 = vc.u32 %v7605, %v7624
    %v7631 = vadd.s32 %v7627, 1
    %v7632 = vsel %vm7630, %v7631, %v7627
    %v7633 = vadd.s32 %v7628, %v7632
    %v7634 = vadd.s32 %v7633, 536870912
    %v7635 = vshrl.u32 %v7634, 30
    %v7636 = vshll.u32 %v7635, 30
    %v7637 = vsub.s32 %v7633, %v7636
    %vm7638 = vcmp.lt.s32.totalorder %v7637, 0
    %v7639 = vsub.s32 0, %v7637
    %v7640 = vsel %vm7638, %v7639, %v7637
    %v7641 = vclz %v7640
    %v7642 = vsub.s32 %v7641, 2
    %vm7643 = vcmp.gt.s32.totalorder 0, %v7642
    %v7644 = vsel %vm7643, 0, %v7642
    %v7645 = vsub.s32 32, %v7644
    %v7646 = vshll.u32 %v7637, %v7644
    %v7647 = vshrl.u32 %v7629, %v7645
    %v7648 = vor.u32 %v7646, %v7647
    %v7649 = vsub.s32 4294967266, %v7644
    %v7650 = vadd.s32 %v7649, 127
    %v7651 = vshll.u32 %v7650, 23
    %v7652 = vor.u32 4788187, %v7651
    %v7653 = vand.u32 2147483647, %v7652
    %v7655 = vcvt.s32.f32 %v7648
    %v7656 = vmul.f32 %v7655, %v7653
    %v7657 = vxor.u32 %v7656, 2147483648
    %v7658 = vsel %vm7537, %v7657, %v7656
    %v7659 = vsub.s32 4, %v7635
    %v7660 = vsel %vm7537, %v7659, %v7635
    %v7661 = vsel %vm7536, %v317, %v7658
    %v7662 = vsel %vm7536, 0, %v7660
    %v7663 = vmul.f32 %v7661, %v7661
    %v7664 = vmul.f32 %v7663, -0.001358992
    %v7665 = vadd.f32 %v7664, 0.041655596
    %v7666 = vmul.f32 %v7663, %v7665
    %v7667 = vadd.f32 %v7666, -0.4999988
    %v7668 = vmul.f32 %v7663, %v7667
    %v7669 = vadd.f32 1.0, %v7668
    %v7670 = vmul.f32 %v7661, %v7661
    %v7671 = vmul.f32 %v7670, -0.00019511016
    %v7672 = vadd.f32 %v7671, 0.008332121
    %v7673 = vmul.f32 %v7670, %v7672
    %v7674 = vadd.f32 %v7673, -0.16666654
    %v7675 = vmul.f32 %v7670, %v7674
    %v7676 = vadd.f32 %v7675, 1.0
    %v7677 = vmul.f32 %v7676, %v7661
    %vm7678 = vweird.f32 %v317
    %v7679 = vand.u32 %v7662, 3
    %vm7680 = vcmp.lt.s32.totalorder %v7679, 2
    %vm7681 = vcmp.eq.s32.totalorder %v7679, 0
    %v7682 = vxor.u32 %v7677, 2147483648
    %v7683 = vsel %vm7681, %v7669, %v7682
    %vm7684 = vcmp.eq.s32.totalorder %v7679, 2
    %v7685 = vxor.u32 %v7669, 2147483648
    %v7686 = vsel %vm7684, %v7685, %v7677
    %v7687 = vsel %vm7680, %v7683, %v7686
    %v7688 = vsel %vm7678, nan, %v7687
    %v7689 = vand.u32 2147483647, %v318
    %vm7690 = vcmp.le.f32.partialorder %v7689, 0.7853982
    %vm7691 = vcmp.lt.s32.totalorder %v318, 0
    %v7692 = vand.u32 %v318, 2139095040
    %v7693 = vshrl.u32 %v7692, 23
    %v7694 = vsub.s32 %v7693, 127
    %v7695 = vand.u32 2147483647, %v318
    %v7696 = vand.u32 %v7695, 8388607
    %v7697 = vor.u32 %v7696, 8388608
    %v7698 = vsub.s32 0, %v7697
    %v7699 = vadd.s32 %v7694, 1
    %vm7700 = vcmp.gt.s32.totalorder %v7699, 0
    %v7701 = vsel %vm7700, %v7699, 0
    %v7702 = vshrl.u32 %v7701, 5
    %v7703 = vand.u32 %v7701, 31
    %v7704 = vsub.s32 32, %v7703
    %v7705 = vshrl.u32 683565275, %v7704
    %v7706 = vshll.u32 683565275, %v7703
    %v7707 = vshrl.u32 2475754826, %v7704
    %v7708 = vor.u32 %v7706, %v7707
    %v7709 = vshll.u32 2475754826, %v7703
    %v7710 = vshrl.u32 2131351028, %v7704
    %v7711 = vor.u32 %v7709, %v7710
    %v7712 = vshll.u32 2131351028, %v7703
    %v7713 = vshrl.u32 2102212464, %v7704
    %v7714 = vor.u32 %v7712, %v7713
    %v7715 = vshll.u32 2102212464, %v7703
    %v7716 = vshrl.u32 920167782, %v7704
    %v7717 = vor.u32 %v7715, %v7716
    %v7718 = vshll.u32 920167782, %v7703
    %v7719 = vshrl.u32 1326507024, %v7704
    %v7720 = vor.u32 %v7718, %v7719
    %vm7721 = vcmp.lt.s32.totalorder %v7702, 1
    %vm7722 = vcmp.lt.s32.totalorder %v7702, 2
    %vm7723 = vcmp.lt.s32.totalorder %v7702, 3
    %vm7724 = vcmp.lt.s32.totalorder %v7702, 4
    %v7725 = vsel %vm7721, %v7705, %v7708
    %v7726 = vsel %vm7724, %v7714, 2102212464
    %v7727 = vsel %vm7723, %v7711, %v7726
    %v7728 = vsel %vm7722, %v7725, %v7727
    %v7729 = vsel %vm7721, %v7708, %v7711
    %v7730 = vsel %vm7724, %v7717, 920167782
    %v7731 = vsel %vm7723, %v7714, %v7730
    %v7732 = vsel %vm7722, %v7729, %v7731
    %v7733 = vsel %vm7721, %v7711, %v7714
    %v7734 = vsel %vm7724, %v7720, 1326507024
    %v7735 = vsel %vm7723, %v7717, %v7734
    %v7736 = vsel %vm7722, %v7733, %v7735
    %v7737 = vshll.u32 %v7697, 8
    %v7738 = vand.u32 %v7737, 65535
    %v7739 = vshrl.u32 %v7737, 16
    %v7740 = vand.u32 %v7736, 65535
    %v7741 = vshrl.u32 %v7736, 16
    %v7742 = vmul.u32 %v7738, %v7740
    %v7743 = vmul.u32 %v7738, %v7741
    %v7744 = vmul.u32 %v7739, %v7740
    %v7745 = vmul.u32 %v7739, %v7741
    %v7746 = vshll.u32 %v7743, 16
    %v7747 = vshrl.u32 %v7743, 16
    %v7748 = vshll.u32 %v7744, 16
    %v7749 = vshrl.u32 %v7744, 16
    %vm7750 = vc.u32 %v7742, %v7746
    %v7751 = vsel %vm7750, 1, 0
    %v7752 = vadd.s32 %v7742, %v7746
    %v7753 = vadd.s32 %v7745, %v7751
    %vm7754 = vc.u32 %v7752, %v7748
    %v7755 = vsel %vm7754, 1, 0
    %v7756 = vadd.s32 %v7752, %v7748
    %v7757 = vadd.s32 %v7753, %v7755
    %v7758 = vadd.s32 %v7757, %v7747
    %v7759 = vadd.s32 %v7758, %v7749
    %v7760 = vand.u32 %v7737, 65535
    %v7761 = vshrl.u32 %v7737, 16
    %v7762 = vand.u32 %v7732, 65535
    %v7763 = vshrl.u32 %v7732, 16
    %v7764 = vmul.u32 %v7760, %v7762
    %v7765 = vmul.u32 %v7760, %v7763
    %v7766 = vmul.u32 %v7761, %v7762
    %v7767 = vmul.u32 %v7761, %v7763
    %v7768 = vshll.u32 %v7765, 16
    %v7769 = vshrl.u32 %v7765, 16
    %v7770 = vshll.u32 %v7766, 16
    %v7771 = vshrl.u32 %v7766, 16
    %vm7772 = vc.u32 %v7764, %v7768
    %v7773 = vsel %vm7772, 1, 0
    %v7774 = vadd.s32 %v7764, %v7768
    %v7775 = vadd.s32 %v7767, %v7773
    %vm7776 = vc.u32 %v7774, %v7770
    %v7777 = vsel %vm7776, 1, 0
    %v7778 = vadd.s32 %v7774, %v7770
    %v7779 = vadd.s32 %v7775, %v7777
    %v7780 = vadd.s32 %v7779, %v7769
    %v7781 = vadd.s32 %v7780, %v7771
    %v7782 = vmul.u32 %v7737, %v7728
    %v7783 = vadd.s32 %v7759, %v7778
    %vm7784 = vc.u32 %v7759, %v7778
    %v7785 = vadd.s32 %v7781, 1
    %v7786 = vsel %vm7784, %v7785, %v7781
    %v7787 = vadd.s32 %v7782, %v7786
    %v7788 = vadd.s32 %v7787, 536870912
    %v7789 = vshrl.u32 %v7788, 30
    %v7790 = vshll.u32 %v7789, 30
    %v7791 = vsub.s32 %v7787, %v7790
    %vm7792 = vcmp.lt.s32.totalorder %v7791, 0
    %v7793 = vsub.s32 0, %v7791
    %v7794 = vsel %vm7792, %v7793, %v7791
    %v7795 = vclz %v7794
    %v7796 = vsub.s32 %v7795, 2
    %vm7797 = vcmp.gt.s32.totalorder 0, %v7796
    %v7798 = vsel %vm7797, 0, %v7796
    %v7799 = vsub.s32 32, %v7798
    %v7800 = vshll.u32 %v7791, %v7798
    %v7801 = vshrl.u32 %v7783, %v7799
    %v7802 = vor.u32 %v7800, %v7801
    %v7803 = vsub.s32 4294967266, %v7798
    %v7804 = vadd.s32 %v7803, 127
    %v7805 = vshll.u32 %v7804, 23
    %v7806 = vor.u32 4788187, %v7805
    %v7807 = vand.u32 2147483647, %v7806
    %v7809 = vcvt.s32.f32 %v7802
    %v7810 = vmul.f32 %v7809, %v7807
    %v7811 = vxor.u32 %v7810, 2147483648
    %v7812 = vsel %vm7691, %v7811, %v7810
    %v7813 = vsub.s32 4, %v7789
    %v7814 = vsel %vm7691, %v7813, %v7789
    %v7815 = vsel %vm7690, %v318, %v7812
    %v7816 = vsel %vm7690, 0, %v7814
    %v7817 = vmul.f32 %v7815, %v7815
    %v7818 = vmul.f32 %v7817, -0.001358992
    %v7819 = vadd.f32 %v7818, 0.041655596
    %v7820 = vmul.f32 %v7817, %v7819
    %v7821 = vadd.f32 %v7820, -0.4999988
    %v7822 = vmul.f32 %v7817, %v7821
    %v7823 = vadd.f32 1.0, %v7822
    %v7824 = vmul.f32 %v7815, %v7815
    %v7825 = vmul.f32 %v7824, -0.00019511016
    %v7826 = vadd.f32 %v7825, 0.008332121
    %v7827 = vmul.f32 %v7824, %v7826
    %v7828 = vadd.f32 %v7827, -0.16666654
    %v7829 = vmul.f32 %v7824, %v7828
    %v7830 = vadd.f32 %v7829, 1.0
    %v7831 = vmul.f32 %v7830, %v7815
    %vm7832 = vweird.f32 %v318
    %v7833 = vand.u32 %v7816, 3
    %vm7834 = vcmp.lt.s32.totalorder %v7833, 2
    %vm7835 = vcmp.eq.s32.totalorder %v7833, 0
    %v7836 = vxor.u32 %v7831, 2147483648
    %v7837 = vsel %vm7835, %v7823, %v7836
    %vm7838 = vcmp.eq.s32.totalorder %v7833, 2
    %v7839 = vxor.u32 %v7823, 2147483648
    %v7840 = vsel %vm7838, %v7839, %v7831
    %v7841 = vsel %vm7834, %v7837, %v7840
    %v7842 = vsel %vm7832, nan, %v7841
    %v7843 = vand.u32 2147483647, %v319
    %vm7844 = vcmp.le.f32.partialorder %v7843, 0.7853982
    %vm7845 = vcmp.lt.s32.totalorder %v319, 0
    %v7846 = vand.u32 %v319, 2139095040
    %v7847 = vshrl.u32 %v7846, 23
    %v7848 = vsub.s32 %v7847, 127
    %v7849 = vand.u32 2147483647, %v319
    %v7850 = vand.u32 %v7849, 8388607
    %v7851 = vor.u32 %v7850, 8388608
    %v7852 = vsub.s32 0, %v7851
    %v7853 = vadd.s32 %v7848, 1
    %vm7854 = vcmp.gt.s32.totalorder %v7853, 0
    %v7855 = vsel %vm7854, %v7853, 0
    %v7856 = vshrl.u32 %v7855, 5
    %v7857 = vand.u32 %v7855, 31
    %v7858 = vsub.s32 32, %v7857
    %v7859 = vshrl.u32 683565275, %v7858
    %v7860 = vshll.u32 683565275, %v7857
    %v7861 = vshrl.u32 2475754826, %v7858
    %v7862 = vor.u32 %v7860, %v7861
    %v7863 = vshll.u32 2475754826, %v7857
    %v7864 = vshrl.u32 2131351028, %v7858
    %v7865 = vor.u32 %v7863, %v7864
    %v7866 = vshll.u32 2131351028, %v7857
    %v7867 = vshrl.u32 2102212464, %v7858
    %v7868 = vor.u32 %v7866, %v7867
    %v7869 = vshll.u32 2102212464, %v7857
    %v7870 = vshrl.u32 920167782, %v7858
    %v7871 = vor.u32 %v7869, %v7870
    %v7872 = vshll.u32 920167782, %v7857
    %v7873 = vshrl.u32 1326507024, %v7858
    %v7874 = vor.u32 %v7872, %v7873
    %vm7875 = vcmp.lt.s32.totalorder %v7856, 1
    %vm7876 = vcmp.lt.s32.totalorder %v7856, 2
    %vm7877 = vcmp.lt.s32.totalorder %v7856, 3
    %vm7878 = vcmp.lt.s32.totalorder %v7856, 4
    %v7879 = vsel %vm7875, %v7859, %v7862
    %v7880 = vsel %vm7878, %v7868, 2102212464
    %v7881 = vsel %vm7877, %v7865, %v7880
    %v7882 = vsel %vm7876, %v7879, %v7881
    %v7883 = vsel %vm7875, %v7862, %v7865
    %v7884 = vsel %vm7878, %v7871, 920167782
    %v7885 = vsel %vm7877, %v7868, %v7884
    %v7886 = vsel %vm7876, %v7883, %v7885
    %v7887 = vsel %vm7875, %v7865, %v7868
    %v7888 = vsel %vm7878, %v7874, 1326507024
    %v7889 = vsel %vm7877, %v7871, %v7888
    %v7890 = vsel %vm7876, %v7887, %v7889
    %v7891 = vshll.u32 %v7851, 8
    %v7892 = vand.u32 %v7891, 65535
    %v7893 = vshrl.u32 %v7891, 16
    %v7894 = vand.u32 %v7890, 65535
    %v7895 = vshrl.u32 %v7890, 16
    %v7896 = vmul.u32 %v7892, %v7894
    %v7897 = vmul.u32 %v7892, %v7895
    %v7898 = vmul.u32 %v7893, %v7894
    %v7899 = vmul.u32 %v7893, %v7895
    %v7900 = vshll.u32 %v7897, 16
    %v7901 = vshrl.u32 %v7897, 16
    %v7902 = vshll.u32 %v7898, 16
    %v7903 = vshrl.u32 %v7898, 16
    %vm7904 = vc.u32 %v7896, %v7900
    %v7905 = vsel %vm7904, 1, 0
    %v7906 = vadd.s32 %v7896, %v7900
    %v7907 = vadd.s32 %v7899, %v7905
    %vm7908 = vc.u32 %v7906, %v7902
    %v7909 = vsel %vm7908, 1, 0
    %v7910 = vadd.s32 %v7906, %v7902
    %v7911 = vadd.s32 %v7907, %v7909
    %v7912 = vadd.s32 %v7911, %v7901
    %v7913 = vadd.s32 %v7912, %v7903
    %v7914 = vand.u32 %v7891, 65535
    %v7915 = vshrl.u32 %v7891, 16
    %v7916 = vand.u32 %v7886, 65535
    %v7917 = vshrl.u32 %v7886, 16
    %v7918 = vmul.u32 %v7914, %v7916
    %v7919 = vmul.u32 %v7914, %v7917
    %v7920 = vmul.u32 %v7915, %v7916
    %v7921 = vmul.u32 %v7915, %v7917
    %v7922 = vshll.u32 %v7919, 16
    %v7923 = vshrl.u32 %v7919, 16
    %v7924 = vshll.u32 %v7920, 16
    %v7925 = vshrl.u32 %v7920, 16
    %vm7926 = vc.u32 %v7918, %v7922
    %v7927 = vsel %vm7926, 1, 0
    %v7928 = vadd.s32 %v7918, %v7922
    %v7929 = vadd.s32 %v7921, %v7927
    %vm7930 = vc.u32 %v7928, %v7924
    %v7931 = vsel %vm7930, 1, 0
    %v7932 = vadd.s32 %v7928, %v7924
    %v7933 = vadd.s32 %v7929, %v7931
    %v7934 = vadd.s32 %v7933, %v7923
    %v7935 = vadd.s32 %v7934, %v7925
    %v7936 = vmul.u32 %v7891, %v7882
    %v7937 = vadd.s32 %v7913, %v7932
    %vm7938 = vc.u32 %v7913, %v7932
    %v7939 = vadd.s32 %v7935, 1
    %v7940 = vsel %vm7938, %v7939, %v7935
    %v7941 = vadd.s32 %v7936, %v7940
    %v7942 = vadd.s32 %v7941, 536870912
    %v7943 = vshrl.u32 %v7942, 30
    %v7944 = vshll.u32 %v7943, 30
    %v7945 = vsub.s32 %v7941, %v7944
    %vm7946 = vcmp.lt.s32.totalorder %v7945, 0
    %v7947 = vsub.s32 0, %v7945
    %v7948 = vsel %vm7946, %v7947, %v7945
    %v7949 = vclz %v7948
    %v7950 = vsub.s32 %v7949, 2
    %vm7951 = vcmp.gt.s32.totalorder 0, %v7950
    %v7952 = vsel %vm7951, 0, %v7950
    %v7953 = vsub.s32 32, %v7952
    %v7954 = vshll.u32 %v7945, %v7952
    %v7955 = vshrl.u32 %v7937, %v7953
    %v7956 = vor.u32 %v7954, %v7955
    %v7957 = vsub.s32 4294967266, %v7952
    %v7958 = vadd.s32 %v7957, 127
    %v7959 = vshll.u32 %v7958, 23
    %v7960 = vor.u32 4788187, %v7959
    %v7961 = vand.u32 2147483647, %v7960
    %v7963 = vcvt.s32.f32 %v7956
    %v7964 = vmul.f32 %v7963, %v7961
    %v7965 = vxor.u32 %v7964, 2147483648
    %v7966 = vsel %vm7845, %v7965, %v7964
    %v7967 = vsub.s32 4, %v7943
    %v7968 = vsel %vm7845, %v7967, %v7943
    %v7969 = vsel %vm7844, %v319, %v7966
    %v7970 = vsel %vm7844, 0, %v7968
    %v7971 = vmul.f32 %v7969, %v7969
    %v7972 = vmul.f32 %v7971, -0.001358992
    %v7973 = vadd.f32 %v7972, 0.041655596
    %v7974 = vmul.f32 %v7971, %v7973
    %v7975 = vadd.f32 %v7974, -0.4999988
    %v7976 = vmul.f32 %v7971, %v7975
    %v7977 = vadd.f32 1.0, %v7976
    %v7978 = vmul.f32 %v7969, %v7969
    %v7979 = vmul.f32 %v7978, -0.00019511016
    %v7980 = vadd.f32 %v7979, 0.008332121
    %v7981 = vmul.f32 %v7978, %v7980
    %v7982 = vadd.f32 %v7981, -0.16666654
    %v7983 = vmul.f32 %v7978, %v7982
    %v7984 = vadd.f32 %v7983, 1.0
    %v7985 = vmul.f32 %v7984, %v7969
    %vm7986 = vweird.f32 %v319
    %v7987 = vand.u32 %v7970, 3
    %vm7988 = vcmp.lt.s32.totalorder %v7987, 2
    %vm7989 = vcmp.eq.s32.totalorder %v7987, 0
    %v7990 = vxor.u32 %v7985, 2147483648
    %v7991 = vsel %vm7989, %v7977, %v7990
    %vm7992 = vcmp.eq.s32.totalorder %v7987, 2
    %v7993 = vxor.u32 %v7977, 2147483648
    %v7994 = vsel %vm7992, %v7993, %v7985
    %v7995 = vsel %vm7988, %v7991, %v7994
    %v7996 = vsel %vm7986, nan, %v7995
    %v7997 = vand.u32 2147483647, %v320
    %vm7998 = vcmp.le.f32.partialorder %v7997, 0.7853982
    %vm7999 = vcmp.lt.s32.totalorder %v320, 0
    %v8000 = vand.u32 %v320, 2139095040
    %v8001 = vshrl.u32 %v8000, 23
    %v8002 = vsub.s32 %v8001, 127
    %v8003 = vand.u32 2147483647, %v320
    %v8004 = vand.u32 %v8003, 8388607
    %v8005 = vor.u32 %v8004, 8388608
    %v8006 = vsub.s32 0, %v8005
    %v8007 = vadd.s32 %v8002, 1
    %vm8008 = vcmp.gt.s32.totalorder %v8007, 0
    %v8009 = vsel %vm8008, %v8007, 0
    %v8010 = vshrl.u32 %v8009, 5
    %v8011 = vand.u32 %v8009, 31
    %v8012 = vsub.s32 32, %v8011
    %v8013 = vshrl.u32 683565275, %v8012
    %v8014 = vshll.u32 683565275, %v8011
    %v8015 = vshrl.u32 2475754826, %v8012
    %v8016 = vor.u32 %v8014, %v8015
    %v8017 = vshll.u32 2475754826, %v8011
    %v8018 = vshrl.u32 2131351028, %v8012
    %v8019 = vor.u32 %v8017, %v8018
    %v8020 = vshll.u32 2131351028, %v8011
    %v8021 = vshrl.u32 2102212464, %v8012
    %v8022 = vor.u32 %v8020, %v8021
    %v8023 = vshll.u32 2102212464, %v8011
    %v8024 = vshrl.u32 920167782, %v8012
    %v8025 = vor.u32 %v8023, %v8024
    %v8026 = vshll.u32 920167782, %v8011
    %v8027 = vshrl.u32 1326507024, %v8012
    %v8028 = vor.u32 %v8026, %v8027
    %vm8029 = vcmp.lt.s32.totalorder %v8010, 1
    %vm8030 = vcmp.lt.s32.totalorder %v8010, 2
    %vm8031 = vcmp.lt.s32.totalorder %v8010, 3
    %vm8032 = vcmp.lt.s32.totalorder %v8010, 4
    %v8033 = vsel %vm8029, %v8013, %v8016
    %v8034 = vsel %vm8032, %v8022, 2102212464
    %v8035 = vsel %vm8031, %v8019, %v8034
    %v8036 = vsel %vm8030, %v8033, %v8035
    %v8037 = vsel %vm8029, %v8016, %v8019
    %v8038 = vsel %vm8032, %v8025, 920167782
    %v8039 = vsel %vm8031, %v8022, %v8038
    %v8040 = vsel %vm8030, %v8037, %v8039
    %v8041 = vsel %vm8029, %v8019, %v8022
    %v8042 = vsel %vm8032, %v8028, 1326507024
    %v8043 = vsel %vm8031, %v8025, %v8042
    %v8044 = vsel %vm8030, %v8041, %v8043
    %v8045 = vshll.u32 %v8005, 8
    %v8046 = vand.u32 %v8045, 65535
    %v8047 = vshrl.u32 %v8045, 16
    %v8048 = vand.u32 %v8044, 65535
    %v8049 = vshrl.u32 %v8044, 16
    %v8050 = vmul.u32 %v8046, %v8048
    %v8051 = vmul.u32 %v8046, %v8049
    %v8052 = vmul.u32 %v8047, %v8048
    %v8053 = vmul.u32 %v8047, %v8049
    %v8054 = vshll.u32 %v8051, 16
    %v8055 = vshrl.u32 %v8051, 16
    %v8056 = vshll.u32 %v8052, 16
    %v8057 = vshrl.u32 %v8052, 16
    %vm8058 = vc.u32 %v8050, %v8054
    %v8059 = vsel %vm8058, 1, 0
    %v8060 = vadd.s32 %v8050, %v8054
    %v8061 = vadd.s32 %v8053, %v8059
    %vm8062 = vc.u32 %v8060, %v8056
    %v8063 = vsel %vm8062, 1, 0
    %v8064 = vadd.s32 %v8060, %v8056
    %v8065 = vadd.s32 %v8061, %v8063
    %v8066 = vadd.s32 %v8065, %v8055
    %v8067 = vadd.s32 %v8066, %v8057
    %v8068 = vand.u32 %v8045, 65535
    %v8069 = vshrl.u32 %v8045, 16
    %v8070 = vand.u32 %v8040, 65535
    %v8071 = vshrl.u32 %v8040, 16
    %v8072 = vmul.u32 %v8068, %v8070
    %v8073 = vmul.u32 %v8068, %v8071
    %v8074 = vmul.u32 %v8069, %v8070
    %v8075 = vmul.u32 %v8069, %v8071
    %v8076 = vshll.u32 %v8073, 16
    %v8077 = vshrl.u32 %v8073, 16
    %v8078 = vshll.u32 %v8074, 16
    %v8079 = vshrl.u32 %v8074, 16
    %vm8080 = vc.u32 %v8072, %v8076
    %v8081 = vsel %vm8080, 1, 0
    %v8082 = vadd.s32 %v8072, %v8076
    %v8083 = vadd.s32 %v8075, %v8081
    %vm8084 = vc.u32 %v8082, %v8078
    %v8085 = vsel %vm8084, 1, 0
    %v8086 = vadd.s32 %v8082, %v8078
    %v8087 = vadd.s32 %v8083, %v8085
    %v8088 = vadd.s32 %v8087, %v8077
    %v8089 = vadd.s32 %v8088, %v8079
    %v8090 = vmul.u32 %v8045, %v8036
    %v8091 = vadd.s32 %v8067, %v8086
    %vm8092 = vc.u32 %v8067, %v8086
    %v8093 = vadd.s32 %v8089, 1
    %v8094 = vsel %vm8092, %v8093, %v8089
    %v8095 = vadd.s32 %v8090, %v8094
    %v8096 = vadd.s32 %v8095, 536870912
    %v8097 = vshrl.u32 %v8096, 30
    %v8098 = vshll.u32 %v8097, 30
    %v8099 = vsub.s32 %v8095, %v8098
    %vm8100 = vcmp.lt.s32.totalorder %v8099, 0
    %v8101 = vsub.s32 0, %v8099
    %v8102 = vsel %vm8100, %v8101, %v8099
    %v8103 = vclz %v8102
    %v8104 = vsub.s32 %v8103, 2
    %vm8105 = vcmp.gt.s32.totalorder 0, %v8104
    %v8106 = vsel %vm8105, 0, %v8104
    %v8107 = vsub.s32 32, %v8106
    %v8108 = vshll.u32 %v8099, %v8106
    %v8109 = vshrl.u32 %v8091, %v8107
    %v8110 = vor.u32 %v8108, %v8109
    %v8111 = vsub.s32 4294967266, %v8106
    %v8112 = vadd.s32 %v8111, 127
    %v8113 = vshll.u32 %v8112, 23
    %v8114 = vor.u32 4788187, %v8113
    %v8115 = vand.u32 2147483647, %v8114
    %v8117 = vcvt.s32.f32 %v8110
    %v8118 = vmul.f32 %v8117, %v8115
    %v8119 = vxor.u32 %v8118, 2147483648
    %v8120 = vsel %vm7999, %v8119, %v8118
    %v8121 = vsub.s32 4, %v8097
    %v8122 = vsel %vm7999, %v8121, %v8097
    %v8123 = vsel %vm7998, %v320, %v8120
    %v8124 = vsel %vm7998, 0, %v8122
    %v8125 = vmul.f32 %v8123, %v8123
    %v8126 = vmul.f32 %v8125, -0.001358992
    %v8127 = vadd.f32 %v8126, 0.041655596
    %v8128 = vmul.f32 %v8125, %v8127
    %v8129 = vadd.f32 %v8128, -0.4999988
    %v8130 = vmul.f32 %v8125, %v8129
    %v8131 = vadd.f32 1.0, %v8130
    %v8132 = vmul.f32 %v8123, %v8123
    %v8133 = vmul.f32 %v8132, -0.00019511016
    %v8134 = vadd.f32 %v8133, 0.008332121
    %v8135 = vmul.f32 %v8132, %v8134
    %v8136 = vadd.f32 %v8135, -0.16666654
    %v8137 = vmul.f32 %v8132, %v8136
    %v8138 = vadd.f32 %v8137, 1.0
    %v8139 = vmul.f32 %v8138, %v8123
    %vm8140 = vweird.f32 %v320
    %v8141 = vand.u32 %v8124, 3
    %vm8142 = vcmp.lt.s32.totalorder %v8141, 2
    %vm8143 = vcmp.eq.s32.totalorder %v8141, 0
    %v8144 = vxor.u32 %v8139, 2147483648
    %v8145 = vsel %vm8143, %v8131, %v8144
    %vm8146 = vcmp.eq.s32.totalorder %v8141, 2
    %v8147 = vxor.u32 %v8131, 2147483648
    %v8148 = vsel %vm8146, %v8147, %v8139
    %v8149 = vsel %vm8142, %v8145, %v8148
    %v8150 = vsel %vm8140, nan, %v8149
    %s8151 = scalar_lea.vmem %s4, 320
    %v8152 = vld [vmem:[%s8151] sm:$0xff]
    %v8153 = vld [vmem:[%s8151 + $0x8] sm:$0xff]
    %v8154 = vld [vmem:[%s8151 + $0x10] sm:$0xff]
    %v8155 = vld [vmem:[%s8151 + $0x18] sm:$0xff]
    %v8156 = vld [vmem:[%s8151 + $0x20] sm:$0xff]
    %v8157 = vld [vmem:[%s8151 + $0x28] sm:$0xff]
    %v8158 = vld [vmem:[%s8151 + $0x30] sm:$0xff]
    %v8159 = vld [vmem:[%s8151 + $0x38] sm:$0xff]
    %v8161 = vsel %vm1570, %v7072, 0
    %v8164 = vsel %vm1570, %v7226, 0
    %v8167 = vsel %vm1570, %v7380, 0
    %v8170 = vsel %vm1570, %v7534, 0
    %v8173 = vsel %vm1570, %v7688, 0
    %v8176 = vsel %vm1570, %v7842, 0
    %v8179 = vsel %vm1570, %v7996, 0
    %v8182 = vsel %vm1570, %v8150, 0
    %8184 = vmatpush.msra.mxu0 0.0
    %8185 = vmatpush.msra.mxu0 0.0
    %8186 = vmatpush.msra.mxu0 0.0
    %8187 = vmatpush.msra.mxu0 0.0
    %8188 = vmatpush.msra.mxu0 0.0
    %8189 = vmatpush.msra.mxu0 0.0
    %8190 = vmatpush.msra.mxu0 0.0
    %8191 = vmatpush.msra.mxu0 0.0
    %8192 = vmatpush.msra.mxu0 %v8159
    %8193 = vmatpush.msra.mxu0 %v8158
    %8194 = vmatpush.msra.mxu0 %v8157
    %8195 = vmatpush.msra.mxu0 %v8156
    %8196 = vmatpush.msra.mxu0 %v8155
    %8197 = vmatpush.msra.mxu0 %v8154
    %8198 = vmatpush.msra.mxu0 %v8153
    %8199 = vmatpush.msra.mxu0 %v8152
    %8200 = vmatmul.f32.gmra.mxu0 %v8161
    %v8201 = vpop.f32.mrf.mxu0
    %v8202 = vadd.f32 0.0, %v8201
    %8203 = vmatmul.f32.gmra.mxu0 %v8164
    %v8204 = vpop.f32.mrf.mxu0
    %v8205 = vadd.f32 0.0, %v8204
    %8206 = vmatmul.f32.gmra.mxu0 %v8167
    %v8207 = vpop.f32.mrf.mxu0
    %v8208 = vadd.f32 0.0, %v8207
    %8209 = vmatmul.f32.gmra.mxu0 %v8170
    %v8210 = vpop.f32.mrf.mxu0
    %v8211 = vadd.f32 0.0, %v8210
    %8212 = vmatmul.f32.gmra.mxu0 %v8173
    %v8213 = vpop.f32.mrf.mxu0
    %v8214 = vadd.f32 0.0, %v8213
    %8215 = vmatmul.f32.gmra.mxu0 %v8176
    %v8216 = vpop.f32.mrf.mxu0
    %v8217 = vadd.f32 0.0, %v8216
    %8218 = vmatmul.f32.gmra.mxu0 %v8179
    %v8219 = vpop.f32.mrf.mxu0
    %v8220 = vadd.f32 0.0, %v8219
    %8221 = vmatmul.f32.gmra.mxu0 %v8182
    %v8222 = vpop.f32.mrf.mxu0
    %v8223 = vadd.f32 0.0, %v8222
    %8224 = vdwg.mxu0
    %v8225 = vadd.f32 %v6911, %v8202
    %v8226 = vadd.f32 %v6912, %v8205
    %v8227 = vadd.f32 %v6913, %v8208
    %v8228 = vadd.f32 %v6914, %v8211
    %v8229 = vadd.f32 %v6915, %v8214
    %v8230 = vadd.f32 %v6916, %v8217
    %v8231 = vadd.f32 %v6917, %v8220
    %v8232 = vadd.f32 %v6918, %v8223
    %v8233 = vmul.f32 %v8225, 0.5
    %v8234 = vmul.f32 %v8226, 0.5
    %v8235 = vmul.f32 %v8227, 0.5
    %v8236 = vmul.f32 %v8228, 0.5
    %v8237 = vmul.f32 %v8229, 0.5
    %v8238 = vmul.f32 %v8230, 0.5
    %v8239 = vmul.f32 %v8231, 0.5
    %v8240 = vmul.f32 %v8232, 0.5
    %v8241 = vmul.f32 %v8225, 0.70710677
    %v8242 = vmul.f32 %v8226, 0.70710677
    %v8243 = vmul.f32 %v8227, 0.70710677
    %v8244 = vmul.f32 %v8228, 0.70710677
    %v8245 = vmul.f32 %v8229, 0.70710677
    %v8246 = vmul.f32 %v8230, 0.70710677
    %v8247 = vmul.f32 %v8231, 0.70710677
    %v8248 = vmul.f32 %v8232, 0.70710677
    %v8249 = vmul.f32 %v8241, %v8241
    %v8250 = vmin.f32 16.0, %v8249
    %v8251 = vmul.f32 %v8250, 2.1237322e-06
    %v8252 = vadd.f32 %v8251, 0.00028619796
    %v8253 = vmul.f32 %v8250, %v8252
    %v8254 = vadd.f32 %v8253, 0.0036580483
    %v8255 = vmul.f32 %v8250, %v8254
    %v8256 = vadd.f32 %v8255, 0.05243302
    %v8257 = vmul.f32 %v8250, %v8256
    %v8258 = vadd.f32 %v8257, 0.18741608
    %v8259 = vmul.f32 %v8250, %v8258
    %v8260 = vadd.f32 %v8259, 1.1283791
    %v8261 = vmul.f32 %v8241, %v8260
    %v8262 = vmul.f32 %v8250, 3.8918573e-05
    %v8263 = vadd.f32 %v8262, 0.001143296
    %v8264 = vmul.f32 %v8250, %v8263
    %v8265 = vadd.f32 %v8264, 0.014752088
    %v8266 = vmul.f32 %v8250, %v8265
    %v8267 = vadd.f32 %v8266, 0.112945676
    %v8268 = vmul.f32 %v8250, %v8267
    %v8269 = vadd.f32 %v8268, 0.4994258
    %v8270 = vmul.f32 %v8250, %v8269
    %v8271 = vadd.f32 %v8270, 1.0
    %v8272 = vrcp.pop %v8271
    %v8273 = vmul.f32 %v8271, %v8272
    %v8274 = vsub.f32 1.0, %v8273
    %v8275 = vmul.f32 %v8272, %v8274
    %v8276 = vadd.f32 %v8272, %v8275
    %vm8277 = vweird.f32 %v8271
    %vm8278 = vweird.f32 %v8272
    %vm8279 = vmor %vm8277, %vm8278
    %v8280 = vsel %vm8279, %v8272, %v8276
    %v8281 = vand.u32 2147483647, %v8271
    %vm8282 = vcmp.eq.f32.partialorder %v8281, 8.507059e+37
    %v8283 = vand.u32 %v8271, 2147483648
    %v8284 = vor.u32 1.1754944e-38, %v8283
    %v8285 = vsel %vm8282, %v8284, %v8280
    %v8286 = vmul.f32 %v8261, %v8285
    %v8287 = vmin.f32 %v8286, 1.0
    %v8288 = vmax.f32 %v8287, -1.0
    %v8289 = vmul.f32 %v8242, %v8242
    %v8290 = vmin.f32 16.0, %v8289
    %v8291 = vmul.f32 %v8290, 2.1237322e-06
    %v8292 = vadd.f32 %v8291, 0.00028619796
    %v8293 = vmul.f32 %v8290, %v8292
    %v8294 = vadd.f32 %v8293, 0.0036580483
    %v8295 = vmul.f32 %v8290, %v8294
    %v8296 = vadd.f32 %v8295, 0.05243302
    %v8297 = vmul.f32 %v8290, %v8296
    %v8298 = vadd.f32 %v8297, 0.18741608
    %v8299 = vmul.f32 %v8290, %v8298
    %v8300 = vadd.f32 %v8299, 1.1283791
    %v8301 = vmul.f32 %v8242, %v8300
    %v8302 = vmul.f32 %v8290, 3.8918573e-05
    %v8303 = vadd.f32 %v8302, 0.001143296
    %v8304 = vmul.f32 %v8290, %v8303
    %v8305 = vadd.f32 %v8304, 0.014752088
    %v8306 = vmul.f32 %v8290, %v8305
    %v8307 = vadd.f32 %v8306, 0.112945676
    %v8308 = vmul.f32 %v8290, %v8307
    %v8309 = vadd.f32 %v8308, 0.4994258
    %v8310 = vmul.f32 %v8290, %v8309
    %v8311 = vadd.f32 %v8310, 1.0
    %v8312 = vrcp.pop %v8311
    %v8313 = vmul.f32 %v8311, %v8312
    %v8314 = vsub.f32 1.0, %v8313
    %v8315 = vmul.f32 %v8312, %v8314
    %v8316 = vadd.f32 %v8312, %v8315
    %vm8317 = vweird.f32 %v8311
    %vm8318 = vweird.f32 %v8312
    %vm8319 = vmor %vm8317, %vm8318
    %v8320 = vsel %vm8319, %v8312, %v8316
    %v8321 = vand.u32 2147483647, %v8311
    %vm8322 = vcmp.eq.f32.partialorder %v8321, 8.507059e+37
    %v8323 = vand.u32 %v8311, 2147483648
    %v8324 = vor.u32 1.1754944e-38, %v8323
    %v8325 = vsel %vm8322, %v8324, %v8320
    %v8326 = vmul.f32 %v8301, %v8325
    %v8327 = vmin.f32 %v8326, 1.0
    %v8328 = vmax.f32 %v8327, -1.0
    %v8329 = vmul.f32 %v8243, %v8243
    %v8330 = vmin.f32 16.0, %v8329
    %v8331 = vmul.f32 %v8330, 2.1237322e-06
    %v8332 = vadd.f32 %v8331, 0.00028619796
    %v8333 = vmul.f32 %v8330, %v8332
    %v8334 = vadd.f32 %v8333, 0.0036580483
    %v8335 = vmul.f32 %v8330, %v8334
    %v8336 = vadd.f32 %v8335, 0.05243302
    %v8337 = vmul.f32 %v8330, %v8336
    %v8338 = vadd.f32 %v8337, 0.18741608
    %v8339 = vmul.f32 %v8330, %v8338
    %v8340 = vadd.f32 %v8339, 1.1283791
    %v8341 = vmul.f32 %v8243, %v8340
    %v8342 = vmul.f32 %v8330, 3.8918573e-05
    %v8343 = vadd.f32 %v8342, 0.001143296
    %v8344 = vmul.f32 %v8330, %v8343
    %v8345 = vadd.f32 %v8344, 0.014752088
    %v8346 = vmul.f32 %v8330, %v8345
    %v8347 = vadd.f32 %v8346, 0.112945676
    %v8348 = vmul.f32 %v8330, %v8347
    %v8349 = vadd.f32 %v8348, 0.4994258
    %v8350 = vmul.f32 %v8330, %v8349
    %v8351 = vadd.f32 %v8350, 1.0
    %v8352 = vrcp.pop %v8351
    %v8353 = vmul.f32 %v8351, %v8352
    %v8354 = vsub.f32 1.0, %v8353
    %v8355 = vmul.f32 %v8352, %v8354
    %v8356 = vadd.f32 %v8352, %v8355
    %vm8357 = vweird.f32 %v8351
    %vm8358 = vweird.f32 %v8352
    %vm8359 = vmor %vm8357, %vm8358
    %v8360 = vsel %vm8359, %v8352, %v8356
    %v8361 = vand.u32 2147483647, %v8351
    %vm8362 = vcmp.eq.f32.partialorder %v8361, 8.507059e+37
    %v8363 = vand.u32 %v8351, 2147483648
    %v8364 = vor.u32 1.1754944e-38, %v8363
    %v8365 = vsel %vm8362, %v8364, %v8360
    %v8366 = vmul.f32 %v8341, %v8365
    %v8367 = vmin.f32 %v8366, 1.0
    %v8368 = vmax.f32 %v8367, -1.0
    %v8369 = vmul.f32 %v8244, %v8244
    %v8370 = vmin.f32 16.0, %v8369
    %v8371 = vmul.f32 %v8370, 2.1237322e-06
    %v8372 = vadd.f32 %v8371, 0.00028619796
    %v8373 = vmul.f32 %v8370, %v8372
    %v8374 = vadd.f32 %v8373, 0.0036580483
    %v8375 = vmul.f32 %v8370, %v8374
    %v8376 = vadd.f32 %v8375, 0.05243302
    %v8377 = vmul.f32 %v8370, %v8376
    %v8378 = vadd.f32 %v8377, 0.18741608
    %v8379 = vmul.f32 %v8370, %v8378
    %v8380 = vadd.f32 %v8379, 1.1283791
    %v8381 = vmul.f32 %v8244, %v8380
    %v8382 = vmul.f32 %v8370, 3.8918573e-05
    %v8383 = vadd.f32 %v8382, 0.001143296
    %v8384 = vmul.f32 %v8370, %v8383
    %v8385 = vadd.f32 %v8384, 0.014752088
    %v8386 = vmul.f32 %v8370, %v8385
    %v8387 = vadd.f32 %v8386, 0.112945676
    %v8388 = vmul.f32 %v8370, %v8387
    %v8389 = vadd.f32 %v8388, 0.4994258
    %v8390 = vmul.f32 %v8370, %v8389
    %v8391 = vadd.f32 %v8390, 1.0
    %v8392 = vrcp.pop %v8391
    %v8393 = vmul.f32 %v8391, %v8392
    %v8394 = vsub.f32 1.0, %v8393
    %v8395 = vmul.f32 %v8392, %v8394
    %v8396 = vadd.f32 %v8392, %v8395
    %vm8397 = vweird.f32 %v8391
    %vm8398 = vweird.f32 %v8392
    %vm8399 = vmor %vm8397, %vm8398
    %v8400 = vsel %vm8399, %v8392, %v8396
    %v8401 = vand.u32 2147483647, %v8391
    %vm8402 = vcmp.eq.f32.partialorder %v8401, 8.507059e+37
    %v8403 = vand.u32 %v8391, 2147483648
    %v8404 = vor.u32 1.1754944e-38, %v8403
    %v8405 = vsel %vm8402, %v8404, %v8400
    %v8406 = vmul.f32 %v8381, %v8405
    %v8407 = vmin.f32 %v8406, 1.0
    %v8408 = vmax.f32 %v8407, -1.0
    %v8409 = vmul.f32 %v8245, %v8245
    %v8410 = vmin.f32 16.0, %v8409
    %v8411 = vmul.f32 %v8410, 2.1237322e-06
    %v8412 = vadd.f32 %v8411, 0.00028619796
    %v8413 = vmul.f32 %v8410, %v8412
    %v8414 = vadd.f32 %v8413, 0.0036580483
    %v8415 = vmul.f32 %v8410, %v8414
    %v8416 = vadd.f32 %v8415, 0.05243302
    %v8417 = vmul.f32 %v8410, %v8416
    %v8418 = vadd.f32 %v8417, 0.18741608
    %v8419 = vmul.f32 %v8410, %v8418
    %v8420 = vadd.f32 %v8419, 1.1283791
    %v8421 = vmul.f32 %v8245, %v8420
    %v8422 = vmul.f32 %v8410, 3.8918573e-05
    %v8423 = vadd.f32 %v8422, 0.001143296
    %v8424 = vmul.f32 %v8410, %v8423
    %v8425 = vadd.f32 %v8424, 0.014752088
    %v8426 = vmul.f32 %v8410, %v8425
    %v8427 = vadd.f32 %v8426, 0.112945676
    %v8428 = vmul.f32 %v8410, %v8427
    %v8429 = vadd.f32 %v8428, 0.4994258
    %v8430 = vmul.f32 %v8410, %v8429
    %v8431 = vadd.f32 %v8430, 1.0
    %v8432 = vrcp.pop %v8431
    %v8433 = vmul.f32 %v8431, %v8432
    %v8434 = vsub.f32 1.0, %v8433
    %v8435 = vmul.f32 %v8432, %v8434
    %v8436 = vadd.f32 %v8432, %v8435
    %vm8437 = vweird.f32 %v8431
    %vm8438 = vweird.f32 %v8432
    %vm8439 = vmor %vm8437, %vm8438
    %v8440 = vsel %vm8439, %v8432, %v8436
    %v8441 = vand.u32 2147483647, %v8431
    %vm8442 = vcmp.eq.f32.partialorder %v8441, 8.507059e+37
    %v8443 = vand.u32 %v8431, 2147483648
    %v8444 = vor.u32 1.1754944e-38, %v8443
    %v8445 = vsel %vm8442, %v8444, %v8440
    %v8446 = vmul.f32 %v8421, %v8445
    %v8447 = vmin.f32 %v8446, 1.0
    %v8448 = vmax.f32 %v8447, -1.0
    %v8449 = vmul.f32 %v8246, %v8246
    %v8450 = vmin.f32 16.0, %v8449
    %v8451 = vmul.f32 %v8450, 2.1237322e-06
    %v8452 = vadd.f32 %v8451, 0.00028619796
    %v8453 = vmul.f32 %v8450, %v8452
    %v8454 = vadd.f32 %v8453, 0.0036580483
    %v8455 = vmul.f32 %v8450, %v8454
    %v8456 = vadd.f32 %v8455, 0.05243302
    %v8457 = vmul.f32 %v8450, %v8456
    %v8458 = vadd.f32 %v8457, 0.18741608
    %v8459 = vmul.f32 %v8450, %v8458
    %v8460 = vadd.f32 %v8459, 1.1283791
    %v8461 = vmul.f32 %v8246, %v8460
    %v8462 = vmul.f32 %v8450, 3.8918573e-05
    %v8463 = vadd.f32 %v8462, 0.001143296
    %v8464 = vmul.f32 %v8450, %v8463
    %v8465 = vadd.f32 %v8464, 0.014752088
    %v8466 = vmul.f32 %v8450, %v8465
    %v8467 = vadd.f32 %v8466, 0.112945676
    %v8468 = vmul.f32 %v8450, %v8467
    %v8469 = vadd.f32 %v8468, 0.4994258
    %v8470 = vmul.f32 %v8450, %v8469
    %v8471 = vadd.f32 %v8470, 1.0
    %v8472 = vrcp.pop %v8471
    %v8473 = vmul.f32 %v8471, %v8472
    %v8474 = vsub.f32 1.0, %v8473
    %v8475 = vmul.f32 %v8472, %v8474
    %v8476 = vadd.f32 %v8472, %v8475
    %vm8477 = vweird.f32 %v8471
    %vm8478 = vweird.f32 %v8472
    %vm8479 = vmor %vm8477, %vm8478
    %v8480 = vsel %vm8479, %v8472, %v8476
    %v8481 = vand.u32 2147483647, %v8471
    %vm8482 = vcmp.eq.f32.partialorder %v8481, 8.507059e+37
    %v8483 = vand.u32 %v8471, 2147483648
    %v8484 = vor.u32 1.1754944e-38, %v8483
    %v8485 = vsel %vm8482, %v8484, %v8480
    %v8486 = vmul.f32 %v8461, %v8485
    %v8487 = vmin.f32 %v8486, 1.0
    %v8488 = vmax.f32 %v8487, -1.0
    %v8489 = vmul.f32 %v8247, %v8247
    %v8490 = vmin.f32 16.0, %v8489
    %v8491 = vmul.f32 %v8490, 2.1237322e-06
    %v8492 = vadd.f32 %v8491, 0.00028619796
    %v8493 = vmul.f32 %v8490, %v8492
    %v8494 = vadd.f32 %v8493, 0.0036580483
    %v8495 = vmul.f32 %v8490, %v8494
    %v8496 = vadd.f32 %v8495, 0.05243302
    %v8497 = vmul.f32 %v8490, %v8496
    %v8498 = vadd.f32 %v8497, 0.18741608
    %v8499 = vmul.f32 %v8490, %v8498
    %v8500 = vadd.f32 %v8499, 1.1283791
    %v8501 = vmul.f32 %v8247, %v8500
    %v8502 = vmul.f32 %v8490, 3.8918573e-05
    %v8503 = vadd.f32 %v8502, 0.001143296
    %v8504 = vmul.f32 %v8490, %v8503
    %v8505 = vadd.f32 %v8504, 0.014752088
    %v8506 = vmul.f32 %v8490, %v8505
    %v8507 = vadd.f32 %v8506, 0.112945676
    %v8508 = vmul.f32 %v8490, %v8507
    %v8509 = vadd.f32 %v8508, 0.4994258
    %v8510 = vmul.f32 %v8490, %v8509
    %v8511 = vadd.f32 %v8510, 1.0
    %v8512 = vrcp.pop %v8511
    %v8513 = vmul.f32 %v8511, %v8512
    %v8514 = vsub.f32 1.0, %v8513
    %v8515 = vmul.f32 %v8512, %v8514
    %v8516 = vadd.f32 %v8512, %v8515
    %vm8517 = vweird.f32 %v8511
    %vm8518 = vweird.f32 %v8512
    %vm8519 = vmor %vm8517, %vm8518
    %v8520 = vsel %vm8519, %v8512, %v8516
    %v8521 = vand.u32 2147483647, %v8511
    %vm8522 = vcmp.eq.f32.partialorder %v8521, 8.507059e+37
    %v8523 = vand.u32 %v8511, 2147483648
    %v8524 = vor.u32 1.1754944e-38, %v8523
    %v8525 = vsel %vm8522, %v8524, %v8520
    %v8526 = vmul.f32 %v8501, %v8525
    %v8527 = vmin.f32 %v8526, 1.0
    %v8528 = vmax.f32 %v8527, -1.0
    %v8529 = vmul.f32 %v8248, %v8248
    %v8530 = vmin.f32 16.0, %v8529
    %v8531 = vmul.f32 %v8530, 2.1237322e-06
    %v8532 = vadd.f32 %v8531, 0.00028619796
    %v8533 = vmul.f32 %v8530, %v8532
    %v8534 = vadd.f32 %v8533, 0.0036580483
    %v8535 = vmul.f32 %v8530, %v8534
    %v8536 = vadd.f32 %v8535, 0.05243302
    %v8537 = vmul.f32 %v8530, %v8536
    %v8538 = vadd.f32 %v8537, 0.18741608
    %v8539 = vmul.f32 %v8530, %v8538
    %v8540 = vadd.f32 %v8539, 1.1283791
    %v8541 = vmul.f32 %v8248, %v8540
    %v8542 = vmul.f32 %v8530, 3.8918573e-05
    %v8543 = vadd.f32 %v8542, 0.001143296
    %v8544 = vmul.f32 %v8530, %v8543
    %v8545 = vadd.f32 %v8544, 0.014752088
    %v8546 = vmul.f32 %v8530, %v8545
    %v8547 = vadd.f32 %v8546, 0.112945676
    %v8548 = vmul.f32 %v8530, %v8547
    %v8549 = vadd.f32 %v8548, 0.4994258
    %v8550 = vmul.f32 %v8530, %v8549
    %v8551 = vadd.f32 %v8550, 1.0
    %v8552 = vrcp.pop %v8551
    %v8553 = vmul.f32 %v8551, %v8552
    %v8554 = vsub.f32 1.0, %v8553
    %v8555 = vmul.f32 %v8552, %v8554
    %v8556 = vadd.f32 %v8552, %v8555
    %vm8557 = vweird.f32 %v8551
    %vm8558 = vweird.f32 %v8552
    %vm8559 = vmor %vm8557, %vm8558
    %v8560 = vsel %vm8559, %v8552, %v8556
    %v8561 = vand.u32 2147483647, %v8551
    %vm8562 = vcmp.eq.f32.partialorder %v8561, 8.507059e+37
    %v8563 = vand.u32 %v8551, 2147483648
    %v8564 = vor.u32 1.1754944e-38, %v8563
    %v8565 = vsel %vm8562, %v8564, %v8560
    %v8566 = vmul.f32 %v8541, %v8565
    %v8567 = vmin.f32 %v8566, 1.0
    %v8568 = vmax.f32 %v8567, -1.0
    %v8569 = vadd.f32 %v8288, 1.0
    %v8570 = vadd.f32 %v8328, 1.0
    %v8571 = vadd.f32 %v8368, 1.0
    %v8572 = vadd.f32 %v8408, 1.0
    %v8573 = vadd.f32 %v8448, 1.0
    %v8574 = vadd.f32 %v8488, 1.0
    %v8575 = vadd.f32 %v8528, 1.0
    %v8576 = vadd.f32 %v8568, 1.0
    %v8577 = vmul.f32 %v8233, %v8569
    %v8578 = vmul.f32 %v8234, %v8570
    %v8579 = vmul.f32 %v8235, %v8571
    %v8580 = vmul.f32 %v8236, %v8572
    %v8581 = vmul.f32 %v8237, %v8573
    %v8582 = vmul.f32 %v8238, %v8574
    %v8583 = vmul.f32 %v8239, %v8575
    %v8584 = vmul.f32 %v8240, %v8576
    %v8585 = vld [vmem:[%s6] sm:$0x1]
    %v8586 = vld [vmem:[%s7] sm:$0x1]
    %8587 = vadd.xlane.f32.xlu0 %v8577
    %v8588 = vpop.xlane.xlu0 %8587
    %8589 = vadd.xlane.f32.xlu0 %v8578
    %v8590 = vpop.xlane.xlu0 %8589
    %8591 = vadd.xlane.f32.xlu0 %v8579
    %v8592 = vpop.xlane.xlu0 %8591
    %8593 = vadd.xlane.f32.xlu0 %v8580
    %v8594 = vpop.xlane.xlu0 %8593
    %8595 = vadd.xlane.f32.xlu0 %v8581
    %v8596 = vpop.xlane.xlu0 %8595
    %8597 = vadd.xlane.f32.xlu0 %v8582
    %v8598 = vpop.xlane.xlu0 %8597
    %8599 = vadd.xlane.f32.xlu0 %v8583
    %v8600 = vpop.xlane.xlu0 %8599
    %8601 = vadd.xlane.f32.xlu0 %v8584
    %v8602 = vpop.xlane.xlu0 %8601
    %v8603 = vmul.f32 %v8577, %v8577
    %v8604 = vmul.f32 %v8578, %v8578
    %v8605 = vmul.f32 %v8579, %v8579
    %v8606 = vmul.f32 %v8580, %v8580
    %v8607 = vmul.f32 %v8581, %v8581
    %v8608 = vmul.f32 %v8582, %v8582
    %v8609 = vmul.f32 %v8583, %v8583
    %v8610 = vmul.f32 %v8584, %v8584
    %8611 = vadd.xlane.f32.xlu0 %v8603
    %v8612 = vpop.xlane.xlu0 %8611
    %8613 = vadd.xlane.f32.xlu0 %v8604
    %v8614 = vpop.xlane.xlu0 %8613
    %8615 = vadd.xlane.f32.xlu0 %v8605
    %v8616 = vpop.xlane.xlu0 %8615
    %8617 = vadd.xlane.f32.xlu0 %v8606
    %v8618 = vpop.xlane.xlu0 %8617
    %8619 = vadd.xlane.f32.xlu0 %v8607
    %v8620 = vpop.xlane.xlu0 %8619
    %8621 = vadd.xlane.f32.xlu0 %v8608
    %v8622 = vpop.xlane.xlu0 %8621
    %8623 = vadd.xlane.f32.xlu0 %v8609
    %v8624 = vpop.xlane.xlu0 %8623
    %8625 = vadd.xlane.f32.xlu0 %v8610
    %v8626 = vpop.xlane.xlu0 %8625
    %v8627 = vmul.f32 %v8588, 0.0078125
    %v8628 = vmul.f32 %v8590, 0.0078125
    %v8629 = vmul.f32 %v8592, 0.0078125
    %v8630 = vmul.f32 %v8594, 0.0078125
    %v8631 = vmul.f32 %v8596, 0.0078125
    %v8632 = vmul.f32 %v8598, 0.0078125
    %v8633 = vmul.f32 %v8600, 0.0078125
    %v8634 = vmul.f32 %v8602, 0.0078125
    %v8635 = vmul.f32 %v8612, 0.0078125
    %v8636 = vmul.f32 %v8614, 0.0078125
    %v8637 = vmul.f32 %v8616, 0.0078125
    %v8638 = vmul.f32 %v8618, 0.0078125
    %v8639 = vmul.f32 %v8620, 0.0078125
    %v8640 = vmul.f32 %v8622, 0.0078125
    %v8641 = vmul.f32 %v8624, 0.0078125
    %v8642 = vmul.f32 %v8626, 0.0078125
    %v8643 = vmul.f32 %v8627, %v8627
    %v8644 = vmul.f32 %v8628, %v8628
    %v8645 = vmul.f32 %v8629, %v8629
    %v8646 = vmul.f32 %v8630, %v8630
    %v8647 = vmul.f32 %v8631, %v8631
    %v8648 = vmul.f32 %v8632, %v8632
    %v8649 = vmul.f32 %v8633, %v8633
    %v8650 = vmul.f32 %v8634, %v8634
    %v8651 = vsub.f32 %v8635, %v8643
    %v8652 = vsub.f32 %v8636, %v8644
    %v8653 = vsub.f32 %v8637, %v8645
    %v8654 = vsub.f32 %v8638, %v8646
    %v8655 = vsub.f32 %v8639, %v8647
    %v8656 = vsub.f32 %v8640, %v8648
    %v8657 = vsub.f32 %v8641, %v8649
    %v8658 = vsub.f32 %v8642, %v8650
    %v8659 = vsub.f32 %v8577, %v8627
    %v8660 = vsub.f32 %v8578, %v8628
    %v8661 = vsub.f32 %v8579, %v8629
    %v8662 = vsub.f32 %v8580, %v8630
    %v8663 = vsub.f32 %v8581, %v8631
    %v8664 = vsub.f32 %v8582, %v8632
    %v8665 = vsub.f32 %v8583, %v8633
    %v8666 = vsub.f32 %v8584, %v8634
    %v8667 = vadd.f32 %v8651, 1e-05
    %v8668 = vadd.f32 %v8652, 1e-05
    %v8669 = vadd.f32 %v8653, 1e-05
    %v8670 = vadd.f32 %v8654, 1e-05
    %v8671 = vadd.f32 %v8655, 1e-05
    %v8672 = vadd.f32 %v8656, 1e-05
    %v8673 = vadd.f32 %v8657, 1e-05
    %v8674 = vadd.f32 %v8658, 1e-05
    %v8675 = vrsqrt.pop %v8667
    %v8676 = vmul.f32 %v8675, %v8667
    %v8677 = vmul.f32 %v8676, %v8675
    %v8678 = vmul.f32 0.5, %v8677
    %v8679 = vsub.f32 1.5, %v8678
    %v8680 = vmul.f32 %v8675, %v8679
    %vm8681 = vweird.f32 %v8667
    %vm8682 = vweird.f32 %v8675
    %vm8683 = vmor %vm8681, %vm8682
    %v8684 = vsel %vm8683, %v8675, %v8680
    %v8685 = vrsqrt.pop %v8668
    %v8686 = vmul.f32 %v8685, %v8668
    %v8687 = vmul.f32 %v8686, %v8685
    %v8688 = vmul.f32 0.5, %v8687
    %v8689 = vsub.f32 1.5, %v8688
    %v8690 = vmul.f32 %v8685, %v8689
    %vm8691 = vweird.f32 %v8668
    %vm8692 = vweird.f32 %v8685
    %vm8693 = vmor %vm8691, %vm8692
    %v8694 = vsel %vm8693, %v8685, %v8690
    %v8695 = vrsqrt.pop %v8669
    %v8696 = vmul.f32 %v8695, %v8669
    %v8697 = vmul.f32 %v8696, %v8695
    %v8698 = vmul.f32 0.5, %v8697
    %v8699 = vsub.f32 1.5, %v8698
    %v8700 = vmul.f32 %v8695, %v8699
    %vm8701 = vweird.f32 %v8669
    %vm8702 = vweird.f32 %v8695
    %vm8703 = vmor %vm8701, %vm8702
    %v8704 = vsel %vm8703, %v8695, %v8700
    %v8705 = vrsqrt.pop %v8670
    %v8706 = vmul.f32 %v8705, %v8670
    %v8707 = vmul.f32 %v8706, %v8705
    %v8708 = vmul.f32 0.5, %v8707
    %v8709 = vsub.f32 1.5, %v8708
    %v8710 = vmul.f32 %v8705, %v8709
    %vm8711 = vweird.f32 %v8670
    %vm8712 = vweird.f32 %v8705
    %vm8713 = vmor %vm8711, %vm8712
    %v8714 = vsel %vm8713, %v8705, %v8710
    %v8715 = vrsqrt.pop %v8671
    %v8716 = vmul.f32 %v8715, %v8671
    %v8717 = vmul.f32 %v8716, %v8715
    %v8718 = vmul.f32 0.5, %v8717
    %v8719 = vsub.f32 1.5, %v8718
    %v8720 = vmul.f32 %v8715, %v8719
    %vm8721 = vweird.f32 %v8671
    %vm8722 = vweird.f32 %v8715
    %vm8723 = vmor %vm8721, %vm8722
    %v8724 = vsel %vm8723, %v8715, %v8720
    %v8725 = vrsqrt.pop %v8672
    %v8726 = vmul.f32 %v8725, %v8672
    %v8727 = vmul.f32 %v8726, %v8725
    %v8728 = vmul.f32 0.5, %v8727
    %v8729 = vsub.f32 1.5, %v8728
    %v8730 = vmul.f32 %v8725, %v8729
    %vm8731 = vweird.f32 %v8672
    %vm8732 = vweird.f32 %v8725
    %vm8733 = vmor %vm8731, %vm8732
    %v8734 = vsel %vm8733, %v8725, %v8730
    %v8735 = vrsqrt.pop %v8673
    %v8736 = vmul.f32 %v8735, %v8673
    %v8737 = vmul.f32 %v8736, %v8735
    %v8738 = vmul.f32 0.5, %v8737
    %v8739 = vsub.f32 1.5, %v8738
    %v8740 = vmul.f32 %v8735, %v8739
    %vm8741 = vweird.f32 %v8673
    %vm8742 = vweird.f32 %v8735
    %vm8743 = vmor %vm8741, %vm8742
    %v8744 = vsel %vm8743, %v8735, %v8740
    %v8745 = vrsqrt.pop %v8674
    %v8746 = vmul.f32 %v8745, %v8674
    %v8747 = vmul.f32 %v8746, %v8745
    %v8748 = vmul.f32 0.5, %v8747
    %v8749 = vsub.f32 1.5, %v8748
    %v8750 = vmul.f32 %v8745, %v8749
    %vm8751 = vweird.f32 %v8674
    %vm8752 = vweird.f32 %v8745
    %vm8753 = vmor %vm8751, %vm8752
    %v8754 = vsel %vm8753, %v8745, %v8750
    %v8755 = vmul.f32 %v8659, %v8684
    %v8756 = vmul.f32 %v8660, %v8694
    %v8757 = vmul.f32 %v8661, %v8704
    %v8758 = vmul.f32 %v8662, %v8714
    %v8759 = vmul.f32 %v8663, %v8724
    %v8760 = vmul.f32 %v8664, %v8734
    %v8761 = vmul.f32 %v8665, %v8744
    %v8762 = vmul.f32 %v8666, %v8754
    %v8764 = vperm.slane %v8585, 0
    %v8766 = vmul.f32 %v8755, %v8764
    %v8767 = vmul.f32 %v8756, %v8764
    %v8768 = vmul.f32 %v8757, %v8764
    %v8769 = vmul.f32 %v8758, %v8764
    %v8770 = vmul.f32 %v8759, %v8764
    %v8771 = vmul.f32 %v8760, %v8764
    %v8772 = vmul.f32 %v8761, %v8764
    %v8773 = vmul.f32 %v8762, %v8764
    %v8775 = vperm.slane %v8586, 0
    %v8777 = vadd.f32 %v8766, %v8775
    %v8778 = vadd.f32 %v8767, %v8775
    %v8779 = vadd.f32 %v8768, %v8775
    %v8780 = vadd.f32 %v8769, %v8775
    %v8781 = vadd.f32 %v8770, %v8775
    %v8782 = vadd.f32 %v8771, %v8775
    %v8783 = vadd.f32 %v8772, %v8775
    %v8784 = vadd.f32 %v8773, %v8775
    %v8785 = vld [vmem:[#allocation4] sm:$0xff]
    %v8786 = vld [vmem:[#allocation4 + $0x8] sm:$0xff]
    %v8787 = vld [vmem:[#allocation4 + $0x10] sm:$0xff]
    %v8788 = vld [vmem:[#allocation4 + $0x18] sm:$0xff]
    %v8789 = vld [vmem:[#allocation4 + $0x20] sm:$0xff]
    %v8790 = vld [vmem:[#allocation4 + $0x28] sm:$0xff]
    %v8791 = vld [vmem:[#allocation4 + $0x30] sm:$0xff]
    %v8792 = vld [vmem:[#allocation4 + $0x38] sm:$0xff]
    %v8793 = vld [vmem:[#allocation4 + $0x40] sm:$0xff]
    %v8794 = vld [vmem:[#allocation4 + $0x48] sm:$0xff]
    %v8795 = vld [vmem:[#allocation4 + $0x50] sm:$0xff]
    %v8796 = vld [vmem:[#allocation4 + $0x58] sm:$0xff]
    %v8797 = vld [vmem:[#allocation4 + $0x60] sm:$0xff]
    %v8798 = vld [vmem:[#allocation4 + $0x68] sm:$0xff]
    %v8799 = vld [vmem:[#allocation4 + $0x70] sm:$0xff]
    %v8800 = vld [vmem:[#allocation4 + $0x78] sm:$0xff]
    %v8801 = vld [vmem:[%s9] sm:$0x1]
    %v8803 = vperm.slane %v8801, 0
    %8805 = vmatpush.msra.mxu0 %v8800
    %8806 = vmatpush.msra.mxu0 %v8799
    %8807 = vmatpush.msra.mxu0 %v8798
    %8808 = vmatpush.msra.mxu0 %v8797
    %8809 = vmatpush.msra.mxu0 %v8796
    %8810 = vmatpush.msra.mxu0 %v8795
    %8811 = vmatpush.msra.mxu0 %v8794
    %8812 = vmatpush.msra.mxu0 %v8793
    %8813 = vmatpush.msra.mxu0 %v8792
    %8814 = vmatpush.msra.mxu0 %v8791
    %8815 = vmatpush.msra.mxu0 %v8790
    %8816 = vmatpush.msra.mxu0 %v8789
    %8817 = vmatpush.msra.mxu0 %v8788
    %8818 = vmatpush.msra.mxu0 %v8787
    %8819 = vmatpush.msra.mxu0 %v8786
    %8820 = vmatpush.msra.mxu0 %v8785
    %8821 = vmatmul.f32.gmra.mxu0 %v8777
    %v8822 = vpop.f32.mrf.mxu0
    %v8823 = vadd.f32 %v8803, %v8822
    %8824 = vmatmul.f32.gmra.mxu0 %v8778
    %v8825 = vpop.f32.mrf.mxu0
    %v8826 = vadd.f32 %v8803, %v8825
    %8827 = vmatmul.f32.gmra.mxu0 %v8779
    %v8828 = vpop.f32.mrf.mxu0
    %v8829 = vadd.f32 %v8803, %v8828
    %8830 = vmatmul.f32.gmra.mxu0 %v8780
    %v8831 = vpop.f32.mrf.mxu0
    %v8832 = vadd.f32 %v8803, %v8831
    %8833 = vmatmul.f32.gmra.mxu0 %v8781
    %v8834 = vpop.f32.mrf.mxu0
    %v8835 = vadd.f32 %v8803, %v8834
    %8836 = vmatmul.f32.gmra.mxu0 %v8782
    %v8837 = vpop.f32.mrf.mxu0
    %v8838 = vadd.f32 %v8803, %v8837
    %8839 = vmatmul.f32.gmra.mxu0 %v8783
    %v8840 = vpop.f32.mrf.mxu0
    %v8841 = vadd.f32 %v8803, %v8840
    %8842 = vmatmul.f32.gmra.mxu0 %v8784
    %v8843 = vpop.f32.mrf.mxu0
    %v8844 = vadd.f32 %v8803, %v8843
    %8845 = vdwg.mxu0
    %v8846 = vmul.f32 %v8823, 0.5
    %v8847 = vmul.f32 %v8826, 0.5
    %v8848 = vmul.f32 %v8829, 0.5
    %v8849 = vmul.f32 %v8832, 0.5
    %v8850 = vmul.f32 %v8835, 0.5
    %v8851 = vmul.f32 %v8838, 0.5
    %v8852 = vmul.f32 %v8841, 0.5
    %v8853 = vmul.f32 %v8844, 0.5
    %v8854 = vmul.f32 %v8823, 0.70710677
    %v8855 = vmul.f32 %v8826, 0.70710677
    %v8856 = vmul.f32 %v8829, 0.70710677
    %v8857 = vmul.f32 %v8832, 0.70710677
    %v8858 = vmul.f32 %v8835, 0.70710677
    %v8859 = vmul.f32 %v8838, 0.70710677
    %v8860 = vmul.f32 %v8841, 0.70710677
    %v8861 = vmul.f32 %v8844, 0.70710677
    %v8862 = vmul.f32 %v8854, %v8854
    %v8863 = vmin.f32 16.0, %v8862
    %v8864 = vmul.f32 %v8863, 2.1237322e-06
    %v8865 = vadd.f32 %v8864, 0.00028619796
    %v8866 = vmul.f32 %v8863, %v8865
    %v8867 = vadd.f32 %v8866, 0.0036580483
    %v8868 = vmul.f32 %v8863, %v8867
    %v8869 = vadd.f32 %v8868, 0.05243302
    %v8870 = vmul.f32 %v8863, %v8869
    %v8871 = vadd.f32 %v8870, 0.18741608
    %v8872 = vmul.f32 %v8863, %v8871
    %v8873 = vadd.f32 %v8872, 1.1283791
    %v8874 = vmul.f32 %v8854, %v8873
    %v8875 = vmul.f32 %v8863, 3.8918573e-05
    %v8876 = vadd.f32 %v8875, 0.001143296
    %v8877 = vmul.f32 %v8863, %v8876
    %v8878 = vadd.f32 %v8877, 0.014752088
    %v8879 = vmul.f32 %v8863, %v8878
    %v8880 = vadd.f32 %v8879, 0.112945676
    %v8881 = vmul.f32 %v8863, %v8880
    %v8882 = vadd.f32 %v8881, 0.4994258
    %v8883 = vmul.f32 %v8863, %v8882
    %v8884 = vadd.f32 %v8883, 1.0
    %v8885 = vrcp.pop %v8884
    %v8886 = vmul.f32 %v8884, %v8885
    %v8887 = vsub.f32 1.0, %v8886
    %v8888 = vmul.f32 %v8885, %v8887
    %v8889 = vadd.f32 %v8885, %v8888
    %vm8890 = vweird.f32 %v8884
    %vm8891 = vweird.f32 %v8885
    %vm8892 = vmor %vm8890, %vm8891
    %v8893 = vsel %vm8892, %v8885, %v8889
    %v8894 = vand.u32 2147483647, %v8884
    %vm8895 = vcmp.eq.f32.partialorder %v8894, 8.507059e+37
    %v8896 = vand.u32 %v8884, 2147483648
    %v8897 = vor.u32 1.1754944e-38, %v8896
    %v8898 = vsel %vm8895, %v8897, %v8893
    %v8899 = vmul.f32 %v8874, %v8898
    %v8900 = vmin.f32 %v8899, 1.0
    %v8901 = vmax.f32 %v8900, -1.0
    %v8902 = vmul.f32 %v8855, %v8855
    %v8903 = vmin.f32 16.0, %v8902
    %v8904 = vmul.f32 %v8903, 2.1237322e-06
    %v8905 = vadd.f32 %v8904, 0.00028619796
    %v8906 = vmul.f32 %v8903, %v8905
    %v8907 = vadd.f32 %v8906, 0.0036580483
    %v8908 = vmul.f32 %v8903, %v8907
    %v8909 = vadd.f32 %v8908, 0.05243302
    %v8910 = vmul.f32 %v8903, %v8909
    %v8911 = vadd.f32 %v8910, 0.18741608
    %v8912 = vmul.f32 %v8903, %v8911
    %v8913 = vadd.f32 %v8912, 1.1283791
    %v8914 = vmul.f32 %v8855, %v8913
    %v8915 = vmul.f32 %v8903, 3.8918573e-05
    %v8916 = vadd.f32 %v8915, 0.001143296
    %v8917 = vmul.f32 %v8903, %v8916
    %v8918 = vadd.f32 %v8917, 0.014752088
    %v8919 = vmul.f32 %v8903, %v8918
    %v8920 = vadd.f32 %v8919, 0.112945676
    %v8921 = vmul.f32 %v8903, %v8920
    %v8922 = vadd.f32 %v8921, 0.4994258
    %v8923 = vmul.f32 %v8903, %v8922
    %v8924 = vadd.f32 %v8923, 1.0
    %v8925 = vrcp.pop %v8924
    %v8926 = vmul.f32 %v8924, %v8925
    %v8927 = vsub.f32 1.0, %v8926
    %v8928 = vmul.f32 %v8925, %v8927
    %v8929 = vadd.f32 %v8925, %v8928
    %vm8930 = vweird.f32 %v8924
    %vm8931 = vweird.f32 %v8925
    %vm8932 = vmor %vm8930, %vm8931
    %v8933 = vsel %vm8932, %v8925, %v8929
    %v8934 = vand.u32 2147483647, %v8924
    %vm8935 = vcmp.eq.f32.partialorder %v8934, 8.507059e+37
    %v8936 = vand.u32 %v8924, 2147483648
    %v8937 = vor.u32 1.1754944e-38, %v8936
    %v8938 = vsel %vm8935, %v8937, %v8933
    %v8939 = vmul.f32 %v8914, %v8938
    %v8940 = vmin.f32 %v8939, 1.0
    %v8941 = vmax.f32 %v8940, -1.0
    %v8942 = vmul.f32 %v8856, %v8856
    %v8943 = vmin.f32 16.0, %v8942
    %v8944 = vmul.f32 %v8943, 2.1237322e-06
    %v8945 = vadd.f32 %v8944, 0.00028619796
    %v8946 = vmul.f32 %v8943, %v8945
    %v8947 = vadd.f32 %v8946, 0.0036580483
    %v8948 = vmul.f32 %v8943, %v8947
    %v8949 = vadd.f32 %v8948, 0.05243302
    %v8950 = vmul.f32 %v8943, %v8949
    %v8951 = vadd.f32 %v8950, 0.18741608
    %v8952 = vmul.f32 %v8943, %v8951
    %v8953 = vadd.f32 %v8952, 1.1283791
    %v8954 = vmul.f32 %v8856, %v8953
    %v8955 = vmul.f32 %v8943, 3.8918573e-05
    %v8956 = vadd.f32 %v8955, 0.001143296
    %v8957 = vmul.f32 %v8943, %v8956
    %v8958 = vadd.f32 %v8957, 0.014752088
    %v8959 = vmul.f32 %v8943, %v8958
    %v8960 = vadd.f32 %v8959, 0.112945676
    %v8961 = vmul.f32 %v8943, %v8960
    %v8962 = vadd.f32 %v8961, 0.4994258
    %v8963 = vmul.f32 %v8943, %v8962
    %v8964 = vadd.f32 %v8963, 1.0
    %v8965 = vrcp.pop %v8964
    %v8966 = vmul.f32 %v8964, %v8965
    %v8967 = vsub.f32 1.0, %v8966
    %v8968 = vmul.f32 %v8965, %v8967
    %v8969 = vadd.f32 %v8965, %v8968
    %vm8970 = vweird.f32 %v8964
    %vm8971 = vweird.f32 %v8965
    %vm8972 = vmor %vm8970, %vm8971
    %v8973 = vsel %vm8972, %v8965, %v8969
    %v8974 = vand.u32 2147483647, %v8964
    %vm8975 = vcmp.eq.f32.partialorder %v8974, 8.507059e+37
    %v8976 = vand.u32 %v8964, 2147483648
    %v8977 = vor.u32 1.1754944e-38, %v8976
    %v8978 = vsel %vm8975, %v8977, %v8973
    %v8979 = vmul.f32 %v8954, %v8978
    %v8980 = vmin.f32 %v8979, 1.0
    %v8981 = vmax.f32 %v8980, -1.0
    %v8982 = vmul.f32 %v8857, %v8857
    %v8983 = vmin.f32 16.0, %v8982
    %v8984 = vmul.f32 %v8983, 2.1237322e-06
    %v8985 = vadd.f32 %v8984, 0.00028619796
    %v8986 = vmul.f32 %v8983, %v8985
    %v8987 = vadd.f32 %v8986, 0.0036580483
    %v8988 = vmul.f32 %v8983, %v8987
    %v8989 = vadd.f32 %v8988, 0.05243302
    %v8990 = vmul.f32 %v8983, %v8989
    %v8991 = vadd.f32 %v8990, 0.18741608
    %v8992 = vmul.f32 %v8983, %v8991
    %v8993 = vadd.f32 %v8992, 1.1283791
    %v8994 = vmul.f32 %v8857, %v8993
    %v8995 = vmul.f32 %v8983, 3.8918573e-05
    %v8996 = vadd.f32 %v8995, 0.001143296
    %v8997 = vmul.f32 %v8983, %v8996
    %v8998 = vadd.f32 %v8997, 0.014752088
    %v8999 = vmul.f32 %v8983, %v8998
    %v9000 = vadd.f32 %v8999, 0.112945676
    %v9001 = vmul.f32 %v8983, %v9000
    %v9002 = vadd.f32 %v9001, 0.4994258
    %v9003 = vmul.f32 %v8983, %v9002
    %v9004 = vadd.f32 %v9003, 1.0
    %v9005 = vrcp.pop %v9004
    %v9006 = vmul.f32 %v9004, %v9005
    %v9007 = vsub.f32 1.0, %v9006
    %v9008 = vmul.f32 %v9005, %v9007
    %v9009 = vadd.f32 %v9005, %v9008
    %vm9010 = vweird.f32 %v9004
    %vm9011 = vweird.f32 %v9005
    %vm9012 = vmor %vm9010, %vm9011
    %v9013 = vsel %vm9012, %v9005, %v9009
    %v9014 = vand.u32 2147483647, %v9004
    %vm9015 = vcmp.eq.f32.partialorder %v9014, 8.507059e+37
    %v9016 = vand.u32 %v9004, 2147483648
    %v9017 = vor.u32 1.1754944e-38, %v9016
    %v9018 = vsel %vm9015, %v9017, %v9013
    %v9019 = vmul.f32 %v8994, %v9018
    %v9020 = vmin.f32 %v9019, 1.0
    %v9021 = vmax.f32 %v9020, -1.0
    %v9022 = vmul.f32 %v8858, %v8858
    %v9023 = vmin.f32 16.0, %v9022
    %v9024 = vmul.f32 %v9023, 2.1237322e-06
    %v9025 = vadd.f32 %v9024, 0.00028619796
    %v9026 = vmul.f32 %v9023, %v9025
    %v9027 = vadd.f32 %v9026, 0.0036580483
    %v9028 = vmul.f32 %v9023, %v9027
    %v9029 = vadd.f32 %v9028, 0.05243302
    %v9030 = vmul.f32 %v9023, %v9029
    %v9031 = vadd.f32 %v9030, 0.18741608
    %v9032 = vmul.f32 %v9023, %v9031
    %v9033 = vadd.f32 %v9032, 1.1283791
    %v9034 = vmul.f32 %v8858, %v9033
    %v9035 = vmul.f32 %v9023, 3.8918573e-05
    %v9036 = vadd.f32 %v9035, 0.001143296
    %v9037 = vmul.f32 %v9023, %v9036
    %v9038 = vadd.f32 %v9037, 0.014752088
    %v9039 = vmul.f32 %v9023, %v9038
    %v9040 = vadd.f32 %v9039, 0.112945676
    %v9041 = vmul.f32 %v9023, %v9040
    %v9042 = vadd.f32 %v9041, 0.4994258
    %v9043 = vmul.f32 %v9023, %v9042
    %v9044 = vadd.f32 %v9043, 1.0
    %v9045 = vrcp.pop %v9044
    %v9046 = vmul.f32 %v9044, %v9045
    %v9047 = vsub.f32 1.0, %v9046
    %v9048 = vmul.f32 %v9045, %v9047
    %v9049 = vadd.f32 %v9045, %v9048
    %vm9050 = vweird.f32 %v9044
    %vm9051 = vweird.f32 %v9045
    %vm9052 = vmor %vm9050, %vm9051
    %v9053 = vsel %vm9052, %v9045, %v9049
    %v9054 = vand.u32 2147483647, %v9044
    %vm9055 = vcmp.eq.f32.partialorder %v9054, 8.507059e+37
    %v9056 = vand.u32 %v9044, 2147483648
    %v9057 = vor.u32 1.1754944e-38, %v9056
    %v9058 = vsel %vm9055, %v9057, %v9053
    %v9059 = vmul.f32 %v9034, %v9058
    %v9060 = vmin.f32 %v9059, 1.0
    %v9061 = vmax.f32 %v9060, -1.0
    %v9062 = vmul.f32 %v8859, %v8859
    %v9063 = vmin.f32 16.0, %v9062
    %v9064 = vmul.f32 %v9063, 2.1237322e-06
    %v9065 = vadd.f32 %v9064, 0.00028619796
    %v9066 = vmul.f32 %v9063, %v9065
    %v9067 = vadd.f32 %v9066, 0.0036580483
    %v9068 = vmul.f32 %v9063, %v9067
    %v9069 = vadd.f32 %v9068, 0.05243302
    %v9070 = vmul.f32 %v9063, %v9069
    %v9071 = vadd.f32 %v9070, 0.18741608
    %v9072 = vmul.f32 %v9063, %v9071
    %v9073 = vadd.f32 %v9072, 1.1283791
    %v9074 = vmul.f32 %v8859, %v9073
    %v9075 = vmul.f32 %v9063, 3.8918573e-05
    %v9076 = vadd.f32 %v9075, 0.001143296
    %v9077 = vmul.f32 %v9063, %v9076
    %v9078 = vadd.f32 %v9077, 0.014752088
    %v9079 = vmul.f32 %v9063, %v9078
    %v9080 = vadd.f32 %v9079, 0.112945676
    %v9081 = vmul.f32 %v9063, %v9080
    %v9082 = vadd.f32 %v9081, 0.4994258
    %v9083 = vmul.f32 %v9063, %v9082
    %v9084 = vadd.f32 %v9083, 1.0
    %v9085 = vrcp.pop %v9084
    %v9086 = vmul.f32 %v9084, %v9085
    %v9087 = vsub.f32 1.0, %v9086
    %v9088 = vmul.f32 %v9085, %v9087
    %v9089 = vadd.f32 %v9085, %v9088
    %vm9090 = vweird.f32 %v9084
    %vm9091 = vweird.f32 %v9085
    %vm9092 = vmor %vm9090, %vm9091
    %v9093 = vsel %vm9092, %v9085, %v9089
    %v9094 = vand.u32 2147483647, %v9084
    %vm9095 = vcmp.eq.f32.partialorder %v9094, 8.507059e+37
    %v9096 = vand.u32 %v9084, 2147483648
    %v9097 = vor.u32 1.1754944e-38, %v9096
    %v9098 = vsel %vm9095, %v9097, %v9093
    %v9099 = vmul.f32 %v9074, %v9098
    %v9100 = vmin.f32 %v9099, 1.0
    %v9101 = vmax.f32 %v9100, -1.0
    %v9102 = vmul.f32 %v8860, %v8860
    %v9103 = vmin.f32 16.0, %v9102
    %v9104 = vmul.f32 %v9103, 2.1237322e-06
    %v9105 = vadd.f32 %v9104, 0.00028619796
    %v9106 = vmul.f32 %v9103, %v9105
    %v9107 = vadd.f32 %v9106, 0.0036580483
    %v9108 = vmul.f32 %v9103, %v9107
    %v9109 = vadd.f32 %v9108, 0.05243302
    %v9110 = vmul.f32 %v9103, %v9109
    %v9111 = vadd.f32 %v9110, 0.18741608
    %v9112 = vmul.f32 %v9103, %v9111
    %v9113 = vadd.f32 %v9112, 1.1283791
    %v9114 = vmul.f32 %v8860, %v9113
    %v9115 = vmul.f32 %v9103, 3.8918573e-05
    %v9116 = vadd.f32 %v9115, 0.001143296
    %v9117 = vmul.f32 %v9103, %v9116
    %v9118 = vadd.f32 %v9117, 0.014752088
    %v9119 = vmul.f32 %v9103, %v9118
    %v9120 = vadd.f32 %v9119, 0.112945676
    %v9121 = vmul.f32 %v9103, %v9120
    %v9122 = vadd.f32 %v9121, 0.4994258
    %v9123 = vmul.f32 %v9103, %v9122
    %v9124 = vadd.f32 %v9123, 1.0
    %v9125 = vrcp.pop %v9124
    %v9126 = vmul.f32 %v9124, %v9125
    %v9127 = vsub.f32 1.0, %v9126
    %v9128 = vmul.f32 %v9125, %v9127
    %v9129 = vadd.f32 %v9125, %v9128
    %vm9130 = vweird.f32 %v9124
    %vm9131 = vweird.f32 %v9125
    %vm9132 = vmor %vm9130, %vm9131
    %v9133 = vsel %vm9132, %v9125, %v9129
    %v9134 = vand.u32 2147483647, %v9124
    %vm9135 = vcmp.eq.f32.partialorder %v9134, 8.507059e+37
    %v9136 = vand.u32 %v9124, 2147483648
    %v9137 = vor.u32 1.1754944e-38, %v9136
    %v9138 = vsel %vm9135, %v9137, %v9133
    %v9139 = vmul.f32 %v9114, %v9138
    %v9140 = vmin.f32 %v9139, 1.0
    %v9141 = vmax.f32 %v9140, -1.0
    %v9142 = vmul.f32 %v8861, %v8861
    %v9143 = vmin.f32 16.0, %v9142
    %v9144 = vmul.f32 %v9143, 2.1237322e-06
    %v9145 = vadd.f32 %v9144, 0.00028619796
    %v9146 = vmul.f32 %v9143, %v9145
    %v9147 = vadd.f32 %v9146, 0.0036580483
    %v9148 = vmul.f32 %v9143, %v9147
    %v9149 = vadd.f32 %v9148, 0.05243302
    %v9150 = vmul.f32 %v9143, %v9149
    %v9151 = vadd.f32 %v9150, 0.18741608
    %v9152 = vmul.f32 %v9143, %v9151
    %v9153 = vadd.f32 %v9152, 1.1283791
    %v9154 = vmul.f32 %v8861, %v9153
    %v9155 = vmul.f32 %v9143, 3.8918573e-05
    %v9156 = vadd.f32 %v9155, 0.001143296
    %v9157 = vmul.f32 %v9143, %v9156
    %v9158 = vadd.f32 %v9157, 0.014752088
    %v9159 = vmul.f32 %v9143, %v9158
    %v9160 = vadd.f32 %v9159, 0.112945676
    %v9161 = vmul.f32 %v9143, %v9160
    %v9162 = vadd.f32 %v9161, 0.4994258
    %v9163 = vmul.f32 %v9143, %v9162
    %v9164 = vadd.f32 %v9163, 1.0
    %v9165 = vrcp.pop %v9164
    %v9166 = vmul.f32 %v9164, %v9165
    %v9167 = vsub.f32 1.0, %v9166
    %v9168 = vmul.f32 %v9165, %v9167
    %v9169 = vadd.f32 %v9165, %v9168
    %vm9170 = vweird.f32 %v9164
    %vm9171 = vweird.f32 %v9165
    %vm9172 = vmor %vm9170, %vm9171
    %v9173 = vsel %vm9172, %v9165, %v9169
    %v9174 = vand.u32 2147483647, %v9164
    %vm9175 = vcmp.eq.f32.partialorder %v9174, 8.507059e+37
    %v9176 = vand.u32 %v9164, 2147483648
    %v9177 = vor.u32 1.1754944e-38, %v9176
    %v9178 = vsel %vm9175, %v9177, %v9173
    %v9179 = vmul.f32 %v9154, %v9178
    %v9180 = vmin.f32 %v9179, 1.0
    %v9181 = vmax.f32 %v9180, -1.0
    %v9182 = vadd.f32 %v8901, 1.0
    %v9183 = vadd.f32 %v8941, 1.0
    %v9184 = vadd.f32 %v8981, 1.0
    %v9185 = vadd.f32 %v9021, 1.0
    %v9186 = vadd.f32 %v9061, 1.0
    %v9187 = vadd.f32 %v9101, 1.0
    %v9188 = vadd.f32 %v9141, 1.0
    %v9189 = vadd.f32 %v9181, 1.0
    %v9190 = vmul.f32 %v8846, %v9182
    %v9191 = vmul.f32 %v8847, %v9183
    %v9192 = vmul.f32 %v8848, %v9184
    %v9193 = vmul.f32 %v8849, %v9185
    %v9194 = vmul.f32 %v8850, %v9186
    %v9195 = vmul.f32 %v8851, %v9187
    %v9196 = vmul.f32 %v8852, %v9188
    %v9197 = vmul.f32 %v8853, %v9189
    %v9198 = vadd.f32 %v8577, %v9190
    %v9199 = vadd.f32 %v8578, %v9191
    %v9200 = vadd.f32 %v8579, %v9192
    %v9201 = vadd.f32 %v8580, %v9193
    %v9202 = vadd.f32 %v8581, %v9194
    %v9203 = vadd.f32 %v8582, %v9195
    %v9204 = vadd.f32 %v8583, %v9196
    %v9205 = vadd.f32 %v8584, %v9197
    %s9206 = scalar_lea.vmem %s6, 1
    %v9207 = vld [vmem:[%s9206] sm:$0x1]
    %s9208 = scalar_lea.vmem %s7, 1
    %v9209 = vld [vmem:[%s9208] sm:$0x1]
    %9210 = vadd.xlane.f32.xlu0 %v9198
    %v9211 = vpop.xlane.xlu0 %9210
    %9212 = vadd.xlane.f32.xlu0 %v9199
    %v9213 = vpop.xlane.xlu0 %9212
    %9214 = vadd.xlane.f32.xlu0 %v9200
    %v9215 = vpop.xlane.xlu0 %9214
    %9216 = vadd.xlane.f32.xlu0 %v9201
    %v9217 = vpop.xlane.xlu0 %9216
    %9218 = vadd.xlane.f32.xlu0 %v9202
    %v9219 = vpop.xlane.xlu0 %9218
    %9220 = vadd.xlane.f32.xlu0 %v9203
    %v9221 = vpop.xlane.xlu0 %9220
    %9222 = vadd.xlane.f32.xlu0 %v9204
    %v9223 = vpop.xlane.xlu0 %9222
    %9224 = vadd.xlane.f32.xlu0 %v9205
    %v9225 = vpop.xlane.xlu0 %9224
    %v9226 = vmul.f32 %v9198, %v9198
    %v9227 = vmul.f32 %v9199, %v9199
    %v9228 = vmul.f32 %v9200, %v9200
    %v9229 = vmul.f32 %v9201, %v9201
    %v9230 = vmul.f32 %v9202, %v9202
    %v9231 = vmul.f32 %v9203, %v9203
    %v9232 = vmul.f32 %v9204, %v9204
    %v9233 = vmul.f32 %v9205, %v9205
    %9234 = vadd.xlane.f32.xlu0 %v9226
    %v9235 = vpop.xlane.xlu0 %9234
    %9236 = vadd.xlane.f32.xlu0 %v9227
    %v9237 = vpop.xlane.xlu0 %9236
    %9238 = vadd.xlane.f32.xlu0 %v9228
    %v9239 = vpop.xlane.xlu0 %9238
    %9240 = vadd.xlane.f32.xlu0 %v9229
    %v9241 = vpop.xlane.xlu0 %9240
    %9242 = vadd.xlane.f32.xlu0 %v9230
    %v9243 = vpop.xlane.xlu0 %9242
    %9244 = vadd.xlane.f32.xlu0 %v9231
    %v9245 = vpop.xlane.xlu0 %9244
    %9246 = vadd.xlane.f32.xlu0 %v9232
    %v9247 = vpop.xlane.xlu0 %9246
    %9248 = vadd.xlane.f32.xlu0 %v9233
    %v9249 = vpop.xlane.xlu0 %9248
    %v9250 = vmul.f32 %v9211, 0.0078125
    %v9251 = vmul.f32 %v9213, 0.0078125
    %v9252 = vmul.f32 %v9215, 0.0078125
    %v9253 = vmul.f32 %v9217, 0.0078125
    %v9254 = vmul.f32 %v9219, 0.0078125
    %v9255 = vmul.f32 %v9221, 0.0078125
    %v9256 = vmul.f32 %v9223, 0.0078125
    %v9257 = vmul.f32 %v9225, 0.0078125
    %v9258 = vmul.f32 %v9235, 0.0078125
    %v9259 = vmul.f32 %v9237, 0.0078125
    %v9260 = vmul.f32 %v9239, 0.0078125
    %v9261 = vmul.f32 %v9241, 0.0078125
    %v9262 = vmul.f32 %v9243, 0.0078125
    %v9263 = vmul.f32 %v9245, 0.0078125
    %v9264 = vmul.f32 %v9247, 0.0078125
    %v9265 = vmul.f32 %v9249, 0.0078125
    %v9266 = vmul.f32 %v9250, %v9250
    %v9267 = vmul.f32 %v9251, %v9251
    %v9268 = vmul.f32 %v9252, %v9252
    %v9269 = vmul.f32 %v9253, %v9253
    %v9270 = vmul.f32 %v9254, %v9254
    %v9271 = vmul.f32 %v9255, %v9255
    %v9272 = vmul.f32 %v9256, %v9256
    %v9273 = vmul.f32 %v9257, %v9257
    %v9274 = vsub.f32 %v9258, %v9266
    %v9275 = vsub.f32 %v9259, %v9267
    %v9276 = vsub.f32 %v9260, %v9268
    %v9277 = vsub.f32 %v9261, %v9269
    %v9278 = vsub.f32 %v9262, %v9270
    %v9279 = vsub.f32 %v9263, %v9271
    %v9280 = vsub.f32 %v9264, %v9272
    %v9281 = vsub.f32 %v9265, %v9273
    %v9282 = vsub.f32 %v9198, %v9250
    %v9283 = vsub.f32 %v9199, %v9251
    %v9284 = vsub.f32 %v9200, %v9252
    %v9285 = vsub.f32 %v9201, %v9253
    %v9286 = vsub.f32 %v9202, %v9254
    %v9287 = vsub.f32 %v9203, %v9255
    %v9288 = vsub.f32 %v9204, %v9256
    %v9289 = vsub.f32 %v9205, %v9257
    %v9290 = vadd.f32 %v9274, 1e-05
    %v9291 = vadd.f32 %v9275, 1e-05
    %v9292 = vadd.f32 %v9276, 1e-05
    %v9293 = vadd.f32 %v9277, 1e-05
    %v9294 = vadd.f32 %v9278, 1e-05
    %v9295 = vadd.f32 %v9279, 1e-05
    %v9296 = vadd.f32 %v9280, 1e-05
    %v9297 = vadd.f32 %v9281, 1e-05
    %v9298 = vrsqrt.pop %v9290
    %v9299 = vmul.f32 %v9298, %v9290
    %v9300 = vmul.f32 %v9299, %v9298
    %v9301 = vmul.f32 0.5, %v9300
    %v9302 = vsub.f32 1.5, %v9301
    %v9303 = vmul.f32 %v9298, %v9302
    %vm9304 = vweird.f32 %v9290
    %vm9305 = vweird.f32 %v9298
    %vm9306 = vmor %vm9304, %vm9305
    %v9307 = vsel %vm9306, %v9298, %v9303
    %v9308 = vrsqrt.pop %v9291
    %v9309 = vmul.f32 %v9308, %v9291
    %v9310 = vmul.f32 %v9309, %v9308
    %v9311 = vmul.f32 0.5, %v9310
    %v9312 = vsub.f32 1.5, %v9311
    %v9313 = vmul.f32 %v9308, %v9312
    %vm9314 = vweird.f32 %v9291
    %vm9315 = vweird.f32 %v9308
    %vm9316 = vmor %vm9314, %vm9315
    %v9317 = vsel %vm9316, %v9308, %v9313
    %v9318 = vrsqrt.pop %v9292
    %v9319 = vmul.f32 %v9318, %v9292
    %v9320 = vmul.f32 %v9319, %v9318
    %v9321 = vmul.f32 0.5, %v9320
    %v9322 = vsub.f32 1.5, %v9321
    %v9323 = vmul.f32 %v9318, %v9322
    %vm9324 = vweird.f32 %v9292
    %vm9325 = vweird.f32 %v9318
    %vm9326 = vmor %vm9324, %vm9325
    %v9327 = vsel %vm9326, %v9318, %v9323
    %v9328 = vrsqrt.pop %v9293
    %v9329 = vmul.f32 %v9328, %v9293
    %v9330 = vmul.f32 %v9329, %v9328
    %v9331 = vmul.f32 0.5, %v9330
    %v9332 = vsub.f32 1.5, %v9331
    %v9333 = vmul.f32 %v9328, %v9332
    %vm9334 = vweird.f32 %v9293
    %vm9335 = vweird.f32 %v9328
    %vm9336 = vmor %vm9334, %vm9335
    %v9337 = vsel %vm9336, %v9328, %v9333
    %v9338 = vrsqrt.pop %v9294
    %v9339 = vmul.f32 %v9338, %v9294
    %v9340 = vmul.f32 %v9339, %v9338
    %v9341 = vmul.f32 0.5, %v9340
    %v9342 = vsub.f32 1.5, %v9341
    %v9343 = vmul.f32 %v9338, %v9342
    %vm9344 = vweird.f32 %v9294
    %vm9345 = vweird.f32 %v9338
    %vm9346 = vmor %vm9344, %vm9345
    %v9347 = vsel %vm9346, %v9338, %v9343
    %v9348 = vrsqrt.pop %v9295
    %v9349 = vmul.f32 %v9348, %v9295
    %v9350 = vmul.f32 %v9349, %v9348
    %v9351 = vmul.f32 0.5, %v9350
    %v9352 = vsub.f32 1.5, %v9351
    %v9353 = vmul.f32 %v9348, %v9352
    %vm9354 = vweird.f32 %v9295
    %vm9355 = vweird.f32 %v9348
    %vm9356 = vmor %vm9354, %vm9355
    %v9357 = vsel %vm9356, %v9348, %v9353
    %v9358 = vrsqrt.pop %v9296
    %v9359 = vmul.f32 %v9358, %v9296
    %v9360 = vmul.f32 %v9359, %v9358
    %v9361 = vmul.f32 0.5, %v9360
    %v9362 = vsub.f32 1.5, %v9361
    %v9363 = vmul.f32 %v9358, %v9362
    %vm9364 = vweird.f32 %v9296
    %vm9365 = vweird.f32 %v9358
    %vm9366 = vmor %vm9364, %vm9365
    %v9367 = vsel %vm9366, %v9358, %v9363
    %v9368 = vrsqrt.pop %v9297
    %v9369 = vmul.f32 %v9368, %v9297
    %v9370 = vmul.f32 %v9369, %v9368
    %v9371 = vmul.f32 0.5, %v9370
    %v9372 = vsub.f32 1.5, %v9371
    %v9373 = vmul.f32 %v9368, %v9372
    %vm9374 = vweird.f32 %v9297
    %vm9375 = vweird.f32 %v9368
    %vm9376 = vmor %vm9374, %vm9375
    %v9377 = vsel %vm9376, %v9368, %v9373
    %v9378 = vmul.f32 %v9282, %v9307
    %v9379 = vmul.f32 %v9283, %v9317
    %v9380 = vmul.f32 %v9284, %v9327
    %v9381 = vmul.f32 %v9285, %v9337
    %v9382 = vmul.f32 %v9286, %v9347
    %v9383 = vmul.f32 %v9287, %v9357
    %v9384 = vmul.f32 %v9288, %v9367
    %v9385 = vmul.f32 %v9289, %v9377
    %v9387 = vperm.slane %v9207, 0
    %v9389 = vmul.f32 %v9378, %v9387
    %v9390 = vmul.f32 %v9379, %v9387
    %v9391 = vmul.f32 %v9380, %v9387
    %v9392 = vmul.f32 %v9381, %v9387
    %v9393 = vmul.f32 %v9382, %v9387
    %v9394 = vmul.f32 %v9383, %v9387
    %v9395 = vmul.f32 %v9384, %v9387
    %v9396 = vmul.f32 %v9385, %v9387
    %v9398 = vperm.slane %v9209, 0
    %v9400 = vadd.f32 %v9389, %v9398
    %v9401 = vadd.f32 %v9390, %v9398
    %v9402 = vadd.f32 %v9391, %v9398
    %v9403 = vadd.f32 %v9392, %v9398
    %v9404 = vadd.f32 %v9393, %v9398
    %v9405 = vadd.f32 %v9394, %v9398
    %v9406 = vadd.f32 %v9395, %v9398
    %v9407 = vadd.f32 %v9396, %v9398
    %s9408 = scalar_lea.vmem [#allocation4], 128
    %v9409 = vld [vmem:[%s9408] sm:$0xff]
    %v9410 = vld [vmem:[%s9408 + $0x8] sm:$0xff]
    %v9411 = vld [vmem:[%s9408 + $0x10] sm:$0xff]
    %v9412 = vld [vmem:[%s9408 + $0x18] sm:$0xff]
    %v9413 = vld [vmem:[%s9408 + $0x20] sm:$0xff]
    %v9414 = vld [vmem:[%s9408 + $0x28] sm:$0xff]
    %v9415 = vld [vmem:[%s9408 + $0x30] sm:$0xff]
    %v9416 = vld [vmem:[%s9408 + $0x38] sm:$0xff]
    %v9417 = vld [vmem:[%s9408 + $0x40] sm:$0xff]
    %v9418 = vld [vmem:[%s9408 + $0x48] sm:$0xff]
    %v9419 = vld [vmem:[%s9408 + $0x50] sm:$0xff]
    %v9420 = vld [vmem:[%s9408 + $0x58] sm:$0xff]
    %v9421 = vld [vmem:[%s9408 + $0x60] sm:$0xff]
    %v9422 = vld [vmem:[%s9408 + $0x68] sm:$0xff]
    %v9423 = vld [vmem:[%s9408 + $0x70] sm:$0xff]
    %v9424 = vld [vmem:[%s9408 + $0x78] sm:$0xff]
    %s9425 = scalar_lea.vmem %s9, 1
    %v9426 = vld [vmem:[%s9425] sm:$0x1]
    %v9428 = vperm.slane %v9426, 0
    %9430 = vmatpush.msra.mxu0 %v9424
    %9431 = vmatpush.msra.mxu0 %v9423
    %9432 = vmatpush.msra.mxu0 %v9422
    %9433 = vmatpush.msra.mxu0 %v9421
    %9434 = vmatpush.msra.mxu0 %v9420
    %9435 = vmatpush.msra.mxu0 %v9419
    %9436 = vmatpush.msra.mxu0 %v9418
    %9437 = vmatpush.msra.mxu0 %v9417
    %9438 = vmatpush.msra.mxu0 %v9416
    %9439 = vmatpush.msra.mxu0 %v9415
    %9440 = vmatpush.msra.mxu0 %v9414
    %9441 = vmatpush.msra.mxu0 %v9413
    %9442 = vmatpush.msra.mxu0 %v9412
    %9443 = vmatpush.msra.mxu0 %v9411
    %9444 = vmatpush.msra.mxu0 %v9410
    %9445 = vmatpush.msra.mxu0 %v9409
    %9446 = vmatmul.f32.gmra.mxu0 %v9400
    %v9447 = vpop.f32.mrf.mxu0
    %v9448 = vadd.f32 %v9428, %v9447
    %9449 = vmatmul.f32.gmra.mxu0 %v9401
    %v9450 = vpop.f32.mrf.mxu0
    %v9451 = vadd.f32 %v9428, %v9450
    %9452 = vmatmul.f32.gmra.mxu0 %v9402
    %v9453 = vpop.f32.mrf.mxu0
    %v9454 = vadd.f32 %v9428, %v9453
    %9455 = vmatmul.f32.gmra.mxu0 %v9403
    %v9456 = vpop.f32.mrf.mxu0
    %v9457 = vadd.f32 %v9428, %v9456
    %9458 = vmatmul.f32.gmra.mxu0 %v9404
    %v9459 = vpop.f32.mrf.mxu0
    %v9460 = vadd.f32 %v9428, %v9459
    %9461 = vmatmul.f32.gmra.mxu0 %v9405
    %v9462 = vpop.f32.mrf.mxu0
    %v9463 = vadd.f32 %v9428, %v9462
    %9464 = vmatmul.f32.gmra.mxu0 %v9406
    %v9465 = vpop.f32.mrf.mxu0
    %v9466 = vadd.f32 %v9428, %v9465
    %9467 = vmatmul.f32.gmra.mxu0 %v9407
    %v9468 = vpop.f32.mrf.mxu0
    %v9469 = vadd.f32 %v9428, %v9468
    %9470 = vdwg.mxu0
    %v9471 = vmul.f32 %v9448, 0.5
    %v9472 = vmul.f32 %v9451, 0.5
    %v9473 = vmul.f32 %v9454, 0.5
    %v9474 = vmul.f32 %v9457, 0.5
    %v9475 = vmul.f32 %v9460, 0.5
    %v9476 = vmul.f32 %v9463, 0.5
    %v9477 = vmul.f32 %v9466, 0.5
    %v9478 = vmul.f32 %v9469, 0.5
    %v9479 = vmul.f32 %v9448, 0.70710677
    %v9480 = vmul.f32 %v9451, 0.70710677
    %v9481 = vmul.f32 %v9454, 0.70710677
    %v9482 = vmul.f32 %v9457, 0.70710677
    %v9483 = vmul.f32 %v9460, 0.70710677
    %v9484 = vmul.f32 %v9463, 0.70710677
    %v9485 = vmul.f32 %v9466, 0.70710677
    %v9486 = vmul.f32 %v9469, 0.70710677
    %v9487 = vmul.f32 %v9479, %v9479
    %v9488 = vmin.f32 16.0, %v9487
    %v9489 = vmul.f32 %v9488, 2.1237322e-06
    %v9490 = vadd.f32 %v9489, 0.00028619796
    %v9491 = vmul.f32 %v9488, %v9490
    %v9492 = vadd.f32 %v9491, 0.0036580483
    %v9493 = vmul.f32 %v9488, %v9492
    %v9494 = vadd.f32 %v9493, 0.05243302
    %v9495 = vmul.f32 %v9488, %v9494
    %v9496 = vadd.f32 %v9495, 0.18741608
    %v9497 = vmul.f32 %v9488, %v9496
    %v9498 = vadd.f32 %v9497, 1.1283791
    %v9499 = vmul.f32 %v9479, %v9498
    %v9500 = vmul.f32 %v9488, 3.8918573e-05
    %v9501 = vadd.f32 %v9500, 0.001143296
    %v9502 = vmul.f32 %v9488, %v9501
    %v9503 = vadd.f32 %v9502, 0.014752088
    %v9504 = vmul.f32 %v9488, %v9503
    %v9505 = vadd.f32 %v9504, 0.112945676
    %v9506 = vmul.f32 %v9488, %v9505
    %v9507 = vadd.f32 %v9506, 0.4994258
    %v9508 = vmul.f32 %v9488, %v9507
    %v9509 = vadd.f32 %v9508, 1.0
    %v9510 = vrcp.pop %v9509
    %v9511 = vmul.f32 %v9509, %v9510
    %v9512 = vsub.f32 1.0, %v9511
    %v9513 = vmul.f32 %v9510, %v9512
    %v9514 = vadd.f32 %v9510, %v9513
    %vm9515 = vweird.f32 %v9509
    %vm9516 = vweird.f32 %v9510
    %vm9517 = vmor %vm9515, %vm9516
    %v9518 = vsel %vm9517, %v9510, %v9514
    %v9519 = vand.u32 2147483647, %v9509
    %vm9520 = vcmp.eq.f32.partialorder %v9519, 8.507059e+37
    %v9521 = vand.u32 %v9509, 2147483648
    %v9522 = vor.u32 1.1754944e-38, %v9521
    %v9523 = vsel %vm9520, %v9522, %v9518
    %v9524 = vmul.f32 %v9499, %v9523
    %v9525 = vmin.f32 %v9524, 1.0
    %v9526 = vmax.f32 %v9525, -1.0
    %v9527 = vmul.f32 %v9480, %v9480
    %v9528 = vmin.f32 16.0, %v9527
    %v9529 = vmul.f32 %v9528, 2.1237322e-06
    %v9530 = vadd.f32 %v9529, 0.00028619796
    %v9531 = vmul.f32 %v9528, %v9530
    %v9532 = vadd.f32 %v9531, 0.0036580483
    %v9533 = vmul.f32 %v9528, %v9532
    %v9534 = vadd.f32 %v9533, 0.05243302
    %v9535 = vmul.f32 %v9528, %v9534
    %v9536 = vadd.f32 %v9535, 0.18741608
    %v9537 = vmul.f32 %v9528, %v9536
    %v9538 = vadd.f32 %v9537, 1.1283791
    %v9539 = vmul.f32 %v9480, %v9538
    %v9540 = vmul.f32 %v9528, 3.8918573e-05
    %v9541 = vadd.f32 %v9540, 0.001143296
    %v9542 = vmul.f32 %v9528, %v9541
    %v9543 = vadd.f32 %v9542, 0.014752088
    %v9544 = vmul.f32 %v9528, %v9543
    %v9545 = vadd.f32 %v9544, 0.112945676
    %v9546 = vmul.f32 %v9528, %v9545
    %v9547 = vadd.f32 %v9546, 0.4994258
    %v9548 = vmul.f32 %v9528, %v9547
    %v9549 = vadd.f32 %v9548, 1.0
    %v9550 = vrcp.pop %v9549
    %v9551 = vmul.f32 %v9549, %v9550
    %v9552 = vsub.f32 1.0, %v9551
    %v9553 = vmul.f32 %v9550, %v9552
    %v9554 = vadd.f32 %v9550, %v9553
    %vm9555 = vweird.f32 %v9549
    %vm9556 = vweird.f32 %v9550
    %vm9557 = vmor %vm9555, %vm9556
    %v9558 = vsel %vm9557, %v9550, %v9554
    %v9559 = vand.u32 2147483647, %v9549
    %vm9560 = vcmp.eq.f32.partialorder %v9559, 8.507059e+37
    %v9561 = vand.u32 %v9549, 2147483648
    %v9562 = vor.u32 1.1754944e-38, %v9561
    %v9563 = vsel %vm9560, %v9562, %v9558
    %v9564 = vmul.f32 %v9539, %v9563
    %v9565 = vmin.f32 %v9564, 1.0
    %v9566 = vmax.f32 %v9565, -1.0
    %v9567 = vmul.f32 %v9481, %v9481
    %v9568 = vmin.f32 16.0, %v9567
    %v9569 = vmul.f32 %v9568, 2.1237322e-06
    %v9570 = vadd.f32 %v9569, 0.00028619796
    %v9571 = vmul.f32 %v9568, %v9570
    %v9572 = vadd.f32 %v9571, 0.0036580483
    %v9573 = vmul.f32 %v9568, %v9572
    %v9574 = vadd.f32 %v9573, 0.05243302
    %v9575 = vmul.f32 %v9568, %v9574
    %v9576 = vadd.f32 %v9575, 0.18741608
    %v9577 = vmul.f32 %v9568, %v9576
    %v9578 = vadd.f32 %v9577, 1.1283791
    %v9579 = vmul.f32 %v9481, %v9578
    %v9580 = vmul.f32 %v9568, 3.8918573e-05
    %v9581 = vadd.f32 %v9580, 0.001143296
    %v9582 = vmul.f32 %v9568, %v9581
    %v9583 = vadd.f32 %v9582, 0.014752088
    %v9584 = vmul.f32 %v9568, %v9583
    %v9585 = vadd.f32 %v9584, 0.112945676
    %v9586 = vmul.f32 %v9568, %v9585
    %v9587 = vadd.f32 %v9586, 0.4994258
    %v9588 = vmul.f32 %v9568, %v9587
    %v9589 = vadd.f32 %v9588, 1.0
    %v9590 = vrcp.pop %v9589
    %v9591 = vmul.f32 %v9589, %v9590
    %v9592 = vsub.f32 1.0, %v9591
    %v9593 = vmul.f32 %v9590, %v9592
    %v9594 = vadd.f32 %v9590, %v9593
    %vm9595 = vweird.f32 %v9589
    %vm9596 = vweird.f32 %v9590
    %vm9597 = vmor %vm9595, %vm9596
    %v9598 = vsel %vm9597, %v9590, %v9594
    %v9599 = vand.u32 2147483647, %v9589
    %vm9600 = vcmp.eq.f32.partialorder %v9599, 8.507059e+37
    %v9601 = vand.u32 %v9589, 2147483648
    %v9602 = vor.u32 1.1754944e-38, %v9601
    %v9603 = vsel %vm9600, %v9602, %v9598
    %v9604 = vmul.f32 %v9579, %v9603
    %v9605 = vmin.f32 %v9604, 1.0
    %v9606 = vmax.f32 %v9605, -1.0
    %v9607 = vmul.f32 %v9482, %v9482
    %v9608 = vmin.f32 16.0, %v9607
    %v9609 = vmul.f32 %v9608, 2.1237322e-06
    %v9610 = vadd.f32 %v9609, 0.00028619796
    %v9611 = vmul.f32 %v9608, %v9610
    %v9612 = vadd.f32 %v9611, 0.0036580483
    %v9613 = vmul.f32 %v9608, %v9612
    %v9614 = vadd.f32 %v9613, 0.05243302
    %v9615 = vmul.f32 %v9608, %v9614
    %v9616 = vadd.f32 %v9615, 0.18741608
    %v9617 = vmul.f32 %v9608, %v9616
    %v9618 = vadd.f32 %v9617, 1.1283791
    %v9619 = vmul.f32 %v9482, %v9618
    %v9620 = vmul.f32 %v9608, 3.8918573e-05
    %v9621 = vadd.f32 %v9620, 0.001143296
    %v9622 = vmul.f32 %v9608, %v9621
    %v9623 = vadd.f32 %v9622, 0.014752088
    %v9624 = vmul.f32 %v9608, %v9623
    %v9625 = vadd.f32 %v9624, 0.112945676
    %v9626 = vmul.f32 %v9608, %v9625
    %v9627 = vadd.f32 %v9626, 0.4994258
    %v9628 = vmul.f32 %v9608, %v9627
    %v9629 = vadd.f32 %v9628, 1.0
    %v9630 = vrcp.pop %v9629
    %v9631 = vmul.f32 %v9629, %v9630
    %v9632 = vsub.f32 1.0, %v9631
    %v9633 = vmul.f32 %v9630, %v9632
    %v9634 = vadd.f32 %v9630, %v9633
    %vm9635 = vweird.f32 %v9629
    %vm9636 = vweird.f32 %v9630
    %vm9637 = vmor %vm9635, %vm9636
    %v9638 = vsel %vm9637, %v9630, %v9634
    %v9639 = vand.u32 2147483647, %v9629
    %vm9640 = vcmp.eq.f32.partialorder %v9639, 8.507059e+37
    %v9641 = vand.u32 %v9629, 2147483648
    %v9642 = vor.u32 1.1754944e-38, %v9641
    %v9643 = vsel %vm9640, %v9642, %v9638
    %v9644 = vmul.f32 %v9619, %v9643
    %v9645 = vmin.f32 %v9644, 1.0
    %v9646 = vmax.f32 %v9645, -1.0
    %v9647 = vmul.f32 %v9483, %v9483
    %v9648 = vmin.f32 16.0, %v9647
    %v9649 = vmul.f32 %v9648, 2.1237322e-06
    %v9650 = vadd.f32 %v9649, 0.00028619796
    %v9651 = vmul.f32 %v9648, %v9650
    %v9652 = vadd.f32 %v9651, 0.0036580483
    %v9653 = vmul.f32 %v9648, %v9652
    %v9654 = vadd.f32 %v9653, 0.05243302
    %v9655 = vmul.f32 %v9648, %v9654
    %v9656 = vadd.f32 %v9655, 0.18741608
    %v9657 = vmul.f32 %v9648, %v9656
    %v9658 = vadd.f32 %v9657, 1.1283791
    %v9659 = vmul.f32 %v9483, %v9658
    %v9660 = vmul.f32 %v9648, 3.8918573e-05
    %v9661 = vadd.f32 %v9660, 0.001143296
    %v9662 = vmul.f32 %v9648, %v9661
    %v9663 = vadd.f32 %v9662, 0.014752088
    %v9664 = vmul.f32 %v9648, %v9663
    %v9665 = vadd.f32 %v9664, 0.112945676
    %v9666 = vmul.f32 %v9648, %v9665
    %v9667 = vadd.f32 %v9666, 0.4994258
    %v9668 = vmul.f32 %v9648, %v9667
    %v9669 = vadd.f32 %v9668, 1.0
    %v9670 = vrcp.pop %v9669
    %v9671 = vmul.f32 %v9669, %v9670
    %v9672 = vsub.f32 1.0, %v9671
    %v9673 = vmul.f32 %v9670, %v9672
    %v9674 = vadd.f32 %v9670, %v9673
    %vm9675 = vweird.f32 %v9669
    %vm9676 = vweird.f32 %v9670
    %vm9677 = vmor %vm9675, %vm9676
    %v9678 = vsel %vm9677, %v9670, %v9674
    %v9679 = vand.u32 2147483647, %v9669
    %vm9680 = vcmp.eq.f32.partialorder %v9679, 8.507059e+37
    %v9681 = vand.u32 %v9669, 2147483648
    %v9682 = vor.u32 1.1754944e-38, %v9681
    %v9683 = vsel %vm9680, %v9682, %v9678
    %v9684 = vmul.f32 %v9659, %v9683
    %v9685 = vmin.f32 %v9684, 1.0
    %v9686 = vmax.f32 %v9685, -1.0
    %v9687 = vmul.f32 %v9484, %v9484
    %v9688 = vmin.f32 16.0, %v9687
    %v9689 = vmul.f32 %v9688, 2.1237322e-06
    %v9690 = vadd.f32 %v9689, 0.00028619796
    %v9691 = vmul.f32 %v9688, %v9690
    %v9692 = vadd.f32 %v9691, 0.0036580483
    %v9693 = vmul.f32 %v9688, %v9692
    %v9694 = vadd.f32 %v9693, 0.05243302
    %v9695 = vmul.f32 %v9688, %v9694
    %v9696 = vadd.f32 %v9695, 0.18741608
    %v9697 = vmul.f32 %v9688, %v9696
    %v9698 = vadd.f32 %v9697, 1.1283791
    %v9699 = vmul.f32 %v9484, %v9698
    %v9700 = vmul.f32 %v9688, 3.8918573e-05
    %v9701 = vadd.f32 %v9700, 0.001143296
    %v9702 = vmul.f32 %v9688, %v9701
    %v9703 = vadd.f32 %v9702, 0.014752088
    %v9704 = vmul.f32 %v9688, %v9703
    %v9705 = vadd.f32 %v9704, 0.112945676
    %v9706 = vmul.f32 %v9688, %v9705
    %v9707 = vadd.f32 %v9706, 0.4994258
    %v9708 = vmul.f32 %v9688, %v9707
    %v9709 = vadd.f32 %v9708, 1.0
    %v9710 = vrcp.pop %v9709
    %v9711 = vmul.f32 %v9709, %v9710
    %v9712 = vsub.f32 1.0, %v9711
    %v9713 = vmul.f32 %v9710, %v9712
    %v9714 = vadd.f32 %v9710, %v9713
    %vm9715 = vweird.f32 %v9709
    %vm9716 = vweird.f32 %v9710
    %vm9717 = vmor %vm9715, %vm9716
    %v9718 = vsel %vm9717, %v9710, %v9714
    %v9719 = vand.u32 2147483647, %v9709
    %vm9720 = vcmp.eq.f32.partialorder %v9719, 8.507059e+37
    %v9721 = vand.u32 %v9709, 2147483648
    %v9722 = vor.u32 1.1754944e-38, %v9721
    %v9723 = vsel %vm9720, %v9722, %v9718
    %v9724 = vmul.f32 %v9699, %v9723
    %v9725 = vmin.f32 %v9724, 1.0
    %v9726 = vmax.f32 %v9725, -1.0
    %v9727 = vmul.f32 %v9485, %v9485
    %v9728 = vmin.f32 16.0, %v9727
    %v9729 = vmul.f32 %v9728, 2.1237322e-06
    %v9730 = vadd.f32 %v9729, 0.00028619796
    %v9731 = vmul.f32 %v9728, %v9730
    %v9732 = vadd.f32 %v9731, 0.0036580483
    %v9733 = vmul.f32 %v9728, %v9732
    %v9734 = vadd.f32 %v9733, 0.05243302
    %v9735 = vmul.f32 %v9728, %v9734
    %v9736 = vadd.f32 %v9735, 0.18741608
    %v9737 = vmul.f32 %v9728, %v9736
    %v9738 = vadd.f32 %v9737, 1.1283791
    %v9739 = vmul.f32 %v9485, %v9738
    %v9740 = vmul.f32 %v9728, 3.8918573e-05
    %v9741 = vadd.f32 %v9740, 0.001143296
    %v9742 = vmul.f32 %v9728, %v9741
    %v9743 = vadd.f32 %v9742, 0.014752088
    %v9744 = vmul.f32 %v9728, %v9743
    %v9745 = vadd.f32 %v9744, 0.112945676
    %v9746 = vmul.f32 %v9728, %v9745
    %v9747 = vadd.f32 %v9746, 0.4994258
    %v9748 = vmul.f32 %v9728, %v9747
    %v9749 = vadd.f32 %v9748, 1.0
    %v9750 = vrcp.pop %v9749
    %v9751 = vmul.f32 %v9749, %v9750
    %v9752 = vsub.f32 1.0, %v9751
    %v9753 = vmul.f32 %v9750, %v9752
    %v9754 = vadd.f32 %v9750, %v9753
    %vm9755 = vweird.f32 %v9749
    %vm9756 = vweird.f32 %v9750
    %vm9757 = vmor %vm9755, %vm9756
    %v9758 = vsel %vm9757, %v9750, %v9754
    %v9759 = vand.u32 2147483647, %v9749
    %vm9760 = vcmp.eq.f32.partialorder %v9759, 8.507059e+37
    %v9761 = vand.u32 %v9749, 2147483648
    %v9762 = vor.u32 1.1754944e-38, %v9761
    %v9763 = vsel %vm9760, %v9762, %v9758
    %v9764 = vmul.f32 %v9739, %v9763
    %v9765 = vmin.f32 %v9764, 1.0
    %v9766 = vmax.f32 %v9765, -1.0
    %v9767 = vmul.f32 %v9486, %v9486
    %v9768 = vmin.f32 16.0, %v9767
    %v9769 = vmul.f32 %v9768, 2.1237322e-06
    %v9770 = vadd.f32 %v9769, 0.00028619796
    %v9771 = vmul.f32 %v9768, %v9770
    %v9772 = vadd.f32 %v9771, 0.0036580483
    %v9773 = vmul.f32 %v9768, %v9772
    %v9774 = vadd.f32 %v9773, 0.05243302
    %v9775 = vmul.f32 %v9768, %v9774
    %v9776 = vadd.f32 %v9775, 0.18741608
    %v9777 = vmul.f32 %v9768, %v9776
    %v9778 = vadd.f32 %v9777, 1.1283791
    %v9779 = vmul.f32 %v9486, %v9778
    %v9780 = vmul.f32 %v9768, 3.8918573e-05
    %v9781 = vadd.f32 %v9780, 0.001143296
    %v9782 = vmul.f32 %v9768, %v9781
    %v9783 = vadd.f32 %v9782, 0.014752088
    %v9784 = vmul.f32 %v9768, %v9783
    %v9785 = vadd.f32 %v9784, 0.112945676
    %v9786 = vmul.f32 %v9768, %v9785
    %v9787 = vadd.f32 %v9786, 0.4994258
    %v9788 = vmul.f32 %v9768, %v9787
    %v9789 = vadd.f32 %v9788, 1.0
    %v9790 = vrcp.pop %v9789
    %v9791 = vmul.f32 %v9789, %v9790
    %v9792 = vsub.f32 1.0, %v9791
    %v9793 = vmul.f32 %v9790, %v9792
    %v9794 = vadd.f32 %v9790, %v9793
    %vm9795 = vweird.f32 %v9789
    %vm9796 = vweird.f32 %v9790
    %vm9797 = vmor %vm9795, %vm9796
    %v9798 = vsel %vm9797, %v9790, %v9794
    %v9799 = vand.u32 2147483647, %v9789
    %vm9800 = vcmp.eq.f32.partialorder %v9799, 8.507059e+37
    %v9801 = vand.u32 %v9789, 2147483648
    %v9802 = vor.u32 1.1754944e-38, %v9801
    %v9803 = vsel %vm9800, %v9802, %v9798
    %v9804 = vmul.f32 %v9779, %v9803
    %v9805 = vmin.f32 %v9804, 1.0
    %v9806 = vmax.f32 %v9805, -1.0
    %v9807 = vadd.f32 %v9526, 1.0
    %v9808 = vadd.f32 %v9566, 1.0
    %v9809 = vadd.f32 %v9606, 1.0
    %v9810 = vadd.f32 %v9646, 1.0
    %v9811 = vadd.f32 %v9686, 1.0
    %v9812 = vadd.f32 %v9726, 1.0
    %v9813 = vadd.f32 %v9766, 1.0
    %v9814 = vadd.f32 %v9806, 1.0
    %v9815 = vmul.f32 %v9471, %v9807
    %v9816 = vmul.f32 %v9472, %v9808
    %v9817 = vmul.f32 %v9473, %v9809
    %v9818 = vmul.f32 %v9474, %v9810
    %v9819 = vmul.f32 %v9475, %v9811
    %v9820 = vmul.f32 %v9476, %v9812
    %v9821 = vmul.f32 %v9477, %v9813
    %v9822 = vmul.f32 %v9478, %v9814
    %v9823 = vadd.f32 %v9198, %v9815
    %v9824 = vadd.f32 %v9199, %v9816
    %v9825 = vadd.f32 %v9200, %v9817
    %v9826 = vadd.f32 %v9201, %v9818
    %v9827 = vadd.f32 %v9202, %v9819
    %v9828 = vadd.f32 %v9203, %v9820
    %v9829 = vadd.f32 %v9204, %v9821
    %v9830 = vadd.f32 %v9205, %v9822
    %s9831 = scalar_lea.vmem %s6, 2
    %v9832 = vld [vmem:[%s9831] sm:$0x1]
    %s9833 = scalar_lea.vmem %s7, 2
    %v9834 = vld [vmem:[%s9833] sm:$0x1]
    %9835 = vadd.xlane.f32.xlu0 %v9823
    %v9836 = vpop.xlane.xlu0 %9835
    %9837 = vadd.xlane.f32.xlu0 %v9824
    %v9838 = vpop.xlane.xlu0 %9837
    %9839 = vadd.xlane.f32.xlu0 %v9825
    %v9840 = vpop.xlane.xlu0 %9839
    %9841 = vadd.xlane.f32.xlu0 %v9826
    %v9842 = vpop.xlane.xlu0 %9841
    %9843 = vadd.xlane.f32.xlu0 %v9827
    %v9844 = vpop.xlane.xlu0 %9843
    %9845 = vadd.xlane.f32.xlu0 %v9828
    %v9846 = vpop.xlane.xlu0 %9845
    %9847 = vadd.xlane.f32.xlu0 %v9829
    %v9848 = vpop.xlane.xlu0 %9847
    %9849 = vadd.xlane.f32.xlu0 %v9830
    %v9850 = vpop.xlane.xlu0 %9849
    %v9851 = vmul.f32 %v9823, %v9823
    %v9852 = vmul.f32 %v9824, %v9824
    %v9853 = vmul.f32 %v9825, %v9825
    %v9854 = vmul.f32 %v9826, %v9826
    %v9855 = vmul.f32 %v9827, %v9827
    %v9856 = vmul.f32 %v9828, %v9828
    %v9857 = vmul.f32 %v9829, %v9829
    %v9858 = vmul.f32 %v9830, %v9830
    %9859 = vadd.xlane.f32.xlu0 %v9851
    %v9860 = vpop.xlane.xlu0 %9859
    %9861 = vadd.xlane.f32.xlu0 %v9852
    %v9862 = vpop.xlane.xlu0 %9861
    %9863 = vadd.xlane.f32.xlu0 %v9853
    %v9864 = vpop.xlane.xlu0 %9863
    %9865 = vadd.xlane.f32.xlu0 %v9854
    %v9866 = vpop.xlane.xlu0 %9865
    %9867 = vadd.xlane.f32.xlu0 %v9855
    %v9868 = vpop.xlane.xlu0 %9867
    %9869 = vadd.xlane.f32.xlu0 %v9856
    %v9870 = vpop.xlane.xlu0 %9869
    %9871 = vadd.xlane.f32.xlu0 %v9857
    %v9872 = vpop.xlane.xlu0 %9871
    %9873 = vadd.xlane.f32.xlu0 %v9858
    %v9874 = vpop.xlane.xlu0 %9873
    %v9875 = vmul.f32 %v9836, 0.0078125
    %v9876 = vmul.f32 %v9838, 0.0078125
    %v9877 = vmul.f32 %v9840, 0.0078125
    %v9878 = vmul.f32 %v9842, 0.0078125
    %v9879 = vmul.f32 %v9844, 0.0078125
    %v9880 = vmul.f32 %v9846, 0.0078125
    %v9881 = vmul.f32 %v9848, 0.0078125
    %v9882 = vmul.f32 %v9850, 0.0078125
    %v9883 = vmul.f32 %v9860, 0.0078125
    %v9884 = vmul.f32 %v9862, 0.0078125
    %v9885 = vmul.f32 %v9864, 0.0078125
    %v9886 = vmul.f32 %v9866, 0.0078125
    %v9887 = vmul.f32 %v9868, 0.0078125
    %v9888 = vmul.f32 %v9870, 0.0078125
    %v9889 = vmul.f32 %v9872, 0.0078125
    %v9890 = vmul.f32 %v9874, 0.0078125
    %v9891 = vmul.f32 %v9875, %v9875
    %v9892 = vmul.f32 %v9876, %v9876
    %v9893 = vmul.f32 %v9877, %v9877
    %v9894 = vmul.f32 %v9878, %v9878
    %v9895 = vmul.f32 %v9879, %v9879
    %v9896 = vmul.f32 %v9880, %v9880
    %v9897 = vmul.f32 %v9881, %v9881
    %v9898 = vmul.f32 %v9882, %v9882
    %v9899 = vsub.f32 %v9883, %v9891
    %v9900 = vsub.f32 %v9884, %v9892
    %v9901 = vsub.f32 %v9885, %v9893
    %v9902 = vsub.f32 %v9886, %v9894
    %v9903 = vsub.f32 %v9887, %v9895
    %v9904 = vsub.f32 %v9888, %v9896
    %v9905 = vsub.f32 %v9889, %v9897
    %v9906 = vsub.f32 %v9890, %v9898
    %v9907 = vsub.f32 %v9823, %v9875
    %v9908 = vsub.f32 %v9824, %v9876
    %v9909 = vsub.f32 %v9825, %v9877
    %v9910 = vsub.f32 %v9826, %v9878
    %v9911 = vsub.f32 %v9827, %v9879
    %v9912 = vsub.f32 %v9828, %v9880
    %v9913 = vsub.f32 %v9829, %v9881
    %v9914 = vsub.f32 %v9830, %v9882
    %v9915 = vadd.f32 %v9899, 1e-05
    %v9916 = vadd.f32 %v9900, 1e-05
    %v9917 = vadd.f32 %v9901, 1e-05
    %v9918 = vadd.f32 %v9902, 1e-05
    %v9919 = vadd.f32 %v9903, 1e-05
    %v9920 = vadd.f32 %v9904, 1e-05
    %v9921 = vadd.f32 %v9905, 1e-05
    %v9922 = vadd.f32 %v9906, 1e-05
    %v9923 = vrsqrt.pop %v9915
    %v9924 = vmul.f32 %v9923, %v9915
    %v9925 = vmul.f32 %v9924, %v9923
    %v9926 = vmul.f32 0.5, %v9925
    %v9927 = vsub.f32 1.5, %v9926
    %v9928 = vmul.f32 %v9923, %v9927
    %vm9929 = vweird.f32 %v9915
    %vm9930 = vweird.f32 %v9923
    %vm9931 = vmor %vm9929, %vm9930
    %v9932 = vsel %vm9931, %v9923, %v9928
    %v9933 = vrsqrt.pop %v9916
    %v9934 = vmul.f32 %v9933, %v9916
    %v9935 = vmul.f32 %v9934, %v9933
    %v9936 = vmul.f32 0.5, %v9935
    %v9937 = vsub.f32 1.5, %v9936
    %v9938 = vmul.f32 %v9933, %v9937
    %vm9939 = vweird.f32 %v9916
    %vm9940 = vweird.f32 %v9933
    %vm9941 = vmor %vm9939, %vm9940
    %v9942 = vsel %vm9941, %v9933, %v9938
    %v9943 = vrsqrt.pop %v9917
    %v9944 = vmul.f32 %v9943, %v9917
    %v9945 = vmul.f32 %v9944, %v9943
    %v9946 = vmul.f32 0.5, %v9945
    %v9947 = vsub.f32 1.5, %v9946
    %v9948 = vmul.f32 %v9943, %v9947
    %vm9949 = vweird.f32 %v9917
    %vm9950 = vweird.f32 %v9943
    %vm9951 = vmor %vm9949, %vm9950
    %v9952 = vsel %vm9951, %v9943, %v9948
    %v9953 = vrsqrt.pop %v9918
    %v9954 = vmul.f32 %v9953, %v9918
    %v9955 = vmul.f32 %v9954, %v9953
    %v9956 = vmul.f32 0.5, %v9955
    %v9957 = vsub.f32 1.5, %v9956
    %v9958 = vmul.f32 %v9953, %v9957
    %vm9959 = vweird.f32 %v9918
    %vm9960 = vweird.f32 %v9953
    %vm9961 = vmor %vm9959, %vm9960
    %v9962 = vsel %vm9961, %v9953, %v9958
    %v9963 = vrsqrt.pop %v9919
    %v9964 = vmul.f32 %v9963, %v9919
    %v9965 = vmul.f32 %v9964, %v9963
    %v9966 = vmul.f32 0.5, %v9965
    %v9967 = vsub.f32 1.5, %v9966
    %v9968 = vmul.f32 %v9963, %v9967
    %vm9969 = vweird.f32 %v9919
    %vm9970 = vweird.f32 %v9963
    %vm9971 = vmor %vm9969, %vm9970
    %v9972 = vsel %vm9971, %v9963, %v9968
    %v9973 = vrsqrt.pop %v9920
    %v9974 = vmul.f32 %v9973, %v9920
    %v9975 = vmul.f32 %v9974, %v9973
    %v9976 = vmul.f32 0.5, %v9975
    %v9977 = vsub.f32 1.5, %v9976
    %v9978 = vmul.f32 %v9973, %v9977
    %vm9979 = vweird.f32 %v9920
    %vm9980 = vweird.f32 %v9973
    %vm9981 = vmor %vm9979, %vm9980
    %v9982 = vsel %vm9981, %v9973, %v9978
    %v9983 = vrsqrt.pop %v9921
    %v9984 = vmul.f32 %v9983, %v9921
    %v9985 = vmul.f32 %v9984, %v9983
    %v9986 = vmul.f32 0.5, %v9985
    %v9987 = vsub.f32 1.5, %v9986
    %v9988 = vmul.f32 %v9983, %v9987
    %vm9989 = vweird.f32 %v9921
    %vm9990 = vweird.f32 %v9983
    %vm9991 = vmor %vm9989, %vm9990
    %v9992 = vsel %vm9991, %v9983, %v9988
    %v9993 = vrsqrt.pop %v9922
    %v9994 = vmul.f32 %v9993, %v9922
    %v9995 = vmul.f32 %v9994, %v9993
    %v9996 = vmul.f32 0.5, %v9995
    %v9997 = vsub.f32 1.5, %v9996
    %v9998 = vmul.f32 %v9993, %v9997
    %vm9999 = vweird.f32 %v9922
    %vm10000 = vweird.f32 %v9993
    %vm10001 = vmor %vm9999, %vm10000
    %v10002 = vsel %vm10001, %v9993, %v9998
    %v10003 = vmul.f32 %v9907, %v9932
    %v10004 = vmul.f32 %v9908, %v9942
    %v10005 = vmul.f32 %v9909, %v9952
    %v10006 = vmul.f32 %v9910, %v9962
    %v10007 = vmul.f32 %v9911, %v9972
    %v10008 = vmul.f32 %v9912, %v9982
    %v10009 = vmul.f32 %v9913, %v9992
    %v10010 = vmul.f32 %v9914, %v10002
    %v10012 = vperm.slane %v9832, 0
    %v10014 = vmul.f32 %v10003, %v10012
    %v10015 = vmul.f32 %v10004, %v10012
    %v10016 = vmul.f32 %v10005, %v10012
    %v10017 = vmul.f32 %v10006, %v10012
    %v10018 = vmul.f32 %v10007, %v10012
    %v10019 = vmul.f32 %v10008, %v10012
    %v10020 = vmul.f32 %v10009, %v10012
    %v10021 = vmul.f32 %v10010, %v10012
    %v10023 = vperm.slane %v9834, 0
    %v10025 = vadd.f32 %v10014, %v10023
    %v10026 = vadd.f32 %v10015, %v10023
    %v10027 = vadd.f32 %v10016, %v10023
    %v10028 = vadd.f32 %v10017, %v10023
    %v10029 = vadd.f32 %v10018, %v10023
    %v10030 = vadd.f32 %v10019, %v10023
    %v10031 = vadd.f32 %v10020, %v10023
    %v10032 = vadd.f32 %v10021, %v10023
    %s10033 = scalar_lea.vmem [#allocation4], 256
    %v10034 = vld [vmem:[%s10033] sm:$0xff]
    %v10035 = vld [vmem:[%s10033 + $0x8] sm:$0xff]
    %v10036 = vld [vmem:[%s10033 + $0x10] sm:$0xff]
    %v10037 = vld [vmem:[%s10033 + $0x18] sm:$0xff]
    %v10038 = vld [vmem:[%s10033 + $0x20] sm:$0xff]
    %v10039 = vld [vmem:[%s10033 + $0x28] sm:$0xff]
    %v10040 = vld [vmem:[%s10033 + $0x30] sm:$0xff]
    %v10041 = vld [vmem:[%s10033 + $0x38] sm:$0xff]
    %v10042 = vld [vmem:[%s10033 + $0x40] sm:$0xff]
    %v10043 = vld [vmem:[%s10033 + $0x48] sm:$0xff]
    %v10044 = vld [vmem:[%s10033 + $0x50] sm:$0xff]
    %v10045 = vld [vmem:[%s10033 + $0x58] sm:$0xff]
    %v10046 = vld [vmem:[%s10033 + $0x60] sm:$0xff]
    %v10047 = vld [vmem:[%s10033 + $0x68] sm:$0xff]
    %v10048 = vld [vmem:[%s10033 + $0x70] sm:$0xff]
    %v10049 = vld [vmem:[%s10033 + $0x78] sm:$0xff]
    %s10050 = scalar_lea.vmem %s9, 2
    %v10051 = vld [vmem:[%s10050] sm:$0x1]
    %v10053 = vperm.slane %v10051, 0
    %10055 = vmatpush.msra.mxu0 %v10049
    %10056 = vmatpush.msra.mxu0 %v10048
    %10057 = vmatpush.msra.mxu0 %v10047
    %10058 = vmatpush.msra.mxu0 %v10046
    %10059 = vmatpush.msra.mxu0 %v10045
    %10060 = vmatpush.msra.mxu0 %v10044
    %10061 = vmatpush.msra.mxu0 %v10043
    %10062 = vmatpush.msra.mxu0 %v10042
    %10063 = vmatpush.msra.mxu0 %v10041
    %10064 = vmatpush.msra.mxu0 %v10040
    %10065 = vmatpush.msra.mxu0 %v10039
    %10066 = vmatpush.msra.mxu0 %v10038
    %10067 = vmatpush.msra.mxu0 %v10037
    %10068 = vmatpush.msra.mxu0 %v10036
    %10069 = vmatpush.msra.mxu0 %v10035
    %10070 = vmatpush.msra.mxu0 %v10034
    %10071 = vmatmul.f32.gmra.mxu0 %v10025
    %v10072 = vpop.f32.mrf.mxu0
    %v10073 = vadd.f32 %v10053, %v10072
    %10074 = vmatmul.f32.gmra.mxu0 %v10026
    %v10075 = vpop.f32.mrf.mxu0
    %v10076 = vadd.f32 %v10053, %v10075
    %10077 = vmatmul.f32.gmra.mxu0 %v10027
    %v10078 = vpop.f32.mrf.mxu0
    %v10079 = vadd.f32 %v10053, %v10078
    %10080 = vmatmul.f32.gmra.mxu0 %v10028
    %v10081 = vpop.f32.mrf.mxu0
    %v10082 = vadd.f32 %v10053, %v10081
    %10083 = vmatmul.f32.gmra.mxu0 %v10029
    %v10084 = vpop.f32.mrf.mxu0
    %v10085 = vadd.f32 %v10053, %v10084
    %10086 = vmatmul.f32.gmra.mxu0 %v10030
    %v10087 = vpop.f32.mrf.mxu0
    %v10088 = vadd.f32 %v10053, %v10087
    %10089 = vmatmul.f32.gmra.mxu0 %v10031
    %v10090 = vpop.f32.mrf.mxu0
    %v10091 = vadd.f32 %v10053, %v10090
    %10092 = vmatmul.f32.gmra.mxu0 %v10032
    %v10093 = vpop.f32.mrf.mxu0
    %v10094 = vadd.f32 %v10053, %v10093
    %10095 = vdwg.mxu0
    %v10096 = vmul.f32 %v10073, 0.5
    %v10097 = vmul.f32 %v10076, 0.5
    %v10098 = vmul.f32 %v10079, 0.5
    %v10099 = vmul.f32 %v10082, 0.5
    %v10100 = vmul.f32 %v10085, 0.5
    %v10101 = vmul.f32 %v10088, 0.5
    %v10102 = vmul.f32 %v10091, 0.5
    %v10103 = vmul.f32 %v10094, 0.5
    %v10104 = vmul.f32 %v10073, 0.70710677
    %v10105 = vmul.f32 %v10076, 0.70710677
    %v10106 = vmul.f32 %v10079, 0.70710677
    %v10107 = vmul.f32 %v10082, 0.70710677
    %v10108 = vmul.f32 %v10085, 0.70710677
    %v10109 = vmul.f32 %v10088, 0.70710677
    %v10110 = vmul.f32 %v10091, 0.70710677
    %v10111 = vmul.f32 %v10094, 0.70710677
    %v10112 = vmul.f32 %v10104, %v10104
    %v10113 = vmin.f32 16.0, %v10112
    %v10114 = vmul.f32 %v10113, 2.1237322e-06
    %v10115 = vadd.f32 %v10114, 0.00028619796
    %v10116 = vmul.f32 %v10113, %v10115
    %v10117 = vadd.f32 %v10116, 0.0036580483
    %v10118 = vmul.f32 %v10113, %v10117
    %v10119 = vadd.f32 %v10118, 0.05243302
    %v10120 = vmul.f32 %v10113, %v10119
    %v10121 = vadd.f32 %v10120, 0.18741608
    %v10122 = vmul.f32 %v10113, %v10121
    %v10123 = vadd.f32 %v10122, 1.1283791
    %v10124 = vmul.f32 %v10104, %v10123
    %v10125 = vmul.f32 %v10113, 3.8918573e-05
    %v10126 = vadd.f32 %v10125, 0.001143296
    %v10127 = vmul.f32 %v10113, %v10126
    %v10128 = vadd.f32 %v10127, 0.014752088
    %v10129 = vmul.f32 %v10113, %v10128
    %v10130 = vadd.f32 %v10129, 0.112945676
    %v10131 = vmul.f32 %v10113, %v10130
    %v10132 = vadd.f32 %v10131, 0.4994258
    %v10133 = vmul.f32 %v10113, %v10132
    %v10134 = vadd.f32 %v10133, 1.0
    %v10135 = vrcp.pop %v10134
    %v10136 = vmul.f32 %v10134, %v10135
    %v10137 = vsub.f32 1.0, %v10136
    %v10138 = vmul.f32 %v10135, %v10137
    %v10139 = vadd.f32 %v10135, %v10138
    %vm10140 = vweird.f32 %v10134
    %vm10141 = vweird.f32 %v10135
    %vm10142 = vmor %vm10140, %vm10141
    %v10143 = vsel %vm10142, %v10135, %v10139
    %v10144 = vand.u32 2147483647, %v10134
    %vm10145 = vcmp.eq.f32.partialorder %v10144, 8.507059e+37
    %v10146 = vand.u32 %v10134, 2147483648
    %v10147 = vor.u32 1.1754944e-38, %v10146
    %v10148 = vsel %vm10145, %v10147, %v10143
    %v10149 = vmul.f32 %v10124, %v10148
    %v10150 = vmin.f32 %v10149, 1.0
    %v10151 = vmax.f32 %v10150, -1.0
    %v10152 = vmul.f32 %v10105, %v10105
    %v10153 = vmin.f32 16.0, %v10152
    %v10154 = vmul.f32 %v10153, 2.1237322e-06
    %v10155 = vadd.f32 %v10154, 0.00028619796
    %v10156 = vmul.f32 %v10153, %v10155
    %v10157 = vadd.f32 %v10156, 0.0036580483
    %v10158 = vmul.f32 %v10153, %v10157
    %v10159 = vadd.f32 %v10158, 0.05243302
    %v10160 = vmul.f32 %v10153, %v10159
    %v10161 = vadd.f32 %v10160, 0.18741608
    %v10162 = vmul.f32 %v10153, %v10161
    %v10163 = vadd.f32 %v10162, 1.1283791
    %v10164 = vmul.f32 %v10105, %v10163
    %v10165 = vmul.f32 %v10153, 3.8918573e-05
    %v10166 = vadd.f32 %v10165, 0.001143296
    %v10167 = vmul.f32 %v10153, %v10166
    %v10168 = vadd.f32 %v10167, 0.014752088
    %v10169 = vmul.f32 %v10153, %v10168
    %v10170 = vadd.f32 %v10169, 0.112945676
    %v10171 = vmul.f32 %v10153, %v10170
    %v10172 = vadd.f32 %v10171, 0.4994258
    %v10173 = vmul.f32 %v10153, %v10172
    %v10174 = vadd.f32 %v10173, 1.0
    %v10175 = vrcp.pop %v10174
    %v10176 = vmul.f32 %v10174, %v10175
    %v10177 = vsub.f32 1.0, %v10176
    %v10178 = vmul.f32 %v10175, %v10177
    %v10179 = vadd.f32 %v10175, %v10178
    %vm10180 = vweird.f32 %v10174
    %vm10181 = vweird.f32 %v10175
    %vm10182 = vmor %vm10180, %vm10181
    %v10183 = vsel %vm10182, %v10175, %v10179
    %v10184 = vand.u32 2147483647, %v10174
    %vm10185 = vcmp.eq.f32.partialorder %v10184, 8.507059e+37
    %v10186 = vand.u32 %v10174, 2147483648
    %v10187 = vor.u32 1.1754944e-38, %v10186
    %v10188 = vsel %vm10185, %v10187, %v10183
    %v10189 = vmul.f32 %v10164, %v10188
    %v10190 = vmin.f32 %v10189, 1.0
    %v10191 = vmax.f32 %v10190, -1.0
    %v10192 = vmul.f32 %v10106, %v10106
    %v10193 = vmin.f32 16.0, %v10192
    %v10194 = vmul.f32 %v10193, 2.1237322e-06
    %v10195 = vadd.f32 %v10194, 0.00028619796
    %v10196 = vmul.f32 %v10193, %v10195
    %v10197 = vadd.f32 %v10196, 0.0036580483
    %v10198 = vmul.f32 %v10193, %v10197
    %v10199 = vadd.f32 %v10198, 0.05243302
    %v10200 = vmul.f32 %v10193, %v10199
    %v10201 = vadd.f32 %v10200, 0.18741608
    %v10202 = vmul.f32 %v10193, %v10201
    %v10203 = vadd.f32 %v10202, 1.1283791
    %v10204 = vmul.f32 %v10106, %v10203
    %v10205 = vmul.f32 %v10193, 3.8918573e-05
    %v10206 = vadd.f32 %v10205, 0.001143296
    %v10207 = vmul.f32 %v10193, %v10206
    %v10208 = vadd.f32 %v10207, 0.014752088
    %v10209 = vmul.f32 %v10193, %v10208
    %v10210 = vadd.f32 %v10209, 0.112945676
    %v10211 = vmul.f32 %v10193, %v10210
    %v10212 = vadd.f32 %v10211, 0.4994258
    %v10213 = vmul.f32 %v10193, %v10212
    %v10214 = vadd.f32 %v10213, 1.0
    %v10215 = vrcp.pop %v10214
    %v10216 = vmul.f32 %v10214, %v10215
    %v10217 = vsub.f32 1.0, %v10216
    %v10218 = vmul.f32 %v10215, %v10217
    %v10219 = vadd.f32 %v10215, %v10218
    %vm10220 = vweird.f32 %v10214
    %vm10221 = vweird.f32 %v10215
    %vm10222 = vmor %vm10220, %vm10221
    %v10223 = vsel %vm10222, %v10215, %v10219
    %v10224 = vand.u32 2147483647, %v10214
    %vm10225 = vcmp.eq.f32.partialorder %v10224, 8.507059e+37
    %v10226 = vand.u32 %v10214, 2147483648
    %v10227 = vor.u32 1.1754944e-38, %v10226
    %v10228 = vsel %vm10225, %v10227, %v10223
    %v10229 = vmul.f32 %v10204, %v10228
    %v10230 = vmin.f32 %v10229, 1.0
    %v10231 = vmax.f32 %v10230, -1.0
    %v10232 = vmul.f32 %v10107, %v10107
    %v10233 = vmin.f32 16.0, %v10232
    %v10234 = vmul.f32 %v10233, 2.1237322e-06
    %v10235 = vadd.f32 %v10234, 0.00028619796
    %v10236 = vmul.f32 %v10233, %v10235
    %v10237 = vadd.f32 %v10236, 0.0036580483
    %v10238 = vmul.f32 %v10233, %v10237
    %v10239 = vadd.f32 %v10238, 0.05243302
    %v10240 = vmul.f32 %v10233, %v10239
    %v10241 = vadd.f32 %v10240, 0.18741608
    %v10242 = vmul.f32 %v10233, %v10241
    %v10243 = vadd.f32 %v10242, 1.1283791
    %v10244 = vmul.f32 %v10107, %v10243
    %v10245 = vmul.f32 %v10233, 3.8918573e-05
    %v10246 = vadd.f32 %v10245, 0.001143296
    %v10247 = vmul.f32 %v10233, %v10246
    %v10248 = vadd.f32 %v10247, 0.014752088
    %v10249 = vmul.f32 %v10233, %v10248
    %v10250 = vadd.f32 %v10249, 0.112945676
    %v10251 = vmul.f32 %v10233, %v10250
    %v10252 = vadd.f32 %v10251, 0.4994258
    %v10253 = vmul.f32 %v10233, %v10252
    %v10254 = vadd.f32 %v10253, 1.0
    %v10255 = vrcp.pop %v10254
    %v10256 = vmul.f32 %v10254, %v10255
    %v10257 = vsub.f32 1.0, %v10256
    %v10258 = vmul.f32 %v10255, %v10257
    %v10259 = vadd.f32 %v10255, %v10258
    %vm10260 = vweird.f32 %v10254
    %vm10261 = vweird.f32 %v10255
    %vm10262 = vmor %vm10260, %vm10261
    %v10263 = vsel %vm10262, %v10255, %v10259
    %v10264 = vand.u32 2147483647, %v10254
    %vm10265 = vcmp.eq.f32.partialorder %v10264, 8.507059e+37
    %v10266 = vand.u32 %v10254, 2147483648
    %v10267 = vor.u32 1.1754944e-38, %v10266
    %v10268 = vsel %vm10265, %v10267, %v10263
    %v10269 = vmul.f32 %v10244, %v10268
    %v10270 = vmin.f32 %v10269, 1.0
    %v10271 = vmax.f32 %v10270, -1.0
    %v10272 = vmul.f32 %v10108, %v10108
    %v10273 = vmin.f32 16.0, %v10272
    %v10274 = vmul.f32 %v10273, 2.1237322e-06
    %v10275 = vadd.f32 %v10274, 0.00028619796
    %v10276 = vmul.f32 %v10273, %v10275
    %v10277 = vadd.f32 %v10276, 0.0036580483
    %v10278 = vmul.f32 %v10273, %v10277
    %v10279 = vadd.f32 %v10278, 0.05243302
    %v10280 = vmul.f32 %v10273, %v10279
    %v10281 = vadd.f32 %v10280, 0.18741608
    %v10282 = vmul.f32 %v10273, %v10281
    %v10283 = vadd.f32 %v10282, 1.1283791
    %v10284 = vmul.f32 %v10108, %v10283
    %v10285 = vmul.f32 %v10273, 3.8918573e-05
    %v10286 = vadd.f32 %v10285, 0.001143296
    %v10287 = vmul.f32 %v10273, %v10286
    %v10288 = vadd.f32 %v10287, 0.014752088
    %v10289 = vmul.f32 %v10273, %v10288
    %v10290 = vadd.f32 %v10289, 0.112945676
    %v10291 = vmul.f32 %v10273, %v10290
    %v10292 = vadd.f32 %v10291, 0.4994258
    %v10293 = vmul.f32 %v10273, %v10292
    %v10294 = vadd.f32 %v10293, 1.0
    %v10295 = vrcp.pop %v10294
    %v10296 = vmul.f32 %v10294, %v10295
    %v10297 = vsub.f32 1.0, %v10296
    %v10298 = vmul.f32 %v10295, %v10297
    %v10299 = vadd.f32 %v10295, %v10298
    %vm10300 = vweird.f32 %v10294
    %vm10301 = vweird.f32 %v10295
    %vm10302 = vmor %vm10300, %vm10301
    %v10303 = vsel %vm10302, %v10295, %v10299
    %v10304 = vand.u32 2147483647, %v10294
    %vm10305 = vcmp.eq.f32.partialorder %v10304, 8.507059e+37
    %v10306 = vand.u32 %v10294, 2147483648
    %v10307 = vor.u32 1.1754944e-38, %v10306
    %v10308 = vsel %vm10305, %v10307, %v10303
    %v10309 = vmul.f32 %v10284, %v10308
    %v10310 = vmin.f32 %v10309, 1.0
    %v10311 = vmax.f32 %v10310, -1.0
    %v10312 = vmul.f32 %v10109, %v10109
    %v10313 = vmin.f32 16.0, %v10312
    %v10314 = vmul.f32 %v10313, 2.1237322e-06
    %v10315 = vadd.f32 %v10314, 0.00028619796
    %v10316 = vmul.f32 %v10313, %v10315
    %v10317 = vadd.f32 %v10316, 0.0036580483
    %v10318 = vmul.f32 %v10313, %v10317
    %v10319 = vadd.f32 %v10318, 0.05243302
    %v10320 = vmul.f32 %v10313, %v10319
    %v10321 = vadd.f32 %v10320, 0.18741608
    %v10322 = vmul.f32 %v10313, %v10321
    %v10323 = vadd.f32 %v10322, 1.1283791
    %v10324 = vmul.f32 %v10109, %v10323
    %v10325 = vmul.f32 %v10313, 3.8918573e-05
    %v10326 = vadd.f32 %v10325, 0.001143296
    %v10327 = vmul.f32 %v10313, %v10326
    %v10328 = vadd.f32 %v10327, 0.014752088
    %v10329 = vmul.f32 %v10313, %v10328
    %v10330 = vadd.f32 %v10329, 0.112945676
    %v10331 = vmul.f32 %v10313, %v10330
    %v10332 = vadd.f32 %v10331, 0.4994258
    %v10333 = vmul.f32 %v10313, %v10332
    %v10334 = vadd.f32 %v10333, 1.0
    %v10335 = vrcp.pop %v10334
    %v10336 = vmul.f32 %v10334, %v10335
    %v10337 = vsub.f32 1.0, %v10336
    %v10338 = vmul.f32 %v10335, %v10337
    %v10339 = vadd.f32 %v10335, %v10338
    %vm10340 = vweird.f32 %v10334
    %vm10341 = vweird.f32 %v10335
    %vm10342 = vmor %vm10340, %vm10341
    %v10343 = vsel %vm10342, %v10335, %v10339
    %v10344 = vand.u32 2147483647, %v10334
    %vm10345 = vcmp.eq.f32.partialorder %v10344, 8.507059e+37
    %v10346 = vand.u32 %v10334, 2147483648
    %v10347 = vor.u32 1.1754944e-38, %v10346
    %v10348 = vsel %vm10345, %v10347, %v10343
    %v10349 = vmul.f32 %v10324, %v10348
    %v10350 = vmin.f32 %v10349, 1.0
    %v10351 = vmax.f32 %v10350, -1.0
    %v10352 = vmul.f32 %v10110, %v10110
    %v10353 = vmin.f32 16.0, %v10352
    %v10354 = vmul.f32 %v10353, 2.1237322e-06
    %v10355 = vadd.f32 %v10354, 0.00028619796
    %v10356 = vmul.f32 %v10353, %v10355
    %v10357 = vadd.f32 %v10356, 0.0036580483
    %v10358 = vmul.f32 %v10353, %v10357
    %v10359 = vadd.f32 %v10358, 0.05243302
    %v10360 = vmul.f32 %v10353, %v10359
    %v10361 = vadd.f32 %v10360, 0.18741608
    %v10362 = vmul.f32 %v10353, %v10361
    %v10363 = vadd.f32 %v10362, 1.1283791
    %v10364 = vmul.f32 %v10110, %v10363
    %v10365 = vmul.f32 %v10353, 3.8918573e-05
    %v10366 = vadd.f32 %v10365, 0.001143296
    %v10367 = vmul.f32 %v10353, %v10366
    %v10368 = vadd.f32 %v10367, 0.014752088
    %v10369 = vmul.f32 %v10353, %v10368
    %v10370 = vadd.f32 %v10369, 0.112945676
    %v10371 = vmul.f32 %v10353, %v10370
    %v10372 = vadd.f32 %v10371, 0.4994258
    %v10373 = vmul.f32 %v10353, %v10372
    %v10374 = vadd.f32 %v10373, 1.0
    %v10375 = vrcp.pop %v10374
    %v10376 = vmul.f32 %v10374, %v10375
    %v10377 = vsub.f32 1.0, %v10376
    %v10378 = vmul.f32 %v10375, %v10377
    %v10379 = vadd.f32 %v10375, %v10378
    %vm10380 = vweird.f32 %v10374
    %vm10381 = vweird.f32 %v10375
    %vm10382 = vmor %vm10380, %vm10381
    %v10383 = vsel %vm10382, %v10375, %v10379
    %v10384 = vand.u32 2147483647, %v10374
    %vm10385 = vcmp.eq.f32.partialorder %v10384, 8.507059e+37
    %v10386 = vand.u32 %v10374, 2147483648
    %v10387 = vor.u32 1.1754944e-38, %v10386
    %v10388 = vsel %vm10385, %v10387, %v10383
    %v10389 = vmul.f32 %v10364, %v10388
    %v10390 = vmin.f32 %v10389, 1.0
    %v10391 = vmax.f32 %v10390, -1.0
    %v10392 = vmul.f32 %v10111, %v10111
    %v10393 = vmin.f32 16.0, %v10392
    %v10394 = vmul.f32 %v10393, 2.1237322e-06
    %v10395 = vadd.f32 %v10394, 0.00028619796
    %v10396 = vmul.f32 %v10393, %v10395
    %v10397 = vadd.f32 %v10396, 0.0036580483
    %v10398 = vmul.f32 %v10393, %v10397
    %v10399 = vadd.f32 %v10398, 0.05243302
    %v10400 = vmul.f32 %v10393, %v10399
    %v10401 = vadd.f32 %v10400, 0.18741608
    %v10402 = vmul.f32 %v10393, %v10401
    %v10403 = vadd.f32 %v10402, 1.1283791
    %v10404 = vmul.f32 %v10111, %v10403
    %v10405 = vmul.f32 %v10393, 3.8918573e-05
    %v10406 = vadd.f32 %v10405, 0.001143296
    %v10407 = vmul.f32 %v10393, %v10406
    %v10408 = vadd.f32 %v10407, 0.014752088
    %v10409 = vmul.f32 %v10393, %v10408
    %v10410 = vadd.f32 %v10409, 0.112945676
    %v10411 = vmul.f32 %v10393, %v10410
    %v10412 = vadd.f32 %v10411, 0.4994258
    %v10413 = vmul.f32 %v10393, %v10412
    %v10414 = vadd.f32 %v10413, 1.0
    %v10415 = vrcp.pop %v10414
    %v10416 = vmul.f32 %v10414, %v10415
    %v10417 = vsub.f32 1.0, %v10416
    %v10418 = vmul.f32 %v10415, %v10417
    %v10419 = vadd.f32 %v10415, %v10418
    %vm10420 = vweird.f32 %v10414
    %vm10421 = vweird.f32 %v10415
    %vm10422 = vmor %vm10420, %vm10421
    %v10423 = vsel %vm10422, %v10415, %v10419
    %v10424 = vand.u32 2147483647, %v10414
    %vm10425 = vcmp.eq.f32.partialorder %v10424, 8.507059e+37
    %v10426 = vand.u32 %v10414, 2147483648
    %v10427 = vor.u32 1.1754944e-38, %v10426
    %v10428 = vsel %vm10425, %v10427, %v10423
    %v10429 = vmul.f32 %v10404, %v10428
    %v10430 = vmin.f32 %v10429, 1.0
    %v10431 = vmax.f32 %v10430, -1.0
    %v10432 = vadd.f32 %v10151, 1.0
    %v10433 = vadd.f32 %v10191, 1.0
    %v10434 = vadd.f32 %v10231, 1.0
    %v10435 = vadd.f32 %v10271, 1.0
    %v10436 = vadd.f32 %v10311, 1.0
    %v10437 = vadd.f32 %v10351, 1.0
    %v10438 = vadd.f32 %v10391, 1.0
    %v10439 = vadd.f32 %v10431, 1.0
    %v10440 = vmul.f32 %v10096, %v10432
    %v10441 = vmul.f32 %v10097, %v10433
    %v10442 = vmul.f32 %v10098, %v10434
    %v10443 = vmul.f32 %v10099, %v10435
    %v10444 = vmul.f32 %v10100, %v10436
    %v10445 = vmul.f32 %v10101, %v10437
    %v10446 = vmul.f32 %v10102, %v10438
    %v10447 = vmul.f32 %v10103, %v10439
    %v10448 = vadd.f32 %v9823, %v10440
    %v10449 = vadd.f32 %v9824, %v10441
    %v10450 = vadd.f32 %v9825, %v10442
    %v10451 = vadd.f32 %v9826, %v10443
    %v10452 = vadd.f32 %v9827, %v10444
    %v10453 = vadd.f32 %v9828, %v10445
    %v10454 = vadd.f32 %v9829, %v10446
    %v10455 = vadd.f32 %v9830, %v10447
    %v10456 = vld [vmem:[#allocation6] sm:$0x1]
    %v10457 = vld [vmem:[#allocation7] sm:$0x1]
    %10458 = vadd.xlane.f32.xlu0 %v10448
    %v10459 = vpop.xlane.xlu0 %10458
    %10460 = vadd.xlane.f32.xlu0 %v10449
    %v10461 = vpop.xlane.xlu0 %10460
    %10462 = vadd.xlane.f32.xlu0 %v10450
    %v10463 = vpop.xlane.xlu0 %10462
    %10464 = vadd.xlane.f32.xlu0 %v10451
    %v10465 = vpop.xlane.xlu0 %10464
    %10466 = vadd.xlane.f32.xlu0 %v10452
    %v10467 = vpop.xlane.xlu0 %10466
    %10468 = vadd.xlane.f32.xlu0 %v10453
    %v10469 = vpop.xlane.xlu0 %10468
    %10470 = vadd.xlane.f32.xlu0 %v10454
    %v10471 = vpop.xlane.xlu0 %10470
    %10472 = vadd.xlane.f32.xlu0 %v10455
    %v10473 = vpop.xlane.xlu0 %10472
    %v10474 = vmul.f32 %v10448, %v10448
    %v10475 = vmul.f32 %v10449, %v10449
    %v10476 = vmul.f32 %v10450, %v10450
    %v10477 = vmul.f32 %v10451, %v10451
    %v10478 = vmul.f32 %v10452, %v10452
    %v10479 = vmul.f32 %v10453, %v10453
    %v10480 = vmul.f32 %v10454, %v10454
    %v10481 = vmul.f32 %v10455, %v10455
    %10482 = vadd.xlane.f32.xlu0 %v10474
    %v10483 = vpop.xlane.xlu0 %10482
    %10484 = vadd.xlane.f32.xlu0 %v10475
    %v10485 = vpop.xlane.xlu0 %10484
    %10486 = vadd.xlane.f32.xlu0 %v10476
    %v10487 = vpop.xlane.xlu0 %10486
    %10488 = vadd.xlane.f32.xlu0 %v10477
    %v10489 = vpop.xlane.xlu0 %10488
    %10490 = vadd.xlane.f32.xlu0 %v10478
    %v10491 = vpop.xlane.xlu0 %10490
    %10492 = vadd.xlane.f32.xlu0 %v10479
    %v10493 = vpop.xlane.xlu0 %10492
    %10494 = vadd.xlane.f32.xlu0 %v10480
    %v10495 = vpop.xlane.xlu0 %10494
    %10496 = vadd.xlane.f32.xlu0 %v10481
    %v10497 = vpop.xlane.xlu0 %10496
    %v10498 = vmul.f32 %v10459, 0.0078125
    %v10499 = vmul.f32 %v10461, 0.0078125
    %v10500 = vmul.f32 %v10463, 0.0078125
    %v10501 = vmul.f32 %v10465, 0.0078125
    %v10502 = vmul.f32 %v10467, 0.0078125
    %v10503 = vmul.f32 %v10469, 0.0078125
    %v10504 = vmul.f32 %v10471, 0.0078125
    %v10505 = vmul.f32 %v10473, 0.0078125
    %v10506 = vmul.f32 %v10483, 0.0078125
    %v10507 = vmul.f32 %v10485, 0.0078125
    %v10508 = vmul.f32 %v10487, 0.0078125
    %v10509 = vmul.f32 %v10489, 0.0078125
    %v10510 = vmul.f32 %v10491, 0.0078125
    %v10511 = vmul.f32 %v10493, 0.0078125
    %v10512 = vmul.f32 %v10495, 0.0078125
    %v10513 = vmul.f32 %v10497, 0.0078125
    %v10514 = vmul.f32 %v10498, %v10498
    %v10515 = vmul.f32 %v10499, %v10499
    %v10516 = vmul.f32 %v10500, %v10500
    %v10517 = vmul.f32 %v10501, %v10501
    %v10518 = vmul.f32 %v10502, %v10502
    %v10519 = vmul.f32 %v10503, %v10503
    %v10520 = vmul.f32 %v10504, %v10504
    %v10521 = vmul.f32 %v10505, %v10505
    %v10522 = vsub.f32 %v10506, %v10514
    %v10523 = vsub.f32 %v10507, %v10515
    %v10524 = vsub.f32 %v10508, %v10516
    %v10525 = vsub.f32 %v10509, %v10517
    %v10526 = vsub.f32 %v10510, %v10518
    %v10527 = vsub.f32 %v10511, %v10519
    %v10528 = vsub.f32 %v10512, %v10520
    %v10529 = vsub.f32 %v10513, %v10521
    %v10530 = vsub.f32 %v10448, %v10498
    %v10531 = vsub.f32 %v10449, %v10499
    %v10532 = vsub.f32 %v10450, %v10500
    %v10533 = vsub.f32 %v10451, %v10501
    %v10534 = vsub.f32 %v10452, %v10502
    %v10535 = vsub.f32 %v10453, %v10503
    %v10536 = vsub.f32 %v10454, %v10504
    %v10537 = vsub.f32 %v10455, %v10505
    %v10538 = vadd.f32 %v10522, 1e-05
    %v10539 = vadd.f32 %v10523, 1e-05
    %v10540 = vadd.f32 %v10524, 1e-05
    %v10541 = vadd.f32 %v10525, 1e-05
    %v10542 = vadd.f32 %v10526, 1e-05
    %v10543 = vadd.f32 %v10527, 1e-05
    %v10544 = vadd.f32 %v10528, 1e-05
    %v10545 = vadd.f32 %v10529, 1e-05
    %v10546 = vrsqrt.pop %v10538
    %v10547 = vmul.f32 %v10546, %v10538
    %v10548 = vmul.f32 %v10547, %v10546
    %v10549 = vmul.f32 0.5, %v10548
    %v10550 = vsub.f32 1.5, %v10549
    %v10551 = vmul.f32 %v10546, %v10550
    %vm10552 = vweird.f32 %v10538
    %vm10553 = vweird.f32 %v10546
    %vm10554 = vmor %vm10552, %vm10553
    %v10555 = vsel %vm10554, %v10546, %v10551
    %v10556 = vrsqrt.pop %v10539
    %v10557 = vmul.f32 %v10556, %v10539
    %v10558 = vmul.f32 %v10557, %v10556
    %v10559 = vmul.f32 0.5, %v10558
    %v10560 = vsub.f32 1.5, %v10559
    %v10561 = vmul.f32 %v10556, %v10560
    %vm10562 = vweird.f32 %v10539
    %vm10563 = vweird.f32 %v10556
    %vm10564 = vmor %vm10562, %vm10563
    %v10565 = vsel %vm10564, %v10556, %v10561
    %v10566 = vrsqrt.pop %v10540
    %v10567 = vmul.f32 %v10566, %v10540
    %v10568 = vmul.f32 %v10567, %v10566
    %v10569 = vmul.f32 0.5, %v10568
    %v10570 = vsub.f32 1.5, %v10569
    %v10571 = vmul.f32 %v10566, %v10570
    %vm10572 = vweird.f32 %v10540
    %vm10573 = vweird.f32 %v10566
    %vm10574 = vmor %vm10572, %vm10573
    %v10575 = vsel %vm10574, %v10566, %v10571
    %v10576 = vrsqrt.pop %v10541
    %v10577 = vmul.f32 %v10576, %v10541
    %v10578 = vmul.f32 %v10577, %v10576
    %v10579 = vmul.f32 0.5, %v10578
    %v10580 = vsub.f32 1.5, %v10579
    %v10581 = vmul.f32 %v10576, %v10580
    %vm10582 = vweird.f32 %v10541
    %vm10583 = vweird.f32 %v10576
    %vm10584 = vmor %vm10582, %vm10583
    %v10585 = vsel %vm10584, %v10576, %v10581
    %v10586 = vrsqrt.pop %v10542
    %v10587 = vmul.f32 %v10586, %v10542
    %v10588 = vmul.f32 %v10587, %v10586
    %v10589 = vmul.f32 0.5, %v10588
    %v10590 = vsub.f32 1.5, %v10589
    %v10591 = vmul.f32 %v10586, %v10590
    %vm10592 = vweird.f32 %v10542
    %vm10593 = vweird.f32 %v10586
    %vm10594 = vmor %vm10592, %vm10593
    %v10595 = vsel %vm10594, %v10586, %v10591
    %v10596 = vrsqrt.pop %v10543
    %v10597 = vmul.f32 %v10596, %v10543
    %v10598 = vmul.f32 %v10597, %v10596
    %v10599 = vmul.f32 0.5, %v10598
    %v10600 = vsub.f32 1.5, %v10599
    %v10601 = vmul.f32 %v10596, %v10600
    %vm10602 = vweird.f32 %v10543
    %vm10603 = vweird.f32 %v10596
    %vm10604 = vmor %vm10602, %vm10603
    %v10605 = vsel %vm10604, %v10596, %v10601
    %v10606 = vrsqrt.pop %v10544
    %v10607 = vmul.f32 %v10606, %v10544
    %v10608 = vmul.f32 %v10607, %v10606
    %v10609 = vmul.f32 0.5, %v10608
    %v10610 = vsub.f32 1.5, %v10609
    %v10611 = vmul.f32 %v10606, %v10610
    %vm10612 = vweird.f32 %v10544
    %vm10613 = vweird.f32 %v10606
    %vm10614 = vmor %vm10612, %vm10613
    %v10615 = vsel %vm10614, %v10606, %v10611
    %v10616 = vrsqrt.pop %v10545
    %v10617 = vmul.f32 %v10616, %v10545
    %v10618 = vmul.f32 %v10617, %v10616
    %v10619 = vmul.f32 0.5, %v10618
    %v10620 = vsub.f32 1.5, %v10619
    %v10621 = vmul.f32 %v10616, %v10620
    %vm10622 = vweird.f32 %v10545
    %vm10623 = vweird.f32 %v10616
    %vm10624 = vmor %vm10622, %vm10623
    %v10625 = vsel %vm10624, %v10616, %v10621
    %v10626 = vmul.f32 %v10530, %v10555
    %v10627 = vmul.f32 %v10531, %v10565
    %v10628 = vmul.f32 %v10532, %v10575
    %v10629 = vmul.f32 %v10533, %v10585
    %v10630 = vmul.f32 %v10534, %v10595
    %v10631 = vmul.f32 %v10535, %v10605
    %v10632 = vmul.f32 %v10536, %v10615
    %v10633 = vmul.f32 %v10537, %v10625
    %v10635 = vperm.slane %v10456, 0
    %v10637 = vmul.f32 %v10626, %v10635
    %v10638 = vmul.f32 %v10627, %v10635
    %v10639 = vmul.f32 %v10628, %v10635
    %v10640 = vmul.f32 %v10629, %v10635
    %v10641 = vmul.f32 %v10630, %v10635
    %v10642 = vmul.f32 %v10631, %v10635
    %v10643 = vmul.f32 %v10632, %v10635
    %v10644 = vmul.f32 %v10633, %v10635
    %v10646 = vperm.slane %v10457, 0
    %v10648 = vadd.f32 %v10637, %v10646
    %v10649 = vadd.f32 %v10638, %v10646
    %v10650 = vadd.f32 %v10639, %v10646
    %v10651 = vadd.f32 %v10640, %v10646
    %v10652 = vadd.f32 %v10641, %v10646
    %v10653 = vadd.f32 %v10642, %v10646
    %v10654 = vadd.f32 %v10643, %v10646
    %v10655 = vadd.f32 %v10644, %v10646
    %v10656 = vld [vmem:[#allocation9] sm:$0xff]
    %v10657 = vld [vmem:[#allocation9 + $0x8] sm:$0xff]
    %v10658 = vld [vmem:[#allocation9 + $0x10] sm:$0xff]
    %v10659 = vld [vmem:[#allocation9 + $0x18] sm:$0xff]
    %v10660 = vld [vmem:[#allocation9 + $0x20] sm:$0xff]
    %v10661 = vld [vmem:[#allocation9 + $0x28] sm:$0xff]
    %v10662 = vld [vmem:[#allocation9 + $0x30] sm:$0xff]
    %v10663 = vld [vmem:[#allocation9 + $0x38] sm:$0xff]
    %v10664 = vld [vmem:[#allocation9 + $0x40] sm:$0xff]
    %v10665 = vld [vmem:[#allocation9 + $0x48] sm:$0xff]
    %v10666 = vld [vmem:[#allocation9 + $0x50] sm:$0xff]
    %v10667 = vld [vmem:[#allocation9 + $0x58] sm:$0xff]
    %v10668 = vld [vmem:[#allocation9 + $0x60] sm:$0xff]
    %v10669 = vld [vmem:[#allocation9 + $0x68] sm:$0xff]
    %v10670 = vld [vmem:[#allocation9 + $0x70] sm:$0xff]
    %v10671 = vld [vmem:[#allocation9 + $0x78] sm:$0xff]
    %v10672 = vld [vmem:[#allocation10] sm:$0x1]
    %v10674 = vperm.slane %v10672, 0
    %10676 = vmatpush.msra.mxu0 %v10671
    %10677 = vmatpush.msra.mxu0 %v10670
    %10678 = vmatpush.msra.mxu0 %v10669
    %10679 = vmatpush.msra.mxu0 %v10668
    %10680 = vmatpush.msra.mxu0 %v10667
    %10681 = vmatpush.msra.mxu0 %v10666
    %10682 = vmatpush.msra.mxu0 %v10665
    %10683 = vmatpush.msra.mxu0 %v10664
    %10684 = vmatpush.msra.mxu0 %v10663
    %10685 = vmatpush.msra.mxu0 %v10662
    %10686 = vmatpush.msra.mxu0 %v10661
    %10687 = vmatpush.msra.mxu0 %v10660
    %10688 = vmatpush.msra.mxu0 %v10659
    %10689 = vmatpush.msra.mxu0 %v10658
    %10690 = vmatpush.msra.mxu0 %v10657
    %10691 = vmatpush.msra.mxu0 %v10656
    %10692 = vmatmul.f32.gmra.mxu0 %v10648
    %v10693 = vpop.f32.mrf.mxu0
    %v10694 = vadd.f32 %v10674, %v10693
    %10695 = vmatmul.f32.gmra.mxu0 %v10649
    %v10696 = vpop.f32.mrf.mxu0
    %v10697 = vadd.f32 %v10674, %v10696
    %10698 = vmatmul.f32.gmra.mxu0 %v10650
    %v10699 = vpop.f32.mrf.mxu0
    %v10700 = vadd.f32 %v10674, %v10699
    %10701 = vmatmul.f32.gmra.mxu0 %v10651
    %v10702 = vpop.f32.mrf.mxu0
    %v10703 = vadd.f32 %v10674, %v10702
    %10704 = vmatmul.f32.gmra.mxu0 %v10652
    %v10705 = vpop.f32.mrf.mxu0
    %v10706 = vadd.f32 %v10674, %v10705
    %10707 = vmatmul.f32.gmra.mxu0 %v10653
    %v10708 = vpop.f32.mrf.mxu0
    %v10709 = vadd.f32 %v10674, %v10708
    %10710 = vmatmul.f32.gmra.mxu0 %v10654
    %v10711 = vpop.f32.mrf.mxu0
    %v10712 = vadd.f32 %v10674, %v10711
    %10713 = vmatmul.f32.gmra.mxu0 %v10655
    %v10714 = vpop.f32.mrf.mxu0
    %v10715 = vadd.f32 %v10674, %v10714
    %10716 = vdwg.mxu0
    %10717 = vst [vmem:[%s14] sm:$0xff] %v10694
    %10718 = vst [vmem:[%s14 + $0x8] sm:$0xff] %v10697
    %10719 = vst [vmem:[%s14 + $0x10] sm:$0xff] %v10700
    %10720 = vst [vmem:[%s14 + $0x18] sm:$0xff] %v10703
    %10721 = vst [vmem:[%s14 + $0x20] sm:$0xff] %v10706
    %10722 = vst [vmem:[%s14 + $0x28] sm:$0xff] %v10709
    %10723 = vst [vmem:[%s14 + $0x30] sm:$0xff] %v10712
    %10724 = vst [vmem:[%s14 + $0x38] sm:$0xff] %v10715
    // Predicated region
    $region82: #{model_forward.1} parent=1 // pred_check
      _
    $region83: #{model_forward.1} parent=1 // pred_check_branch
      %10726 = sbr.rel (0) target = $region85
    $region84: #{model_forward.1} parent=1 // pred_region
      _
    $region85: #{model_forward.1} parent=1 // pred_fallthru
      _
    // Predicated region
    $region86: #{model_forward.1} parent=1 // pred_check
      _
    $region87: #{model_forward.1} parent=1 // pred_check_branch
      %10728 = sbr.rel (0) target = $region89
    $region88: #{model_forward.1} parent=1 // pred_region
      _
    $region89: #{model_forward.1} parent=1 // pred_fallthru
      _
    %10729 = vsyncpa [#allocation3], 1
    %10730 = vsyncpa [#allocation5], 1
    %10731 = vsyncpa [#allocation8], 1
    %10732 = vsyncpa [#allocation11], 1

</llo_original>
